<compile_context>
chip_gen: v6e
topology: v6e:2x2x1
jax: 0.10.0
libtpu: 0.0.40
codegen_flags: <defaults>
</compile_context>

<pallas_src>
import functools
import math

import jax
import jax.numpy as jnp
from jax.experimental import pallas as pl

# ----------------------------- configuration -----------------------------
D = 32           # hidden dim
NH = 4           # attention heads
DH = D // NH     # head dim
MLP = 64         # MLP hidden dim
PATCH = 4        # ViT patch size
V = 16           # n_tokens (vocab size)
PAD_IDX = 0
MASK_IDX = 1
L_SENT = 8       # sentence length


# ----------------------------- in-kernel building blocks -----------------------------
def _layernorm(x, g_ref, b_ref):
    mu = jnp.mean(x, axis=-1, keepdims=True)
    var = jnp.mean(jnp.square(x - mu), axis=-1, keepdims=True)
    return (x - mu) * jax.lax.rsqrt(var + 1e-5) * g_ref[...] + b_ref[...]


def _linear(x, w_ref, b_ref):
    return jnp.dot(x, w_ref[...], preferred_element_type=jnp.float32) + b_ref[...]


def _gelu(x):
    # TODO(synk): PyTorch nn.GELU() default is the exact erf form; tanh approx used here.
    return jax.nn.gelu(x, approximate=True)


def _attention(xq, xkv, p, key_bias, B):
    """Multi-head attention, fully in-kernel.

    xq: (B*L, D), xkv: (B*S, D), key_bias: (B, 1, S) additive bias or None.
    p: dict of refs {wqkv (D,3D), bqkv (1,3D), wo (D,D), bo (1,D)}.
    Returns (B*L, D).
    """
    L = xq.shape[0] // B
    S = xkv.shape[0] // B

    if xq is xkv:
        # self-attention: one fused (M, D) x (D, 3D) matmul
        qkv = jnp.dot(xq, p["wqkv"][...], preferred_element_type=jnp.float32) + p["bqkv"][...]
        q, k, v = qkv[:, :D], qkv[:, D:2 * D], qkv[:, 2 * D:]
    else:
        # cross-attention: queries / keys+values come from different sources
        q = jnp.dot(xq, p["wqkv"][:, :D], preferred_element_type=jnp.float32) + p["bqkv"][:, :D]
        kv = jnp.dot(xkv, p["wqkv"][:, D:], preferred_element_type=jnp.float32) + p["bqkv"][:, D:]
        k, v = kv[:, :D], kv[:, D:]

    scale = 1.0 / math.sqrt(DH)
    out = None
    for h in range(NH):  # NH = 4, statically unrolled; head split + merge in-kernel
        sl = slice(h * DH, (h + 1) * DH)
        qh = q[:, sl].reshape(B, L, DH)
        kh = k[:, sl].reshape(B, S, DH)
        vh = v[:, sl].reshape(B, S, DH)

        s = jnp.einsum("bld,bsd->bls", qh, kh, preferred_element_type=jnp.float32) * scale
        if key_bias is not None:
            s = s + key_bias                                   # (B, 1, S) broadcast over queries
        m = jnp.max(s, axis=-1, keepdims=True)
        e = jnp.exp(s - m)
        denom = jnp.sum(e, axis=-1, keepdims=True)
        oh = jnp.einsum("bls,bsd->bld", e, vh, preferred_element_type=jnp.float32)
        oh = oh * pl.reciprocal(denom, approx=True)            # divide after PV matmul (EUP)

        # merge heads by accumulating into the output projection:
        # o @ Wo == sum_h o_h @ Wo[h*DH:(h+1)*DH, :]
        contrib = jnp.dot(oh.reshape(B * L, DH), p["wo"][sl, :],
                          preferred_element_type=jnp.float32)
        out = contrib if out is None else out + contrib
    return out + p["bo"][...]


# ----------------------------- the fused forward kernel -----------------------------
def _fused_forward_kernel(*refs, treedef, B, nP, L):
    patches_ref, sent_ref, sent_col_ref = refs[0], refs[1], refs[2]
    out_ref = refs[-1]
    p = jax.tree_util.tree_unflatten(treedef, refs[3:-1])
    pe, pd = p["enc"], p["dec"]

    # ---------- encoder: patch-embed (conv-as-matmul) + one pre-LN transformer block ----------
    x = _linear(patches_ref[...], pe["w_patch"], pe["b_patch"])            # (B*nP, D)
    x = (x.reshape(B, nP, D) + pe["pos"][...][None]).reshape(B * nP, D)

    h = _layernorm(x, pe["ln1_g"], pe["ln1_b"])
    x = x + _attention(h, h, pe["attn"], None, B)                          # no bias tensor needed
    h = _layernorm(x, pe["ln2_g"], pe["ln2_b"])
    h = _gelu(_linear(h, pe["w1"], pe["b1"]))
    h = _linear(h, pe["w2"], pe["b2"])
    img_embs = x + h                                                       # (B*nP, D)

    # ---------- decoder ----------
    sent = sent_ref[...]                                                   # (B, L) int32
    sent_col = sent_col_ref[...]                                           # (B*L, 1) int32

    # token embedding via in-kernel one-hot (iota compare) + (V, D) table matmul
    onehot = (sent_col == jax.lax.broadcasted_iota(jnp.int32, (B * L, V), 1)).astype(jnp.float32)
    x = _linear(onehot, pd["w_emb"], pd["b_emb"])                          # (B*L, D)
    x = (x.reshape(B, L, D) + pd["pos"][...][None]).reshape(B * L, D)

    # additive pad-key bias built in-kernel (tokenizer.idxs2is_pad_mask)
    pad_bias = jnp.where(sent == PAD_IDX, -1e9, 0.0).astype(jnp.float32)[:, None, :]  # (B,1,L)

    # self-attention over the sentence (pad tokens masked out as keys)
    h = _layernorm(x, pd["ln1_g"], pd["ln1_b"])
    x = x + _attention(h, h, pd["self_attn"], pad_bias, B)

    # cross-attention onto the image embeddings
    h = _layernorm(x, pd["ln2_g"], pd["ln2_b"])
    x = x + _attention(h, img_embs, pd["cross_attn"], None, B)

    # MLP
    h = _layernorm(x, pd["ln3_g"], pd["ln3_b"])
    h = _gelu(_linear(h, pd["w1"], pd["b1"]))
    h = _linear(h, pd["w2"], pd["b2"])
    x = x + h

    # pool over masked positions (tokenizer.idxs2is_masked_mask) + classification head
    h = _layernorm(x, pd["ln_out_g"], pd["ln_out_b"])                      # (B*L, D)
    m = (sent_col == MASK_IDX).astype(jnp.float32)                         # (B*L, 1)
    pooled = jnp.sum((h * m).reshape(B, L, D), axis=1)                     # (B, D)
    cnt = jnp.maximum(jnp.sum(m.reshape(B, L, 1), axis=1), 1.0)            # (B, 1)
    pooled = pooled / cnt
    out_ref[...] = _linear(pooled, pd["w_head"], pd["b_head"])             # (B, n_tokens)


# ----------------------------- wrapper -----------------------------
def vit_cls_tree_forward(params, sent, img):
    """ViTCLSTree.forward: sent (B, L) int32 ids, img (B, 3, H, W) NCHW -> (B, n_tokens)."""
    B, C, H, W = img.shape
    ph, pw = H // PATCH, W // PATCH
    nP = ph * pw
    L = sent.shape[1]

    # NCHW -> (B*nP, C*PATCH*PATCH): Conv2d(kernel=PATCH, stride=PATCH) as a matmul (layout only)
    patches = img.reshape(B, C, ph, PATCH, pw, PATCH)
    patches = patches.transpose(0, 2, 4, 1, 3, 5).reshape(B * nP, C * PATCH * PATCH)
    sent_col = sent.reshape(B * L, 1)          # lane-friendly layout for embedding / pooling

    leaves, treedef = jax.tree_util.tree_flatten(params)
    kernel = functools.partial(_fused_forward_kernel, treedef=treedef, B=B, nP=nP, L=L)

    # Single ungridded pallas_call: whole-array VMEM blocks for every input,
    # everything (weights + activations) stays on-chip for the full forward.
    return pl.pallas_call(
        kernel,
        out_shape=jax.ShapeDtypeStruct((B, V), jnp.float32),
    )(patches, sent, sent_col, *leaves)


# ----------------------------- parameter init -----------------------------
def _attn_params(key):
    k1, k2 = jax.random.split(key)
    return dict(
        wqkv=0.02 * jax.random.normal(k1, (D, 3 * D), jnp.float32),   # fused Q/K/V weight
        bqkv=jnp.zeros((1, 3 * D), jnp.float32),
        wo=0.02 * jax.random.normal(k2, (D, D), jnp.float32),
        bo=jnp.zeros((1, D), jnp.float32),
    )


def init_params(key, n_patches):
    ke, kd = jax.random.split(key)
    ke = jax.random.split(ke, 8)
    kd = jax.random.split(kd, 10)
    z = lambda n: jnp.zeros((1, n), jnp.float32)
    o = lambda n: jnp.ones((1, n), jnp.float32)
    enc = dict(
        w_patch=0.02 * jax.random.normal(ke[0], (3 * PATCH * PATCH, D), jnp.float32),
        b_patch=z(D),
        pos=0.02 * jax.random.normal(ke[1], (n_patches, D), jnp.float32),
        ln1_g=o(D), ln1_b=z(D),
        attn=_attn_params(ke[2]),
        ln2_g=o(D), ln2_b=z(D),
        w1=0.02 * jax.random.normal(ke[3], (D, MLP), jnp.float32),
        b1=z(MLP),
        w2=0.02 * jax.random.normal(ke[4], (MLP, D), jnp.float32),
        b2=z(D),
    )
    dec = dict(
        w_emb=0.02 * jax.random.normal(kd[0], (V, D), jnp.float32),
        b_emb=z(D),
        pos=0.02 * jax.random.normal(kd[1], (L_SENT, D), jnp.float32),
        ln1_g=o(D), ln1_b=z(D),
        self_attn=_attn_params(kd[2]),
        ln2_g=o(D), ln2_b=z(D),
        cross_attn=_attn_params(kd[3]),
        ln3_g=o(D), ln3_b=z(D),
        w1=0.02 * jax.random.normal(kd[4], (D, MLP), jnp.float32),
        b1=z(MLP),
        w2=0.02 * jax.random.normal(kd[5], (MLP, D), jnp.float32),
        b2=z(D),
        ln_out_g=o(D), ln_out_b=z(D),
        w_head=0.02 * jax.random.normal(kd[6], (D, V), jnp.float32),
        b_head=z(V),
    )
    return dict(enc=enc, dec=dec)


# ----------------------------- main -----------------------------
if __name__ == "__main__":
    B, H, W = 2, 16, 16
    key = jax.random.PRNGKey(0)
    k_img, _ = jax.random.split(key)
    img = jax.random.normal(k_img, (B, 3, H, W), jnp.float32)
    sent = jnp.array(
        [
            [2, MASK_IDX, 5, 7, MASK_IDX, PAD_IDX, PAD_IDX, PAD_IDX],
            [MASK_IDX, 3, 4, 9, 11, 6, MASK_IDX, PAD_IDX],
        ],
        jnp.int32,
    )
    params = init_params(jax.random.PRNGKey(42), n_patches=(H // PATCH) * (W // PATCH))

    pred = jax.jit(vit_cls_tree_forward)(params, sent, img)
    pred = jax.block_until_ready(pred)
    assert pred.shape == (B, V) and pred.dtype == jnp.float32
    assert bool(jnp.all(jnp.isfinite(pred)))
    print("KERNEL_OK")
</pallas_src>

<mosaic_0001>
module attributes {stable_mosaic.version = 11 : i64} {
  func.func @_fused_forward_kernel(%arg0: memref<32x48xf32, #tpu.memory_space<vmem>>, %arg1: memref<2x8xi32, #tpu.memory_space<vmem>>, %arg2: memref<16x1xi32, #tpu.memory_space<vmem>>, %arg3: memref<1x64xf32, #tpu.memory_space<vmem>>, %arg4: memref<1x32xf32, #tpu.memory_space<vmem>>, %arg5: memref<1x32xf32, #tpu.memory_space<vmem>>, %arg6: memref<1x16xf32, #tpu.memory_space<vmem>>, %arg7: memref<1x32xf32, #tpu.memory_space<vmem>>, %arg8: memref<1x96xf32, #tpu.memory_space<vmem>>, %arg9: memref<32x32xf32, #tpu.memory_space<vmem>>, %arg10: memref<32x96xf32, #tpu.memory_space<vmem>>, %arg11: memref<1x32xf32, #tpu.memory_space<vmem>>, %arg12: memref<1x32xf32, #tpu.memory_space<vmem>>, %arg13: memref<1x32xf32, #tpu.memory_space<vmem>>, %arg14: memref<1x32xf32, #tpu.memory_space<vmem>>, %arg15: memref<1x32xf32, #tpu.memory_space<vmem>>, %arg16: memref<1x32xf32, #tpu.memory_space<vmem>>, %arg17: memref<1x32xf32, #tpu.memory_space<vmem>>, %arg18: memref<1x32xf32, #tpu.memory_space<vmem>>, %arg19: memref<8x32xf32, #tpu.memory_space<vmem>>, %arg20: memref<1x32xf32, #tpu.memory_space<vmem>>, %arg21: memref<1x96xf32, #tpu.memory_space<vmem>>, %arg22: memref<32x32xf32, #tpu.memory_space<vmem>>, %arg23: memref<32x96xf32, #tpu.memory_space<vmem>>, %arg24: memref<32x64xf32, #tpu.memory_space<vmem>>, %arg25: memref<64x32xf32, #tpu.memory_space<vmem>>, %arg26: memref<16x32xf32, #tpu.memory_space<vmem>>, %arg27: memref<32x16xf32, #tpu.memory_space<vmem>>, %arg28: memref<1x32xf32, #tpu.memory_space<vmem>>, %arg29: memref<1x96xf32, #tpu.memory_space<vmem>>, %arg30: memref<32x32xf32, #tpu.memory_space<vmem>>, %arg31: memref<32x96xf32, #tpu.memory_space<vmem>>, %arg32: memref<1x64xf32, #tpu.memory_space<vmem>>, %arg33: memref<1x32xf32, #tpu.memory_space<vmem>>, %arg34: memref<1x32xf32, #tpu.memory_space<vmem>>, %arg35: memref<1x32xf32, #tpu.memory_space<vmem>>, %arg36: memref<1x32xf32, #tpu.memory_space<vmem>>, %arg37: memref<1x32xf32, #tpu.memory_space<vmem>>, %arg38: memref<1x32xf32, #tpu.memory_space<vmem>>, %arg39: memref<16x32xf32, #tpu.memory_space<vmem>>, %arg40: memref<32x64xf32, #tpu.memory_space<vmem>>, %arg41: memref<64x32xf32, #tpu.memory_space<vmem>>, %arg42: memref<48x32xf32, #tpu.memory_space<vmem>>, %arg43: memref<2x16xf32, #tpu.memory_space<vmem>>) attributes {dimension_semantics = [], scalar_prefetch = 0 : i64, scratch_operands = 0 : i64, tpu.core_type = #tpu.core_type<tc>} {
    %c0 = arith.constant 0 : index
    %c0_0 = arith.constant 0 : index
    %0 = vector.load %arg0[%c0, %c0_0] : memref<32x48xf32, #tpu.memory_space<vmem>>, vector<32x48xf32>
    %c0_1 = arith.constant 0 : index
    %c0_2 = arith.constant 0 : index
    %1 = vector.load %arg42[%c0_1, %c0_2] : memref<48x32xf32, #tpu.memory_space<vmem>>, vector<48x32xf32>
    %cst = arith.constant dense<0.000000e+00> : vector<32x32xf32>
    %2 = tpu.matmul %0, %1, %cst {dimension_numbers = #tpu.dot_dimension_numbers<[1], [0], [0], [1], [0, 0, 1, 1], [], []>} : vector<32x48xf32>, vector<48x32xf32>, vector<32x32xf32> -> vector<32x32xf32>
    %c0_3 = arith.constant 0 : index
    %c0_4 = arith.constant 0 : index
    %3 = vector.load %arg34[%c0_3, %c0_4] : memref<1x32xf32, #tpu.memory_space<vmem>>, vector<1x32xf32>
    %4 = vector.broadcast %3 : vector<1x32xf32> to vector<32x32xf32>
    %5 = arith.addf %2, %4 : vector<32x32xf32>
    %6 = vector.shape_cast %5 : vector<32x32xf32> to vector<2x16x32xf32>
    %c0_5 = arith.constant 0 : index
    %c0_6 = arith.constant 0 : index
    %7 = vector.load %arg39[%c0_5, %c0_6] : memref<16x32xf32, #tpu.memory_space<vmem>>, vector<16x32xf32>
    %8 = vector.shape_cast %7 : vector<16x32xf32> to vector<1x16x32xf32>
    %9 = vector.broadcast %8 : vector<1x16x32xf32> to vector<2x16x32xf32>
    %10 = arith.addf %6, %9 : vector<2x16x32xf32>
    %11 = vector.shape_cast %10 : vector<2x16x32xf32> to vector<32x32xf32>
    %cst_7 = arith.constant dense<0.000000e+00> : vector<32xf32>
    %12 = vector.multi_reduction <add>, %11, %cst_7 [1] : vector<32x32xf32> to vector<32xf32>
    %13 = vector.shape_cast %12 : vector<32xf32> to vector<32x1xf32>
    %cst_8 = arith.constant 3.200000e+01 : f32
    %14 = vector.broadcast %cst_8 : f32 to vector<32x1xf32>
    %15 = arith.divf %13, %14 : vector<32x1xf32>
    %16 = vector.broadcast %15 : vector<32x1xf32> to vector<32x32xf32>
    %17 = arith.subf %11, %16 : vector<32x32xf32>
    %18 = arith.mulf %17, %17 : vector<32x32xf32>
    %cst_9 = arith.constant dense<0.000000e+00> : vector<32xf32>
    %19 = vector.multi_reduction <add>, %18, %cst_9 [1] : vector<32x32xf32> to vector<32xf32>
    %20 = vector.shape_cast %19 : vector<32xf32> to vector<32x1xf32>
    %cst_10 = arith.constant 3.200000e+01 : f32
    %21 = vector.broadcast %cst_10 : f32 to vector<32x1xf32>
    %22 = arith.divf %20, %21 : vector<32x1xf32>
    %23 = vector.broadcast %15 : vector<32x1xf32> to vector<32x32xf32>
    %24 = arith.subf %11, %23 : vector<32x32xf32>
    %cst_11 = arith.constant 9.99999974E-6 : f32
    %25 = vector.broadcast %cst_11 : f32 to vector<32x1xf32>
    %26 = arith.addf %22, %25 : vector<32x1xf32>
    %27 = math.rsqrt %26 : vector<32x1xf32>
    %28 = vector.broadcast %27 : vector<32x1xf32> to vector<32x32xf32>
    %29 = arith.mulf %24, %28 : vector<32x32xf32>
    %c0_12 = arith.constant 0 : index
    %c0_13 = arith.constant 0 : index
    %30 = vector.load %arg36[%c0_12, %c0_13] : memref<1x32xf32, #tpu.memory_space<vmem>>, vector<1x32xf32>
    %31 = vector.broadcast %30 : vector<1x32xf32> to vector<32x32xf32>
    %32 = arith.mulf %29, %31 : vector<32x32xf32>
    %c0_14 = arith.constant 0 : index
    %c0_15 = arith.constant 0 : index
    %33 = vector.load %arg35[%c0_14, %c0_15] : memref<1x32xf32, #tpu.memory_space<vmem>>, vector<1x32xf32>
    %34 = vector.broadcast %33 : vector<1x32xf32> to vector<32x32xf32>
    %35 = arith.addf %32, %34 : vector<32x32xf32>
    %c0_16 = arith.constant 0 : index
    %c0_17 = arith.constant 0 : index
    %36 = vector.load %arg31[%c0_16, %c0_17] : memref<32x96xf32, #tpu.memory_space<vmem>>, vector<32x96xf32>
    %cst_18 = arith.constant dense<0.000000e+00> : vector<32x96xf32>
    %37 = tpu.matmul %35, %36, %cst_18 {dimension_numbers = #tpu.dot_dimension_numbers<[1], [0], [0], [1], [0, 0, 1, 1], [], []>} : vector<32x32xf32>, vector<32x96xf32>, vector<32x96xf32> -> vector<32x96xf32>
    %c0_19 = arith.constant 0 : index
    %c0_20 = arith.constant 0 : index
    %38 = vector.load %arg29[%c0_19, %c0_20] : memref<1x96xf32, #tpu.memory_space<vmem>>, vector<1x96xf32>
    %39 = vector.broadcast %38 : vector<1x96xf32> to vector<32x96xf32>
    %40 = arith.addf %37, %39 : vector<32x96xf32>
    %41 = vector.extract_strided_slice %40 {offsets = [0, 0], sizes = [32, 32], strides = [1, 1]} : vector<32x96xf32> to vector<32x32xf32>
    %42 = vector.extract_strided_slice %40 {offsets = [0, 32], sizes = [32, 32], strides = [1, 1]} : vector<32x96xf32> to vector<32x32xf32>
    %43 = vector.extract_strided_slice %40 {offsets = [0, 64], sizes = [32, 32], strides = [1, 1]} : vector<32x96xf32> to vector<32x32xf32>
    %44 = vector.extract_strided_slice %41 {offsets = [0, 0], sizes = [32, 8], strides = [1, 1]} : vector<32x32xf32> to vector<32x8xf32>
    %45 = vector.shape_cast %44 : vector<32x8xf32> to vector<2x16x8xf32>
    %46 = vector.extract_strided_slice %42 {offsets = [0, 0], sizes = [32, 8], strides = [1, 1]} : vector<32x32xf32> to vector<32x8xf32>
    %47 = vector.shape_cast %46 : vector<32x8xf32> to vector<2x16x8xf32>
    %48 = vector.extract_strided_slice %43 {offsets = [0, 0], sizes = [32, 8], strides = [1, 1]} : vector<32x32xf32> to vector<32x8xf32>
    %49 = vector.shape_cast %48 : vector<32x8xf32> to vector<2x16x8xf32>
    "tpu.trace_start"() <{level = 10 : i32, message = "bld,bsd->bls"}> : () -> ()
    %cst_21 = arith.constant dense<0.000000e+00> : vector<2x16x16xf32>
    %50 = tpu.matmul %45, %47, %cst_21 {dimension_numbers = #tpu.dot_dimension_numbers<[2], [2], [1], [1], [0, 0, 0, 1, 1, 1], [0], [0]>} : vector<2x16x8xf32>, vector<2x16x8xf32>, vector<2x16x16xf32> -> vector<2x16x16xf32>
    "tpu.trace_stop"() : () -> ()
    %cst_22 = arith.constant 0.353553385 : f32
    %51 = vector.broadcast %cst_22 : f32 to vector<2x16x16xf32>
    %52 = arith.mulf %50, %51 : vector<2x16x16xf32>
    %cst_23 = arith.constant dense<0xFF800000> : vector<2x16xf32>
    %53 = vector.multi_reduction <maximumf>, %52, %cst_23 [2] : vector<2x16x16xf32> to vector<2x16xf32>
    %54 = vector.shape_cast %53 : vector<2x16xf32> to vector<2x16x1xf32>
    %55 = vector.broadcast %54 : vector<2x16x1xf32> to vector<2x16x16xf32>
    %56 = arith.subf %52, %55 : vector<2x16x16xf32>
    %57 = math.exp %56 : vector<2x16x16xf32>
    %cst_24 = arith.constant dense<0.000000e+00> : vector<2x16xf32>
    %58 = vector.multi_reduction <add>, %57, %cst_24 [2] : vector<2x16x16xf32> to vector<2x16xf32>
    %59 = vector.shape_cast %58 : vector<2x16xf32> to vector<2x16x1xf32>
    "tpu.trace_start"() <{level = 10 : i32, message = "bls,bsd->bld"}> : () -> ()
    %cst_25 = arith.constant dense<0.000000e+00> : vector<2x16x8xf32>
    %60 = tpu.matmul %57, %49, %cst_25 {dimension_numbers = #tpu.dot_dimension_numbers<[2], [1], [1], [2], [0, 0, 0, 1, 1, 2], [0], [0]>} : vector<2x16x16xf32>, vector<2x16x8xf32>, vector<2x16x8xf32> -> vector<2x16x8xf32>
    "tpu.trace_stop"() : () -> ()
    %61 = tpu.reciprocal %59 {approx = true} : vector<2x16x1xf32> -> vector<2x16x1xf32>
    %62 = vector.broadcast %61 : vector<2x16x1xf32> to vector<2x16x8xf32>
    %63 = arith.mulf %60, %62 : vector<2x16x8xf32>
    %64 = vector.shape_cast %63 : vector<2x16x8xf32> to vector<32x8xf32>
    %c0_26 = arith.constant 0 : index
    %c0_27 = arith.constant 0 : index
    %65 = vector.load %arg30[%c0_26, %c0_27] : memref<32x32xf32, #tpu.memory_space<vmem>>, vector<8x32xf32>
    %cst_28 = arith.constant dense<0.000000e+00> : vector<32x32xf32>
    %66 = tpu.matmul %64, %65, %cst_28 {dimension_numbers = #tpu.dot_dimension_numbers<[1], [0], [0], [1], [0, 0, 1, 1], [], []>} : vector<32x8xf32>, vector<8x32xf32>, vector<32x32xf32> -> vector<32x32xf32>
    %67 = vector.extract_strided_slice %41 {offsets = [0, 8], sizes = [32, 8], strides = [1, 1]} : vector<32x32xf32> to vector<32x8xf32>
    %68 = vector.shape_cast %67 : vector<32x8xf32> to vector<2x16x8xf32>
    %69 = vector.extract_strided_slice %42 {offsets = [0, 8], sizes = [32, 8], strides = [1, 1]} : vector<32x32xf32> to vector<32x8xf32>
    %70 = vector.shape_cast %69 : vector<32x8xf32> to vector<2x16x8xf32>
    %71 = vector.extract_strided_slice %43 {offsets = [0, 8], sizes = [32, 8], strides = [1, 1]} : vector<32x32xf32> to vector<32x8xf32>
    %72 = vector.shape_cast %71 : vector<32x8xf32> to vector<2x16x8xf32>
    "tpu.trace_start"() <{level = 10 : i32, message = "bld,bsd->bls"}> : () -> ()
    %cst_29 = arith.constant dense<0.000000e+00> : vector<2x16x16xf32>
    %73 = tpu.matmul %68, %70, %cst_29 {dimension_numbers = #tpu.dot_dimension_numbers<[2], [2], [1], [1], [0, 0, 0, 1, 1, 1], [0], [0]>} : vector<2x16x8xf32>, vector<2x16x8xf32>, vector<2x16x16xf32> -> vector<2x16x16xf32>
    "tpu.trace_stop"() : () -> ()
    %cst_30 = arith.constant 0.353553385 : f32
    %74 = vector.broadcast %cst_30 : f32 to vector<2x16x16xf32>
    %75 = arith.mulf %73, %74 : vector<2x16x16xf32>
    %cst_31 = arith.constant dense<0xFF800000> : vector<2x16xf32>
    %76 = vector.multi_reduction <maximumf>, %75, %cst_31 [2] : vector<2x16x16xf32> to vector<2x16xf32>
    %77 = vector.shape_cast %76 : vector<2x16xf32> to vector<2x16x1xf32>
    %78 = vector.broadcast %77 : vector<2x16x1xf32> to vector<2x16x16xf32>
    %79 = arith.subf %75, %78 : vector<2x16x16xf32>
    %80 = math.exp %79 : vector<2x16x16xf32>
    %cst_32 = arith.constant dense<0.000000e+00> : vector<2x16xf32>
    %81 = vector.multi_reduction <add>, %80, %cst_32 [2] : vector<2x16x16xf32> to vector<2x16xf32>
    %82 = vector.shape_cast %81 : vector<2x16xf32> to vector<2x16x1xf32>
    "tpu.trace_start"() <{level = 10 : i32, message = "bls,bsd->bld"}> : () -> ()
    %cst_33 = arith.constant dense<0.000000e+00> : vector<2x16x8xf32>
    %83 = tpu.matmul %80, %72, %cst_33 {dimension_numbers = #tpu.dot_dimension_numbers<[2], [1], [1], [2], [0, 0, 0, 1, 1, 2], [0], [0]>} : vector<2x16x16xf32>, vector<2x16x8xf32>, vector<2x16x8xf32> -> vector<2x16x8xf32>
    "tpu.trace_stop"() : () -> ()
    %84 = tpu.reciprocal %82 {approx = true} : vector<2x16x1xf32> -> vector<2x16x1xf32>
    %85 = vector.broadcast %84 : vector<2x16x1xf32> to vector<2x16x8xf32>
    %86 = arith.mulf %83, %85 : vector<2x16x8xf32>
    %87 = vector.shape_cast %86 : vector<2x16x8xf32> to vector<32x8xf32>
    %c8 = arith.constant 8 : index
    %c0_34 = arith.constant 0 : index
    %88 = vector.load %arg30[%c8, %c0_34] : memref<32x32xf32, #tpu.memory_space<vmem>>, vector<8x32xf32>
    %cst_35 = arith.constant dense<0.000000e+00> : vector<32x32xf32>
    %89 = tpu.matmul %87, %88, %cst_35 {dimension_numbers = #tpu.dot_dimension_numbers<[1], [0], [0], [1], [0, 0, 1, 1], [], []>} : vector<32x8xf32>, vector<8x32xf32>, vector<32x32xf32> -> vector<32x32xf32>
    %90 = arith.addf %66, %89 : vector<32x32xf32>
    %91 = vector.extract_strided_slice %41 {offsets = [0, 16], sizes = [32, 8], strides = [1, 1]} : vector<32x32xf32> to vector<32x8xf32>
    %92 = vector.shape_cast %91 : vector<32x8xf32> to vector<2x16x8xf32>
    %93 = vector.extract_strided_slice %42 {offsets = [0, 16], sizes = [32, 8], strides = [1, 1]} : vector<32x32xf32> to vector<32x8xf32>
    %94 = vector.shape_cast %93 : vector<32x8xf32> to vector<2x16x8xf32>
    %95 = vector.extract_strided_slice %43 {offsets = [0, 16], sizes = [32, 8], strides = [1, 1]} : vector<32x32xf32> to vector<32x8xf32>
    %96 = vector.shape_cast %95 : vector<32x8xf32> to vector<2x16x8xf32>
    "tpu.trace_start"() <{level = 10 : i32, message = "bld,bsd->bls"}> : () -> ()
    %cst_36 = arith.constant dense<0.000000e+00> : vector<2x16x16xf32>
    %97 = tpu.matmul %92, %94, %cst_36 {dimension_numbers = #tpu.dot_dimension_numbers<[2], [2], [1], [1], [0, 0, 0, 1, 1, 1], [0], [0]>} : vector<2x16x8xf32>, vector<2x16x8xf32>, vector<2x16x16xf32> -> vector<2x16x16xf32>
    "tpu.trace_stop"() : () -> ()
    %cst_37 = arith.constant 0.353553385 : f32
    %98 = vector.broadcast %cst_37 : f32 to vector<2x16x16xf32>
    %99 = arith.mulf %97, %98 : vector<2x16x16xf32>
    %cst_38 = arith.constant dense<0xFF800000> : vector<2x16xf32>
    %100 = vector.multi_reduction <maximumf>, %99, %cst_38 [2] : vector<2x16x16xf32> to vector<2x16xf32>
    %101 = vector.shape_cast %100 : vector<2x16xf32> to vector<2x16x1xf32>
    %102 = vector.broadcast %101 : vector<2x16x1xf32> to vector<2x16x16xf32>
    %103 = arith.subf %99, %102 : vector<2x16x16xf32>
    %104 = math.exp %103 : vector<2x16x16xf32>
    %cst_39 = arith.constant dense<0.000000e+00> : vector<2x16xf32>
    %105 = vector.multi_reduction <add>, %104, %cst_39 [2] : vector<2x16x16xf32> to vector<2x16xf32>
    %106 = vector.shape_cast %105 : vector<2x16xf32> to vector<2x16x1xf32>
    "tpu.trace_start"() <{level = 10 : i32, message = "bls,bsd->bld"}> : () -> ()
    %cst_40 = arith.constant dense<0.000000e+00> : vector<2x16x8xf32>
    %107 = tpu.matmul %104, %96, %cst_40 {dimension_numbers = #tpu.dot_dimension_numbers<[2], [1], [1], [2], [0, 0, 0, 1, 1, 2], [0], [0]>} : vector<2x16x16xf32>, vector<2x16x8xf32>, vector<2x16x8xf32> -> vector<2x16x8xf32>
    "tpu.trace_stop"() : () -> ()
    %108 = tpu.reciprocal %106 {approx = true} : vector<2x16x1xf32> -> vector<2x16x1xf32>
    %109 = vector.broadcast %108 : vector<2x16x1xf32> to vector<2x16x8xf32>
    %110 = arith.mulf %107, %109 : vector<2x16x8xf32>
    %111 = vector.shape_cast %110 : vector<2x16x8xf32> to vector<32x8xf32>
    %c16 = arith.constant 16 : index
    %c0_41 = arith.constant 0 : index
    %112 = vector.load %arg30[%c16, %c0_41] : memref<32x32xf32, #tpu.memory_space<vmem>>, vector<8x32xf32>
    %cst_42 = arith.constant dense<0.000000e+00> : vector<32x32xf32>
    %113 = tpu.matmul %111, %112, %cst_42 {dimension_numbers = #tpu.dot_dimension_numbers<[1], [0], [0], [1], [0, 0, 1, 1], [], []>} : vector<32x8xf32>, vector<8x32xf32>, vector<32x32xf32> -> vector<32x32xf32>
    %114 = arith.addf %90, %113 : vector<32x32xf32>
    %115 = vector.extract_strided_slice %41 {offsets = [0, 24], sizes = [32, 8], strides = [1, 1]} : vector<32x32xf32> to vector<32x8xf32>
    %116 = vector.shape_cast %115 : vector<32x8xf32> to vector<2x16x8xf32>
    %117 = vector.extract_strided_slice %42 {offsets = [0, 24], sizes = [32, 8], strides = [1, 1]} : vector<32x32xf32> to vector<32x8xf32>
    %118 = vector.shape_cast %117 : vector<32x8xf32> to vector<2x16x8xf32>
    %119 = vector.extract_strided_slice %43 {offsets = [0, 24], sizes = [32, 8], strides = [1, 1]} : vector<32x32xf32> to vector<32x8xf32>
    %120 = vector.shape_cast %119 : vector<32x8xf32> to vector<2x16x8xf32>
    "tpu.trace_start"() <{level = 10 : i32, message = "bld,bsd->bls"}> : () -> ()
    %cst_43 = arith.constant dense<0.000000e+00> : vector<2x16x16xf32>
    %121 = tpu.matmul %116, %118, %cst_43 {dimension_numbers = #tpu.dot_dimension_numbers<[2], [2], [1], [1], [0, 0, 0, 1, 1, 1], [0], [0]>} : vector<2x16x8xf32>, vector<2x16x8xf32>, vector<2x16x16xf32> -> vector<2x16x16xf32>
    "tpu.trace_stop"() : () -> ()
    %cst_44 = arith.constant 0.353553385 : f32
    %122 = vector.broadcast %cst_44 : f32 to vector<2x16x16xf32>
    %123 = arith.mulf %121, %122 : vector<2x16x16xf32>
    %cst_45 = arith.constant dense<0xFF800000> : vector<2x16xf32>
    %124 = vector.multi_reduction <maximumf>, %123, %cst_45 [2] : vector<2x16x16xf32> to vector<2x16xf32>
    %125 = vector.shape_cast %124 : vector<2x16xf32> to vector<2x16x1xf32>
    %126 = vector.broadcast %125 : vector<2x16x1xf32> to vector<2x16x16xf32>
    %127 = arith.subf %123, %126 : vector<2x16x16xf32>
    %128 = math.exp %127 : vector<2x16x16xf32>
    %cst_46 = arith.constant dense<0.000000e+00> : vector<2x16xf32>
    %129 = vector.multi_reduction <add>, %128, %cst_46 [2] : vector<2x16x16xf32> to vector<2x16xf32>
    %130 = vector.shape_cast %129 : vector<2x16xf32> to vector<2x16x1xf32>
    "tpu.trace_start"() <{level = 10 : i32, message = "bls,bsd->bld"}> : () -> ()
    %cst_47 = arith.constant dense<0.000000e+00> : vector<2x16x8xf32>
    %131 = tpu.matmul %128, %120, %cst_47 {dimension_numbers = #tpu.dot_dimension_numbers<[2], [1], [1], [2], [0, 0, 0, 1, 1, 2], [0], [0]>} : vector<2x16x16xf32>, vector<2x16x8xf32>, vector<2x16x8xf32> -> vector<2x16x8xf32>
    "tpu.trace_stop"() : () -> ()
    %132 = tpu.reciprocal %130 {approx = true} : vector<2x16x1xf32> -> vector<2x16x1xf32>
    %133 = vector.broadcast %132 : vector<2x16x1xf32> to vector<2x16x8xf32>
    %134 = arith.mulf %131, %133 : vector<2x16x8xf32>
    %135 = vector.shape_cast %134 : vector<2x16x8xf32> to vector<32x8xf32>
    %c24 = arith.constant 24 : index
    %c0_48 = arith.constant 0 : index
    %136 = vector.load %arg30[%c24, %c0_48] : memref<32x32xf32, #tpu.memory_space<vmem>>, vector<8x32xf32>
    %cst_49 = arith.constant dense<0.000000e+00> : vector<32x32xf32>
    %137 = tpu.matmul %135, %136, %cst_49 {dimension_numbers = #tpu.dot_dimension_numbers<[1], [0], [0], [1], [0, 0, 1, 1], [], []>} : vector<32x8xf32>, vector<8x32xf32>, vector<32x32xf32> -> vector<32x32xf32>
    %138 = arith.addf %114, %137 : vector<32x32xf32>
    %c0_50 = arith.constant 0 : index
    %c0_51 = arith.constant 0 : index
    %139 = vector.load %arg28[%c0_50, %c0_51] : memref<1x32xf32, #tpu.memory_space<vmem>>, vector<1x32xf32>
    %140 = vector.broadcast %139 : vector<1x32xf32> to vector<32x32xf32>
    %141 = arith.addf %138, %140 : vector<32x32xf32>
    %142 = arith.addf %11, %141 : vector<32x32xf32>
    %cst_52 = arith.constant dense<0.000000e+00> : vector<32xf32>
    %143 = vector.multi_reduction <add>, %142, %cst_52 [1] : vector<32x32xf32> to vector<32xf32>
    %144 = vector.shape_cast %143 : vector<32xf32> to vector<32x1xf32>
    %cst_53 = arith.constant 3.200000e+01 : f32
    %145 = vector.broadcast %cst_53 : f32 to vector<32x1xf32>
    %146 = arith.divf %144, %145 : vector<32x1xf32>
    %147 = vector.broadcast %146 : vector<32x1xf32> to vector<32x32xf32>
    %148 = arith.subf %142, %147 : vector<32x32xf32>
    %149 = arith.mulf %148, %148 : vector<32x32xf32>
    %cst_54 = arith.constant dense<0.000000e+00> : vector<32xf32>
    %150 = vector.multi_reduction <add>, %149, %cst_54 [1] : vector<32x32xf32> to vector<32xf32>
    %151 = vector.shape_cast %150 : vector<32xf32> to vector<32x1xf32>
    %cst_55 = arith.constant 3.200000e+01 : f32
    %152 = vector.broadcast %cst_55 : f32 to vector<32x1xf32>
    %153 = arith.divf %151, %152 : vector<32x1xf32>
    %154 = vector.broadcast %146 : vector<32x1xf32> to vector<32x32xf32>
    %155 = arith.subf %142, %154 : vector<32x32xf32>
    %cst_56 = arith.constant 9.99999974E-6 : f32
    %156 = vector.broadcast %cst_56 : f32 to vector<32x1xf32>
    %157 = arith.addf %153, %156 : vector<32x1xf32>
    %158 = math.rsqrt %157 : vector<32x1xf32>
    %159 = vector.broadcast %158 : vector<32x1xf32> to vector<32x32xf32>
    %160 = arith.mulf %155, %159 : vector<32x32xf32>
    %c0_57 = arith.constant 0 : index
    %c0_58 = arith.constant 0 : index
    %161 = vector.load %arg38[%c0_57, %c0_58] : memref<1x32xf32, #tpu.memory_space<vmem>>, vector<1x32xf32>
    %162 = vector.broadcast %161 : vector<1x32xf32> to vector<32x32xf32>
    %163 = arith.mulf %160, %162 : vector<32x32xf32>
    %c0_59 = arith.constant 0 : index
    %c0_60 = arith.constant 0 : index
    %164 = vector.load %arg37[%c0_59, %c0_60] : memref<1x32xf32, #tpu.memory_space<vmem>>, vector<1x32xf32>
    %165 = vector.broadcast %164 : vector<1x32xf32> to vector<32x32xf32>
    %166 = arith.addf %163, %165 : vector<32x32xf32>
    %c0_61 = arith.constant 0 : index
    %c0_62 = arith.constant 0 : index
    %167 = vector.load %arg40[%c0_61, %c0_62] : memref<32x64xf32, #tpu.memory_space<vmem>>, vector<32x64xf32>
    %cst_63 = arith.constant dense<0.000000e+00> : vector<32x64xf32>
    %168 = tpu.matmul %166, %167, %cst_63 {dimension_numbers = #tpu.dot_dimension_numbers<[1], [0], [0], [1], [0, 0, 1, 1], [], []>} : vector<32x32xf32>, vector<32x64xf32>, vector<32x64xf32> -> vector<32x64xf32>
    %c0_64 = arith.constant 0 : index
    %c0_65 = arith.constant 0 : index
    %169 = vector.load %arg32[%c0_64, %c0_65] : memref<1x64xf32, #tpu.memory_space<vmem>>, vector<1x64xf32>
    %170 = vector.broadcast %169 : vector<1x64xf32> to vector<32x64xf32>
    %171 = arith.addf %168, %170 : vector<32x64xf32>
    %172 = arith.mulf %171, %171 : vector<32x64xf32>
    %173 = arith.mulf %171, %172 : vector<32x64xf32>
    %cst_66 = arith.constant 4.471500e-02 : f32
    %174 = vector.broadcast %cst_66 : f32 to vector<32x64xf32>
    %175 = arith.mulf %174, %173 : vector<32x64xf32>
    %176 = arith.addf %171, %175 : vector<32x64xf32>
    %cst_67 = arith.constant 0.797884583 : f32
    %177 = vector.broadcast %cst_67 : f32 to vector<32x64xf32>
    %178 = arith.mulf %177, %176 : vector<32x64xf32>
    %179 = math.tanh %178 : vector<32x64xf32>
    %cst_68 = arith.constant 1.000000e+00 : f32
    %180 = vector.broadcast %cst_68 : f32 to vector<32x64xf32>
    %181 = arith.addf %180, %179 : vector<32x64xf32>
    %cst_69 = arith.constant 5.000000e-01 : f32
    %182 = vector.broadcast %cst_69 : f32 to vector<32x64xf32>
    %183 = arith.mulf %182, %181 : vector<32x64xf32>
    %184 = arith.mulf %171, %183 : vector<32x64xf32>
    %c0_70 = arith.constant 0 : index
    %c0_71 = arith.constant 0 : index
    %185 = vector.load %arg41[%c0_70, %c0_71] : memref<64x32xf32, #tpu.memory_space<vmem>>, vector<64x32xf32>
    %cst_72 = arith.constant dense<0.000000e+00> : vector<32x32xf32>
    %186 = tpu.matmul %184, %185, %cst_72 {dimension_numbers = #tpu.dot_dimension_numbers<[1], [0], [0], [1], [0, 0, 1, 1], [], []>} : vector<32x64xf32>, vector<64x32xf32>, vector<32x32xf32> -> vector<32x32xf32>
    %c0_73 = arith.constant 0 : index
    %c0_74 = arith.constant 0 : index
    %187 = vector.load %arg33[%c0_73, %c0_74] : memref<1x32xf32, #tpu.memory_space<vmem>>, vector<1x32xf32>
    %188 = vector.broadcast %187 : vector<1x32xf32> to vector<32x32xf32>
    %189 = arith.addf %186, %188 : vector<32x32xf32>
    %190 = arith.addf %142, %189 : vector<32x32xf32>
    %c0_75 = arith.constant 0 : index
    %c0_76 = arith.constant 0 : index
    %191 = vector.load %arg1[%c0_75, %c0_76] : memref<2x8xi32, #tpu.memory_space<vmem>>, vector<2x8xi32>
    %c0_77 = arith.constant 0 : index
    %c0_78 = arith.constant 0 : index
    %192 = vector.load %arg2[%c0_77, %c0_78] : memref<16x1xi32, #tpu.memory_space<vmem>>, vector<16x1xi32>
    %193 = tpu.iota {dimensions = array<i32: 1>} : vector<16x16xi32>
    %194 = vector.broadcast %192 : vector<16x1xi32> to vector<16x16xi32>
    %195 = arith.cmpi eq, %194, %193 : vector<16x16xi32>
    %196 = arith.extui %195 : vector<16x16xi1> to vector<16x16xi32>
    %197 = arith.sitofp %196 : vector<16x16xi32> to vector<16x16xf32>
    %c0_79 = arith.constant 0 : index
    %c0_80 = arith.constant 0 : index
    %198 = vector.load %arg26[%c0_79, %c0_80] : memref<16x32xf32, #tpu.memory_space<vmem>>, vector<16x32xf32>
    %cst_81 = arith.constant dense<0.000000e+00> : vector<16x32xf32>
    %199 = tpu.matmul %197, %198, %cst_81 {dimension_numbers = #tpu.dot_dimension_numbers<[1], [0], [0], [1], [0, 0, 1, 1], [], []>} : vector<16x16xf32>, vector<16x32xf32>, vector<16x32xf32> -> vector<16x32xf32>
    %c0_82 = arith.constant 0 : index
    %c0_83 = arith.constant 0 : index
    %200 = vector.load %arg5[%c0_82, %c0_83] : memref<1x32xf32, #tpu.memory_space<vmem>>, vector<1x32xf32>
    %201 = vector.broadcast %200 : vector<1x32xf32> to vector<16x32xf32>
    %202 = arith.addf %199, %201 : vector<16x32xf32>
    %203 = vector.shape_cast %202 : vector<16x32xf32> to vector<2x8x32xf32>
    %c0_84 = arith.constant 0 : index
    %c0_85 = arith.constant 0 : index
    %204 = vector.load %arg19[%c0_84, %c0_85] : memref<8x32xf32, #tpu.memory_space<vmem>>, vector<8x32xf32>
    %205 = vector.shape_cast %204 : vector<8x32xf32> to vector<1x8x32xf32>
    %206 = vector.broadcast %205 : vector<1x8x32xf32> to vector<2x8x32xf32>
    %207 = arith.addf %203, %206 : vector<2x8x32xf32>
    %208 = vector.shape_cast %207 : vector<2x8x32xf32> to vector<16x32xf32>
    %c0_i32 = arith.constant 0 : i32
    %209 = vector.broadcast %c0_i32 : i32 to vector<2x8xi32>
    %210 = arith.cmpi eq, %191, %209 : vector<2x8xi32>
    %cst_86 = arith.constant -1.000000e+09 : f32
    %cst_87 = arith.constant 0.000000e+00 : f32
    %211 = vector.broadcast %cst_86 : f32 to vector<2x8xf32>
    %212 = vector.broadcast %cst_87 : f32 to vector<2x8xf32>
    %213 = arith.select %210, %211, %212 : vector<2x8xi1>, vector<2x8xf32>
    %214 = vector.shape_cast %213 : vector<2x8xf32> to vector<2x1x8xf32>
    %cst_88 = arith.constant dense<0.000000e+00> : vector<16xf32>
    %215 = vector.multi_reduction <add>, %208, %cst_88 [1] : vector<16x32xf32> to vector<16xf32>
    %216 = vector.shape_cast %215 : vector<16xf32> to vector<16x1xf32>
    %cst_89 = arith.constant 3.200000e+01 : f32
    %217 = vector.broadcast %cst_89 : f32 to vector<16x1xf32>
    %218 = arith.divf %216, %217 : vector<16x1xf32>
    %219 = vector.broadcast %218 : vector<16x1xf32> to vector<16x32xf32>
    %220 = arith.subf %208, %219 : vector<16x32xf32>
    %221 = arith.mulf %220, %220 : vector<16x32xf32>
    %cst_90 = arith.constant dense<0.000000e+00> : vector<16xf32>
    %222 = vector.multi_reduction <add>, %221, %cst_90 [1] : vector<16x32xf32> to vector<16xf32>
    %223 = vector.shape_cast %222 : vector<16xf32> to vector<16x1xf32>
    %cst_91 = arith.constant 3.200000e+01 : f32
    %224 = vector.broadcast %cst_91 : f32 to vector<16x1xf32>
    %225 = arith.divf %223, %224 : vector<16x1xf32>
    %226 = vector.broadcast %218 : vector<16x1xf32> to vector<16x32xf32>
    %227 = arith.subf %208, %226 : vector<16x32xf32>
    %cst_92 = arith.constant 9.99999974E-6 : f32
    %228 = vector.broadcast %cst_92 : f32 to vector<16x1xf32>
    %229 = arith.addf %225, %228 : vector<16x1xf32>
    %230 = math.rsqrt %229 : vector<16x1xf32>
    %231 = vector.broadcast %230 : vector<16x1xf32> to vector<16x32xf32>
    %232 = arith.mulf %227, %231 : vector<16x32xf32>
    %c0_93 = arith.constant 0 : index
    %c0_94 = arith.constant 0 : index
    %233 = vector.load %arg12[%c0_93, %c0_94] : memref<1x32xf32, #tpu.memory_space<vmem>>, vector<1x32xf32>
    %234 = vector.broadcast %233 : vector<1x32xf32> to vector<16x32xf32>
    %235 = arith.mulf %232, %234 : vector<16x32xf32>
    %c0_95 = arith.constant 0 : index
    %c0_96 = arith.constant 0 : index
    %236 = vector.load %arg11[%c0_95, %c0_96] : memref<1x32xf32, #tpu.memory_space<vmem>>, vector<1x32xf32>
    %237 = vector.broadcast %236 : vector<1x32xf32> to vector<16x32xf32>
    %238 = arith.addf %235, %237 : vector<16x32xf32>
    %c0_97 = arith.constant 0 : index
    %c0_98 = arith.constant 0 : index
    %239 = vector.load %arg23[%c0_97, %c0_98] : memref<32x96xf32, #tpu.memory_space<vmem>>, vector<32x96xf32>
    %cst_99 = arith.constant dense<0.000000e+00> : vector<16x96xf32>
    %240 = tpu.matmul %238, %239, %cst_99 {dimension_numbers = #tpu.dot_dimension_numbers<[1], [0], [0], [1], [0, 0, 1, 1], [], []>} : vector<16x32xf32>, vector<32x96xf32>, vector<16x96xf32> -> vector<16x96xf32>
    %c0_100 = arith.constant 0 : index
    %c0_101 = arith.constant 0 : index
    %241 = vector.load %arg21[%c0_100, %c0_101] : memref<1x96xf32, #tpu.memory_space<vmem>>, vector<1x96xf32>
    %242 = vector.broadcast %241 : vector<1x96xf32> to vector<16x96xf32>
    %243 = arith.addf %240, %242 : vector<16x96xf32>
    %244 = vector.extract_strided_slice %243 {offsets = [0, 0], sizes = [16, 32], strides = [1, 1]} : vector<16x96xf32> to vector<16x32xf32>
    %245 = vector.extract_strided_slice %243 {offsets = [0, 32], sizes = [16, 32], strides = [1, 1]} : vector<16x96xf32> to vector<16x32xf32>
    %246 = vector.extract_strided_slice %243 {offsets = [0, 64], sizes = [16, 32], strides = [1, 1]} : vector<16x96xf32> to vector<16x32xf32>
    %247 = vector.extract_strided_slice %244 {offsets = [0, 0], sizes = [16, 8], strides = [1, 1]} : vector<16x32xf32> to vector<16x8xf32>
    %248 = vector.shape_cast %247 : vector<16x8xf32> to vector<2x8x8xf32>
    %249 = vector.extract_strided_slice %245 {offsets = [0, 0], sizes = [16, 8], strides = [1, 1]} : vector<16x32xf32> to vector<16x8xf32>
    %250 = vector.shape_cast %249 : vector<16x8xf32> to vector<2x8x8xf32>
    %251 = vector.extract_strided_slice %246 {offsets = [0, 0], sizes = [16, 8], strides = [1, 1]} : vector<16x32xf32> to vector<16x8xf32>
    %252 = vector.shape_cast %251 : vector<16x8xf32> to vector<2x8x8xf32>
    "tpu.trace_start"() <{level = 10 : i32, message = "bld,bsd->bls"}> : () -> ()
    %cst_102 = arith.constant dense<0.000000e+00> : vector<2x8x8xf32>
    %253 = tpu.matmul %248, %250, %cst_102 {dimension_numbers = #tpu.dot_dimension_numbers<[2], [2], [1], [1], [0, 0, 0, 1, 1, 1], [0], [0]>} : vector<2x8x8xf32>, vector<2x8x8xf32>, vector<2x8x8xf32> -> vector<2x8x8xf32>
    "tpu.trace_stop"() : () -> ()
    %cst_103 = arith.constant 0.353553385 : f32
    %254 = vector.broadcast %cst_103 : f32 to vector<2x8x8xf32>
    %255 = arith.mulf %253, %254 : vector<2x8x8xf32>
    %256 = vector.broadcast %214 : vector<2x1x8xf32> to vector<2x8x8xf32>
    %257 = arith.addf %255, %256 : vector<2x8x8xf32>
    %cst_104 = arith.constant dense<0xFF800000> : vector<2x8xf32>
    %258 = vector.multi_reduction <maximumf>, %257, %cst_104 [2] : vector<2x8x8xf32> to vector<2x8xf32>
    %259 = vector.shape_cast %258 : vector<2x8xf32> to vector<2x8x1xf32>
    %260 = vector.broadcast %259 : vector<2x8x1xf32> to vector<2x8x8xf32>
    %261 = arith.subf %257, %260 : vector<2x8x8xf32>
    %262 = math.exp %261 : vector<2x8x8xf32>
    %cst_105 = arith.constant dense<0.000000e+00> : vector<2x8xf32>
    %263 = vector.multi_reduction <add>, %262, %cst_105 [2] : vector<2x8x8xf32> to vector<2x8xf32>
    %264 = vector.shape_cast %263 : vector<2x8xf32> to vector<2x8x1xf32>
    "tpu.trace_start"() <{level = 10 : i32, message = "bls,bsd->bld"}> : () -> ()
    %cst_106 = arith.constant dense<0.000000e+00> : vector<2x8x8xf32>
    %265 = tpu.matmul %262, %252, %cst_106 {dimension_numbers = #tpu.dot_dimension_numbers<[2], [1], [1], [2], [0, 0, 0, 1, 1, 2], [0], [0]>} : vector<2x8x8xf32>, vector<2x8x8xf32>, vector<2x8x8xf32> -> vector<2x8x8xf32>
    "tpu.trace_stop"() : () -> ()
    %266 = tpu.reciprocal %264 {approx = true} : vector<2x8x1xf32> -> vector<2x8x1xf32>
    %267 = vector.broadcast %266 : vector<2x8x1xf32> to vector<2x8x8xf32>
    %268 = arith.mulf %265, %267 : vector<2x8x8xf32>
    %269 = vector.shape_cast %268 : vector<2x8x8xf32> to vector<16x8xf32>
    %c0_107 = arith.constant 0 : index
    %c0_108 = arith.constant 0 : index
    %270 = vector.load %arg22[%c0_107, %c0_108] : memref<32x32xf32, #tpu.memory_space<vmem>>, vector<8x32xf32>
    %cst_109 = arith.constant dense<0.000000e+00> : vector<16x32xf32>
    %271 = tpu.matmul %269, %270, %cst_109 {dimension_numbers = #tpu.dot_dimension_numbers<[1], [0], [0], [1], [0, 0, 1, 1], [], []>} : vector<16x8xf32>, vector<8x32xf32>, vector<16x32xf32> -> vector<16x32xf32>
    %272 = vector.extract_strided_slice %244 {offsets = [0, 8], sizes = [16, 8], strides = [1, 1]} : vector<16x32xf32> to vector<16x8xf32>
    %273 = vector.shape_cast %272 : vector<16x8xf32> to vector<2x8x8xf32>
    %274 = vector.extract_strided_slice %245 {offsets = [0, 8], sizes = [16, 8], strides = [1, 1]} : vector<16x32xf32> to vector<16x8xf32>
    %275 = vector.shape_cast %274 : vector<16x8xf32> to vector<2x8x8xf32>
    %276 = vector.extract_strided_slice %246 {offsets = [0, 8], sizes = [16, 8], strides = [1, 1]} : vector<16x32xf32> to vector<16x8xf32>
    %277 = vector.shape_cast %276 : vector<16x8xf32> to vector<2x8x8xf32>
    "tpu.trace_start"() <{level = 10 : i32, message = "bld,bsd->bls"}> : () -> ()
    %cst_110 = arith.constant dense<0.000000e+00> : vector<2x8x8xf32>
    %278 = tpu.matmul %273, %275, %cst_110 {dimension_numbers = #tpu.dot_dimension_numbers<[2], [2], [1], [1], [0, 0, 0, 1, 1, 1], [0], [0]>} : vector<2x8x8xf32>, vector<2x8x8xf32>, vector<2x8x8xf32> -> vector<2x8x8xf32>
    "tpu.trace_stop"() : () -> ()
    %cst_111 = arith.constant 0.353553385 : f32
    %279 = vector.broadcast %cst_111 : f32 to vector<2x8x8xf32>
    %280 = arith.mulf %278, %279 : vector<2x8x8xf32>
    %281 = vector.broadcast %214 : vector<2x1x8xf32> to vector<2x8x8xf32>
    %282 = arith.addf %280, %281 : vector<2x8x8xf32>
    %cst_112 = arith.constant dense<0xFF800000> : vector<2x8xf32>
    %283 = vector.multi_reduction <maximumf>, %282, %cst_112 [2] : vector<2x8x8xf32> to vector<2x8xf32>
    %284 = vector.shape_cast %283 : vector<2x8xf32> to vector<2x8x1xf32>
    %285 = vector.broadcast %284 : vector<2x8x1xf32> to vector<2x8x8xf32>
    %286 = arith.subf %282, %285 : vector<2x8x8xf32>
    %287 = math.exp %286 : vector<2x8x8xf32>
    %cst_113 = arith.constant dense<0.000000e+00> : vector<2x8xf32>
    %288 = vector.multi_reduction <add>, %287, %cst_113 [2] : vector<2x8x8xf32> to vector<2x8xf32>
    %289 = vector.shape_cast %288 : vector<2x8xf32> to vector<2x8x1xf32>
    "tpu.trace_start"() <{level = 10 : i32, message = "bls,bsd->bld"}> : () -> ()
    %cst_114 = arith.constant dense<0.000000e+00> : vector<2x8x8xf32>
    %290 = tpu.matmul %287, %277, %cst_114 {dimension_numbers = #tpu.dot_dimension_numbers<[2], [1], [1], [2], [0, 0, 0, 1, 1, 2], [0], [0]>} : vector<2x8x8xf32>, vector<2x8x8xf32>, vector<2x8x8xf32> -> vector<2x8x8xf32>
    "tpu.trace_stop"() : () -> ()
    %291 = tpu.reciprocal %289 {approx = true} : vector<2x8x1xf32> -> vector<2x8x1xf32>
    %292 = vector.broadcast %291 : vector<2x8x1xf32> to vector<2x8x8xf32>
    %293 = arith.mulf %290, %292 : vector<2x8x8xf32>
    %294 = vector.shape_cast %293 : vector<2x8x8xf32> to vector<16x8xf32>
    %c8_115 = arith.constant 8 : index
    %c0_116 = arith.constant 0 : index
    %295 = vector.load %arg22[%c8_115, %c0_116] : memref<32x32xf32, #tpu.memory_space<vmem>>, vector<8x32xf32>
    %cst_117 = arith.constant dense<0.000000e+00> : vector<16x32xf32>
    %296 = tpu.matmul %294, %295, %cst_117 {dimension_numbers = #tpu.dot_dimension_numbers<[1], [0], [0], [1], [0, 0, 1, 1], [], []>} : vector<16x8xf32>, vector<8x32xf32>, vector<16x32xf32> -> vector<16x32xf32>
    %297 = arith.addf %271, %296 : vector<16x32xf32>
    %298 = vector.extract_strided_slice %244 {offsets = [0, 16], sizes = [16, 8], strides = [1, 1]} : vector<16x32xf32> to vector<16x8xf32>
    %299 = vector.shape_cast %298 : vector<16x8xf32> to vector<2x8x8xf32>
    %300 = vector.extract_strided_slice %245 {offsets = [0, 16], sizes = [16, 8], strides = [1, 1]} : vector<16x32xf32> to vector<16x8xf32>
    %301 = vector.shape_cast %300 : vector<16x8xf32> to vector<2x8x8xf32>
    %302 = vector.extract_strided_slice %246 {offsets = [0, 16], sizes = [16, 8], strides = [1, 1]} : vector<16x32xf32> to vector<16x8xf32>
    %303 = vector.shape_cast %302 : vector<16x8xf32> to vector<2x8x8xf32>
    "tpu.trace_start"() <{level = 10 : i32, message = "bld,bsd->bls"}> : () -> ()
    %cst_118 = arith.constant dense<0.000000e+00> : vector<2x8x8xf32>
    %304 = tpu.matmul %299, %301, %cst_118 {dimension_numbers = #tpu.dot_dimension_numbers<[2], [2], [1], [1], [0, 0, 0, 1, 1, 1], [0], [0]>} : vector<2x8x8xf32>, vector<2x8x8xf32>, vector<2x8x8xf32> -> vector<2x8x8xf32>
    "tpu.trace_stop"() : () -> ()
    %cst_119 = arith.constant 0.353553385 : f32
    %305 = vector.broadcast %cst_119 : f32 to vector<2x8x8xf32>
    %306 = arith.mulf %304, %305 : vector<2x8x8xf32>
    %307 = vector.broadcast %214 : vector<2x1x8xf32> to vector<2x8x8xf32>
    %308 = arith.addf %306, %307 : vector<2x8x8xf32>
    %cst_120 = arith.constant dense<0xFF800000> : vector<2x8xf32>
    %309 = vector.multi_reduction <maximumf>, %308, %cst_120 [2] : vector<2x8x8xf32> to vector<2x8xf32>
    %310 = vector.shape_cast %309 : vector<2x8xf32> to vector<2x8x1xf32>
    %311 = vector.broadcast %310 : vector<2x8x1xf32> to vector<2x8x8xf32>
    %312 = arith.subf %308, %311 : vector<2x8x8xf32>
    %313 = math.exp %312 : vector<2x8x8xf32>
    %cst_121 = arith.constant dense<0.000000e+00> : vector<2x8xf32>
    %314 = vector.multi_reduction <add>, %313, %cst_121 [2] : vector<2x8x8xf32> to vector<2x8xf32>
    %315 = vector.shape_cast %314 : vector<2x8xf32> to vector<2x8x1xf32>
    "tpu.trace_start"() <{level = 10 : i32, message = "bls,bsd->bld"}> : () -> ()
    %cst_122 = arith.constant dense<0.000000e+00> : vector<2x8x8xf32>
    %316 = tpu.matmul %313, %303, %cst_122 {dimension_numbers = #tpu.dot_dimension_numbers<[2], [1], [1], [2], [0, 0, 0, 1, 1, 2], [0], [0]>} : vector<2x8x8xf32>, vector<2x8x8xf32>, vector<2x8x8xf32> -> vector<2x8x8xf32>
    "tpu.trace_stop"() : () -> ()
    %317 = tpu.reciprocal %315 {approx = true} : vector<2x8x1xf32> -> vector<2x8x1xf32>
    %318 = vector.broadcast %317 : vector<2x8x1xf32> to vector<2x8x8xf32>
    %319 = arith.mulf %316, %318 : vector<2x8x8xf32>
    %320 = vector.shape_cast %319 : vector<2x8x8xf32> to vector<16x8xf32>
    %c16_123 = arith.constant 16 : index
    %c0_124 = arith.constant 0 : index
    %321 = vector.load %arg22[%c16_123, %c0_124] : memref<32x32xf32, #tpu.memory_space<vmem>>, vector<8x32xf32>
    %cst_125 = arith.constant dense<0.000000e+00> : vector<16x32xf32>
    %322 = tpu.matmul %320, %321, %cst_125 {dimension_numbers = #tpu.dot_dimension_numbers<[1], [0], [0], [1], [0, 0, 1, 1], [], []>} : vector<16x8xf32>, vector<8x32xf32>, vector<16x32xf32> -> vector<16x32xf32>
    %323 = arith.addf %297, %322 : vector<16x32xf32>
    %324 = vector.extract_strided_slice %244 {offsets = [0, 24], sizes = [16, 8], strides = [1, 1]} : vector<16x32xf32> to vector<16x8xf32>
    %325 = vector.shape_cast %324 : vector<16x8xf32> to vector<2x8x8xf32>
    %326 = vector.extract_strided_slice %245 {offsets = [0, 24], sizes = [16, 8], strides = [1, 1]} : vector<16x32xf32> to vector<16x8xf32>
    %327 = vector.shape_cast %326 : vector<16x8xf32> to vector<2x8x8xf32>
    %328 = vector.extract_strided_slice %246 {offsets = [0, 24], sizes = [16, 8], strides = [1, 1]} : vector<16x32xf32> to vector<16x8xf32>
    %329 = vector.shape_cast %328 : vector<16x8xf32> to vector<2x8x8xf32>
    "tpu.trace_start"() <{level = 10 : i32, message = "bld,bsd->bls"}> : () -> ()
    %cst_126 = arith.constant dense<0.000000e+00> : vector<2x8x8xf32>
    %330 = tpu.matmul %325, %327, %cst_126 {dimension_numbers = #tpu.dot_dimension_numbers<[2], [2], [1], [1], [0, 0, 0, 1, 1, 1], [0], [0]>} : vector<2x8x8xf32>, vector<2x8x8xf32>, vector<2x8x8xf32> -> vector<2x8x8xf32>
    "tpu.trace_stop"() : () -> ()
    %cst_127 = arith.constant 0.353553385 : f32
    %331 = vector.broadcast %cst_127 : f32 to vector<2x8x8xf32>
    %332 = arith.mulf %330, %331 : vector<2x8x8xf32>
    %333 = vector.broadcast %214 : vector<2x1x8xf32> to vector<2x8x8xf32>
    %334 = arith.addf %332, %333 : vector<2x8x8xf32>
    %cst_128 = arith.constant dense<0xFF800000> : vector<2x8xf32>
    %335 = vector.multi_reduction <maximumf>, %334, %cst_128 [2] : vector<2x8x8xf32> to vector<2x8xf32>
    %336 = vector.shape_cast %335 : vector<2x8xf32> to vector<2x8x1xf32>
    %337 = vector.broadcast %336 : vector<2x8x1xf32> to vector<2x8x8xf32>
    %338 = arith.subf %334, %337 : vector<2x8x8xf32>
    %339 = math.exp %338 : vector<2x8x8xf32>
    %cst_129 = arith.constant dense<0.000000e+00> : vector<2x8xf32>
    %340 = vector.multi_reduction <add>, %339, %cst_129 [2] : vector<2x8x8xf32> to vector<2x8xf32>
    %341 = vector.shape_cast %340 : vector<2x8xf32> to vector<2x8x1xf32>
    "tpu.trace_start"() <{level = 10 : i32, message = "bls,bsd->bld"}> : () -> ()
    %cst_130 = arith.constant dense<0.000000e+00> : vector<2x8x8xf32>
    %342 = tpu.matmul %339, %329, %cst_130 {dimension_numbers = #tpu.dot_dimension_numbers<[2], [1], [1], [2], [0, 0, 0, 1, 1, 2], [0], [0]>} : vector<2x8x8xf32>, vector<2x8x8xf32>, vector<2x8x8xf32> -> vector<2x8x8xf32>
    "tpu.trace_stop"() : () -> ()
    %343 = tpu.reciprocal %341 {approx = true} : vector<2x8x1xf32> -> vector<2x8x1xf32>
    %344 = vector.broadcast %343 : vector<2x8x1xf32> to vector<2x8x8xf32>
    %345 = arith.mulf %342, %344 : vector<2x8x8xf32>
    %346 = vector.shape_cast %345 : vector<2x8x8xf32> to vector<16x8xf32>
    %c24_131 = arith.constant 24 : index
    %c0_132 = arith.constant 0 : index
    %347 = vector.load %arg22[%c24_131, %c0_132] : memref<32x32xf32, #tpu.memory_space<vmem>>, vector<8x32xf32>
    %cst_133 = arith.constant dense<0.000000e+00> : vector<16x32xf32>
    %348 = tpu.matmul %346, %347, %cst_133 {dimension_numbers = #tpu.dot_dimension_numbers<[1], [0], [0], [1], [0, 0, 1, 1], [], []>} : vector<16x8xf32>, vector<8x32xf32>, vector<16x32xf32> -> vector<16x32xf32>
    %349 = arith.addf %323, %348 : vector<16x32xf32>
    %c0_134 = arith.constant 0 : index
    %c0_135 = arith.constant 0 : index
    %350 = vector.load %arg20[%c0_134, %c0_135] : memref<1x32xf32, #tpu.memory_space<vmem>>, vector<1x32xf32>
    %351 = vector.broadcast %350 : vector<1x32xf32> to vector<16x32xf32>
    %352 = arith.addf %349, %351 : vector<16x32xf32>
    %353 = arith.addf %208, %352 : vector<16x32xf32>
    %cst_136 = arith.constant dense<0.000000e+00> : vector<16xf32>
    %354 = vector.multi_reduction <add>, %353, %cst_136 [1] : vector<16x32xf32> to vector<16xf32>
    %355 = vector.shape_cast %354 : vector<16xf32> to vector<16x1xf32>
    %cst_137 = arith.constant 3.200000e+01 : f32
    %356 = vector.broadcast %cst_137 : f32 to vector<16x1xf32>
    %357 = arith.divf %355, %356 : vector<16x1xf32>
    %358 = vector.broadcast %357 : vector<16x1xf32> to vector<16x32xf32>
    %359 = arith.subf %353, %358 : vector<16x32xf32>
    %360 = arith.mulf %359, %359 : vector<16x32xf32>
    %cst_138 = arith.constant dense<0.000000e+00> : vector<16xf32>
    %361 = vector.multi_reduction <add>, %360, %cst_138 [1] : vector<16x32xf32> to vector<16xf32>
    %362 = vector.shape_cast %361 : vector<16xf32> to vector<16x1xf32>
    %cst_139 = arith.constant 3.200000e+01 : f32
    %363 = vector.broadcast %cst_139 : f32 to vector<16x1xf32>
    %364 = arith.divf %362, %363 : vector<16x1xf32>
    %365 = vector.broadcast %357 : vector<16x1xf32> to vector<16x32xf32>
    %366 = arith.subf %353, %365 : vector<16x32xf32>
    %cst_140 = arith.constant 9.99999974E-6 : f32
    %367 = vector.broadcast %cst_140 : f32 to vector<16x1xf32>
    %368 = arith.addf %364, %367 : vector<16x1xf32>
    %369 = math.rsqrt %368 : vector<16x1xf32>
    %370 = vector.broadcast %369 : vector<16x1xf32> to vector<16x32xf32>
    %371 = arith.mulf %366, %370 : vector<16x32xf32>
    %c0_141 = arith.constant 0 : index
    %c0_142 = arith.constant 0 : index
    %372 = vector.load %arg14[%c0_141, %c0_142] : memref<1x32xf32, #tpu.memory_space<vmem>>, vector<1x32xf32>
    %373 = vector.broadcast %372 : vector<1x32xf32> to vector<16x32xf32>
    %374 = arith.mulf %371, %373 : vector<16x32xf32>
    %c0_143 = arith.constant 0 : index
    %c0_144 = arith.constant 0 : index
    %375 = vector.load %arg13[%c0_143, %c0_144] : memref<1x32xf32, #tpu.memory_space<vmem>>, vector<1x32xf32>
    %376 = vector.broadcast %375 : vector<1x32xf32> to vector<16x32xf32>
    %377 = arith.addf %374, %376 : vector<16x32xf32>
    %c0_145 = arith.constant 0 : index
    %c0_146 = arith.constant 0 : index
    %378 = vector.load %arg10[%c0_145, %c0_146] : memref<32x96xf32, #tpu.memory_space<vmem>>, vector<32x32xf32>
    %cst_147 = arith.constant dense<0.000000e+00> : vector<16x32xf32>
    %379 = tpu.matmul %377, %378, %cst_147 {dimension_numbers = #tpu.dot_dimension_numbers<[1], [0], [0], [1], [0, 0, 1, 1], [], []>} : vector<16x32xf32>, vector<32x32xf32>, vector<16x32xf32> -> vector<16x32xf32>
    %c0_148 = arith.constant 0 : index
    %c0_149 = arith.constant 0 : index
    %380 = vector.load %arg8[%c0_148, %c0_149] : memref<1x96xf32, #tpu.memory_space<vmem>>, vector<1x32xf32>
    %381 = vector.broadcast %380 : vector<1x32xf32> to vector<16x32xf32>
    %382 = arith.addf %379, %381 : vector<16x32xf32>
    %c0_150 = arith.constant 0 : index
    %c32 = arith.constant 32 : index
    %383 = vector.load %arg10[%c0_150, %c32] : memref<32x96xf32, #tpu.memory_space<vmem>>, vector<32x64xf32>
    %cst_151 = arith.constant dense<0.000000e+00> : vector<32x64xf32>
    %384 = tpu.matmul %190, %383, %cst_151 {dimension_numbers = #tpu.dot_dimension_numbers<[1], [0], [0], [1], [0, 0, 1, 1], [], []>} : vector<32x32xf32>, vector<32x64xf32>, vector<32x64xf32> -> vector<32x64xf32>
    %c0_152 = arith.constant 0 : index
    %c32_153 = arith.constant 32 : index
    %385 = vector.load %arg8[%c0_152, %c32_153] : memref<1x96xf32, #tpu.memory_space<vmem>>, vector<1x64xf32>
    %386 = vector.broadcast %385 : vector<1x64xf32> to vector<32x64xf32>
    %387 = arith.addf %384, %386 : vector<32x64xf32>
    %388 = vector.extract_strided_slice %387 {offsets = [0, 0], sizes = [32, 32], strides = [1, 1]} : vector<32x64xf32> to vector<32x32xf32>
    %389 = vector.extract_strided_slice %387 {offsets = [0, 32], sizes = [32, 32], strides = [1, 1]} : vector<32x64xf32> to vector<32x32xf32>
    %390 = vector.extract_strided_slice %382 {offsets = [0, 0], sizes = [16, 8], strides = [1, 1]} : vector<16x32xf32> to vector<16x8xf32>
    %391 = vector.shape_cast %390 : vector<16x8xf32> to vector<2x8x8xf32>
    %392 = vector.extract_strided_slice %388 {offsets = [0, 0], sizes = [32, 8], strides = [1, 1]} : vector<32x32xf32> to vector<32x8xf32>
    %393 = vector.shape_cast %392 : vector<32x8xf32> to vector<2x16x8xf32>
    %394 = vector.extract_strided_slice %389 {offsets = [0, 0], sizes = [32, 8], strides = [1, 1]} : vector<32x32xf32> to vector<32x8xf32>
    %395 = vector.shape_cast %394 : vector<32x8xf32> to vector<2x16x8xf32>
    "tpu.trace_start"() <{level = 10 : i32, message = "bld,bsd->bls"}> : () -> ()
    %cst_154 = arith.constant dense<0.000000e+00> : vector<2x8x16xf32>
    %396 = tpu.matmul %391, %393, %cst_154 {dimension_numbers = #tpu.dot_dimension_numbers<[2], [2], [1], [1], [0, 0, 0, 1, 1, 1], [0], [0]>} : vector<2x8x8xf32>, vector<2x16x8xf32>, vector<2x8x16xf32> -> vector<2x8x16xf32>
    "tpu.trace_stop"() : () -> ()
    %cst_155 = arith.constant 0.353553385 : f32
    %397 = vector.broadcast %cst_155 : f32 to vector<2x8x16xf32>
    %398 = arith.mulf %396, %397 : vector<2x8x16xf32>
    %cst_156 = arith.constant dense<0xFF800000> : vector<2x8xf32>
    %399 = vector.multi_reduction <maximumf>, %398, %cst_156 [2] : vector<2x8x16xf32> to vector<2x8xf32>
    %400 = vector.shape_cast %399 : vector<2x8xf32> to vector<2x8x1xf32>
    %401 = vector.broadcast %400 : vector<2x8x1xf32> to vector<2x8x16xf32>
    %402 = arith.subf %398, %401 : vector<2x8x16xf32>
    %403 = math.exp %402 : vector<2x8x16xf32>
    %cst_157 = arith.constant dense<0.000000e+00> : vector<2x8xf32>
    %404 = vector.multi_reduction <add>, %403, %cst_157 [2] : vector<2x8x16xf32> to vector<2x8xf32>
    %405 = vector.shape_cast %404 : vector<2x8xf32> to vector<2x8x1xf32>
    "tpu.trace_start"() <{level = 10 : i32, message = "bls,bsd->bld"}> : () -> ()
    %cst_158 = arith.constant dense<0.000000e+00> : vector<2x8x8xf32>
    %406 = tpu.matmul %403, %395, %cst_158 {dimension_numbers = #tpu.dot_dimension_numbers<[2], [1], [1], [2], [0, 0, 0, 1, 1, 2], [0], [0]>} : vector<2x8x16xf32>, vector<2x16x8xf32>, vector<2x8x8xf32> -> vector<2x8x8xf32>
    "tpu.trace_stop"() : () -> ()
    %407 = tpu.reciprocal %405 {approx = true} : vector<2x8x1xf32> -> vector<2x8x1xf32>
    %408 = vector.broadcast %407 : vector<2x8x1xf32> to vector<2x8x8xf32>
    %409 = arith.mulf %406, %408 : vector<2x8x8xf32>
    %410 = vector.shape_cast %409 : vector<2x8x8xf32> to vector<16x8xf32>
    %c0_159 = arith.constant 0 : index
    %c0_160 = arith.constant 0 : index
    %411 = vector.load %arg9[%c0_159, %c0_160] : memref<32x32xf32, #tpu.memory_space<vmem>>, vector<8x32xf32>
    %cst_161 = arith.constant dense<0.000000e+00> : vector<16x32xf32>
    %412 = tpu.matmul %410, %411, %cst_161 {dimension_numbers = #tpu.dot_dimension_numbers<[1], [0], [0], [1], [0, 0, 1, 1], [], []>} : vector<16x8xf32>, vector<8x32xf32>, vector<16x32xf32> -> vector<16x32xf32>
    %413 = vector.extract_strided_slice %382 {offsets = [0, 8], sizes = [16, 8], strides = [1, 1]} : vector<16x32xf32> to vector<16x8xf32>
    %414 = vector.shape_cast %413 : vector<16x8xf32> to vector<2x8x8xf32>
    %415 = vector.extract_strided_slice %388 {offsets = [0, 8], sizes = [32, 8], strides = [1, 1]} : vector<32x32xf32> to vector<32x8xf32>
    %416 = vector.shape_cast %415 : vector<32x8xf32> to vector<2x16x8xf32>
    %417 = vector.extract_strided_slice %389 {offsets = [0, 8], sizes = [32, 8], strides = [1, 1]} : vector<32x32xf32> to vector<32x8xf32>
    %418 = vector.shape_cast %417 : vector<32x8xf32> to vector<2x16x8xf32>
    "tpu.trace_start"() <{level = 10 : i32, message = "bld,bsd->bls"}> : () -> ()
    %cst_162 = arith.constant dense<0.000000e+00> : vector<2x8x16xf32>
    %419 = tpu.matmul %414, %416, %cst_162 {dimension_numbers = #tpu.dot_dimension_numbers<[2], [2], [1], [1], [0, 0, 0, 1, 1, 1], [0], [0]>} : vector<2x8x8xf32>, vector<2x16x8xf32>, vector<2x8x16xf32> -> vector<2x8x16xf32>
    "tpu.trace_stop"() : () -> ()
    %cst_163 = arith.constant 0.353553385 : f32
    %420 = vector.broadcast %cst_163 : f32 to vector<2x8x16xf32>
    %421 = arith.mulf %419, %420 : vector<2x8x16xf32>
    %cst_164 = arith.constant dense<0xFF800000> : vector<2x8xf32>
    %422 = vector.multi_reduction <maximumf>, %421, %cst_164 [2] : vector<2x8x16xf32> to vector<2x8xf32>
    %423 = vector.shape_cast %422 : vector<2x8xf32> to vector<2x8x1xf32>
    %424 = vector.broadcast %423 : vector<2x8x1xf32> to vector<2x8x16xf32>
    %425 = arith.subf %421, %424 : vector<2x8x16xf32>
    %426 = math.exp %425 : vector<2x8x16xf32>
    %cst_165 = arith.constant dense<0.000000e+00> : vector<2x8xf32>
    %427 = vector.multi_reduction <add>, %426, %cst_165 [2] : vector<2x8x16xf32> to vector<2x8xf32>
    %428 = vector.shape_cast %427 : vector<2x8xf32> to vector<2x8x1xf32>
    "tpu.trace_start"() <{level = 10 : i32, message = "bls,bsd->bld"}> : () -> ()
    %cst_166 = arith.constant dense<0.000000e+00> : vector<2x8x8xf32>
    %429 = tpu.matmul %426, %418, %cst_166 {dimension_numbers = #tpu.dot_dimension_numbers<[2], [1], [1], [2], [0, 0, 0, 1, 1, 2], [0], [0]>} : vector<2x8x16xf32>, vector<2x16x8xf32>, vector<2x8x8xf32> -> vector<2x8x8xf32>
    "tpu.trace_stop"() : () -> ()
    %430 = tpu.reciprocal %428 {approx = true} : vector<2x8x1xf32> -> vector<2x8x1xf32>
    %431 = vector.broadcast %430 : vector<2x8x1xf32> to vector<2x8x8xf32>
    %432 = arith.mulf %429, %431 : vector<2x8x8xf32>
    %433 = vector.shape_cast %432 : vector<2x8x8xf32> to vector<16x8xf32>
    %c8_167 = arith.constant 8 : index
    %c0_168 = arith.constant 0 : index
    %434 = vector.load %arg9[%c8_167, %c0_168] : memref<32x32xf32, #tpu.memory_space<vmem>>, vector<8x32xf32>
    %cst_169 = arith.constant dense<0.000000e+00> : vector<16x32xf32>
    %435 = tpu.matmul %433, %434, %cst_169 {dimension_numbers = #tpu.dot_dimension_numbers<[1], [0], [0], [1], [0, 0, 1, 1], [], []>} : vector<16x8xf32>, vector<8x32xf32>, vector<16x32xf32> -> vector<16x32xf32>
    %436 = arith.addf %412, %435 : vector<16x32xf32>
    %437 = vector.extract_strided_slice %382 {offsets = [0, 16], sizes = [16, 8], strides = [1, 1]} : vector<16x32xf32> to vector<16x8xf32>
    %438 = vector.shape_cast %437 : vector<16x8xf32> to vector<2x8x8xf32>
    %439 = vector.extract_strided_slice %388 {offsets = [0, 16], sizes = [32, 8], strides = [1, 1]} : vector<32x32xf32> to vector<32x8xf32>
    %440 = vector.shape_cast %439 : vector<32x8xf32> to vector<2x16x8xf32>
    %441 = vector.extract_strided_slice %389 {offsets = [0, 16], sizes = [32, 8], strides = [1, 1]} : vector<32x32xf32> to vector<32x8xf32>
    %442 = vector.shape_cast %441 : vector<32x8xf32> to vector<2x16x8xf32>
    "tpu.trace_start"() <{level = 10 : i32, message = "bld,bsd->bls"}> : () -> ()
    %cst_170 = arith.constant dense<0.000000e+00> : vector<2x8x16xf32>
    %443 = tpu.matmul %438, %440, %cst_170 {dimension_numbers = #tpu.dot_dimension_numbers<[2], [2], [1], [1], [0, 0, 0, 1, 1, 1], [0], [0]>} : vector<2x8x8xf32>, vector<2x16x8xf32>, vector<2x8x16xf32> -> vector<2x8x16xf32>
    "tpu.trace_stop"() : () -> ()
    %cst_171 = arith.constant 0.353553385 : f32
    %444 = vector.broadcast %cst_171 : f32 to vector<2x8x16xf32>
    %445 = arith.mulf %443, %444 : vector<2x8x16xf32>
    %cst_172 = arith.constant dense<0xFF800000> : vector<2x8xf32>
    %446 = vector.multi_reduction <maximumf>, %445, %cst_172 [2] : vector<2x8x16xf32> to vector<2x8xf32>
    %447 = vector.shape_cast %446 : vector<2x8xf32> to vector<2x8x1xf32>
    %448 = vector.broadcast %447 : vector<2x8x1xf32> to vector<2x8x16xf32>
    %449 = arith.subf %445, %448 : vector<2x8x16xf32>
    %450 = math.exp %449 : vector<2x8x16xf32>
    %cst_173 = arith.constant dense<0.000000e+00> : vector<2x8xf32>
    %451 = vector.multi_reduction <add>, %450, %cst_173 [2] : vector<2x8x16xf32> to vector<2x8xf32>
    %452 = vector.shape_cast %451 : vector<2x8xf32> to vector<2x8x1xf32>
    "tpu.trace_start"() <{level = 10 : i32, message = "bls,bsd->bld"}> : () -> ()
    %cst_174 = arith.constant dense<0.000000e+00> : vector<2x8x8xf32>
    %453 = tpu.matmul %450, %442, %cst_174 {dimension_numbers = #tpu.dot_dimension_numbers<[2], [1], [1], [2], [0, 0, 0, 1, 1, 2], [0], [0]>} : vector<2x8x16xf32>, vector<2x16x8xf32>, vector<2x8x8xf32> -> vector<2x8x8xf32>
    "tpu.trace_stop"() : () -> ()
    %454 = tpu.reciprocal %452 {approx = true} : vector<2x8x1xf32> -> vector<2x8x1xf32>
    %455 = vector.broadcast %454 : vector<2x8x1xf32> to vector<2x8x8xf32>
    %456 = arith.mulf %453, %455 : vector<2x8x8xf32>
    %457 = vector.shape_cast %456 : vector<2x8x8xf32> to vector<16x8xf32>
    %c16_175 = arith.constant 16 : index
    %c0_176 = arith.constant 0 : index
    %458 = vector.load %arg9[%c16_175, %c0_176] : memref<32x32xf32, #tpu.memory_space<vmem>>, vector<8x32xf32>
    %cst_177 = arith.constant dense<0.000000e+00> : vector<16x32xf32>
    %459 = tpu.matmul %457, %458, %cst_177 {dimension_numbers = #tpu.dot_dimension_numbers<[1], [0], [0], [1], [0, 0, 1, 1], [], []>} : vector<16x8xf32>, vector<8x32xf32>, vector<16x32xf32> -> vector<16x32xf32>
    %460 = arith.addf %436, %459 : vector<16x32xf32>
    %461 = vector.extract_strided_slice %382 {offsets = [0, 24], sizes = [16, 8], strides = [1, 1]} : vector<16x32xf32> to vector<16x8xf32>
    %462 = vector.shape_cast %461 : vector<16x8xf32> to vector<2x8x8xf32>
    %463 = vector.extract_strided_slice %388 {offsets = [0, 24], sizes = [32, 8], strides = [1, 1]} : vector<32x32xf32> to vector<32x8xf32>
    %464 = vector.shape_cast %463 : vector<32x8xf32> to vector<2x16x8xf32>
    %465 = vector.extract_strided_slice %389 {offsets = [0, 24], sizes = [32, 8], strides = [1, 1]} : vector<32x32xf32> to vector<32x8xf32>
    %466 = vector.shape_cast %465 : vector<32x8xf32> to vector<2x16x8xf32>
    "tpu.trace_start"() <{level = 10 : i32, message = "bld,bsd->bls"}> : () -> ()
    %cst_178 = arith.constant dense<0.000000e+00> : vector<2x8x16xf32>
    %467 = tpu.matmul %462, %464, %cst_178 {dimension_numbers = #tpu.dot_dimension_numbers<[2], [2], [1], [1], [0, 0, 0, 1, 1, 1], [0], [0]>} : vector<2x8x8xf32>, vector<2x16x8xf32>, vector<2x8x16xf32> -> vector<2x8x16xf32>
    "tpu.trace_stop"() : () -> ()
    %cst_179 = arith.constant 0.353553385 : f32
    %468 = vector.broadcast %cst_179 : f32 to vector<2x8x16xf32>
    %469 = arith.mulf %467, %468 : vector<2x8x16xf32>
    %cst_180 = arith.constant dense<0xFF800000> : vector<2x8xf32>
    %470 = vector.multi_reduction <maximumf>, %469, %cst_180 [2] : vector<2x8x16xf32> to vector<2x8xf32>
    %471 = vector.shape_cast %470 : vector<2x8xf32> to vector<2x8x1xf32>
    %472 = vector.broadcast %471 : vector<2x8x1xf32> to vector<2x8x16xf32>
    %473 = arith.subf %469, %472 : vector<2x8x16xf32>
    %474 = math.exp %473 : vector<2x8x16xf32>
    %cst_181 = arith.constant dense<0.000000e+00> : vector<2x8xf32>
    %475 = vector.multi_reduction <add>, %474, %cst_181 [2] : vector<2x8x16xf32> to vector<2x8xf32>
    %476 = vector.shape_cast %475 : vector<2x8xf32> to vector<2x8x1xf32>
    "tpu.trace_start"() <{level = 10 : i32, message = "bls,bsd->bld"}> : () -> ()
    %cst_182 = arith.constant dense<0.000000e+00> : vector<2x8x8xf32>
    %477 = tpu.matmul %474, %466, %cst_182 {dimension_numbers = #tpu.dot_dimension_numbers<[2], [1], [1], [2], [0, 0, 0, 1, 1, 2], [0], [0]>} : vector<2x8x16xf32>, vector<2x16x8xf32>, vector<2x8x8xf32> -> vector<2x8x8xf32>
    "tpu.trace_stop"() : () -> ()
    %478 = tpu.reciprocal %476 {approx = true} : vector<2x8x1xf32> -> vector<2x8x1xf32>
    %479 = vector.broadcast %478 : vector<2x8x1xf32> to vector<2x8x8xf32>
    %480 = arith.mulf %477, %479 : vector<2x8x8xf32>
    %481 = vector.shape_cast %480 : vector<2x8x8xf32> to vector<16x8xf32>
    %c24_183 = arith.constant 24 : index
    %c0_184 = arith.constant 0 : index
    %482 = vector.load %arg9[%c24_183, %c0_184] : memref<32x32xf32, #tpu.memory_space<vmem>>, vector<8x32xf32>
    %cst_185 = arith.constant dense<0.000000e+00> : vector<16x32xf32>
    %483 = tpu.matmul %481, %482, %cst_185 {dimension_numbers = #tpu.dot_dimension_numbers<[1], [0], [0], [1], [0, 0, 1, 1], [], []>} : vector<16x8xf32>, vector<8x32xf32>, vector<16x32xf32> -> vector<16x32xf32>
    %484 = arith.addf %460, %483 : vector<16x32xf32>
    %c0_186 = arith.constant 0 : index
    %c0_187 = arith.constant 0 : index
    %485 = vector.load %arg7[%c0_186, %c0_187] : memref<1x32xf32, #tpu.memory_space<vmem>>, vector<1x32xf32>
    %486 = vector.broadcast %485 : vector<1x32xf32> to vector<16x32xf32>
    %487 = arith.addf %484, %486 : vector<16x32xf32>
    %488 = arith.addf %353, %487 : vector<16x32xf32>
    %cst_188 = arith.constant dense<0.000000e+00> : vector<16xf32>
    %489 = vector.multi_reduction <add>, %488, %cst_188 [1] : vector<16x32xf32> to vector<16xf32>
    %490 = vector.shape_cast %489 : vector<16xf32> to vector<16x1xf32>
    %cst_189 = arith.constant 3.200000e+01 : f32
    %491 = vector.broadcast %cst_189 : f32 to vector<16x1xf32>
    %492 = arith.divf %490, %491 : vector<16x1xf32>
    %493 = vector.broadcast %492 : vector<16x1xf32> to vector<16x32xf32>
    %494 = arith.subf %488, %493 : vector<16x32xf32>
    %495 = arith.mulf %494, %494 : vector<16x32xf32>
    %cst_190 = arith.constant dense<0.000000e+00> : vector<16xf32>
    %496 = vector.multi_reduction <add>, %495, %cst_190 [1] : vector<16x32xf32> to vector<16xf32>
    %497 = vector.shape_cast %496 : vector<16xf32> to vector<16x1xf32>
    %cst_191 = arith.constant 3.200000e+01 : f32
    %498 = vector.broadcast %cst_191 : f32 to vector<16x1xf32>
    %499 = arith.divf %497, %498 : vector<16x1xf32>
    %500 = vector.broadcast %492 : vector<16x1xf32> to vector<16x32xf32>
    %501 = arith.subf %488, %500 : vector<16x32xf32>
    %cst_192 = arith.constant 9.99999974E-6 : f32
    %502 = vector.broadcast %cst_192 : f32 to vector<16x1xf32>
    %503 = arith.addf %499, %502 : vector<16x1xf32>
    %504 = math.rsqrt %503 : vector<16x1xf32>
    %505 = vector.broadcast %504 : vector<16x1xf32> to vector<16x32xf32>
    %506 = arith.mulf %501, %505 : vector<16x32xf32>
    %c0_193 = arith.constant 0 : index
    %c0_194 = arith.constant 0 : index
    %507 = vector.load %arg16[%c0_193, %c0_194] : memref<1x32xf32, #tpu.memory_space<vmem>>, vector<1x32xf32>
    %508 = vector.broadcast %507 : vector<1x32xf32> to vector<16x32xf32>
    %509 = arith.mulf %506, %508 : vector<16x32xf32>
    %c0_195 = arith.constant 0 : index
    %c0_196 = arith.constant 0 : index
    %510 = vector.load %arg15[%c0_195, %c0_196] : memref<1x32xf32, #tpu.memory_space<vmem>>, vector<1x32xf32>
    %511 = vector.broadcast %510 : vector<1x32xf32> to vector<16x32xf32>
    %512 = arith.addf %509, %511 : vector<16x32xf32>
    %c0_197 = arith.constant 0 : index
    %c0_198 = arith.constant 0 : index
    %513 = vector.load %arg24[%c0_197, %c0_198] : memref<32x64xf32, #tpu.memory_space<vmem>>, vector<32x64xf32>
    %cst_199 = arith.constant dense<0.000000e+00> : vector<16x64xf32>
    %514 = tpu.matmul %512, %513, %cst_199 {dimension_numbers = #tpu.dot_dimension_numbers<[1], [0], [0], [1], [0, 0, 1, 1], [], []>} : vector<16x32xf32>, vector<32x64xf32>, vector<16x64xf32> -> vector<16x64xf32>
    %c0_200 = arith.constant 0 : index
    %c0_201 = arith.constant 0 : index
    %515 = vector.load %arg3[%c0_200, %c0_201] : memref<1x64xf32, #tpu.memory_space<vmem>>, vector<1x64xf32>
    %516 = vector.broadcast %515 : vector<1x64xf32> to vector<16x64xf32>
    %517 = arith.addf %514, %516 : vector<16x64xf32>
    %518 = arith.mulf %517, %517 : vector<16x64xf32>
    %519 = arith.mulf %517, %518 : vector<16x64xf32>
    %cst_202 = arith.constant 4.471500e-02 : f32
    %520 = vector.broadcast %cst_202 : f32 to vector<16x64xf32>
    %521 = arith.mulf %520, %519 : vector<16x64xf32>
    %522 = arith.addf %517, %521 : vector<16x64xf32>
    %cst_203 = arith.constant 0.797884583 : f32
    %523 = vector.broadcast %cst_203 : f32 to vector<16x64xf32>
    %524 = arith.mulf %523, %522 : vector<16x64xf32>
    %525 = math.tanh %524 : vector<16x64xf32>
    %cst_204 = arith.constant 1.000000e+00 : f32
    %526 = vector.broadcast %cst_204 : f32 to vector<16x64xf32>
    %527 = arith.addf %526, %525 : vector<16x64xf32>
    %cst_205 = arith.constant 5.000000e-01 : f32
    %528 = vector.broadcast %cst_205 : f32 to vector<16x64xf32>
    %529 = arith.mulf %528, %527 : vector<16x64xf32>
    %530 = arith.mulf %517, %529 : vector<16x64xf32>
    %c0_206 = arith.constant 0 : index
    %c0_207 = arith.constant 0 : index
    %531 = vector.load %arg25[%c0_206, %c0_207] : memref<64x32xf32, #tpu.memory_space<vmem>>, vector<64x32xf32>
    %cst_208 = arith.constant dense<0.000000e+00> : vector<16x32xf32>
    %532 = tpu.matmul %530, %531, %cst_208 {dimension_numbers = #tpu.dot_dimension_numbers<[1], [0], [0], [1], [0, 0, 1, 1], [], []>} : vector<16x64xf32>, vector<64x32xf32>, vector<16x32xf32> -> vector<16x32xf32>
    %c0_209 = arith.constant 0 : index
    %c0_210 = arith.constant 0 : index
    %533 = vector.load %arg4[%c0_209, %c0_210] : memref<1x32xf32, #tpu.memory_space<vmem>>, vector<1x32xf32>
    %534 = vector.broadcast %533 : vector<1x32xf32> to vector<16x32xf32>
    %535 = arith.addf %532, %534 : vector<16x32xf32>
    %536 = arith.addf %488, %535 : vector<16x32xf32>
    %cst_211 = arith.constant dense<0.000000e+00> : vector<16xf32>
    %537 = vector.multi_reduction <add>, %536, %cst_211 [1] : vector<16x32xf32> to vector<16xf32>
    %538 = vector.shape_cast %537 : vector<16xf32> to vector<16x1xf32>
    %cst_212 = arith.constant 3.200000e+01 : f32
    %539 = vector.broadcast %cst_212 : f32 to vector<16x1xf32>
    %540 = arith.divf %538, %539 : vector<16x1xf32>
    %541 = vector.broadcast %540 : vector<16x1xf32> to vector<16x32xf32>
    %542 = arith.subf %536, %541 : vector<16x32xf32>
    %543 = arith.mulf %542, %542 : vector<16x32xf32>
    %cst_213 = arith.constant dense<0.000000e+00> : vector<16xf32>
    %544 = vector.multi_reduction <add>, %543, %cst_213 [1] : vector<16x32xf32> to vector<16xf32>
    %545 = vector.shape_cast %544 : vector<16xf32> to vector<16x1xf32>
    %cst_214 = arith.constant 3.200000e+01 : f32
    %546 = vector.broadcast %cst_214 : f32 to vector<16x1xf32>
    %547 = arith.divf %545, %546 : vector<16x1xf32>
    %548 = vector.broadcast %540 : vector<16x1xf32> to vector<16x32xf32>
    %549 = arith.subf %536, %548 : vector<16x32xf32>
    %cst_215 = arith.constant 9.99999974E-6 : f32
    %550 = vector.broadcast %cst_215 : f32 to vector<16x1xf32>
    %551 = arith.addf %547, %550 : vector<16x1xf32>
    %552 = math.rsqrt %551 : vector<16x1xf32>
    %553 = vector.broadcast %552 : vector<16x1xf32> to vector<16x32xf32>
    %554 = arith.mulf %549, %553 : vector<16x32xf32>
    %c0_216 = arith.constant 0 : index
    %c0_217 = arith.constant 0 : index
    %555 = vector.load %arg18[%c0_216, %c0_217] : memref<1x32xf32, #tpu.memory_space<vmem>>, vector<1x32xf32>
    %556 = vector.broadcast %555 : vector<1x32xf32> to vector<16x32xf32>
    %557 = arith.mulf %554, %556 : vector<16x32xf32>
    %c0_218 = arith.constant 0 : index
    %c0_219 = arith.constant 0 : index
    %558 = vector.load %arg17[%c0_218, %c0_219] : memref<1x32xf32, #tpu.memory_space<vmem>>, vector<1x32xf32>
    %559 = vector.broadcast %558 : vector<1x32xf32> to vector<16x32xf32>
    %560 = arith.addf %557, %559 : vector<16x32xf32>
    %c1_i32 = arith.constant 1 : i32
    %561 = vector.broadcast %c1_i32 : i32 to vector<16x1xi32>
    %562 = arith.cmpi eq, %192, %561 : vector<16x1xi32>
    %563 = arith.extui %562 : vector<16x1xi1> to vector<16x1xi32>
    %564 = arith.sitofp %563 : vector<16x1xi32> to vector<16x1xf32>
    %565 = vector.broadcast %564 : vector<16x1xf32> to vector<16x32xf32>
    %566 = arith.mulf %560, %565 : vector<16x32xf32>
    %567 = vector.shape_cast %566 : vector<16x32xf32> to vector<2x8x32xf32>
    %cst_220 = arith.constant dense<0.000000e+00> : vector<2x32xf32>
    %568 = vector.multi_reduction <add>, %567, %cst_220 [1] : vector<2x8x32xf32> to vector<2x32xf32>
    %569 = vector.shape_cast %564 : vector<16x1xf32> to vector<2x8x1xf32>
    %cst_221 = arith.constant dense<0.000000e+00> : vector<2x1xf32>
    %570 = vector.multi_reduction <add>, %569, %cst_221 [1] : vector<2x8x1xf32> to vector<2x1xf32>
    %cst_222 = arith.constant 1.000000e+00 : f32
    %571 = vector.broadcast %cst_222 : f32 to vector<2x1xf32>
    %572 = arith.maximumf %570, %571 : vector<2x1xf32>
    %573 = vector.broadcast %572 : vector<2x1xf32> to vector<2x32xf32>
    %574 = arith.divf %568, %573 : vector<2x32xf32>
    %c0_223 = arith.constant 0 : index
    %c0_224 = arith.constant 0 : index
    %575 = vector.load %arg27[%c0_223, %c0_224] : memref<32x16xf32, #tpu.memory_space<vmem>>, vector<32x16xf32>
    %cst_225 = arith.constant dense<0.000000e+00> : vector<2x16xf32>
    %576 = tpu.matmul %574, %575, %cst_225 {dimension_numbers = #tpu.dot_dimension_numbers<[1], [0], [0], [1], [0, 0, 1, 1], [], []>} : vector<2x32xf32>, vector<32x16xf32>, vector<2x16xf32> -> vector<2x16xf32>
    %c0_226 = arith.constant 0 : index
    %c0_227 = arith.constant 0 : index
    %577 = vector.load %arg6[%c0_226, %c0_227] : memref<1x16xf32, #tpu.memory_space<vmem>>, vector<1x16xf32>
    %578 = vector.broadcast %577 : vector<1x16xf32> to vector<2x16xf32>
    %579 = arith.addf %576, %578 : vector<2x16xf32>
    %c0_228 = arith.constant 0 : index
    %c0_229 = arith.constant 0 : index
    %580 = vector.load %arg43[%c0_228, %c0_229] : memref<2x16xf32, #tpu.memory_space<vmem>>, vector<2x16xf32>
    tpu.vector_store %arg43[%c0_228, %c0_229], %579 {strides = array<i32>} : memref<2x16xf32, #tpu.memory_space<vmem>>, vector<2x16xf32>,
    return
  }
}

</mosaic_0001>

<llo_original>
// kernel: vit_cls_tree_forward.1
$region0: #{vit_cls_tree_forward.1}
  #allocation0 [shape = 'u32[]', space=smem, size = 0x4, offset = 0x4, fixed_abs, tag = 'smem constant byte address 0x4 - core index']
  #allocation1 [shape = 'u32[144,128]{1,0:T(1,128)}', space=vmem, size = 0x12000, scoped, tag = 'internal scratch']
  %s0 = inlined_call_operand.smem [shape: u32[44], index: -1, kind: input, shape index: {}]
  %s1 = sld [smem:[%s0]]
  %s2 = scalar_lea.smem %s0, 1
  %s3 = sld [smem:[%s2]]
  %s4 = scalar_lea.smem %s0, 2
  %s5 = sld [smem:[%s4]]
  %s6 = scalar_lea.smem %s0, 3
  %s7 = sld [smem:[%s6]]
  %s8 = scalar_lea.smem %s0, 4
  %s9 = sld [smem:[%s8]]
  %s10 = scalar_lea.smem %s0, 5
  %s11 = sld [smem:[%s10]]
  %s12 = scalar_lea.smem %s0, 6
  %s13 = sld [smem:[%s12]]
  %s14 = scalar_lea.smem %s0, 7
  %s15 = sld [smem:[%s14]]
  %s16 = scalar_lea.smem %s0, 8
  %s17 = sld [smem:[%s16]]
  %s18 = scalar_lea.smem %s0, 9
  %s19 = sld [smem:[%s18]]
  %s20 = scalar_lea.smem %s0, 10
  %s21 = sld [smem:[%s20]]
  %s22 = scalar_lea.smem %s0, 11
  %s23 = sld [smem:[%s22]]
  %s24 = scalar_lea.smem %s0, 12
  %s25 = sld [smem:[%s24]]
  %s26 = scalar_lea.smem %s0, 13
  %s27 = sld [smem:[%s26]]
  %s28 = scalar_lea.smem %s0, 14
  %s29 = sld [smem:[%s28]]
  %s30 = scalar_lea.smem %s0, 15
  %s31 = sld [smem:[%s30]]
  %s32 = scalar_lea.smem %s0, 16
  %s33 = sld [smem:[%s32]]
  %s34 = scalar_lea.smem %s0, 17
  %s35 = sld [smem:[%s34]]
  %s36 = scalar_lea.smem %s0, 18
  %s37 = sld [smem:[%s36]]
  %s38 = scalar_lea.smem %s0, 19
  %s39 = sld [smem:[%s38]]
  %s40 = scalar_lea.smem %s0, 20
  %s41 = sld [smem:[%s40]]
  %s42 = scalar_lea.smem %s0, 21
  %s43 = sld [smem:[%s42]]
  %s44 = scalar_lea.smem %s0, 22
  %s45 = sld [smem:[%s44]]
  %s46 = scalar_lea.smem %s0, 23
  %s47 = sld [smem:[%s46]]
  %s48 = scalar_lea.smem %s0, 24
  %s49 = sld [smem:[%s48]]
  %s50 = scalar_lea.smem %s0, 25
  %s51 = sld [smem:[%s50]]
  %s52 = scalar_lea.smem %s0, 26
  %s53 = sld [smem:[%s52]]
  %s54 = scalar_lea.smem %s0, 27
  %s55 = sld [smem:[%s54]]
  %s56 = scalar_lea.smem %s0, 28
  %s57 = sld [smem:[%s56]]
  %s58 = scalar_lea.smem %s0, 29
  %s59 = sld [smem:[%s58]]
  %s60 = scalar_lea.smem %s0, 30
  %s61 = sld [smem:[%s60]]
  %s62 = scalar_lea.smem %s0, 31
  %s63 = sld [smem:[%s62]]
  %s64 = scalar_lea.smem %s0, 32
  %s65 = sld [smem:[%s64]]
  %s66 = scalar_lea.smem %s0, 33
  %s67 = sld [smem:[%s66]]
  %s68 = scalar_lea.smem %s0, 34
  %s69 = sld [smem:[%s68]]
  %s70 = scalar_lea.smem %s0, 35
  %s71 = sld [smem:[%s70]]
  %s72 = scalar_lea.smem %s0, 36
  %s73 = sld [smem:[%s72]]
  %s74 = scalar_lea.smem %s0, 37
  %s75 = sld [smem:[%s74]]
  %s76 = scalar_lea.smem %s0, 38
  %s77 = sld [smem:[%s76]]
  %s78 = scalar_lea.smem %s0, 39
  %s79 = sld [smem:[%s78]]
  %s80 = scalar_lea.smem %s0, 40
  %s81 = sld [smem:[%s80]]
  %s82 = scalar_lea.smem %s0, 41
  %s83 = sld [smem:[%s82]]
  %s84 = scalar_lea.smem %s0, 42
  %s85 = sld [smem:[%s84]]
  %s86 = scalar_lea.smem %s0, 43
  %s87 = sld [smem:[%s86]]
  %s88 = sld [smem:[#allocation0]]
  $region186: #{vit_cls_tree_forward.1} parent=0
    _
  %s90 = ssub.s32 1, %s88
  %s91 = scalar_select 0, %s90, %s88
  $region1: #{vit_cls_tree_forward.1} parent=0
    #allocation2 [shape = 'u8[512]{0}', space=vmem, size = 0x400, scoped, tag = 'input window, operand 38, single buffered']
    #allocation3 [shape = 's32[1]{0}', space=sflag, size = 0x4, scoped, tag = 'scoped memory for vit_cls_tree_forward.1']
    #allocation4 [shape = 's32[1]{0}', space=sflag, size = 0x4, scoped, tag = 'scoped memory for vit_cls_tree_forward.1']
    #allocation5 [shape = 'u8[1024]{0}', space=vmem, size = 0x400, scoped, tag = 'output window, operand 0, single buffered']
    %92 = vsyncpa [#allocation3], 0
    %93 = vsyncpa [#allocation4], 0
    // Predicated region
    $region2: #{vit_cls_tree_forward.1} parent=1 // pred_check
      _
    $region3: #{vit_cls_tree_forward.1} parent=1 // pred_check_branch
      %95 = sbr.rel (0) target = $region5
    $region4: #{vit_cls_tree_forward.1} parent=1 // pred_region
      _
    $region5: #{vit_cls_tree_forward.1} parent=1 // pred_fallthru
      _
    // Predicated region
    $region6: #{vit_cls_tree_forward.1} parent=1 // pred_check
      _
    $region7: #{vit_cls_tree_forward.1} parent=1 // pred_check_branch
      %97 = sbr.rel (0) target = $region9
    $region8: #{vit_cls_tree_forward.1} parent=1 // pred_region
      _
    $region9: #{vit_cls_tree_forward.1} parent=1 // pred_fallthru
      _
    // Predicated region
    $region10: #{vit_cls_tree_forward.1} parent=1 // pred_check
      _
    $region11: #{vit_cls_tree_forward.1} parent=1 // pred_check_branch
      %99 = sbr.rel (0) target = $region13
    $region12: #{vit_cls_tree_forward.1} parent=1 // pred_region
      _
    $region13: #{vit_cls_tree_forward.1} parent=1 // pred_fallthru
      _
    // Predicated region
    $region14: #{vit_cls_tree_forward.1} parent=1 // pred_check
      _
    $region15: #{vit_cls_tree_forward.1} parent=1 // pred_check_branch
      %101 = sbr.rel (0) target = $region17
    $region16: #{vit_cls_tree_forward.1} parent=1 // pred_region
      _
    $region17: #{vit_cls_tree_forward.1} parent=1 // pred_fallthru
      _
    // Predicated region
    $region18: #{vit_cls_tree_forward.1} parent=1 // pred_check
      _
    $region19: #{vit_cls_tree_forward.1} parent=1 // pred_check_branch
      %103 = sbr.rel (0) target = $region21
    $region20: #{vit_cls_tree_forward.1} parent=1 // pred_region
      _
    $region21: #{vit_cls_tree_forward.1} parent=1 // pred_fallthru
      _
    // Predicated region
    $region22: #{vit_cls_tree_forward.1} parent=1 // pred_check
      _
    $region23: #{vit_cls_tree_forward.1} parent=1 // pred_check_branch
      %105 = sbr.rel (0) target = $region25
    $region24: #{vit_cls_tree_forward.1} parent=1 // pred_region
      _
    $region25: #{vit_cls_tree_forward.1} parent=1 // pred_fallthru
      _
    // Predicated region
    $region26: #{vit_cls_tree_forward.1} parent=1 // pred_check
      _
    $region27: #{vit_cls_tree_forward.1} parent=1 // pred_check_branch
      %107 = sbr.rel (0) target = $region29
    $region28: #{vit_cls_tree_forward.1} parent=1 // pred_region
      _
    $region29: #{vit_cls_tree_forward.1} parent=1 // pred_fallthru
      _
    // Predicated region
    $region30: #{vit_cls_tree_forward.1} parent=1 // pred_check
      _
    $region31: #{vit_cls_tree_forward.1} parent=1 // pred_check_branch
      %109 = sbr.rel (0) target = $region33
    $region32: #{vit_cls_tree_forward.1} parent=1 // pred_region
      _
    $region33: #{vit_cls_tree_forward.1} parent=1 // pred_fallthru
      _
    // Predicated region
    $region34: #{vit_cls_tree_forward.1} parent=1 // pred_check
      _
    $region35: #{vit_cls_tree_forward.1} parent=1 // pred_check_branch
      %111 = sbr.rel (0) target = $region37
    $region36: #{vit_cls_tree_forward.1} parent=1 // pred_region
      _
    $region37: #{vit_cls_tree_forward.1} parent=1 // pred_fallthru
      _
    // Predicated region
    $region38: #{vit_cls_tree_forward.1} parent=1 // pred_check
      _
    $region39: #{vit_cls_tree_forward.1} parent=1 // pred_check_branch
      %113 = sbr.rel (0) target = $region41
    $region40: #{vit_cls_tree_forward.1} parent=1 // pred_region
      _
    $region41: #{vit_cls_tree_forward.1} parent=1 // pred_fallthru
      _
    // Predicated region
    $region42: #{vit_cls_tree_forward.1} parent=1 // pred_check
      _
    $region43: #{vit_cls_tree_forward.1} parent=1 // pred_check_branch
      %115 = sbr.rel (0) target = $region45
    $region44: #{vit_cls_tree_forward.1} parent=1 // pred_region
      _
    $region45: #{vit_cls_tree_forward.1} parent=1 // pred_fallthru
      _
    // Predicated region
    $region46: #{vit_cls_tree_forward.1} parent=1 // pred_check
      _
    $region47: #{vit_cls_tree_forward.1} parent=1 // pred_check_branch
      %117 = sbr.rel (0) target = $region49
    $region48: #{vit_cls_tree_forward.1} parent=1 // pred_region
      _
    $region49: #{vit_cls_tree_forward.1} parent=1 // pred_fallthru
      _
    // Predicated region
    $region50: #{vit_cls_tree_forward.1} parent=1 // pred_check
      _
    $region51: #{vit_cls_tree_forward.1} parent=1 // pred_check_branch
      %119 = sbr.rel (0) target = $region53
    $region52: #{vit_cls_tree_forward.1} parent=1 // pred_region
      _
    $region53: #{vit_cls_tree_forward.1} parent=1 // pred_fallthru
      _
    // Predicated region
    $region54: #{vit_cls_tree_forward.1} parent=1 // pred_check
      _
    $region55: #{vit_cls_tree_forward.1} parent=1 // pred_check_branch
      %121 = sbr.rel (0) target = $region57
    $region56: #{vit_cls_tree_forward.1} parent=1 // pred_region
      _
    $region57: #{vit_cls_tree_forward.1} parent=1 // pred_fallthru
      _
    // Predicated region
    $region58: #{vit_cls_tree_forward.1} parent=1 // pred_check
      _
    $region59: #{vit_cls_tree_forward.1} parent=1 // pred_check_branch
      %123 = sbr.rel (0) target = $region61
    $region60: #{vit_cls_tree_forward.1} parent=1 // pred_region
      _
    $region61: #{vit_cls_tree_forward.1} parent=1 // pred_fallthru
      _
    // Predicated region
    $region62: #{vit_cls_tree_forward.1} parent=1 // pred_check
      _
    $region63: #{vit_cls_tree_forward.1} parent=1 // pred_check_branch
      %125 = sbr.rel (0) target = $region65
    $region64: #{vit_cls_tree_forward.1} parent=1 // pred_region
      _
    $region65: #{vit_cls_tree_forward.1} parent=1 // pred_fallthru
      _
    // Predicated region
    $region66: #{vit_cls_tree_forward.1} parent=1 // pred_check
      _
    $region67: #{vit_cls_tree_forward.1} parent=1 // pred_check_branch
      %127 = sbr.rel (0) target = $region69
    $region68: #{vit_cls_tree_forward.1} parent=1 // pred_region
      _
    $region69: #{vit_cls_tree_forward.1} parent=1 // pred_fallthru
      _
    // Predicated region
    $region70: #{vit_cls_tree_forward.1} parent=1 // pred_check
      _
    $region71: #{vit_cls_tree_forward.1} parent=1 // pred_check_branch
      %129 = sbr.rel (0) target = $region73
    $region72: #{vit_cls_tree_forward.1} parent=1 // pred_region
      _
    $region73: #{vit_cls_tree_forward.1} parent=1 // pred_fallthru
      _
    // Predicated region
    $region74: #{vit_cls_tree_forward.1} parent=1 // pred_check
      _
    $region75: #{vit_cls_tree_forward.1} parent=1 // pred_check_branch
      %131 = sbr.rel (0) target = $region77
    $region76: #{vit_cls_tree_forward.1} parent=1 // pred_region
      _
    $region77: #{vit_cls_tree_forward.1} parent=1 // pred_fallthru
      _
    // Predicated region
    $region78: #{vit_cls_tree_forward.1} parent=1 // pred_check
      _
    $region79: #{vit_cls_tree_forward.1} parent=1 // pred_check_branch
      %133 = sbr.rel (0) target = $region81
    $region80: #{vit_cls_tree_forward.1} parent=1 // pred_region
      _
    $region81: #{vit_cls_tree_forward.1} parent=1 // pred_fallthru
      _
    // Predicated region
    $region82: #{vit_cls_tree_forward.1} parent=1 // pred_check
      _
    $region83: #{vit_cls_tree_forward.1} parent=1 // pred_check_branch
      %135 = sbr.rel (0) target = $region85
    $region84: #{vit_cls_tree_forward.1} parent=1 // pred_region
      _
    $region85: #{vit_cls_tree_forward.1} parent=1 // pred_fallthru
      _
    // Predicated region
    $region86: #{vit_cls_tree_forward.1} parent=1 // pred_check
      _
    $region87: #{vit_cls_tree_forward.1} parent=1 // pred_check_branch
      %137 = sbr.rel (0) target = $region89
    $region88: #{vit_cls_tree_forward.1} parent=1 // pred_region
      _
    $region89: #{vit_cls_tree_forward.1} parent=1 // pred_fallthru
      _
    // Predicated region
    $region90: #{vit_cls_tree_forward.1} parent=1 // pred_check
      _
    $region91: #{vit_cls_tree_forward.1} parent=1 // pred_check_branch
      %139 = sbr.rel (0) target = $region93
    $region92: #{vit_cls_tree_forward.1} parent=1 // pred_region
      _
    $region93: #{vit_cls_tree_forward.1} parent=1 // pred_fallthru
      _
    // Predicated region
    $region94: #{vit_cls_tree_forward.1} parent=1 // pred_check
      _
    $region95: #{vit_cls_tree_forward.1} parent=1 // pred_check_branch
      %141 = sbr.rel (0) target = $region97
    $region96: #{vit_cls_tree_forward.1} parent=1 // pred_region
      _
    $region97: #{vit_cls_tree_forward.1} parent=1 // pred_fallthru
      _
    // Predicated region
    $region98: #{vit_cls_tree_forward.1} parent=1 // pred_check
      _
    $region99: #{vit_cls_tree_forward.1} parent=1 // pred_check_branch
      %143 = sbr.rel (0) target = $region101
    $region100: #{vit_cls_tree_forward.1} parent=1 // pred_region
      _
    $region101: #{vit_cls_tree_forward.1} parent=1 // pred_fallthru
      _
    // Predicated region
    $region102: #{vit_cls_tree_forward.1} parent=1 // pred_check
      _
    $region103: #{vit_cls_tree_forward.1} parent=1 // pred_check_branch
      %145 = sbr.rel (0) target = $region105
    $region104: #{vit_cls_tree_forward.1} parent=1 // pred_region
      _
    $region105: #{vit_cls_tree_forward.1} parent=1 // pred_fallthru
      _
    // Predicated region
    $region106: #{vit_cls_tree_forward.1} parent=1 // pred_check
      _
    $region107: #{vit_cls_tree_forward.1} parent=1 // pred_check_branch
      %147 = sbr.rel (0) target = $region109
    $region108: #{vit_cls_tree_forward.1} parent=1 // pred_region
      _
    $region109: #{vit_cls_tree_forward.1} parent=1 // pred_fallthru
      _
    // Predicated region
    $region110: #{vit_cls_tree_forward.1} parent=1 // pred_check
      _
    $region111: #{vit_cls_tree_forward.1} parent=1 // pred_check_branch
      %149 = sbr.rel (0) target = $region113
    $region112: #{vit_cls_tree_forward.1} parent=1 // pred_region
      _
    $region113: #{vit_cls_tree_forward.1} parent=1 // pred_fallthru
      _
    // Predicated region
    $region114: #{vit_cls_tree_forward.1} parent=1 // pred_check
      _
    $region115: #{vit_cls_tree_forward.1} parent=1 // pred_check_branch
      %151 = sbr.rel (0) target = $region117
    $region116: #{vit_cls_tree_forward.1} parent=1 // pred_region
      _
    $region117: #{vit_cls_tree_forward.1} parent=1 // pred_fallthru
      _
    // Predicated region
    $region118: #{vit_cls_tree_forward.1} parent=1 // pred_check
      _
    $region119: #{vit_cls_tree_forward.1} parent=1 // pred_check_branch
      %153 = sbr.rel (0) target = $region121
    $region120: #{vit_cls_tree_forward.1} parent=1 // pred_region
      _
    $region121: #{vit_cls_tree_forward.1} parent=1 // pred_fallthru
      _
    // Predicated region
    $region122: #{vit_cls_tree_forward.1} parent=1 // pred_check
      _
    $region123: #{vit_cls_tree_forward.1} parent=1 // pred_check_branch
      %155 = sbr.rel (0) target = $region125
    $region124: #{vit_cls_tree_forward.1} parent=1 // pred_region
      _
    $region125: #{vit_cls_tree_forward.1} parent=1 // pred_fallthru
      _
    // Predicated region
    $region126: #{vit_cls_tree_forward.1} parent=1 // pred_check
      _
    $region127: #{vit_cls_tree_forward.1} parent=1 // pred_check_branch
      %157 = sbr.rel (0) target = $region129
    $region128: #{vit_cls_tree_forward.1} parent=1 // pred_region
      _
    $region129: #{vit_cls_tree_forward.1} parent=1 // pred_fallthru
      _
    // Predicated region
    $region130: #{vit_cls_tree_forward.1} parent=1 // pred_check
      _
    $region131: #{vit_cls_tree_forward.1} parent=1 // pred_check_branch
      %159 = sbr.rel (0) target = $region133
    $region132: #{vit_cls_tree_forward.1} parent=1 // pred_region
      _
    $region133: #{vit_cls_tree_forward.1} parent=1 // pred_fallthru
      _
    // Predicated region
    $region134: #{vit_cls_tree_forward.1} parent=1 // pred_check
      _
    $region135: #{vit_cls_tree_forward.1} parent=1 // pred_check_branch
      %161 = sbr.rel (0) target = $region137
    $region136: #{vit_cls_tree_forward.1} parent=1 // pred_region
      _
    $region137: #{vit_cls_tree_forward.1} parent=1 // pred_fallthru
      _
    // Predicated region
    $region138: #{vit_cls_tree_forward.1} parent=1 // pred_check
      _
    $region139: #{vit_cls_tree_forward.1} parent=1 // pred_check_branch
      %163 = sbr.rel (0) target = $region141
    $region140: #{vit_cls_tree_forward.1} parent=1 // pred_region
      _
    $region141: #{vit_cls_tree_forward.1} parent=1 // pred_fallthru
      _
    // Predicated region
    $region142: #{vit_cls_tree_forward.1} parent=1 // pred_check
      _
    $region143: #{vit_cls_tree_forward.1} parent=1 // pred_check_branch
      %165 = sbr.rel (0) target = $region145
    $region144: #{vit_cls_tree_forward.1} parent=1 // pred_region
      _
    $region145: #{vit_cls_tree_forward.1} parent=1 // pred_fallthru
      _
    // Predicated region
    $region146: #{vit_cls_tree_forward.1} parent=1 // pred_check
      _
    $region147: #{vit_cls_tree_forward.1} parent=1 // pred_check_branch
      %167 = sbr.rel (0) target = $region149
    $region148: #{vit_cls_tree_forward.1} parent=1 // pred_region
      _
    $region149: #{vit_cls_tree_forward.1} parent=1 // pred_fallthru
      _
    // Predicated region
    $region150: #{vit_cls_tree_forward.1} parent=1 // pred_check
      _
    $region151: #{vit_cls_tree_forward.1} parent=1 // pred_check_branch
      %169 = sbr.rel (0) target = $region153
    $region152: #{vit_cls_tree_forward.1} parent=1 // pred_region
      _
    $region153: #{vit_cls_tree_forward.1} parent=1 // pred_fallthru
      _
    // Predicated region
    $region154: #{vit_cls_tree_forward.1} parent=1 // pred_check
      _
    $region155: #{vit_cls_tree_forward.1} parent=1 // pred_check_branch
      %171 = sbr.rel (0) target = $region157
    $region156: #{vit_cls_tree_forward.1} parent=1 // pred_region
      %s173 = ssub.s32 16, 16
      %174 = vsyncadd [#allocation3], %s173
      %s176 = sshll.u32 [#allocation2], 4
      %s177 = int_to_ptr.vmem [resolvable:$true] %s176
      %179 = dma.hbm_to_vmem [thread:$0]  %s77, 16, %s177, [#allocation3]
    $region157: #{vit_cls_tree_forward.1} parent=1 // pred_fallthru
      _
    // Predicated region
    $region158: #{vit_cls_tree_forward.1} parent=1 // pred_check
      _
    $region159: #{vit_cls_tree_forward.1} parent=1 // pred_check_branch
      %181 = sbr.rel (0) target = $region161
    $region160: #{vit_cls_tree_forward.1} parent=1 // pred_region
      _
    $region161: #{vit_cls_tree_forward.1} parent=1 // pred_fallthru
      _
    // Predicated region
    $region162: #{vit_cls_tree_forward.1} parent=1 // pred_check
      _
    $region163: #{vit_cls_tree_forward.1} parent=1 // pred_check_branch
      %183 = sbr.rel (0) target = $region165
    $region164: #{vit_cls_tree_forward.1} parent=1 // pred_region
      _
    $region165: #{vit_cls_tree_forward.1} parent=1 // pred_fallthru
      _
    // Predicated region
    $region166: #{vit_cls_tree_forward.1} parent=1 // pred_check
      _
    $region167: #{vit_cls_tree_forward.1} parent=1 // pred_check_branch
      %185 = sbr.rel (0) target = $region169
    $region168: #{vit_cls_tree_forward.1} parent=1 // pred_region
      _
    $region169: #{vit_cls_tree_forward.1} parent=1 // pred_fallthru
      _
    // Predicated region
    $region170: #{vit_cls_tree_forward.1} parent=1 // pred_check
      _
    $region171: #{vit_cls_tree_forward.1} parent=1 // pred_check_branch
      %187 = sbr.rel (0) target = $region173
    $region172: #{vit_cls_tree_forward.1} parent=1 // pred_region
      _
    $region173: #{vit_cls_tree_forward.1} parent=1 // pred_fallthru
      _
    // Predicated region
    $region174: #{vit_cls_tree_forward.1} parent=1 // pred_check
      _
    $region175: #{vit_cls_tree_forward.1} parent=1 // pred_check_branch
      %189 = sbr.rel (0) target = $region177
    $region176: #{vit_cls_tree_forward.1} parent=1 // pred_region
      %190 = dma.done [#allocation3], 16
    $region177: #{vit_cls_tree_forward.1} parent=1 // pred_fallthru
      _
    %v191 = vld [vmem:[%s1] sm:$0xff]
    %v192 = vld [vmem:[%s1 + $0x8] sm:$0xff]
    %v193 = vld [vmem:[%s1 + $0x10] sm:$0xff]
    %v194 = vld [vmem:[%s1 + $0x18] sm:$0xff]
    %v195 = vld [vmem:[%s85] sm:$0xff]
    %v196 = vld [vmem:[%s85 + $0x8] sm:$0xff]
    %v197 = vld [vmem:[%s85 + $0x10] sm:$0xff]
    %v198 = vld [vmem:[%s85 + $0x18] sm:$0xff]
    %v199 = vld [vmem:[%s85 + $0x20] sm:$0xff]
    %v200 = vld [vmem:[%s85 + $0x28] sm:$0xff]
    %v201 = vld [vmem:[%s69] sm:$0x1]
    %v203 = vlaneseq
    %v204 = vshrl.u32 %v203, 7
    %v205 = vsub.s32 0, %v204
    %v206 = vrot.slane %v201, %v205
    %vm208 = vcmask 392192
    %v210 = vsel %vm208, %v191, 0
    %v213 = vsel %vm208, %v192, 0
    %v216 = vsel %vm208, %v193, 0
    %v219 = vsel %vm208, %v194, 0
    %221 = vmatprep.subr.mxu0 0.0
    %222 = vmatpush1.msra.mxu0 0.0
    %223 = vmatprep.subr.mxu0 0.0
    %224 = vmatpush1.msra.mxu0 0.0
    %225 = vmatprep.subr.mxu0 0.0
    %226 = vmatpush1.msra.mxu0 0.0
    %227 = vmatprep.subr.mxu0 0.0
    %228 = vmatpush1.msra.mxu0 0.0
    %229 = vmatprep.subr.mxu0 0.0
    %230 = vmatpush1.msra.mxu0 0.0
    %231 = vmatprep.subr.mxu0 0.0
    %232 = vmatpush1.msra.mxu0 0.0
    %233 = vmatprep.subr.mxu0 0.0
    %234 = vmatpush1.msra.mxu0 0.0
    %235 = vmatprep.subr.mxu0 0.0
    %236 = vmatpush1.msra.mxu0 0.0
    %237 = vmatprep.subr.mxu0 0.0
    %238 = vmatpush1.msra.mxu0 0.0
    %239 = vmatprep.subr.mxu0 0.0
    %240 = vmatpush1.msra.mxu0 0.0
    %241 = vmatprep.subr.mxu0 0.0
    %242 = vmatpush1.msra.mxu0 %v200
    %243 = vmatprep.subr.mxu0 0.0
    %244 = vmatpush1.msra.mxu0 %v199
    %245 = vmatprep.subr.mxu0 0.0
    %246 = vmatpush1.msra.mxu0 %v198
    %247 = vmatprep.subr.mxu0 0.0
    %248 = vmatpush1.msra.mxu0 %v197
    %249 = vmatprep.subr.mxu0 0.0
    %250 = vmatpush1.msra.mxu0 %v196
    %251 = vmatprep.subr.mxu0 0.0
    %252 = vmatpush1.msra.mxu0 %v195
    %253 = vmatprep.subr.mxu0 0.0
    %254 = vmatpush2.msra.mxu0 0.0
    %255 = vmatprep.subr.mxu0 0.0
    %256 = vmatpush2.msra.mxu0 0.0
    %257 = vmatprep.subr.mxu0 0.0
    %258 = vmatpush2.msra.mxu0 0.0
    %259 = vmatprep.subr.mxu0 0.0
    %260 = vmatpush2.msra.mxu0 0.0
    %261 = vmatprep.subr.mxu0 0.0
    %262 = vmatpush2.msra.mxu0 0.0
    %263 = vmatprep.subr.mxu0 0.0
    %264 = vmatpush2.msra.mxu0 0.0
    %265 = vmatprep.subr.mxu0 0.0
    %266 = vmatpush2.msra.mxu0 0.0
    %267 = vmatprep.subr.mxu0 0.0
    %268 = vmatpush2.msra.mxu0 0.0
    %269 = vmatprep.subr.mxu0 0.0
    %270 = vmatpush2.msra.mxu0 0.0
    %271 = vmatprep.subr.mxu0 0.0
    %272 = vmatpush2.msra.mxu0 0.0
    %273 = vmatprep.subr.mxu0 0.0
    %274 = vmatpush2.msra.mxu0 0.0
    %275 = vmatprep.subr.mxu0 0.0
    %276 = vmatpush2.msra.mxu0 0.0
    %277 = vmatprep.subr.mxu0 0.0
    %278 = vmatpush2.msra.mxu0 0.0
    %279 = vmatprep.subr.mxu0 0.0
    %280 = vmatpush2.msra.mxu0 0.0
    %281 = vmatprep.subr.mxu0 0.0
    %282 = vmatpush2.msra.mxu0 0.0
    %283 = vmatprep.subr.mxu0 0.0
    %284 = vmatpush2.msra.mxu0 0.0
    %285 = vmatprep.mubr.f32.mxu0 0.0
    %286 = vmatmul.mubr.f32.gmra.mxu0 %v210
    %v287 = vpop.f32.mrf.mxu0
    %v288 = vadd.f32 %v206, %v287
    %v289 = vpop.f32.mrf.mxu0
    %290 = vmatprep.mubr.f32.mxu0 0.0
    %291 = vmatmul.mubr.f32.gmra.mxu0 %v213
    %v292 = vpop.f32.mrf.mxu0
    %v293 = vadd.f32 %v206, %v292
    %v294 = vpop.f32.mrf.mxu0
    %295 = vmatprep.mubr.f32.mxu0 0.0
    %296 = vmatmul.mubr.f32.gmra.mxu0 %v216
    %v297 = vpop.f32.mrf.mxu0
    %v298 = vadd.f32 %v206, %v297
    %v299 = vpop.f32.mrf.mxu0
    %300 = vmatprep.mubr.f32.mxu0 0.0
    %301 = vmatmul.mubr.f32.gmra.mxu0 %v219
    %v302 = vpop.f32.mrf.mxu0
    %v303 = vadd.f32 %v206, %v302
    %v304 = vpop.f32.mrf.mxu0
    %305 = vdwg.mxu0
    %v306 = vld [vmem:[%s79] sm:$0xff]
    %v307 = vld [vmem:[%s79 + $0x8] sm:$0xff]
    %v308 = vadd.f32 %v288, %v306
    %v309 = vadd.f32 %v293, %v307
    %v310 = vadd.f32 %v298, %v306
    %v311 = vadd.f32 %v303, %v307
    %vm312 = vcmask 261120
    %v313 = vsel %vm312, %v308, 0.0
    %314 = vadd.xlane.f32.xlu0 %v313
    %v315 = vpop.xlane.xlu0 %314
    %v316 = vsel %vm312, %v309, 0.0
    %317 = vadd.xlane.f32.xlu0 %v316
    %v318 = vpop.xlane.xlu0 %317
    %v319 = vsel %vm312, %v310, 0.0
    %320 = vadd.xlane.f32.xlu0 %v319
    %v321 = vpop.xlane.xlu0 %320
    %v322 = vsel %vm312, %v311, 0.0
    %323 = vadd.xlane.f32.xlu0 %v322
    %v324 = vpop.xlane.xlu0 %323
    %v325 = vrcp.pop 32.0
    %v326 = vmul.f32 %v315, %v325
    %v327 = vmul.f32 %v318, %v325
    %v328 = vmul.f32 %v321, %v325
    %v329 = vmul.f32 %v324, %v325
    %v330 = vsub.f32 %v308, %v326
    %v331 = vsub.f32 %v309, %v327
    %v332 = vsub.f32 %v310, %v328
    %v333 = vsub.f32 %v311, %v329
    %v334 = vmul.f32 %v330, %v330
    %v335 = vmul.f32 %v331, %v331
    %v336 = vmul.f32 %v332, %v332
    %v337 = vmul.f32 %v333, %v333
    %v338 = vsel %vm312, %v334, 0.0
    %339 = vadd.xlane.f32.xlu0 %v338
    %v340 = vpop.xlane.xlu0 %339
    %v341 = vsel %vm312, %v335, 0.0
    %342 = vadd.xlane.f32.xlu0 %v341
    %v343 = vpop.xlane.xlu0 %342
    %v344 = vsel %vm312, %v336, 0.0
    %345 = vadd.xlane.f32.xlu0 %v344
    %v346 = vpop.xlane.xlu0 %345
    %v347 = vsel %vm312, %v337, 0.0
    %348 = vadd.xlane.f32.xlu0 %v347
    %v349 = vpop.xlane.xlu0 %348
    %v350 = vmul.f32 %v340, %v325
    %v351 = vmul.f32 %v343, %v325
    %v352 = vmul.f32 %v346, %v325
    %v353 = vmul.f32 %v349, %v325
    %v354 = vadd.f32 %v350, 1e-05
    %v355 = vadd.f32 %v351, 1e-05
    %v356 = vadd.f32 %v352, 1e-05
    %v357 = vadd.f32 %v353, 1e-05
    %v358 = vrsqrt.pop %v354
    %v359 = vrsqrt.pop %v355
    %v360 = vrsqrt.pop %v356
    %v361 = vrsqrt.pop %v357
    %v362 = vmul.f32 %v330, %v358
    %v363 = vmul.f32 %v331, %v359
    %v364 = vmul.f32 %v332, %v360
    %v365 = vmul.f32 %v333, %v361
    %v366 = vld [vmem:[%s73] sm:$0x1]
    %v368 = vlaneseq
    %v369 = vshrl.u32 %v368, 7
    %v370 = vsub.s32 0, %v369
    %v371 = vrot.slane %v366, %v370
    %v373 = vmul.f32 %v362, %v371
    %v374 = vmul.f32 %v363, %v371
    %v375 = vmul.f32 %v364, %v371
    %v376 = vmul.f32 %v365, %v371
    %v377 = vld [vmem:[%s71] sm:$0x1]
    %v379 = vlaneseq
    %v380 = vshrl.u32 %v379, 7
    %v381 = vsub.s32 0, %v380
    %v382 = vrot.slane %v377, %v381
    %v384 = vadd.f32 %v373, %v382
    %v385 = vadd.f32 %v374, %v382
    %v386 = vadd.f32 %v375, %v382
    %v387 = vadd.f32 %v376, %v382
    %v388 = vld [vmem:[%s63] sm:$0xff]
    %v389 = vld [vmem:[%s63 + $0x8] sm:$0xff]
    %v390 = vld [vmem:[%s63 + $0x10] sm:$0xff]
    %v391 = vld [vmem:[%s63 + $0x18] sm:$0xff]
    %v392 = vld [vmem:[%s59] sm:$0x1]
    %v394 = vlaneseq
    %v395 = vshrl.u32 %v394, 7
    %v396 = vsub.s32 0, %v395
    %v397 = vrot.slane %v392, %v396
    %v400 = vsel %vm312, %v384, 0
    %v403 = vsel %vm312, %v385, 0
    %v406 = vsel %vm312, %v386, 0
    %v409 = vsel %vm312, %v387, 0
    %411 = vmatprep.subr.mxu0 0.0
    %412 = vmatpush1.msra.mxu0 0.0
    %413 = vmatprep.subr.mxu0 0.0
    %414 = vmatpush1.msra.mxu0 0.0
    %415 = vmatprep.subr.mxu0 0.0
    %416 = vmatpush1.msra.mxu0 0.0
    %417 = vmatprep.subr.mxu0 0.0
    %418 = vmatpush1.msra.mxu0 0.0
    %419 = vmatprep.subr.mxu0 0.0
    %420 = vmatpush1.msra.mxu0 0.0
    %421 = vmatprep.subr.mxu0 0.0
    %422 = vmatpush1.msra.mxu0 0.0
    %423 = vmatprep.subr.mxu0 0.0
    %424 = vmatpush1.msra.mxu0 0.0
    %425 = vmatprep.subr.mxu0 0.0
    %426 = vmatpush1.msra.mxu0 0.0
    %427 = vmatprep.subr.mxu0 0.0
    %428 = vmatpush1.msra.mxu0 0.0
    %429 = vmatprep.subr.mxu0 0.0
    %430 = vmatpush1.msra.mxu0 0.0
    %431 = vmatprep.subr.mxu0 0.0
    %432 = vmatpush1.msra.mxu0 0.0
    %433 = vmatprep.subr.mxu0 0.0
    %434 = vmatpush1.msra.mxu0 0.0
    %435 = vmatprep.subr.mxu0 0.0
    %436 = vmatpush1.msra.mxu0 %v391
    %437 = vmatprep.subr.mxu0 0.0
    %438 = vmatpush1.msra.mxu0 %v390
    %439 = vmatprep.subr.mxu0 0.0
    %440 = vmatpush1.msra.mxu0 %v389
    %441 = vmatprep.subr.mxu0 0.0
    %442 = vmatpush1.msra.mxu0 %v388
    %443 = vmatprep.subr.mxu0 0.0
    %444 = vmatpush2.msra.mxu0 0.0
    %445 = vmatprep.subr.mxu0 0.0
    %446 = vmatpush2.msra.mxu0 0.0
    %447 = vmatprep.subr.mxu0 0.0
    %448 = vmatpush2.msra.mxu0 0.0
    %449 = vmatprep.subr.mxu0 0.0
    %450 = vmatpush2.msra.mxu0 0.0
    %451 = vmatprep.subr.mxu0 0.0
    %452 = vmatpush2.msra.mxu0 0.0
    %453 = vmatprep.subr.mxu0 0.0
    %454 = vmatpush2.msra.mxu0 0.0
    %455 = vmatprep.subr.mxu0 0.0
    %456 = vmatpush2.msra.mxu0 0.0
    %457 = vmatprep.subr.mxu0 0.0
    %458 = vmatpush2.msra.mxu0 0.0
    %459 = vmatprep.subr.mxu0 0.0
    %460 = vmatpush2.msra.mxu0 0.0
    %461 = vmatprep.subr.mxu0 0.0
    %462 = vmatpush2.msra.mxu0 0.0
    %463 = vmatprep.subr.mxu0 0.0
    %464 = vmatpush2.msra.mxu0 0.0
    %465 = vmatprep.subr.mxu0 0.0
    %466 = vmatpush2.msra.mxu0 0.0
    %467 = vmatprep.subr.mxu0 0.0
    %468 = vmatpush2.msra.mxu0 0.0
    %469 = vmatprep.subr.mxu0 0.0
    %470 = vmatpush2.msra.mxu0 0.0
    %471 = vmatprep.subr.mxu0 0.0
    %472 = vmatpush2.msra.mxu0 0.0
    %473 = vmatprep.subr.mxu0 0.0
    %474 = vmatpush2.msra.mxu0 0.0
    %475 = vmatprep.mubr.f32.mxu0 0.0
    %476 = vmatmul.mubr.f32.gmra.mxu0 %v400
    %v477 = vpop.f32.mrf.mxu0
    %v478 = vadd.f32 %v397, %v477
    %v479 = vpop.f32.mrf.mxu0
    %480 = vmatprep.mubr.f32.mxu0 0.0
    %481 = vmatmul.mubr.f32.gmra.mxu0 %v403
    %v482 = vpop.f32.mrf.mxu0
    %v483 = vadd.f32 %v397, %v482
    %v484 = vpop.f32.mrf.mxu0
    %485 = vmatprep.mubr.f32.mxu0 0.0
    %486 = vmatmul.mubr.f32.gmra.mxu0 %v406
    %v487 = vpop.f32.mrf.mxu0
    %v488 = vadd.f32 %v397, %v487
    %v489 = vpop.f32.mrf.mxu0
    %490 = vmatprep.mubr.f32.mxu0 0.0
    %491 = vmatmul.mubr.f32.gmra.mxu0 %v409
    %v492 = vpop.f32.mrf.mxu0
    %v493 = vadd.f32 %v397, %v492
    %v494 = vpop.f32.mrf.mxu0
    %495 = vdwg.mxu0
    %498 = vrot.lane.b32.xlu0 %v478, 96
    %v499 = vpop.permute.xlu0 %498
    %500 = vrot.lane.b32.xlu0 %v483, 96
    %v501 = vpop.permute.xlu0 %500
    %vm502 = vcmask 64512
    %v503 = vsel %vm502, %v478, 0
    %v505 = vsel %vm502, %v483, 0
    %v507 = vsel %vm502, %v499, 0
    %v509 = vsel %vm502, %v501, 0
    %511 = vmatprep.subr.mxu0 0.0
    %512 = vmatpush1.xpose.msra.mxu0 0.0
    %513 = vmatprep.subr.mxu0 0.0
    %514 = vmatpush1.xpose.msra.mxu0 0.0
    %515 = vmatprep.subr.mxu0 0.0
    %516 = vmatpush1.xpose.msra.mxu0 0.0
    %517 = vmatprep.subr.mxu0 0.0
    %518 = vmatpush1.xpose.msra.mxu0 0.0
    %519 = vmatprep.subr.mxu0 0.0
    %520 = vmatpush1.xpose.msra.mxu0 0.0
    %521 = vmatprep.subr.mxu0 0.0
    %522 = vmatpush1.xpose.msra.mxu0 0.0
    %523 = vmatprep.subr.mxu0 0.0
    %524 = vmatpush1.xpose.msra.mxu0 0.0
    %525 = vmatprep.subr.mxu0 0.0
    %526 = vmatpush1.xpose.msra.mxu0 0.0
    %527 = vmatprep.subr.mxu0 0.0
    %528 = vmatpush1.xpose.msra.mxu0 0.0
    %529 = vmatprep.subr.mxu0 0.0
    %530 = vmatpush1.xpose.msra.mxu0 0.0
    %531 = vmatprep.subr.mxu0 0.0
    %532 = vmatpush1.xpose.msra.mxu0 0.0
    %533 = vmatprep.subr.mxu0 0.0
    %534 = vmatpush1.xpose.msra.mxu0 0.0
    %535 = vmatprep.subr.mxu0 0.0
    %536 = vmatpush1.xpose.msra.mxu0 0.0
    %537 = vmatprep.subr.mxu0 0.0
    %538 = vmatpush1.xpose.msra.mxu0 0.0
    %539 = vmatprep.subr.mxu0 0.0
    %540 = vmatpush1.xpose.msra.mxu0 %v509
    %541 = vmatprep.subr.mxu0 0.0
    %542 = vmatpush1.xpose.msra.mxu0 %v507
    %543 = vmatprep.subr.mxu0 0.0
    %544 = vmatpush2.xpose.msra.mxu0 0.0
    %545 = vmatprep.subr.mxu0 0.0
    %546 = vmatpush2.xpose.msra.mxu0 0.0
    %547 = vmatprep.subr.mxu0 0.0
    %548 = vmatpush2.xpose.msra.mxu0 0.0
    %549 = vmatprep.subr.mxu0 0.0
    %550 = vmatpush2.xpose.msra.mxu0 0.0
    %551 = vmatprep.subr.mxu0 0.0
    %552 = vmatpush2.xpose.msra.mxu0 0.0
    %553 = vmatprep.subr.mxu0 0.0
    %554 = vmatpush2.xpose.msra.mxu0 0.0
    %555 = vmatprep.subr.mxu0 0.0
    %556 = vmatpush2.xpose.msra.mxu0 0.0
    %557 = vmatprep.subr.mxu0 0.0
    %558 = vmatpush2.xpose.msra.mxu0 0.0
    %559 = vmatprep.subr.mxu0 0.0
    %560 = vmatpush2.xpose.msra.mxu0 0.0
    %561 = vmatprep.subr.mxu0 0.0
    %562 = vmatpush2.xpose.msra.mxu0 0.0
    %563 = vmatprep.subr.mxu0 0.0
    %564 = vmatpush2.xpose.msra.mxu0 0.0
    %565 = vmatprep.subr.mxu0 0.0
    %566 = vmatpush2.xpose.msra.mxu0 0.0
    %567 = vmatprep.subr.mxu0 0.0
    %568 = vmatpush2.xpose.msra.mxu0 0.0
    %569 = vmatprep.subr.mxu0 0.0
    %570 = vmatpush2.xpose.msra.mxu0 0.0
    %571 = vmatprep.subr.mxu0 0.0
    %572 = vmatpush2.xpose.msra.mxu0 0.0
    %573 = vmatprep.subr.mxu0 0.0
    %574 = vmatpush2.xpose.msra.mxu0 0.0
    %575 = vmatprep.mubr.f32.mxu0 0.0
    %576 = vmatmul.mubr.f32.gmra.mxu0 %v503
    %v577 = vpop.f32.mrf.mxu0
    %v578 = vadd.f32 0.0, %v577
    %v579 = vpop.f32.mrf.mxu0
    %580 = vmatprep.mubr.f32.mxu0 0.0
    %581 = vmatmul.mubr.f32.gmra.mxu0 %v505
    %v582 = vpop.f32.mrf.mxu0
    %v583 = vadd.f32 0.0, %v582
    %v584 = vpop.f32.mrf.mxu0
    %585 = vdwg.mxu0
    %588 = vrot.lane.b32.xlu0 %v488, 96
    %v589 = vpop.permute.xlu0 %588
    %590 = vrot.lane.b32.xlu0 %v493, 96
    %v591 = vpop.permute.xlu0 %590
    %v592 = vsel %vm502, %v488, 0
    %v594 = vsel %vm502, %v493, 0
    %v596 = vsel %vm502, %v589, 0
    %v598 = vsel %vm502, %v591, 0
    %600 = vmatprep.subr.mxu0 0.0
    %601 = vmatpush1.xpose.msra.mxu0 0.0
    %602 = vmatprep.subr.mxu0 0.0
    %603 = vmatpush1.xpose.msra.mxu0 0.0
    %604 = vmatprep.subr.mxu0 0.0
    %605 = vmatpush1.xpose.msra.mxu0 0.0
    %606 = vmatprep.subr.mxu0 0.0
    %607 = vmatpush1.xpose.msra.mxu0 0.0
    %608 = vmatprep.subr.mxu0 0.0
    %609 = vmatpush1.xpose.msra.mxu0 0.0
    %610 = vmatprep.subr.mxu0 0.0
    %611 = vmatpush1.xpose.msra.mxu0 0.0
    %612 = vmatprep.subr.mxu0 0.0
    %613 = vmatpush1.xpose.msra.mxu0 0.0
    %614 = vmatprep.subr.mxu0 0.0
    %615 = vmatpush1.xpose.msra.mxu0 0.0
    %616 = vmatprep.subr.mxu0 0.0
    %617 = vmatpush1.xpose.msra.mxu0 0.0
    %618 = vmatprep.subr.mxu0 0.0
    %619 = vmatpush1.xpose.msra.mxu0 0.0
    %620 = vmatprep.subr.mxu0 0.0
    %621 = vmatpush1.xpose.msra.mxu0 0.0
    %622 = vmatprep.subr.mxu0 0.0
    %623 = vmatpush1.xpose.msra.mxu0 0.0
    %624 = vmatprep.subr.mxu0 0.0
    %625 = vmatpush1.xpose.msra.mxu0 0.0
    %626 = vmatprep.subr.mxu0 0.0
    %627 = vmatpush1.xpose.msra.mxu0 0.0
    %628 = vmatprep.subr.mxu0 0.0
    %629 = vmatpush1.xpose.msra.mxu0 %v598
    %630 = vmatprep.subr.mxu0 0.0
    %631 = vmatpush1.xpose.msra.mxu0 %v596
    %632 = vmatprep.subr.mxu0 0.0
    %633 = vmatpush2.xpose.msra.mxu0 0.0
    %634 = vmatprep.subr.mxu0 0.0
    %635 = vmatpush2.xpose.msra.mxu0 0.0
    %636 = vmatprep.subr.mxu0 0.0
    %637 = vmatpush2.xpose.msra.mxu0 0.0
    %638 = vmatprep.subr.mxu0 0.0
    %639 = vmatpush2.xpose.msra.mxu0 0.0
    %640 = vmatprep.subr.mxu0 0.0
    %641 = vmatpush2.xpose.msra.mxu0 0.0
    %642 = vmatprep.subr.mxu0 0.0
    %643 = vmatpush2.xpose.msra.mxu0 0.0
    %644 = vmatprep.subr.mxu0 0.0
    %645 = vmatpush2.xpose.msra.mxu0 0.0
    %646 = vmatprep.subr.mxu0 0.0
    %647 = vmatpush2.xpose.msra.mxu0 0.0
    %648 = vmatprep.subr.mxu0 0.0
    %649 = vmatpush2.xpose.msra.mxu0 0.0
    %650 = vmatprep.subr.mxu0 0.0
    %651 = vmatpush2.xpose.msra.mxu0 0.0
    %652 = vmatprep.subr.mxu0 0.0
    %653 = vmatpush2.xpose.msra.mxu0 0.0
    %654 = vmatprep.subr.mxu0 0.0
    %655 = vmatpush2.xpose.msra.mxu0 0.0
    %656 = vmatprep.subr.mxu0 0.0
    %657 = vmatpush2.xpose.msra.mxu0 0.0
    %658 = vmatprep.subr.mxu0 0.0
    %659 = vmatpush2.xpose.msra.mxu0 0.0
    %660 = vmatprep.subr.mxu0 0.0
    %661 = vmatpush2.xpose.msra.mxu0 0.0
    %662 = vmatprep.subr.mxu0 0.0
    %663 = vmatpush2.xpose.msra.mxu0 0.0
    %664 = vmatprep.mubr.f32.mxu0 0.0
    %665 = vmatmul.mubr.f32.gmra.mxu0 %v592
    %v666 = vpop.f32.mrf.mxu0
    %v667 = vadd.f32 0.0, %v666
    %v668 = vpop.f32.mrf.mxu0
    %669 = vmatprep.mubr.f32.mxu0 0.0
    %670 = vmatmul.mubr.f32.gmra.mxu0 %v594
    %v671 = vpop.f32.mrf.mxu0
    %v672 = vadd.f32 0.0, %v671
    %v673 = vpop.f32.mrf.mxu0
    %674 = vdwg.mxu0
    %v675 = vmul.f32 %v578, 0.35355338
    %v676 = vmul.f32 %v583, 0.35355338
    %v677 = vmul.f32 %v667, 0.35355338
    %v678 = vmul.f32 %v672, 0.35355338
    %vm679 = vcmask 130048
    %v680 = vsel %vm679, %v675, -inf
    %681 = vmax.xlane.f32.xlu0 %v680
    %v682 = vpop.xlane.xlu0 %681
    %v683 = vsel %vm679, %v676, -inf
    %684 = vmax.xlane.f32.xlu0 %v683
    %v685 = vpop.xlane.xlu0 %684
    %v686 = vsel %vm679, %v677, -inf
    %687 = vmax.xlane.f32.xlu0 %v686
    %v688 = vpop.xlane.xlu0 %687
    %v689 = vsel %vm679, %v678, -inf
    %690 = vmax.xlane.f32.xlu0 %v689
    %v691 = vpop.xlane.xlu0 %690
    %v692 = vsub.f32 %v675, %v682
    %v693 = vsub.f32 %v676, %v685
    %v694 = vsub.f32 %v677, %v688
    %v695 = vsub.f32 %v678, %v691
    %v696 = vmul.f32 %v692, 1.442695
    %v697 = vpow.pop %v696
    %v698 = vmul.f32 %v693, 1.442695
    %v699 = vpow.pop %v698
    %v700 = vmul.f32 %v694, 1.442695
    %v701 = vpow.pop %v700
    %v702 = vmul.f32 %v695, 1.442695
    %v703 = vpow.pop %v702
    %v704 = vsel %vm679, %v697, 0.0
    %705 = vadd.xlane.f32.xlu0 %v704
    %v706 = vpop.xlane.xlu0 %705
    %v707 = vsel %vm679, %v699, 0.0
    %708 = vadd.xlane.f32.xlu0 %v707
    %v709 = vpop.xlane.xlu0 %708
    %v710 = vsel %vm679, %v701, 0.0
    %711 = vadd.xlane.f32.xlu0 %v710
    %v712 = vpop.xlane.xlu0 %711
    %v713 = vsel %vm679, %v703, 0.0
    %714 = vadd.xlane.f32.xlu0 %v713
    %v715 = vpop.xlane.xlu0 %714
    %716 = vrot.lane.b32.xlu0 %v478, 64
    %v717 = vpop.permute.xlu0 %716
    %718 = vrot.lane.b32.xlu0 %v483, 64
    %v719 = vpop.permute.xlu0 %718
    %v723 = vsel %vm679, %v697, 0
    %v726 = vsel %vm679, %v699, 0
    %728 = vmatprep.subr.mxu0 0.0
    %729 = vmatpush1.msra.mxu0 0.0
    %730 = vmatprep.subr.mxu0 0.0
    %731 = vmatpush1.msra.mxu0 0.0
    %732 = vmatprep.subr.mxu0 0.0
    %733 = vmatpush1.msra.mxu0 0.0
    %734 = vmatprep.subr.mxu0 0.0
    %735 = vmatpush1.msra.mxu0 0.0
    %736 = vmatprep.subr.mxu0 0.0
    %737 = vmatpush1.msra.mxu0 0.0
    %738 = vmatprep.subr.mxu0 0.0
    %739 = vmatpush1.msra.mxu0 0.0
    %740 = vmatprep.subr.mxu0 0.0
    %741 = vmatpush1.msra.mxu0 0.0
    %742 = vmatprep.subr.mxu0 0.0
    %743 = vmatpush1.msra.mxu0 0.0
    %744 = vmatprep.subr.mxu0 0.0
    %745 = vmatpush1.msra.mxu0 0.0
    %746 = vmatprep.subr.mxu0 0.0
    %747 = vmatpush1.msra.mxu0 0.0
    %748 = vmatprep.subr.mxu0 0.0
    %749 = vmatpush1.msra.mxu0 0.0
    %750 = vmatprep.subr.mxu0 0.0
    %751 = vmatpush1.msra.mxu0 0.0
    %752 = vmatprep.subr.mxu0 0.0
    %753 = vmatpush1.msra.mxu0 0.0
    %754 = vmatprep.subr.mxu0 0.0
    %755 = vmatpush1.msra.mxu0 0.0
    %756 = vmatprep.subr.mxu0 0.0
    %757 = vmatpush1.msra.mxu0 %v719
    %758 = vmatprep.subr.mxu0 0.0
    %759 = vmatpush1.msra.mxu0 %v717
    %760 = vmatprep.subr.mxu0 0.0
    %761 = vmatpush2.msra.mxu0 0.0
    %762 = vmatprep.subr.mxu0 0.0
    %763 = vmatpush2.msra.mxu0 0.0
    %764 = vmatprep.subr.mxu0 0.0
    %765 = vmatpush2.msra.mxu0 0.0
    %766 = vmatprep.subr.mxu0 0.0
    %767 = vmatpush2.msra.mxu0 0.0
    %768 = vmatprep.subr.mxu0 0.0
    %769 = vmatpush2.msra.mxu0 0.0
    %770 = vmatprep.subr.mxu0 0.0
    %771 = vmatpush2.msra.mxu0 0.0
    %772 = vmatprep.subr.mxu0 0.0
    %773 = vmatpush2.msra.mxu0 0.0
    %774 = vmatprep.subr.mxu0 0.0
    %775 = vmatpush2.msra.mxu0 0.0
    %776 = vmatprep.subr.mxu0 0.0
    %777 = vmatpush2.msra.mxu0 0.0
    %778 = vmatprep.subr.mxu0 0.0
    %779 = vmatpush2.msra.mxu0 0.0
    %780 = vmatprep.subr.mxu0 0.0
    %781 = vmatpush2.msra.mxu0 0.0
    %782 = vmatprep.subr.mxu0 0.0
    %783 = vmatpush2.msra.mxu0 0.0
    %784 = vmatprep.subr.mxu0 0.0
    %785 = vmatpush2.msra.mxu0 0.0
    %786 = vmatprep.subr.mxu0 0.0
    %787 = vmatpush2.msra.mxu0 0.0
    %788 = vmatprep.subr.mxu0 0.0
    %789 = vmatpush2.msra.mxu0 0.0
    %790 = vmatprep.subr.mxu0 0.0
    %791 = vmatpush2.msra.mxu0 0.0
    %792 = vmatprep.mubr.f32.mxu0 0.0
    %793 = vmatmul.mubr.f32.gmra.mxu0 %v723
    %v794 = vpop.f32.mrf.mxu0
    %v795 = vadd.f32 0.0, %v794
    %v796 = vpop.f32.mrf.mxu0
    %797 = vmatprep.mubr.f32.mxu0 0.0
    %798 = vmatmul.mubr.f32.gmra.mxu0 %v726
    %v799 = vpop.f32.mrf.mxu0
    %v800 = vadd.f32 0.0, %v799
    %v801 = vpop.f32.mrf.mxu0
    %802 = vdwg.mxu0
    %803 = vrot.lane.b32.xlu0 %v488, 64
    %v804 = vpop.permute.xlu0 %803
    %805 = vrot.lane.b32.xlu0 %v493, 64
    %v806 = vpop.permute.xlu0 %805
    %v810 = vsel %vm679, %v701, 0
    %v813 = vsel %vm679, %v703, 0
    %815 = vmatprep.subr.mxu0 0.0
    %816 = vmatpush1.msra.mxu0 0.0
    %817 = vmatprep.subr.mxu0 0.0
    %818 = vmatpush1.msra.mxu0 0.0
    %819 = vmatprep.subr.mxu0 0.0
    %820 = vmatpush1.msra.mxu0 0.0
    %821 = vmatprep.subr.mxu0 0.0
    %822 = vmatpush1.msra.mxu0 0.0
    %823 = vmatprep.subr.mxu0 0.0
    %824 = vmatpush1.msra.mxu0 0.0
    %825 = vmatprep.subr.mxu0 0.0
    %826 = vmatpush1.msra.mxu0 0.0
    %827 = vmatprep.subr.mxu0 0.0
    %828 = vmatpush1.msra.mxu0 0.0
    %829 = vmatprep.subr.mxu0 0.0
    %830 = vmatpush1.msra.mxu0 0.0
    %831 = vmatprep.subr.mxu0 0.0
    %832 = vmatpush1.msra.mxu0 0.0
    %833 = vmatprep.subr.mxu0 0.0
    %834 = vmatpush1.msra.mxu0 0.0
    %835 = vmatprep.subr.mxu0 0.0
    %836 = vmatpush1.msra.mxu0 0.0
    %837 = vmatprep.subr.mxu0 0.0
    %838 = vmatpush1.msra.mxu0 0.0
    %839 = vmatprep.subr.mxu0 0.0
    %840 = vmatpush1.msra.mxu0 0.0
    %841 = vmatprep.subr.mxu0 0.0
    %842 = vmatpush1.msra.mxu0 0.0
    %843 = vmatprep.subr.mxu0 0.0
    %844 = vmatpush1.msra.mxu0 %v806
    %845 = vmatprep.subr.mxu0 0.0
    %846 = vmatpush1.msra.mxu0 %v804
    %847 = vmatprep.subr.mxu0 0.0
    %848 = vmatpush2.msra.mxu0 0.0
    %849 = vmatprep.subr.mxu0 0.0
    %850 = vmatpush2.msra.mxu0 0.0
    %851 = vmatprep.subr.mxu0 0.0
    %852 = vmatpush2.msra.mxu0 0.0
    %853 = vmatprep.subr.mxu0 0.0
    %854 = vmatpush2.msra.mxu0 0.0
    %855 = vmatprep.subr.mxu0 0.0
    %856 = vmatpush2.msra.mxu0 0.0
    %857 = vmatprep.subr.mxu0 0.0
    %858 = vmatpush2.msra.mxu0 0.0
    %859 = vmatprep.subr.mxu0 0.0
    %860 = vmatpush2.msra.mxu0 0.0
    %861 = vmatprep.subr.mxu0 0.0
    %862 = vmatpush2.msra.mxu0 0.0
    %863 = vmatprep.subr.mxu0 0.0
    %864 = vmatpush2.msra.mxu0 0.0
    %865 = vmatprep.subr.mxu0 0.0
    %866 = vmatpush2.msra.mxu0 0.0
    %867 = vmatprep.subr.mxu0 0.0
    %868 = vmatpush2.msra.mxu0 0.0
    %869 = vmatprep.subr.mxu0 0.0
    %870 = vmatpush2.msra.mxu0 0.0
    %871 = vmatprep.subr.mxu0 0.0
    %872 = vmatpush2.msra.mxu0 0.0
    %873 = vmatprep.subr.mxu0 0.0
    %874 = vmatpush2.msra.mxu0 0.0
    %875 = vmatprep.subr.mxu0 0.0
    %876 = vmatpush2.msra.mxu0 0.0
    %877 = vmatprep.subr.mxu0 0.0
    %878 = vmatpush2.msra.mxu0 0.0
    %879 = vmatprep.mubr.f32.mxu0 0.0
    %880 = vmatmul.mubr.f32.gmra.mxu0 %v810
    %v881 = vpop.f32.mrf.mxu0
    %v882 = vadd.f32 0.0, %v881
    %v883 = vpop.f32.mrf.mxu0
    %884 = vmatprep.mubr.f32.mxu0 0.0
    %885 = vmatmul.mubr.f32.gmra.mxu0 %v813
    %v886 = vpop.f32.mrf.mxu0
    %v887 = vadd.f32 0.0, %v886
    %v888 = vpop.f32.mrf.mxu0
    %889 = vdwg.mxu0
    %v890 = vrcp.pop %v706
    %v891 = vrcp.pop %v709
    %v892 = vrcp.pop %v712
    %v893 = vrcp.pop %v715
    %v894 = vmul.f32 %v795, %v890
    %v895 = vmul.f32 %v800, %v891
    %v896 = vmul.f32 %v882, %v892
    %v897 = vmul.f32 %v887, %v893
    %v898 = vld [vmem:[%s61] sm:$0xff]
    %899 = vrot.lane.b32.xlu0 %v478, 120
    %v900 = vpop.permute.xlu0 %899
    %901 = vrot.lane.b32.xlu0 %v483, 120
    %v902 = vpop.permute.xlu0 %901
    %903 = vrot.lane.b32.xlu0 %v478, 88
    %v904 = vpop.permute.xlu0 %903
    %905 = vrot.lane.b32.xlu0 %v483, 88
    %v906 = vpop.permute.xlu0 %905
    %v907 = vsel %vm502, %v900, 0
    %v909 = vsel %vm502, %v902, 0
    %v911 = vsel %vm502, %v904, 0
    %v913 = vsel %vm502, %v906, 0
    %915 = vmatprep.subr.mxu0 0.0
    %916 = vmatpush1.xpose.msra.mxu0 0.0
    %917 = vmatprep.subr.mxu0 0.0
    %918 = vmatpush1.xpose.msra.mxu0 0.0
    %919 = vmatprep.subr.mxu0 0.0
    %920 = vmatpush1.xpose.msra.mxu0 0.0
    %921 = vmatprep.subr.mxu0 0.0
    %922 = vmatpush1.xpose.msra.mxu0 0.0
    %923 = vmatprep.subr.mxu0 0.0
    %924 = vmatpush1.xpose.msra.mxu0 0.0
    %925 = vmatprep.subr.mxu0 0.0
    %926 = vmatpush1.xpose.msra.mxu0 0.0
    %927 = vmatprep.subr.mxu0 0.0
    %928 = vmatpush1.xpose.msra.mxu0 0.0
    %929 = vmatprep.subr.mxu0 0.0
    %930 = vmatpush1.xpose.msra.mxu0 0.0
    %931 = vmatprep.subr.mxu0 0.0
    %932 = vmatpush1.xpose.msra.mxu0 0.0
    %933 = vmatprep.subr.mxu0 0.0
    %934 = vmatpush1.xpose.msra.mxu0 0.0
    %935 = vmatprep.subr.mxu0 0.0
    %936 = vmatpush1.xpose.msra.mxu0 0.0
    %937 = vmatprep.subr.mxu0 0.0
    %938 = vmatpush1.xpose.msra.mxu0 0.0
    %939 = vmatprep.subr.mxu0 0.0
    %940 = vmatpush1.xpose.msra.mxu0 0.0
    %941 = vmatprep.subr.mxu0 0.0
    %942 = vmatpush1.xpose.msra.mxu0 0.0
    %943 = vmatprep.subr.mxu0 0.0
    %944 = vmatpush1.xpose.msra.mxu0 %v913
    %945 = vmatprep.subr.mxu0 0.0
    %946 = vmatpush1.xpose.msra.mxu0 %v911
    %947 = vmatprep.subr.mxu0 0.0
    %948 = vmatpush2.xpose.msra.mxu0 0.0
    %949 = vmatprep.subr.mxu0 0.0
    %950 = vmatpush2.xpose.msra.mxu0 0.0
    %951 = vmatprep.subr.mxu0 0.0
    %952 = vmatpush2.xpose.msra.mxu0 0.0
    %953 = vmatprep.subr.mxu0 0.0
    %954 = vmatpush2.xpose.msra.mxu0 0.0
    %955 = vmatprep.subr.mxu0 0.0
    %956 = vmatpush2.xpose.msra.mxu0 0.0
    %957 = vmatprep.subr.mxu0 0.0
    %958 = vmatpush2.xpose.msra.mxu0 0.0
    %959 = vmatprep.subr.mxu0 0.0
    %960 = vmatpush2.xpose.msra.mxu0 0.0
    %961 = vmatprep.subr.mxu0 0.0
    %962 = vmatpush2.xpose.msra.mxu0 0.0
    %963 = vmatprep.subr.mxu0 0.0
    %964 = vmatpush2.xpose.msra.mxu0 0.0
    %965 = vmatprep.subr.mxu0 0.0
    %966 = vmatpush2.xpose.msra.mxu0 0.0
    %967 = vmatprep.subr.mxu0 0.0
    %968 = vmatpush2.xpose.msra.mxu0 0.0
    %969 = vmatprep.subr.mxu0 0.0
    %970 = vmatpush2.xpose.msra.mxu0 0.0
    %971 = vmatprep.subr.mxu0 0.0
    %972 = vmatpush2.xpose.msra.mxu0 0.0
    %973 = vmatprep.subr.mxu0 0.0
    %974 = vmatpush2.xpose.msra.mxu0 0.0
    %975 = vmatprep.subr.mxu0 0.0
    %976 = vmatpush2.xpose.msra.mxu0 0.0
    %977 = vmatprep.subr.mxu0 0.0
    %978 = vmatpush2.xpose.msra.mxu0 0.0
    %979 = vmatprep.mubr.f32.mxu0 0.0
    %980 = vmatmul.mubr.f32.gmra.mxu0 %v907
    %v981 = vpop.f32.mrf.mxu0
    %v982 = vadd.f32 0.0, %v981
    %v983 = vpop.f32.mrf.mxu0
    %984 = vmatprep.mubr.f32.mxu0 0.0
    %985 = vmatmul.mubr.f32.gmra.mxu0 %v909
    %v986 = vpop.f32.mrf.mxu0
    %v987 = vadd.f32 0.0, %v986
    %v988 = vpop.f32.mrf.mxu0
    %989 = vdwg.mxu0
    %990 = vrot.lane.b32.xlu0 %v488, 120
    %v991 = vpop.permute.xlu0 %990
    %992 = vrot.lane.b32.xlu0 %v493, 120
    %v993 = vpop.permute.xlu0 %992
    %994 = vrot.lane.b32.xlu0 %v488, 88
    %v995 = vpop.permute.xlu0 %994
    %996 = vrot.lane.b32.xlu0 %v493, 88
    %v997 = vpop.permute.xlu0 %996
    %v998 = vsel %vm502, %v991, 0
    %v1000 = vsel %vm502, %v993, 0
    %v1002 = vsel %vm502, %v995, 0
    %v1004 = vsel %vm502, %v997, 0
    %1006 = vmatprep.subr.mxu0 0.0
    %1007 = vmatpush1.xpose.msra.mxu0 0.0
    %1008 = vmatprep.subr.mxu0 0.0
    %1009 = vmatpush1.xpose.msra.mxu0 0.0
    %1010 = vmatprep.subr.mxu0 0.0
    %1011 = vmatpush1.xpose.msra.mxu0 0.0
    %1012 = vmatprep.subr.mxu0 0.0
    %1013 = vmatpush1.xpose.msra.mxu0 0.0
    %1014 = vmatprep.subr.mxu0 0.0
    %1015 = vmatpush1.xpose.msra.mxu0 0.0
    %1016 = vmatprep.subr.mxu0 0.0
    %1017 = vmatpush1.xpose.msra.mxu0 0.0
    %1018 = vmatprep.subr.mxu0 0.0
    %1019 = vmatpush1.xpose.msra.mxu0 0.0
    %1020 = vmatprep.subr.mxu0 0.0
    %1021 = vmatpush1.xpose.msra.mxu0 0.0
    %1022 = vmatprep.subr.mxu0 0.0
    %1023 = vmatpush1.xpose.msra.mxu0 0.0
    %1024 = vmatprep.subr.mxu0 0.0
    %1025 = vmatpush1.xpose.msra.mxu0 0.0
    %1026 = vmatprep.subr.mxu0 0.0
    %1027 = vmatpush1.xpose.msra.mxu0 0.0
    %1028 = vmatprep.subr.mxu0 0.0
    %1029 = vmatpush1.xpose.msra.mxu0 0.0
    %1030 = vmatprep.subr.mxu0 0.0
    %1031 = vmatpush1.xpose.msra.mxu0 0.0
    %1032 = vmatprep.subr.mxu0 0.0
    %1033 = vmatpush1.xpose.msra.mxu0 0.0
    %1034 = vmatprep.subr.mxu0 0.0
    %1035 = vmatpush1.xpose.msra.mxu0 %v1004
    %1036 = vmatprep.subr.mxu0 0.0
    %1037 = vmatpush1.xpose.msra.mxu0 %v1002
    %1038 = vmatprep.subr.mxu0 0.0
    %1039 = vmatpush2.xpose.msra.mxu0 0.0
    %1040 = vmatprep.subr.mxu0 0.0
    %1041 = vmatpush2.xpose.msra.mxu0 0.0
    %1042 = vmatprep.subr.mxu0 0.0
    %1043 = vmatpush2.xpose.msra.mxu0 0.0
    %1044 = vmatprep.subr.mxu0 0.0
    %1045 = vmatpush2.xpose.msra.mxu0 0.0
    %1046 = vmatprep.subr.mxu0 0.0
    %1047 = vmatpush2.xpose.msra.mxu0 0.0
    %1048 = vmatprep.subr.mxu0 0.0
    %1049 = vmatpush2.xpose.msra.mxu0 0.0
    %1050 = vmatprep.subr.mxu0 0.0
    %1051 = vmatpush2.xpose.msra.mxu0 0.0
    %1052 = vmatprep.subr.mxu0 0.0
    %1053 = vmatpush2.xpose.msra.mxu0 0.0
    %1054 = vmatprep.subr.mxu0 0.0
    %1055 = vmatpush2.xpose.msra.mxu0 0.0
    %1056 = vmatprep.subr.mxu0 0.0
    %1057 = vmatpush2.xpose.msra.mxu0 0.0
    %1058 = vmatprep.subr.mxu0 0.0
    %1059 = vmatpush2.xpose.msra.mxu0 0.0
    %1060 = vmatprep.subr.mxu0 0.0
    %1061 = vmatpush2.xpose.msra.mxu0 0.0
    %1062 = vmatprep.subr.mxu0 0.0
    %1063 = vmatpush2.xpose.msra.mxu0 0.0
    %1064 = vmatprep.subr.mxu0 0.0
    %1065 = vmatpush2.xpose.msra.mxu0 0.0
    %1066 = vmatprep.subr.mxu0 0.0
    %1067 = vmatpush2.xpose.msra.mxu0 0.0
    %1068 = vmatprep.subr.mxu0 0.0
    %1069 = vmatpush2.xpose.msra.mxu0 0.0
    %1070 = vmatprep.mubr.f32.mxu0 0.0
    %1071 = vmatmul.mubr.f32.gmra.mxu0 %v998
    %v1072 = vpop.f32.mrf.mxu0
    %v1073 = vadd.f32 0.0, %v1072
    %v1074 = vpop.f32.mrf.mxu0
    %1075 = vmatprep.mubr.f32.mxu0 0.0
    %1076 = vmatmul.mubr.f32.gmra.mxu0 %v1000
    %v1077 = vpop.f32.mrf.mxu0
    %v1078 = vadd.f32 0.0, %v1077
    %v1079 = vpop.f32.mrf.mxu0
    %1080 = vdwg.mxu0
    %v1081 = vmul.f32 %v982, 0.35355338
    %v1082 = vmul.f32 %v987, 0.35355338
    %v1083 = vmul.f32 %v1073, 0.35355338
    %v1084 = vmul.f32 %v1078, 0.35355338
    %v1085 = vsel %vm679, %v1081, -inf
    %1086 = vmax.xlane.f32.xlu0 %v1085
    %v1087 = vpop.xlane.xlu0 %1086
    %v1088 = vsel %vm679, %v1082, -inf
    %1089 = vmax.xlane.f32.xlu0 %v1088
    %v1090 = vpop.xlane.xlu0 %1089
    %v1091 = vsel %vm679, %v1083, -inf
    %1092 = vmax.xlane.f32.xlu0 %v1091
    %v1093 = vpop.xlane.xlu0 %1092
    %v1094 = vsel %vm679, %v1084, -inf
    %1095 = vmax.xlane.f32.xlu0 %v1094
    %v1096 = vpop.xlane.xlu0 %1095
    %v1097 = vsub.f32 %v1081, %v1087
    %v1098 = vsub.f32 %v1082, %v1090
    %v1099 = vsub.f32 %v1083, %v1093
    %v1100 = vsub.f32 %v1084, %v1096
    %v1101 = vmul.f32 %v1097, 1.442695
    %v1102 = vpow.pop %v1101
    %v1103 = vmul.f32 %v1098, 1.442695
    %v1104 = vpow.pop %v1103
    %v1105 = vmul.f32 %v1099, 1.442695
    %v1106 = vpow.pop %v1105
    %v1107 = vmul.f32 %v1100, 1.442695
    %v1108 = vpow.pop %v1107
    %v1109 = vsel %vm679, %v1102, 0.0
    %1110 = vadd.xlane.f32.xlu0 %v1109
    %v1111 = vpop.xlane.xlu0 %1110
    %v1112 = vsel %vm679, %v1104, 0.0
    %1113 = vadd.xlane.f32.xlu0 %v1112
    %v1114 = vpop.xlane.xlu0 %1113
    %v1115 = vsel %vm679, %v1106, 0.0
    %1116 = vadd.xlane.f32.xlu0 %v1115
    %v1117 = vpop.xlane.xlu0 %1116
    %v1118 = vsel %vm679, %v1108, 0.0
    %1119 = vadd.xlane.f32.xlu0 %v1118
    %v1120 = vpop.xlane.xlu0 %1119
    %1121 = vrot.lane.b32.xlu0 %v478, 56
    %v1122 = vpop.permute.xlu0 %1121
    %1123 = vrot.lane.b32.xlu0 %v483, 56
    %v1124 = vpop.permute.xlu0 %1123
    %v1128 = vsel %vm679, %v1102, 0
    %v1131 = vsel %vm679, %v1104, 0
    %1133 = vmatprep.subr.mxu0 0.0
    %1134 = vmatpush1.msra.mxu0 0.0
    %1135 = vmatprep.subr.mxu0 0.0
    %1136 = vmatpush1.msra.mxu0 0.0
    %1137 = vmatprep.subr.mxu0 0.0
    %1138 = vmatpush1.msra.mxu0 0.0
    %1139 = vmatprep.subr.mxu0 0.0
    %1140 = vmatpush1.msra.mxu0 0.0
    %1141 = vmatprep.subr.mxu0 0.0
    %1142 = vmatpush1.msra.mxu0 0.0
    %1143 = vmatprep.subr.mxu0 0.0
    %1144 = vmatpush1.msra.mxu0 0.0
    %1145 = vmatprep.subr.mxu0 0.0
    %1146 = vmatpush1.msra.mxu0 0.0
    %1147 = vmatprep.subr.mxu0 0.0
    %1148 = vmatpush1.msra.mxu0 0.0
    %1149 = vmatprep.subr.mxu0 0.0
    %1150 = vmatpush1.msra.mxu0 0.0
    %1151 = vmatprep.subr.mxu0 0.0
    %1152 = vmatpush1.msra.mxu0 0.0
    %1153 = vmatprep.subr.mxu0 0.0
    %1154 = vmatpush1.msra.mxu0 0.0
    %1155 = vmatprep.subr.mxu0 0.0
    %1156 = vmatpush1.msra.mxu0 0.0
    %1157 = vmatprep.subr.mxu0 0.0
    %1158 = vmatpush1.msra.mxu0 0.0
    %1159 = vmatprep.subr.mxu0 0.0
    %1160 = vmatpush1.msra.mxu0 0.0
    %1161 = vmatprep.subr.mxu0 0.0
    %1162 = vmatpush1.msra.mxu0 %v1124
    %1163 = vmatprep.subr.mxu0 0.0
    %1164 = vmatpush1.msra.mxu0 %v1122
    %1165 = vmatprep.subr.mxu0 0.0
    %1166 = vmatpush2.msra.mxu0 0.0
    %1167 = vmatprep.subr.mxu0 0.0
    %1168 = vmatpush2.msra.mxu0 0.0
    %1169 = vmatprep.subr.mxu0 0.0
    %1170 = vmatpush2.msra.mxu0 0.0
    %1171 = vmatprep.subr.mxu0 0.0
    %1172 = vmatpush2.msra.mxu0 0.0
    %1173 = vmatprep.subr.mxu0 0.0
    %1174 = vmatpush2.msra.mxu0 0.0
    %1175 = vmatprep.subr.mxu0 0.0
    %1176 = vmatpush2.msra.mxu0 0.0
    %1177 = vmatprep.subr.mxu0 0.0
    %1178 = vmatpush2.msra.mxu0 0.0
    %1179 = vmatprep.subr.mxu0 0.0
    %1180 = vmatpush2.msra.mxu0 0.0
    %1181 = vmatprep.subr.mxu0 0.0
    %1182 = vmatpush2.msra.mxu0 0.0
    %1183 = vmatprep.subr.mxu0 0.0
    %1184 = vmatpush2.msra.mxu0 0.0
    %1185 = vmatprep.subr.mxu0 0.0
    %1186 = vmatpush2.msra.mxu0 0.0
    %1187 = vmatprep.subr.mxu0 0.0
    %1188 = vmatpush2.msra.mxu0 0.0
    %1189 = vmatprep.subr.mxu0 0.0
    %1190 = vmatpush2.msra.mxu0 0.0
    %1191 = vmatprep.subr.mxu0 0.0
    %1192 = vmatpush2.msra.mxu0 0.0
    %1193 = vmatprep.subr.mxu0 0.0
    %1194 = vmatpush2.msra.mxu0 0.0
    %1195 = vmatprep.subr.mxu0 0.0
    %1196 = vmatpush2.msra.mxu0 0.0
    %1197 = vmatprep.mubr.f32.mxu0 0.0
    %1198 = vmatmul.mubr.f32.gmra.mxu0 %v1128
    %v1199 = vpop.f32.mrf.mxu0
    %v1200 = vadd.f32 0.0, %v1199
    %v1201 = vpop.f32.mrf.mxu0
    %1202 = vmatprep.mubr.f32.mxu0 0.0
    %1203 = vmatmul.mubr.f32.gmra.mxu0 %v1131
    %v1204 = vpop.f32.mrf.mxu0
    %v1205 = vadd.f32 0.0, %v1204
    %v1206 = vpop.f32.mrf.mxu0
    %1207 = vdwg.mxu0
    %1208 = vrot.lane.b32.xlu0 %v488, 56
    %v1209 = vpop.permute.xlu0 %1208
    %1210 = vrot.lane.b32.xlu0 %v493, 56
    %v1211 = vpop.permute.xlu0 %1210
    %v1215 = vsel %vm679, %v1106, 0
    %v1218 = vsel %vm679, %v1108, 0
    %1220 = vmatprep.subr.mxu0 0.0
    %1221 = vmatpush1.msra.mxu0 0.0
    %1222 = vmatprep.subr.mxu0 0.0
    %1223 = vmatpush1.msra.mxu0 0.0
    %1224 = vmatprep.subr.mxu0 0.0
    %1225 = vmatpush1.msra.mxu0 0.0
    %1226 = vmatprep.subr.mxu0 0.0
    %1227 = vmatpush1.msra.mxu0 0.0
    %1228 = vmatprep.subr.mxu0 0.0
    %1229 = vmatpush1.msra.mxu0 0.0
    %1230 = vmatprep.subr.mxu0 0.0
    %1231 = vmatpush1.msra.mxu0 0.0
    %1232 = vmatprep.subr.mxu0 0.0
    %1233 = vmatpush1.msra.mxu0 0.0
    %1234 = vmatprep.subr.mxu0 0.0
    %1235 = vmatpush1.msra.mxu0 0.0
    %1236 = vmatprep.subr.mxu0 0.0
    %1237 = vmatpush1.msra.mxu0 0.0
    %1238 = vmatprep.subr.mxu0 0.0
    %1239 = vmatpush1.msra.mxu0 0.0
    %1240 = vmatprep.subr.mxu0 0.0
    %1241 = vmatpush1.msra.mxu0 0.0
    %1242 = vmatprep.subr.mxu0 0.0
    %1243 = vmatpush1.msra.mxu0 0.0
    %1244 = vmatprep.subr.mxu0 0.0
    %1245 = vmatpush1.msra.mxu0 0.0
    %1246 = vmatprep.subr.mxu0 0.0
    %1247 = vmatpush1.msra.mxu0 0.0
    %1248 = vmatprep.subr.mxu0 0.0
    %1249 = vmatpush1.msra.mxu0 %v1211
    %1250 = vmatprep.subr.mxu0 0.0
    %1251 = vmatpush1.msra.mxu0 %v1209
    %1252 = vmatprep.subr.mxu0 0.0
    %1253 = vmatpush2.msra.mxu0 0.0
    %1254 = vmatprep.subr.mxu0 0.0
    %1255 = vmatpush2.msra.mxu0 0.0
    %1256 = vmatprep.subr.mxu0 0.0
    %1257 = vmatpush2.msra.mxu0 0.0
    %1258 = vmatprep.subr.mxu0 0.0
    %1259 = vmatpush2.msra.mxu0 0.0
    %1260 = vmatprep.subr.mxu0 0.0
    %1261 = vmatpush2.msra.mxu0 0.0
    %1262 = vmatprep.subr.mxu0 0.0
    %1263 = vmatpush2.msra.mxu0 0.0
    %1264 = vmatprep.subr.mxu0 0.0
    %1265 = vmatpush2.msra.mxu0 0.0
    %1266 = vmatprep.subr.mxu0 0.0
    %1267 = vmatpush2.msra.mxu0 0.0
    %1268 = vmatprep.subr.mxu0 0.0
    %1269 = vmatpush2.msra.mxu0 0.0
    %1270 = vmatprep.subr.mxu0 0.0
    %1271 = vmatpush2.msra.mxu0 0.0
    %1272 = vmatprep.subr.mxu0 0.0
    %1273 = vmatpush2.msra.mxu0 0.0
    %1274 = vmatprep.subr.mxu0 0.0
    %1275 = vmatpush2.msra.mxu0 0.0
    %1276 = vmatprep.subr.mxu0 0.0
    %1277 = vmatpush2.msra.mxu0 0.0
    %1278 = vmatprep.subr.mxu0 0.0
    %1279 = vmatpush2.msra.mxu0 0.0
    %1280 = vmatprep.subr.mxu0 0.0
    %1281 = vmatpush2.msra.mxu0 0.0
    %1282 = vmatprep.subr.mxu0 0.0
    %1283 = vmatpush2.msra.mxu0 0.0
    %1284 = vmatprep.mubr.f32.mxu0 0.0
    %1285 = vmatmul.mubr.f32.gmra.mxu0 %v1215
    %v1286 = vpop.f32.mrf.mxu0
    %v1287 = vadd.f32 0.0, %v1286
    %v1288 = vpop.f32.mrf.mxu0
    %1289 = vmatprep.mubr.f32.mxu0 0.0
    %1290 = vmatmul.mubr.f32.gmra.mxu0 %v1218
    %v1291 = vpop.f32.mrf.mxu0
    %v1292 = vadd.f32 0.0, %v1291
    %v1293 = vpop.f32.mrf.mxu0
    %1294 = vdwg.mxu0
    %v1295 = vrcp.pop %v1111
    %v1296 = vrcp.pop %v1114
    %v1297 = vrcp.pop %v1117
    %v1298 = vrcp.pop %v1120
    %v1299 = vmul.f32 %v1200, %v1295
    %v1300 = vmul.f32 %v1205, %v1296
    %v1301 = vmul.f32 %v1287, %v1297
    %v1302 = vmul.f32 %v1292, %v1298
    %v1303 = vld [vmem:[%s61 + $0x8] sm:$0xff]
    %v1305 = vsel %vm502, %v1299, 0
    %v1308 = vsel %vm502, %v1300, 0
    %v1311 = vsel %vm502, %v1301, 0
    %v1314 = vsel %vm502, %v1302, 0
    %1316 = vmatprep.subr.mxu0 0.0
    %1317 = vmatpush1.msra.mxu0 0.0
    %1318 = vmatprep.subr.mxu0 0.0
    %1319 = vmatpush1.msra.mxu0 0.0
    %1320 = vmatprep.subr.mxu0 0.0
    %1321 = vmatpush1.msra.mxu0 0.0
    %1322 = vmatprep.subr.mxu0 0.0
    %1323 = vmatpush1.msra.mxu0 0.0
    %1324 = vmatprep.subr.mxu0 0.0
    %1325 = vmatpush1.msra.mxu0 0.0
    %1326 = vmatprep.subr.mxu0 0.0
    %1327 = vmatpush1.msra.mxu0 0.0
    %1328 = vmatprep.subr.mxu0 0.0
    %1329 = vmatpush1.msra.mxu0 0.0
    %1330 = vmatprep.subr.mxu0 0.0
    %1331 = vmatpush1.msra.mxu0 0.0
    %1332 = vmatprep.subr.mxu0 0.0
    %1333 = vmatpush1.msra.mxu0 0.0
    %1334 = vmatprep.subr.mxu0 0.0
    %1335 = vmatpush1.msra.mxu0 0.0
    %1336 = vmatprep.subr.mxu0 0.0
    %1337 = vmatpush1.msra.mxu0 0.0
    %1338 = vmatprep.subr.mxu0 0.0
    %1339 = vmatpush1.msra.mxu0 0.0
    %1340 = vmatprep.subr.mxu0 0.0
    %1341 = vmatpush1.msra.mxu0 0.0
    %1342 = vmatprep.subr.mxu0 0.0
    %1343 = vmatpush1.msra.mxu0 0.0
    %1344 = vmatprep.subr.mxu0 0.0
    %1345 = vmatpush1.msra.mxu0 0.0
    %1346 = vmatprep.subr.mxu0 0.0
    %1347 = vmatpush1.msra.mxu0 %v1303
    %1348 = vmatprep.subr.mxu0 0.0
    %1349 = vmatpush2.msra.mxu0 0.0
    %1350 = vmatprep.subr.mxu0 0.0
    %1351 = vmatpush2.msra.mxu0 0.0
    %1352 = vmatprep.subr.mxu0 0.0
    %1353 = vmatpush2.msra.mxu0 0.0
    %1354 = vmatprep.subr.mxu0 0.0
    %1355 = vmatpush2.msra.mxu0 0.0
    %1356 = vmatprep.subr.mxu0 0.0
    %1357 = vmatpush2.msra.mxu0 0.0
    %1358 = vmatprep.subr.mxu0 0.0
    %1359 = vmatpush2.msra.mxu0 0.0
    %1360 = vmatprep.subr.mxu0 0.0
    %1361 = vmatpush2.msra.mxu0 0.0
    %1362 = vmatprep.subr.mxu0 0.0
    %1363 = vmatpush2.msra.mxu0 0.0
    %1364 = vmatprep.subr.mxu0 0.0
    %1365 = vmatpush2.msra.mxu0 0.0
    %1366 = vmatprep.subr.mxu0 0.0
    %1367 = vmatpush2.msra.mxu0 0.0
    %1368 = vmatprep.subr.mxu0 0.0
    %1369 = vmatpush2.msra.mxu0 0.0
    %1370 = vmatprep.subr.mxu0 0.0
    %1371 = vmatpush2.msra.mxu0 0.0
    %1372 = vmatprep.subr.mxu0 0.0
    %1373 = vmatpush2.msra.mxu0 0.0
    %1374 = vmatprep.subr.mxu0 0.0
    %1375 = vmatpush2.msra.mxu0 0.0
    %1376 = vmatprep.subr.mxu0 0.0
    %1377 = vmatpush2.msra.mxu0 0.0
    %1378 = vmatprep.subr.mxu0 0.0
    %1379 = vmatpush2.msra.mxu0 0.0
    %1380 = vmatprep.mubr.f32.mxu0 0.0
    %1381 = vmatmul.mubr.f32.gmra.mxu0 %v1305
    %v1382 = vpop.f32.mrf.mxu0
    %v1383 = vadd.f32 0.0, %v1382
    %v1384 = vpop.f32.mrf.mxu0
    %1385 = vmatprep.mubr.f32.mxu0 0.0
    %1386 = vmatmul.mubr.f32.gmra.mxu0 %v1308
    %v1387 = vpop.f32.mrf.mxu0
    %v1388 = vadd.f32 0.0, %v1387
    %v1389 = vpop.f32.mrf.mxu0
    %1390 = vmatprep.mubr.f32.mxu0 0.0
    %1391 = vmatmul.mubr.f32.gmra.mxu0 %v1311
    %v1392 = vpop.f32.mrf.mxu0
    %v1393 = vadd.f32 0.0, %v1392
    %v1394 = vpop.f32.mrf.mxu0
    %1395 = vmatprep.mubr.f32.mxu0 0.0
    %1396 = vmatmul.mubr.f32.gmra.mxu0 %v1314
    %v1397 = vpop.f32.mrf.mxu0
    %v1398 = vadd.f32 0.0, %v1397
    %v1399 = vpop.f32.mrf.mxu0
    %1400 = vdwg.mxu0
    %v1402 = vsel %vm502, %v894, 0
    %v1405 = vsel %vm502, %v895, 0
    %v1408 = vsel %vm502, %v896, 0
    %v1411 = vsel %vm502, %v897, 0
    %1413 = vmatprep.subr.mxu0 0.0
    %1414 = vmatpush1.msra.mxu0 0.0
    %1415 = vmatprep.subr.mxu0 0.0
    %1416 = vmatpush1.msra.mxu0 0.0
    %1417 = vmatprep.subr.mxu0 0.0
    %1418 = vmatpush1.msra.mxu0 0.0
    %1419 = vmatprep.subr.mxu0 0.0
    %1420 = vmatpush1.msra.mxu0 0.0
    %1421 = vmatprep.subr.mxu0 0.0
    %1422 = vmatpush1.msra.mxu0 0.0
    %1423 = vmatprep.subr.mxu0 0.0
    %1424 = vmatpush1.msra.mxu0 0.0
    %1425 = vmatprep.subr.mxu0 0.0
    %1426 = vmatpush1.msra.mxu0 0.0
    %1427 = vmatprep.subr.mxu0 0.0
    %1428 = vmatpush1.msra.mxu0 0.0
    %1429 = vmatprep.subr.mxu0 0.0
    %1430 = vmatpush1.msra.mxu0 0.0
    %1431 = vmatprep.subr.mxu0 0.0
    %1432 = vmatpush1.msra.mxu0 0.0
    %1433 = vmatprep.subr.mxu0 0.0
    %1434 = vmatpush1.msra.mxu0 0.0
    %1435 = vmatprep.subr.mxu0 0.0
    %1436 = vmatpush1.msra.mxu0 0.0
    %1437 = vmatprep.subr.mxu0 0.0
    %1438 = vmatpush1.msra.mxu0 0.0
    %1439 = vmatprep.subr.mxu0 0.0
    %1440 = vmatpush1.msra.mxu0 0.0
    %1441 = vmatprep.subr.mxu0 0.0
    %1442 = vmatpush1.msra.mxu0 0.0
    %1443 = vmatprep.subr.mxu0 0.0
    %1444 = vmatpush1.msra.mxu0 %v898
    %1445 = vmatprep.subr.mxu0 0.0
    %1446 = vmatpush2.msra.mxu0 0.0
    %1447 = vmatprep.subr.mxu0 0.0
    %1448 = vmatpush2.msra.mxu0 0.0
    %1449 = vmatprep.subr.mxu0 0.0
    %1450 = vmatpush2.msra.mxu0 0.0
    %1451 = vmatprep.subr.mxu0 0.0
    %1452 = vmatpush2.msra.mxu0 0.0
    %1453 = vmatprep.subr.mxu0 0.0
    %1454 = vmatpush2.msra.mxu0 0.0
    %1455 = vmatprep.subr.mxu0 0.0
    %1456 = vmatpush2.msra.mxu0 0.0
    %1457 = vmatprep.subr.mxu0 0.0
    %1458 = vmatpush2.msra.mxu0 0.0
    %1459 = vmatprep.subr.mxu0 0.0
    %1460 = vmatpush2.msra.mxu0 0.0
    %1461 = vmatprep.subr.mxu0 0.0
    %1462 = vmatpush2.msra.mxu0 0.0
    %1463 = vmatprep.subr.mxu0 0.0
    %1464 = vmatpush2.msra.mxu0 0.0
    %1465 = vmatprep.subr.mxu0 0.0
    %1466 = vmatpush2.msra.mxu0 0.0
    %1467 = vmatprep.subr.mxu0 0.0
    %1468 = vmatpush2.msra.mxu0 0.0
    %1469 = vmatprep.subr.mxu0 0.0
    %1470 = vmatpush2.msra.mxu0 0.0
    %1471 = vmatprep.subr.mxu0 0.0
    %1472 = vmatpush2.msra.mxu0 0.0
    %1473 = vmatprep.subr.mxu0 0.0
    %1474 = vmatpush2.msra.mxu0 0.0
    %1475 = vmatprep.subr.mxu0 0.0
    %1476 = vmatpush2.msra.mxu0 0.0
    %1477 = vmatprep.mubr.f32.mxu0 0.0
    %1478 = vmatmul.mubr.f32.gmra.mxu0 %v1402
    %v1479 = vpop.f32.mrf.mxu0
    %v1480 = vadd.f32 %v1383, %v1479
    %v1481 = vpop.f32.mrf.mxu0
    %1482 = vmatprep.mubr.f32.mxu0 0.0
    %1483 = vmatmul.mubr.f32.gmra.mxu0 %v1405
    %v1484 = vpop.f32.mrf.mxu0
    %v1485 = vadd.f32 %v1388, %v1484
    %v1486 = vpop.f32.mrf.mxu0
    %1487 = vmatprep.mubr.f32.mxu0 0.0
    %1488 = vmatmul.mubr.f32.gmra.mxu0 %v1408
    %v1489 = vpop.f32.mrf.mxu0
    %v1490 = vadd.f32 %v1393, %v1489
    %v1491 = vpop.f32.mrf.mxu0
    %1492 = vmatprep.mubr.f32.mxu0 0.0
    %1493 = vmatmul.mubr.f32.gmra.mxu0 %v1411
    %v1494 = vpop.f32.mrf.mxu0
    %v1495 = vadd.f32 %v1398, %v1494
    %v1496 = vpop.f32.mrf.mxu0
    %1497 = vdwg.mxu0
    %1498 = vrot.lane.b32.xlu0 %v478, 112
    %v1499 = vpop.permute.xlu0 %1498
    %1500 = vrot.lane.b32.xlu0 %v483, 112
    %v1501 = vpop.permute.xlu0 %1500
    %1502 = vrot.lane.b32.xlu0 %v478, 80
    %v1503 = vpop.permute.xlu0 %1502
    %1504 = vrot.lane.b32.xlu0 %v483, 80
    %v1505 = vpop.permute.xlu0 %1504
    %v1506 = vsel %vm502, %v1499, 0
    %v1508 = vsel %vm502, %v1501, 0
    %v1510 = vsel %vm502, %v1503, 0
    %v1512 = vsel %vm502, %v1505, 0
    %1514 = vmatprep.subr.mxu0 0.0
    %1515 = vmatpush1.xpose.msra.mxu0 0.0
    %1516 = vmatprep.subr.mxu0 0.0
    %1517 = vmatpush1.xpose.msra.mxu0 0.0
    %1518 = vmatprep.subr.mxu0 0.0
    %1519 = vmatpush1.xpose.msra.mxu0 0.0
    %1520 = vmatprep.subr.mxu0 0.0
    %1521 = vmatpush1.xpose.msra.mxu0 0.0
    %1522 = vmatprep.subr.mxu0 0.0
    %1523 = vmatpush1.xpose.msra.mxu0 0.0
    %1524 = vmatprep.subr.mxu0 0.0
    %1525 = vmatpush1.xpose.msra.mxu0 0.0
    %1526 = vmatprep.subr.mxu0 0.0
    %1527 = vmatpush1.xpose.msra.mxu0 0.0
    %1528 = vmatprep.subr.mxu0 0.0
    %1529 = vmatpush1.xpose.msra.mxu0 0.0
    %1530 = vmatprep.subr.mxu0 0.0
    %1531 = vmatpush1.xpose.msra.mxu0 0.0
    %1532 = vmatprep.subr.mxu0 0.0
    %1533 = vmatpush1.xpose.msra.mxu0 0.0
    %1534 = vmatprep.subr.mxu0 0.0
    %1535 = vmatpush1.xpose.msra.mxu0 0.0
    %1536 = vmatprep.subr.mxu0 0.0
    %1537 = vmatpush1.xpose.msra.mxu0 0.0
    %1538 = vmatprep.subr.mxu0 0.0
    %1539 = vmatpush1.xpose.msra.mxu0 0.0
    %1540 = vmatprep.subr.mxu0 0.0
    %1541 = vmatpush1.xpose.msra.mxu0 0.0
    %1542 = vmatprep.subr.mxu0 0.0
    %1543 = vmatpush1.xpose.msra.mxu0 %v1512
    %1544 = vmatprep.subr.mxu0 0.0
    %1545 = vmatpush1.xpose.msra.mxu0 %v1510
    %1546 = vmatprep.subr.mxu0 0.0
    %1547 = vmatpush2.xpose.msra.mxu0 0.0
    %1548 = vmatprep.subr.mxu0 0.0
    %1549 = vmatpush2.xpose.msra.mxu0 0.0
    %1550 = vmatprep.subr.mxu0 0.0
    %1551 = vmatpush2.xpose.msra.mxu0 0.0
    %1552 = vmatprep.subr.mxu0 0.0
    %1553 = vmatpush2.xpose.msra.mxu0 0.0
    %1554 = vmatprep.subr.mxu0 0.0
    %1555 = vmatpush2.xpose.msra.mxu0 0.0
    %1556 = vmatprep.subr.mxu0 0.0
    %1557 = vmatpush2.xpose.msra.mxu0 0.0
    %1558 = vmatprep.subr.mxu0 0.0
    %1559 = vmatpush2.xpose.msra.mxu0 0.0
    %1560 = vmatprep.subr.mxu0 0.0
    %1561 = vmatpush2.xpose.msra.mxu0 0.0
    %1562 = vmatprep.subr.mxu0 0.0
    %1563 = vmatpush2.xpose.msra.mxu0 0.0
    %1564 = vmatprep.subr.mxu0 0.0
    %1565 = vmatpush2.xpose.msra.mxu0 0.0
    %1566 = vmatprep.subr.mxu0 0.0
    %1567 = vmatpush2.xpose.msra.mxu0 0.0
    %1568 = vmatprep.subr.mxu0 0.0
    %1569 = vmatpush2.xpose.msra.mxu0 0.0
    %1570 = vmatprep.subr.mxu0 0.0
    %1571 = vmatpush2.xpose.msra.mxu0 0.0
    %1572 = vmatprep.subr.mxu0 0.0
    %1573 = vmatpush2.xpose.msra.mxu0 0.0
    %1574 = vmatprep.subr.mxu0 0.0
    %1575 = vmatpush2.xpose.msra.mxu0 0.0
    %1576 = vmatprep.subr.mxu0 0.0
    %1577 = vmatpush2.xpose.msra.mxu0 0.0
    %1578 = vmatprep.mubr.f32.mxu0 0.0
    %1579 = vmatmul.mubr.f32.gmra.mxu0 %v1506
    %v1580 = vpop.f32.mrf.mxu0
    %v1581 = vadd.f32 0.0, %v1580
    %v1582 = vpop.f32.mrf.mxu0
    %1583 = vmatprep.mubr.f32.mxu0 0.0
    %1584 = vmatmul.mubr.f32.gmra.mxu0 %v1508
    %v1585 = vpop.f32.mrf.mxu0
    %v1586 = vadd.f32 0.0, %v1585
    %v1587 = vpop.f32.mrf.mxu0
    %1588 = vdwg.mxu0
    %1589 = vrot.lane.b32.xlu0 %v488, 112
    %v1590 = vpop.permute.xlu0 %1589
    %1591 = vrot.lane.b32.xlu0 %v493, 112
    %v1592 = vpop.permute.xlu0 %1591
    %1593 = vrot.lane.b32.xlu0 %v488, 80
    %v1594 = vpop.permute.xlu0 %1593
    %1595 = vrot.lane.b32.xlu0 %v493, 80
    %v1596 = vpop.permute.xlu0 %1595
    %v1597 = vsel %vm502, %v1590, 0
    %v1599 = vsel %vm502, %v1592, 0
    %v1601 = vsel %vm502, %v1594, 0
    %v1603 = vsel %vm502, %v1596, 0
    %1605 = vmatprep.subr.mxu0 0.0
    %1606 = vmatpush1.xpose.msra.mxu0 0.0
    %1607 = vmatprep.subr.mxu0 0.0
    %1608 = vmatpush1.xpose.msra.mxu0 0.0
    %1609 = vmatprep.subr.mxu0 0.0
    %1610 = vmatpush1.xpose.msra.mxu0 0.0
    %1611 = vmatprep.subr.mxu0 0.0
    %1612 = vmatpush1.xpose.msra.mxu0 0.0
    %1613 = vmatprep.subr.mxu0 0.0
    %1614 = vmatpush1.xpose.msra.mxu0 0.0
    %1615 = vmatprep.subr.mxu0 0.0
    %1616 = vmatpush1.xpose.msra.mxu0 0.0
    %1617 = vmatprep.subr.mxu0 0.0
    %1618 = vmatpush1.xpose.msra.mxu0 0.0
    %1619 = vmatprep.subr.mxu0 0.0
    %1620 = vmatpush1.xpose.msra.mxu0 0.0
    %1621 = vmatprep.subr.mxu0 0.0
    %1622 = vmatpush1.xpose.msra.mxu0 0.0
    %1623 = vmatprep.subr.mxu0 0.0
    %1624 = vmatpush1.xpose.msra.mxu0 0.0
    %1625 = vmatprep.subr.mxu0 0.0
    %1626 = vmatpush1.xpose.msra.mxu0 0.0
    %1627 = vmatprep.subr.mxu0 0.0
    %1628 = vmatpush1.xpose.msra.mxu0 0.0
    %1629 = vmatprep.subr.mxu0 0.0
    %1630 = vmatpush1.xpose.msra.mxu0 0.0
    %1631 = vmatprep.subr.mxu0 0.0
    %1632 = vmatpush1.xpose.msra.mxu0 0.0
    %1633 = vmatprep.subr.mxu0 0.0
    %1634 = vmatpush1.xpose.msra.mxu0 %v1603
    %1635 = vmatprep.subr.mxu0 0.0
    %1636 = vmatpush1.xpose.msra.mxu0 %v1601
    %1637 = vmatprep.subr.mxu0 0.0
    %1638 = vmatpush2.xpose.msra.mxu0 0.0
    %1639 = vmatprep.subr.mxu0 0.0
    %1640 = vmatpush2.xpose.msra.mxu0 0.0
    %1641 = vmatprep.subr.mxu0 0.0
    %1642 = vmatpush2.xpose.msra.mxu0 0.0
    %1643 = vmatprep.subr.mxu0 0.0
    %1644 = vmatpush2.xpose.msra.mxu0 0.0
    %1645 = vmatprep.subr.mxu0 0.0
    %1646 = vmatpush2.xpose.msra.mxu0 0.0
    %1647 = vmatprep.subr.mxu0 0.0
    %1648 = vmatpush2.xpose.msra.mxu0 0.0
    %1649 = vmatprep.subr.mxu0 0.0
    %1650 = vmatpush2.xpose.msra.mxu0 0.0
    %1651 = vmatprep.subr.mxu0 0.0
    %1652 = vmatpush2.xpose.msra.mxu0 0.0
    %1653 = vmatprep.subr.mxu0 0.0
    %1654 = vmatpush2.xpose.msra.mxu0 0.0
    %1655 = vmatprep.subr.mxu0 0.0
    %1656 = vmatpush2.xpose.msra.mxu0 0.0
    %1657 = vmatprep.subr.mxu0 0.0
    %1658 = vmatpush2.xpose.msra.mxu0 0.0
    %1659 = vmatprep.subr.mxu0 0.0
    %1660 = vmatpush2.xpose.msra.mxu0 0.0
    %1661 = vmatprep.subr.mxu0 0.0
    %1662 = vmatpush2.xpose.msra.mxu0 0.0
    %1663 = vmatprep.subr.mxu0 0.0
    %1664 = vmatpush2.xpose.msra.mxu0 0.0
    %1665 = vmatprep.subr.mxu0 0.0
    %1666 = vmatpush2.xpose.msra.mxu0 0.0
    %1667 = vmatprep.subr.mxu0 0.0
    %1668 = vmatpush2.xpose.msra.mxu0 0.0
    %1669 = vmatprep.mubr.f32.mxu0 0.0
    %1670 = vmatmul.mubr.f32.gmra.mxu0 %v1597
    %v1671 = vpop.f32.mrf.mxu0
    %v1672 = vadd.f32 0.0, %v1671
    %v1673 = vpop.f32.mrf.mxu0
    %1674 = vmatprep.mubr.f32.mxu0 0.0
    %1675 = vmatmul.mubr.f32.gmra.mxu0 %v1599
    %v1676 = vpop.f32.mrf.mxu0
    %v1677 = vadd.f32 0.0, %v1676
    %v1678 = vpop.f32.mrf.mxu0
    %1679 = vdwg.mxu0
    %v1680 = vmul.f32 %v1581, 0.35355338
    %v1681 = vmul.f32 %v1586, 0.35355338
    %v1682 = vmul.f32 %v1672, 0.35355338
    %v1683 = vmul.f32 %v1677, 0.35355338
    %v1684 = vsel %vm679, %v1680, -inf
    %1685 = vmax.xlane.f32.xlu0 %v1684
    %v1686 = vpop.xlane.xlu0 %1685
    %v1687 = vsel %vm679, %v1681, -inf
    %1688 = vmax.xlane.f32.xlu0 %v1687
    %v1689 = vpop.xlane.xlu0 %1688
    %v1690 = vsel %vm679, %v1682, -inf
    %1691 = vmax.xlane.f32.xlu0 %v1690
    %v1692 = vpop.xlane.xlu0 %1691
    %v1693 = vsel %vm679, %v1683, -inf
    %1694 = vmax.xlane.f32.xlu0 %v1693
    %v1695 = vpop.xlane.xlu0 %1694
    %v1696 = vsub.f32 %v1680, %v1686
    %v1697 = vsub.f32 %v1681, %v1689
    %v1698 = vsub.f32 %v1682, %v1692
    %v1699 = vsub.f32 %v1683, %v1695
    %v1700 = vmul.f32 %v1696, 1.442695
    %v1701 = vpow.pop %v1700
    %v1702 = vmul.f32 %v1697, 1.442695
    %v1703 = vpow.pop %v1702
    %v1704 = vmul.f32 %v1698, 1.442695
    %v1705 = vpow.pop %v1704
    %v1706 = vmul.f32 %v1699, 1.442695
    %v1707 = vpow.pop %v1706
    %v1708 = vsel %vm679, %v1701, 0.0
    %1709 = vadd.xlane.f32.xlu0 %v1708
    %v1710 = vpop.xlane.xlu0 %1709
    %v1711 = vsel %vm679, %v1703, 0.0
    %1712 = vadd.xlane.f32.xlu0 %v1711
    %v1713 = vpop.xlane.xlu0 %1712
    %v1714 = vsel %vm679, %v1705, 0.0
    %1715 = vadd.xlane.f32.xlu0 %v1714
    %v1716 = vpop.xlane.xlu0 %1715
    %v1717 = vsel %vm679, %v1707, 0.0
    %1718 = vadd.xlane.f32.xlu0 %v1717
    %v1719 = vpop.xlane.xlu0 %1718
    %1720 = vrot.lane.b32.xlu0 %v478, 48
    %v1721 = vpop.permute.xlu0 %1720
    %1722 = vrot.lane.b32.xlu0 %v483, 48
    %v1723 = vpop.permute.xlu0 %1722
    %v1727 = vsel %vm679, %v1701, 0
    %v1730 = vsel %vm679, %v1703, 0
    %1732 = vmatprep.subr.mxu0 0.0
    %1733 = vmatpush1.msra.mxu0 0.0
    %1734 = vmatprep.subr.mxu0 0.0
    %1735 = vmatpush1.msra.mxu0 0.0
    %1736 = vmatprep.subr.mxu0 0.0
    %1737 = vmatpush1.msra.mxu0 0.0
    %1738 = vmatprep.subr.mxu0 0.0
    %1739 = vmatpush1.msra.mxu0 0.0
    %1740 = vmatprep.subr.mxu0 0.0
    %1741 = vmatpush1.msra.mxu0 0.0
    %1742 = vmatprep.subr.mxu0 0.0
    %1743 = vmatpush1.msra.mxu0 0.0
    %1744 = vmatprep.subr.mxu0 0.0
    %1745 = vmatpush1.msra.mxu0 0.0
    %1746 = vmatprep.subr.mxu0 0.0
    %1747 = vmatpush1.msra.mxu0 0.0
    %1748 = vmatprep.subr.mxu0 0.0
    %1749 = vmatpush1.msra.mxu0 0.0
    %1750 = vmatprep.subr.mxu0 0.0
    %1751 = vmatpush1.msra.mxu0 0.0
    %1752 = vmatprep.subr.mxu0 0.0
    %1753 = vmatpush1.msra.mxu0 0.0
    %1754 = vmatprep.subr.mxu0 0.0
    %1755 = vmatpush1.msra.mxu0 0.0
    %1756 = vmatprep.subr.mxu0 0.0
    %1757 = vmatpush1.msra.mxu0 0.0
    %1758 = vmatprep.subr.mxu0 0.0
    %1759 = vmatpush1.msra.mxu0 0.0
    %1760 = vmatprep.subr.mxu0 0.0
    %1761 = vmatpush1.msra.mxu0 %v1723
    %1762 = vmatprep.subr.mxu0 0.0
    %1763 = vmatpush1.msra.mxu0 %v1721
    %1764 = vmatprep.subr.mxu0 0.0
    %1765 = vmatpush2.msra.mxu0 0.0
    %1766 = vmatprep.subr.mxu0 0.0
    %1767 = vmatpush2.msra.mxu0 0.0
    %1768 = vmatprep.subr.mxu0 0.0
    %1769 = vmatpush2.msra.mxu0 0.0
    %1770 = vmatprep.subr.mxu0 0.0
    %1771 = vmatpush2.msra.mxu0 0.0
    %1772 = vmatprep.subr.mxu0 0.0
    %1773 = vmatpush2.msra.mxu0 0.0
    %1774 = vmatprep.subr.mxu0 0.0
    %1775 = vmatpush2.msra.mxu0 0.0
    %1776 = vmatprep.subr.mxu0 0.0
    %1777 = vmatpush2.msra.mxu0 0.0
    %1778 = vmatprep.subr.mxu0 0.0
    %1779 = vmatpush2.msra.mxu0 0.0
    %1780 = vmatprep.subr.mxu0 0.0
    %1781 = vmatpush2.msra.mxu0 0.0
    %1782 = vmatprep.subr.mxu0 0.0
    %1783 = vmatpush2.msra.mxu0 0.0
    %1784 = vmatprep.subr.mxu0 0.0
    %1785 = vmatpush2.msra.mxu0 0.0
    %1786 = vmatprep.subr.mxu0 0.0
    %1787 = vmatpush2.msra.mxu0 0.0
    %1788 = vmatprep.subr.mxu0 0.0
    %1789 = vmatpush2.msra.mxu0 0.0
    %1790 = vmatprep.subr.mxu0 0.0
    %1791 = vmatpush2.msra.mxu0 0.0
    %1792 = vmatprep.subr.mxu0 0.0
    %1793 = vmatpush2.msra.mxu0 0.0
    %1794 = vmatprep.subr.mxu0 0.0
    %1795 = vmatpush2.msra.mxu0 0.0
    %1796 = vmatprep.mubr.f32.mxu0 0.0
    %1797 = vmatmul.mubr.f32.gmra.mxu0 %v1727
    %v1798 = vpop.f32.mrf.mxu0
    %v1799 = vadd.f32 0.0, %v1798
    %v1800 = vpop.f32.mrf.mxu0
    %1801 = vmatprep.mubr.f32.mxu0 0.0
    %1802 = vmatmul.mubr.f32.gmra.mxu0 %v1730
    %v1803 = vpop.f32.mrf.mxu0
    %v1804 = vadd.f32 0.0, %v1803
    %v1805 = vpop.f32.mrf.mxu0
    %1806 = vdwg.mxu0
    %1807 = vrot.lane.b32.xlu0 %v488, 48
    %v1808 = vpop.permute.xlu0 %1807
    %1809 = vrot.lane.b32.xlu0 %v493, 48
    %v1810 = vpop.permute.xlu0 %1809
    %v1814 = vsel %vm679, %v1705, 0
    %v1817 = vsel %vm679, %v1707, 0
    %1819 = vmatprep.subr.mxu0 0.0
    %1820 = vmatpush1.msra.mxu0 0.0
    %1821 = vmatprep.subr.mxu0 0.0
    %1822 = vmatpush1.msra.mxu0 0.0
    %1823 = vmatprep.subr.mxu0 0.0
    %1824 = vmatpush1.msra.mxu0 0.0
    %1825 = vmatprep.subr.mxu0 0.0
    %1826 = vmatpush1.msra.mxu0 0.0
    %1827 = vmatprep.subr.mxu0 0.0
    %1828 = vmatpush1.msra.mxu0 0.0
    %1829 = vmatprep.subr.mxu0 0.0
    %1830 = vmatpush1.msra.mxu0 0.0
    %1831 = vmatprep.subr.mxu0 0.0
    %1832 = vmatpush1.msra.mxu0 0.0
    %1833 = vmatprep.subr.mxu0 0.0
    %1834 = vmatpush1.msra.mxu0 0.0
    %1835 = vmatprep.subr.mxu0 0.0
    %1836 = vmatpush1.msra.mxu0 0.0
    %1837 = vmatprep.subr.mxu0 0.0
    %1838 = vmatpush1.msra.mxu0 0.0
    %1839 = vmatprep.subr.mxu0 0.0
    %1840 = vmatpush1.msra.mxu0 0.0
    %1841 = vmatprep.subr.mxu0 0.0
    %1842 = vmatpush1.msra.mxu0 0.0
    %1843 = vmatprep.subr.mxu0 0.0
    %1844 = vmatpush1.msra.mxu0 0.0
    %1845 = vmatprep.subr.mxu0 0.0
    %1846 = vmatpush1.msra.mxu0 0.0
    %1847 = vmatprep.subr.mxu0 0.0
    %1848 = vmatpush1.msra.mxu0 %v1810
    %1849 = vmatprep.subr.mxu0 0.0
    %1850 = vmatpush1.msra.mxu0 %v1808
    %1851 = vmatprep.subr.mxu0 0.0
    %1852 = vmatpush2.msra.mxu0 0.0
    %1853 = vmatprep.subr.mxu0 0.0
    %1854 = vmatpush2.msra.mxu0 0.0
    %1855 = vmatprep.subr.mxu0 0.0
    %1856 = vmatpush2.msra.mxu0 0.0
    %1857 = vmatprep.subr.mxu0 0.0
    %1858 = vmatpush2.msra.mxu0 0.0
    %1859 = vmatprep.subr.mxu0 0.0
    %1860 = vmatpush2.msra.mxu0 0.0
    %1861 = vmatprep.subr.mxu0 0.0
    %1862 = vmatpush2.msra.mxu0 0.0
    %1863 = vmatprep.subr.mxu0 0.0
    %1864 = vmatpush2.msra.mxu0 0.0
    %1865 = vmatprep.subr.mxu0 0.0
    %1866 = vmatpush2.msra.mxu0 0.0
    %1867 = vmatprep.subr.mxu0 0.0
    %1868 = vmatpush2.msra.mxu0 0.0
    %1869 = vmatprep.subr.mxu0 0.0
    %1870 = vmatpush2.msra.mxu0 0.0
    %1871 = vmatprep.subr.mxu0 0.0
    %1872 = vmatpush2.msra.mxu0 0.0
    %1873 = vmatprep.subr.mxu0 0.0
    %1874 = vmatpush2.msra.mxu0 0.0
    %1875 = vmatprep.subr.mxu0 0.0
    %1876 = vmatpush2.msra.mxu0 0.0
    %1877 = vmatprep.subr.mxu0 0.0
    %1878 = vmatpush2.msra.mxu0 0.0
    %1879 = vmatprep.subr.mxu0 0.0
    %1880 = vmatpush2.msra.mxu0 0.0
    %1881 = vmatprep.subr.mxu0 0.0
    %1882 = vmatpush2.msra.mxu0 0.0
    %1883 = vmatprep.mubr.f32.mxu0 0.0
    %1884 = vmatmul.mubr.f32.gmra.mxu0 %v1814
    %v1885 = vpop.f32.mrf.mxu0
    %v1886 = vadd.f32 0.0, %v1885
    %v1887 = vpop.f32.mrf.mxu0
    %1888 = vmatprep.mubr.f32.mxu0 0.0
    %1889 = vmatmul.mubr.f32.gmra.mxu0 %v1817
    %v1890 = vpop.f32.mrf.mxu0
    %v1891 = vadd.f32 0.0, %v1890
    %v1892 = vpop.f32.mrf.mxu0
    %1893 = vdwg.mxu0
    %v1894 = vrcp.pop %v1710
    %v1895 = vrcp.pop %v1713
    %v1896 = vrcp.pop %v1716
    %v1897 = vrcp.pop %v1719
    %v1898 = vmul.f32 %v1799, %v1894
    %v1899 = vmul.f32 %v1804, %v1895
    %v1900 = vmul.f32 %v1886, %v1896
    %v1901 = vmul.f32 %v1891, %v1897
    %v1902 = vld [vmem:[%s61 + $0x10] sm:$0xff]
    %v1904 = vsel %vm502, %v1898, 0
    %v1907 = vsel %vm502, %v1899, 0
    %v1910 = vsel %vm502, %v1900, 0
    %v1913 = vsel %vm502, %v1901, 0
    %1915 = vmatprep.subr.mxu0 0.0
    %1916 = vmatpush1.msra.mxu0 0.0
    %1917 = vmatprep.subr.mxu0 0.0
    %1918 = vmatpush1.msra.mxu0 0.0
    %1919 = vmatprep.subr.mxu0 0.0
    %1920 = vmatpush1.msra.mxu0 0.0
    %1921 = vmatprep.subr.mxu0 0.0
    %1922 = vmatpush1.msra.mxu0 0.0
    %1923 = vmatprep.subr.mxu0 0.0
    %1924 = vmatpush1.msra.mxu0 0.0
    %1925 = vmatprep.subr.mxu0 0.0
    %1926 = vmatpush1.msra.mxu0 0.0
    %1927 = vmatprep.subr.mxu0 0.0
    %1928 = vmatpush1.msra.mxu0 0.0
    %1929 = vmatprep.subr.mxu0 0.0
    %1930 = vmatpush1.msra.mxu0 0.0
    %1931 = vmatprep.subr.mxu0 0.0
    %1932 = vmatpush1.msra.mxu0 0.0
    %1933 = vmatprep.subr.mxu0 0.0
    %1934 = vmatpush1.msra.mxu0 0.0
    %1935 = vmatprep.subr.mxu0 0.0
    %1936 = vmatpush1.msra.mxu0 0.0
    %1937 = vmatprep.subr.mxu0 0.0
    %1938 = vmatpush1.msra.mxu0 0.0
    %1939 = vmatprep.subr.mxu0 0.0
    %1940 = vmatpush1.msra.mxu0 0.0
    %1941 = vmatprep.subr.mxu0 0.0
    %1942 = vmatpush1.msra.mxu0 0.0
    %1943 = vmatprep.subr.mxu0 0.0
    %1944 = vmatpush1.msra.mxu0 0.0
    %1945 = vmatprep.subr.mxu0 0.0
    %1946 = vmatpush1.msra.mxu0 %v1902
    %1947 = vmatprep.subr.mxu0 0.0
    %1948 = vmatpush2.msra.mxu0 0.0
    %1949 = vmatprep.subr.mxu0 0.0
    %1950 = vmatpush2.msra.mxu0 0.0
    %1951 = vmatprep.subr.mxu0 0.0
    %1952 = vmatpush2.msra.mxu0 0.0
    %1953 = vmatprep.subr.mxu0 0.0
    %1954 = vmatpush2.msra.mxu0 0.0
    %1955 = vmatprep.subr.mxu0 0.0
    %1956 = vmatpush2.msra.mxu0 0.0
    %1957 = vmatprep.subr.mxu0 0.0
    %1958 = vmatpush2.msra.mxu0 0.0
    %1959 = vmatprep.subr.mxu0 0.0
    %1960 = vmatpush2.msra.mxu0 0.0
    %1961 = vmatprep.subr.mxu0 0.0
    %1962 = vmatpush2.msra.mxu0 0.0
    %1963 = vmatprep.subr.mxu0 0.0
    %1964 = vmatpush2.msra.mxu0 0.0
    %1965 = vmatprep.subr.mxu0 0.0
    %1966 = vmatpush2.msra.mxu0 0.0
    %1967 = vmatprep.subr.mxu0 0.0
    %1968 = vmatpush2.msra.mxu0 0.0
    %1969 = vmatprep.subr.mxu0 0.0
    %1970 = vmatpush2.msra.mxu0 0.0
    %1971 = vmatprep.subr.mxu0 0.0
    %1972 = vmatpush2.msra.mxu0 0.0
    %1973 = vmatprep.subr.mxu0 0.0
    %1974 = vmatpush2.msra.mxu0 0.0
    %1975 = vmatprep.subr.mxu0 0.0
    %1976 = vmatpush2.msra.mxu0 0.0
    %1977 = vmatprep.subr.mxu0 0.0
    %1978 = vmatpush2.msra.mxu0 0.0
    %1979 = vmatprep.mubr.f32.mxu0 0.0
    %1980 = vmatmul.mubr.f32.gmra.mxu0 %v1904
    %v1981 = vpop.f32.mrf.mxu0
    %v1982 = vadd.f32 0.0, %v1981
    %v1983 = vpop.f32.mrf.mxu0
    %1984 = vmatprep.mubr.f32.mxu0 0.0
    %1985 = vmatmul.mubr.f32.gmra.mxu0 %v1907
    %v1986 = vpop.f32.mrf.mxu0
    %v1987 = vadd.f32 0.0, %v1986
    %v1988 = vpop.f32.mrf.mxu0
    %1989 = vmatprep.mubr.f32.mxu0 0.0
    %1990 = vmatmul.mubr.f32.gmra.mxu0 %v1910
    %v1991 = vpop.f32.mrf.mxu0
    %v1992 = vadd.f32 0.0, %v1991
    %v1993 = vpop.f32.mrf.mxu0
    %1994 = vmatprep.mubr.f32.mxu0 0.0
    %1995 = vmatmul.mubr.f32.gmra.mxu0 %v1913
    %v1996 = vpop.f32.mrf.mxu0
    %v1997 = vadd.f32 0.0, %v1996
    %v1998 = vpop.f32.mrf.mxu0
    %1999 = vdwg.mxu0
    %v2000 = vadd.f32 %v1480, %v1982
    %v2001 = vadd.f32 %v1485, %v1987
    %v2002 = vadd.f32 %v1490, %v1992
    %v2003 = vadd.f32 %v1495, %v1997
    %2004 = vrot.lane.b32.xlu0 %v478, 104
    %v2005 = vpop.permute.xlu0 %2004
    %2006 = vrot.lane.b32.xlu0 %v483, 104
    %v2007 = vpop.permute.xlu0 %2006
    %2008 = vrot.lane.b32.xlu0 %v478, 72
    %v2009 = vpop.permute.xlu0 %2008
    %2010 = vrot.lane.b32.xlu0 %v483, 72
    %v2011 = vpop.permute.xlu0 %2010
    %v2012 = vsel %vm502, %v2005, 0
    %v2014 = vsel %vm502, %v2007, 0
    %v2016 = vsel %vm502, %v2009, 0
    %v2018 = vsel %vm502, %v2011, 0
    %2020 = vmatprep.subr.mxu0 0.0
    %2021 = vmatpush1.xpose.msra.mxu0 0.0
    %2022 = vmatprep.subr.mxu0 0.0
    %2023 = vmatpush1.xpose.msra.mxu0 0.0
    %2024 = vmatprep.subr.mxu0 0.0
    %2025 = vmatpush1.xpose.msra.mxu0 0.0
    %2026 = vmatprep.subr.mxu0 0.0
    %2027 = vmatpush1.xpose.msra.mxu0 0.0
    %2028 = vmatprep.subr.mxu0 0.0
    %2029 = vmatpush1.xpose.msra.mxu0 0.0
    %2030 = vmatprep.subr.mxu0 0.0
    %2031 = vmatpush1.xpose.msra.mxu0 0.0
    %2032 = vmatprep.subr.mxu0 0.0
    %2033 = vmatpush1.xpose.msra.mxu0 0.0
    %2034 = vmatprep.subr.mxu0 0.0
    %2035 = vmatpush1.xpose.msra.mxu0 0.0
    %2036 = vmatprep.subr.mxu0 0.0
    %2037 = vmatpush1.xpose.msra.mxu0 0.0
    %2038 = vmatprep.subr.mxu0 0.0
    %2039 = vmatpush1.xpose.msra.mxu0 0.0
    %2040 = vmatprep.subr.mxu0 0.0
    %2041 = vmatpush1.xpose.msra.mxu0 0.0
    %2042 = vmatprep.subr.mxu0 0.0
    %2043 = vmatpush1.xpose.msra.mxu0 0.0
    %2044 = vmatprep.subr.mxu0 0.0
    %2045 = vmatpush1.xpose.msra.mxu0 0.0
    %2046 = vmatprep.subr.mxu0 0.0
    %2047 = vmatpush1.xpose.msra.mxu0 0.0
    %2048 = vmatprep.subr.mxu0 0.0
    %2049 = vmatpush1.xpose.msra.mxu0 %v2018
    %2050 = vmatprep.subr.mxu0 0.0
    %2051 = vmatpush1.xpose.msra.mxu0 %v2016
    %2052 = vmatprep.subr.mxu0 0.0
    %2053 = vmatpush2.xpose.msra.mxu0 0.0
    %2054 = vmatprep.subr.mxu0 0.0
    %2055 = vmatpush2.xpose.msra.mxu0 0.0
    %2056 = vmatprep.subr.mxu0 0.0
    %2057 = vmatpush2.xpose.msra.mxu0 0.0
    %2058 = vmatprep.subr.mxu0 0.0
    %2059 = vmatpush2.xpose.msra.mxu0 0.0
    %2060 = vmatprep.subr.mxu0 0.0
    %2061 = vmatpush2.xpose.msra.mxu0 0.0
    %2062 = vmatprep.subr.mxu0 0.0
    %2063 = vmatpush2.xpose.msra.mxu0 0.0
    %2064 = vmatprep.subr.mxu0 0.0
    %2065 = vmatpush2.xpose.msra.mxu0 0.0
    %2066 = vmatprep.subr.mxu0 0.0
    %2067 = vmatpush2.xpose.msra.mxu0 0.0
    %2068 = vmatprep.subr.mxu0 0.0
    %2069 = vmatpush2.xpose.msra.mxu0 0.0
    %2070 = vmatprep.subr.mxu0 0.0
    %2071 = vmatpush2.xpose.msra.mxu0 0.0
    %2072 = vmatprep.subr.mxu0 0.0
    %2073 = vmatpush2.xpose.msra.mxu0 0.0
    %2074 = vmatprep.subr.mxu0 0.0
    %2075 = vmatpush2.xpose.msra.mxu0 0.0
    %2076 = vmatprep.subr.mxu0 0.0
    %2077 = vmatpush2.xpose.msra.mxu0 0.0
    %2078 = vmatprep.subr.mxu0 0.0
    %2079 = vmatpush2.xpose.msra.mxu0 0.0
    %2080 = vmatprep.subr.mxu0 0.0
    %2081 = vmatpush2.xpose.msra.mxu0 0.0
    %2082 = vmatprep.subr.mxu0 0.0
    %2083 = vmatpush2.xpose.msra.mxu0 0.0
    %2084 = vmatprep.mubr.f32.mxu0 0.0
    %2085 = vmatmul.mubr.f32.gmra.mxu0 %v2012
    %v2086 = vpop.f32.mrf.mxu0
    %v2087 = vadd.f32 0.0, %v2086
    %v2088 = vpop.f32.mrf.mxu0
    %2089 = vmatprep.mubr.f32.mxu0 0.0
    %2090 = vmatmul.mubr.f32.gmra.mxu0 %v2014
    %v2091 = vpop.f32.mrf.mxu0
    %v2092 = vadd.f32 0.0, %v2091
    %v2093 = vpop.f32.mrf.mxu0
    %2094 = vdwg.mxu0
    %2095 = vrot.lane.b32.xlu0 %v488, 104
    %v2096 = vpop.permute.xlu0 %2095
    %2097 = vrot.lane.b32.xlu0 %v493, 104
    %v2098 = vpop.permute.xlu0 %2097
    %2099 = vrot.lane.b32.xlu0 %v488, 72
    %v2100 = vpop.permute.xlu0 %2099
    %2101 = vrot.lane.b32.xlu0 %v493, 72
    %v2102 = vpop.permute.xlu0 %2101
    %v2103 = vsel %vm502, %v2096, 0
    %v2105 = vsel %vm502, %v2098, 0
    %v2107 = vsel %vm502, %v2100, 0
    %v2109 = vsel %vm502, %v2102, 0
    %2111 = vmatprep.subr.mxu0 0.0
    %2112 = vmatpush1.xpose.msra.mxu0 0.0
    %2113 = vmatprep.subr.mxu0 0.0
    %2114 = vmatpush1.xpose.msra.mxu0 0.0
    %2115 = vmatprep.subr.mxu0 0.0
    %2116 = vmatpush1.xpose.msra.mxu0 0.0
    %2117 = vmatprep.subr.mxu0 0.0
    %2118 = vmatpush1.xpose.msra.mxu0 0.0
    %2119 = vmatprep.subr.mxu0 0.0
    %2120 = vmatpush1.xpose.msra.mxu0 0.0
    %2121 = vmatprep.subr.mxu0 0.0
    %2122 = vmatpush1.xpose.msra.mxu0 0.0
    %2123 = vmatprep.subr.mxu0 0.0
    %2124 = vmatpush1.xpose.msra.mxu0 0.0
    %2125 = vmatprep.subr.mxu0 0.0
    %2126 = vmatpush1.xpose.msra.mxu0 0.0
    %2127 = vmatprep.subr.mxu0 0.0
    %2128 = vmatpush1.xpose.msra.mxu0 0.0
    %2129 = vmatprep.subr.mxu0 0.0
    %2130 = vmatpush1.xpose.msra.mxu0 0.0
    %2131 = vmatprep.subr.mxu0 0.0
    %2132 = vmatpush1.xpose.msra.mxu0 0.0
    %2133 = vmatprep.subr.mxu0 0.0
    %2134 = vmatpush1.xpose.msra.mxu0 0.0
    %2135 = vmatprep.subr.mxu0 0.0
    %2136 = vmatpush1.xpose.msra.mxu0 0.0
    %2137 = vmatprep.subr.mxu0 0.0
    %2138 = vmatpush1.xpose.msra.mxu0 0.0
    %2139 = vmatprep.subr.mxu0 0.0
    %2140 = vmatpush1.xpose.msra.mxu0 %v2109
    %2141 = vmatprep.subr.mxu0 0.0
    %2142 = vmatpush1.xpose.msra.mxu0 %v2107
    %2143 = vmatprep.subr.mxu0 0.0
    %2144 = vmatpush2.xpose.msra.mxu0 0.0
    %2145 = vmatprep.subr.mxu0 0.0
    %2146 = vmatpush2.xpose.msra.mxu0 0.0
    %2147 = vmatprep.subr.mxu0 0.0
    %2148 = vmatpush2.xpose.msra.mxu0 0.0
    %2149 = vmatprep.subr.mxu0 0.0
    %2150 = vmatpush2.xpose.msra.mxu0 0.0
    %2151 = vmatprep.subr.mxu0 0.0
    %2152 = vmatpush2.xpose.msra.mxu0 0.0
    %2153 = vmatprep.subr.mxu0 0.0
    %2154 = vmatpush2.xpose.msra.mxu0 0.0
    %2155 = vmatprep.subr.mxu0 0.0
    %2156 = vmatpush2.xpose.msra.mxu0 0.0
    %2157 = vmatprep.subr.mxu0 0.0
    %2158 = vmatpush2.xpose.msra.mxu0 0.0
    %2159 = vmatprep.subr.mxu0 0.0
    %2160 = vmatpush2.xpose.msra.mxu0 0.0
    %2161 = vmatprep.subr.mxu0 0.0
    %2162 = vmatpush2.xpose.msra.mxu0 0.0
    %2163 = vmatprep.subr.mxu0 0.0
    %2164 = vmatpush2.xpose.msra.mxu0 0.0
    %2165 = vmatprep.subr.mxu0 0.0
    %2166 = vmatpush2.xpose.msra.mxu0 0.0
    %2167 = vmatprep.subr.mxu0 0.0
    %2168 = vmatpush2.xpose.msra.mxu0 0.0
    %2169 = vmatprep.subr.mxu0 0.0
    %2170 = vmatpush2.xpose.msra.mxu0 0.0
    %2171 = vmatprep.subr.mxu0 0.0
    %2172 = vmatpush2.xpose.msra.mxu0 0.0
    %2173 = vmatprep.subr.mxu0 0.0
    %2174 = vmatpush2.xpose.msra.mxu0 0.0
    %2175 = vmatprep.mubr.f32.mxu0 0.0
    %2176 = vmatmul.mubr.f32.gmra.mxu0 %v2103
    %v2177 = vpop.f32.mrf.mxu0
    %v2178 = vadd.f32 0.0, %v2177
    %v2179 = vpop.f32.mrf.mxu0
    %2180 = vmatprep.mubr.f32.mxu0 0.0
    %2181 = vmatmul.mubr.f32.gmra.mxu0 %v2105
    %v2182 = vpop.f32.mrf.mxu0
    %v2183 = vadd.f32 0.0, %v2182
    %v2184 = vpop.f32.mrf.mxu0
    %2185 = vdwg.mxu0
    %v2186 = vmul.f32 %v2087, 0.35355338
    %v2187 = vmul.f32 %v2092, 0.35355338
    %v2188 = vmul.f32 %v2178, 0.35355338
    %v2189 = vmul.f32 %v2183, 0.35355338
    %v2190 = vsel %vm679, %v2186, -inf
    %2191 = vmax.xlane.f32.xlu0 %v2190
    %v2192 = vpop.xlane.xlu0 %2191
    %v2193 = vsel %vm679, %v2187, -inf
    %2194 = vmax.xlane.f32.xlu0 %v2193
    %v2195 = vpop.xlane.xlu0 %2194
    %v2196 = vsel %vm679, %v2188, -inf
    %2197 = vmax.xlane.f32.xlu0 %v2196
    %v2198 = vpop.xlane.xlu0 %2197
    %v2199 = vsel %vm679, %v2189, -inf
    %2200 = vmax.xlane.f32.xlu0 %v2199
    %v2201 = vpop.xlane.xlu0 %2200
    %v2202 = vsub.f32 %v2186, %v2192
    %v2203 = vsub.f32 %v2187, %v2195
    %v2204 = vsub.f32 %v2188, %v2198
    %v2205 = vsub.f32 %v2189, %v2201
    %v2206 = vmul.f32 %v2202, 1.442695
    %v2207 = vpow.pop %v2206
    %v2208 = vmul.f32 %v2203, 1.442695
    %v2209 = vpow.pop %v2208
    %v2210 = vmul.f32 %v2204, 1.442695
    %v2211 = vpow.pop %v2210
    %v2212 = vmul.f32 %v2205, 1.442695
    %v2213 = vpow.pop %v2212
    %v2214 = vsel %vm679, %v2207, 0.0
    %2215 = vadd.xlane.f32.xlu0 %v2214
    %v2216 = vpop.xlane.xlu0 %2215
    %v2217 = vsel %vm679, %v2209, 0.0
    %2218 = vadd.xlane.f32.xlu0 %v2217
    %v2219 = vpop.xlane.xlu0 %2218
    %v2220 = vsel %vm679, %v2211, 0.0
    %2221 = vadd.xlane.f32.xlu0 %v2220
    %v2222 = vpop.xlane.xlu0 %2221
    %v2223 = vsel %vm679, %v2213, 0.0
    %2224 = vadd.xlane.f32.xlu0 %v2223
    %v2225 = vpop.xlane.xlu0 %2224
    %2226 = vrot.lane.b32.xlu0 %v478, 40
    %v2227 = vpop.permute.xlu0 %2226
    %2228 = vrot.lane.b32.xlu0 %v483, 40
    %v2229 = vpop.permute.xlu0 %2228
    %v2233 = vsel %vm679, %v2207, 0
    %v2236 = vsel %vm679, %v2209, 0
    %2238 = vmatprep.subr.mxu0 0.0
    %2239 = vmatpush1.msra.mxu0 0.0
    %2240 = vmatprep.subr.mxu0 0.0
    %2241 = vmatpush1.msra.mxu0 0.0
    %2242 = vmatprep.subr.mxu0 0.0
    %2243 = vmatpush1.msra.mxu0 0.0
    %2244 = vmatprep.subr.mxu0 0.0
    %2245 = vmatpush1.msra.mxu0 0.0
    %2246 = vmatprep.subr.mxu0 0.0
    %2247 = vmatpush1.msra.mxu0 0.0
    %2248 = vmatprep.subr.mxu0 0.0
    %2249 = vmatpush1.msra.mxu0 0.0
    %2250 = vmatprep.subr.mxu0 0.0
    %2251 = vmatpush1.msra.mxu0 0.0
    %2252 = vmatprep.subr.mxu0 0.0
    %2253 = vmatpush1.msra.mxu0 0.0
    %2254 = vmatprep.subr.mxu0 0.0
    %2255 = vmatpush1.msra.mxu0 0.0
    %2256 = vmatprep.subr.mxu0 0.0
    %2257 = vmatpush1.msra.mxu0 0.0
    %2258 = vmatprep.subr.mxu0 0.0
    %2259 = vmatpush1.msra.mxu0 0.0
    %2260 = vmatprep.subr.mxu0 0.0
    %2261 = vmatpush1.msra.mxu0 0.0
    %2262 = vmatprep.subr.mxu0 0.0
    %2263 = vmatpush1.msra.mxu0 0.0
    %2264 = vmatprep.subr.mxu0 0.0
    %2265 = vmatpush1.msra.mxu0 0.0
    %2266 = vmatprep.subr.mxu0 0.0
    %2267 = vmatpush1.msra.mxu0 %v2229
    %2268 = vmatprep.subr.mxu0 0.0
    %2269 = vmatpush1.msra.mxu0 %v2227
    %2270 = vmatprep.subr.mxu0 0.0
    %2271 = vmatpush2.msra.mxu0 0.0
    %2272 = vmatprep.subr.mxu0 0.0
    %2273 = vmatpush2.msra.mxu0 0.0
    %2274 = vmatprep.subr.mxu0 0.0
    %2275 = vmatpush2.msra.mxu0 0.0
    %2276 = vmatprep.subr.mxu0 0.0
    %2277 = vmatpush2.msra.mxu0 0.0
    %2278 = vmatprep.subr.mxu0 0.0
    %2279 = vmatpush2.msra.mxu0 0.0
    %2280 = vmatprep.subr.mxu0 0.0
    %2281 = vmatpush2.msra.mxu0 0.0
    %2282 = vmatprep.subr.mxu0 0.0
    %2283 = vmatpush2.msra.mxu0 0.0
    %2284 = vmatprep.subr.mxu0 0.0
    %2285 = vmatpush2.msra.mxu0 0.0
    %2286 = vmatprep.subr.mxu0 0.0
    %2287 = vmatpush2.msra.mxu0 0.0
    %2288 = vmatprep.subr.mxu0 0.0
    %2289 = vmatpush2.msra.mxu0 0.0
    %2290 = vmatprep.subr.mxu0 0.0
    %2291 = vmatpush2.msra.mxu0 0.0
    %2292 = vmatprep.subr.mxu0 0.0
    %2293 = vmatpush2.msra.mxu0 0.0
    %2294 = vmatprep.subr.mxu0 0.0
    %2295 = vmatpush2.msra.mxu0 0.0
    %2296 = vmatprep.subr.mxu0 0.0
    %2297 = vmatpush2.msra.mxu0 0.0
    %2298 = vmatprep.subr.mxu0 0.0
    %2299 = vmatpush2.msra.mxu0 0.0
    %2300 = vmatprep.subr.mxu0 0.0
    %2301 = vmatpush2.msra.mxu0 0.0
    %2302 = vmatprep.mubr.f32.mxu0 0.0
    %2303 = vmatmul.mubr.f32.gmra.mxu0 %v2233
    %v2304 = vpop.f32.mrf.mxu0
    %v2305 = vadd.f32 0.0, %v2304
    %v2306 = vpop.f32.mrf.mxu0
    %2307 = vmatprep.mubr.f32.mxu0 0.0
    %2308 = vmatmul.mubr.f32.gmra.mxu0 %v2236
    %v2309 = vpop.f32.mrf.mxu0
    %v2310 = vadd.f32 0.0, %v2309
    %v2311 = vpop.f32.mrf.mxu0
    %2312 = vdwg.mxu0
    %2313 = vrot.lane.b32.xlu0 %v488, 40
    %v2314 = vpop.permute.xlu0 %2313
    %2315 = vrot.lane.b32.xlu0 %v493, 40
    %v2316 = vpop.permute.xlu0 %2315
    %v2320 = vsel %vm679, %v2211, 0
    %v2323 = vsel %vm679, %v2213, 0
    %2325 = vmatprep.subr.mxu0 0.0
    %2326 = vmatpush1.msra.mxu0 0.0
    %2327 = vmatprep.subr.mxu0 0.0
    %2328 = vmatpush1.msra.mxu0 0.0
    %2329 = vmatprep.subr.mxu0 0.0
    %2330 = vmatpush1.msra.mxu0 0.0
    %2331 = vmatprep.subr.mxu0 0.0
    %2332 = vmatpush1.msra.mxu0 0.0
    %2333 = vmatprep.subr.mxu0 0.0
    %2334 = vmatpush1.msra.mxu0 0.0
    %2335 = vmatprep.subr.mxu0 0.0
    %2336 = vmatpush1.msra.mxu0 0.0
    %2337 = vmatprep.subr.mxu0 0.0
    %2338 = vmatpush1.msra.mxu0 0.0
    %2339 = vmatprep.subr.mxu0 0.0
    %2340 = vmatpush1.msra.mxu0 0.0
    %2341 = vmatprep.subr.mxu0 0.0
    %2342 = vmatpush1.msra.mxu0 0.0
    %2343 = vmatprep.subr.mxu0 0.0
    %2344 = vmatpush1.msra.mxu0 0.0
    %2345 = vmatprep.subr.mxu0 0.0
    %2346 = vmatpush1.msra.mxu0 0.0
    %2347 = vmatprep.subr.mxu0 0.0
    %2348 = vmatpush1.msra.mxu0 0.0
    %2349 = vmatprep.subr.mxu0 0.0
    %2350 = vmatpush1.msra.mxu0 0.0
    %2351 = vmatprep.subr.mxu0 0.0
    %2352 = vmatpush1.msra.mxu0 0.0
    %2353 = vmatprep.subr.mxu0 0.0
    %2354 = vmatpush1.msra.mxu0 %v2316
    %2355 = vmatprep.subr.mxu0 0.0
    %2356 = vmatpush1.msra.mxu0 %v2314
    %2357 = vmatprep.subr.mxu0 0.0
    %2358 = vmatpush2.msra.mxu0 0.0
    %2359 = vmatprep.subr.mxu0 0.0
    %2360 = vmatpush2.msra.mxu0 0.0
    %2361 = vmatprep.subr.mxu0 0.0
    %2362 = vmatpush2.msra.mxu0 0.0
    %2363 = vmatprep.subr.mxu0 0.0
    %2364 = vmatpush2.msra.mxu0 0.0
    %2365 = vmatprep.subr.mxu0 0.0
    %2366 = vmatpush2.msra.mxu0 0.0
    %2367 = vmatprep.subr.mxu0 0.0
    %2368 = vmatpush2.msra.mxu0 0.0
    %2369 = vmatprep.subr.mxu0 0.0
    %2370 = vmatpush2.msra.mxu0 0.0
    %2371 = vmatprep.subr.mxu0 0.0
    %2372 = vmatpush2.msra.mxu0 0.0
    %2373 = vmatprep.subr.mxu0 0.0
    %2374 = vmatpush2.msra.mxu0 0.0
    %2375 = vmatprep.subr.mxu0 0.0
    %2376 = vmatpush2.msra.mxu0 0.0
    %2377 = vmatprep.subr.mxu0 0.0
    %2378 = vmatpush2.msra.mxu0 0.0
    %2379 = vmatprep.subr.mxu0 0.0
    %2380 = vmatpush2.msra.mxu0 0.0
    %2381 = vmatprep.subr.mxu0 0.0
    %2382 = vmatpush2.msra.mxu0 0.0
    %2383 = vmatprep.subr.mxu0 0.0
    %2384 = vmatpush2.msra.mxu0 0.0
    %2385 = vmatprep.subr.mxu0 0.0
    %2386 = vmatpush2.msra.mxu0 0.0
    %2387 = vmatprep.subr.mxu0 0.0
    %2388 = vmatpush2.msra.mxu0 0.0
    %2389 = vmatprep.mubr.f32.mxu0 0.0
    %2390 = vmatmul.mubr.f32.gmra.mxu0 %v2320
    %v2391 = vpop.f32.mrf.mxu0
    %v2392 = vadd.f32 0.0, %v2391
    %v2393 = vpop.f32.mrf.mxu0
    %2394 = vmatprep.mubr.f32.mxu0 0.0
    %2395 = vmatmul.mubr.f32.gmra.mxu0 %v2323
    %v2396 = vpop.f32.mrf.mxu0
    %v2397 = vadd.f32 0.0, %v2396
    %v2398 = vpop.f32.mrf.mxu0
    %2399 = vdwg.mxu0
    %v2400 = vrcp.pop %v2216
    %v2401 = vrcp.pop %v2219
    %v2402 = vrcp.pop %v2222
    %v2403 = vrcp.pop %v2225
    %v2404 = vmul.f32 %v2305, %v2400
    %v2405 = vmul.f32 %v2310, %v2401
    %v2406 = vmul.f32 %v2392, %v2402
    %v2407 = vmul.f32 %v2397, %v2403
    %v2408 = vld [vmem:[%s61 + $0x18] sm:$0xff]
    %v2410 = vsel %vm502, %v2404, 0
    %v2413 = vsel %vm502, %v2405, 0
    %v2416 = vsel %vm502, %v2406, 0
    %v2419 = vsel %vm502, %v2407, 0
    %2421 = vmatprep.subr.mxu0 0.0
    %2422 = vmatpush1.msra.mxu0 0.0
    %2423 = vmatprep.subr.mxu0 0.0
    %2424 = vmatpush1.msra.mxu0 0.0
    %2425 = vmatprep.subr.mxu0 0.0
    %2426 = vmatpush1.msra.mxu0 0.0
    %2427 = vmatprep.subr.mxu0 0.0
    %2428 = vmatpush1.msra.mxu0 0.0
    %2429 = vmatprep.subr.mxu0 0.0
    %2430 = vmatpush1.msra.mxu0 0.0
    %2431 = vmatprep.subr.mxu0 0.0
    %2432 = vmatpush1.msra.mxu0 0.0
    %2433 = vmatprep.subr.mxu0 0.0
    %2434 = vmatpush1.msra.mxu0 0.0
    %2435 = vmatprep.subr.mxu0 0.0
    %2436 = vmatpush1.msra.mxu0 0.0
    %2437 = vmatprep.subr.mxu0 0.0
    %2438 = vmatpush1.msra.mxu0 0.0
    %2439 = vmatprep.subr.mxu0 0.0
    %2440 = vmatpush1.msra.mxu0 0.0
    %2441 = vmatprep.subr.mxu0 0.0
    %2442 = vmatpush1.msra.mxu0 0.0
    %2443 = vmatprep.subr.mxu0 0.0
    %2444 = vmatpush1.msra.mxu0 0.0
    %2445 = vmatprep.subr.mxu0 0.0
    %2446 = vmatpush1.msra.mxu0 0.0
    %2447 = vmatprep.subr.mxu0 0.0
    %2448 = vmatpush1.msra.mxu0 0.0
    %2449 = vmatprep.subr.mxu0 0.0
    %2450 = vmatpush1.msra.mxu0 0.0
    %2451 = vmatprep.subr.mxu0 0.0
    %2452 = vmatpush1.msra.mxu0 %v2408
    %2453 = vmatprep.subr.mxu0 0.0
    %2454 = vmatpush2.msra.mxu0 0.0
    %2455 = vmatprep.subr.mxu0 0.0
    %2456 = vmatpush2.msra.mxu0 0.0
    %2457 = vmatprep.subr.mxu0 0.0
    %2458 = vmatpush2.msra.mxu0 0.0
    %2459 = vmatprep.subr.mxu0 0.0
    %2460 = vmatpush2.msra.mxu0 0.0
    %2461 = vmatprep.subr.mxu0 0.0
    %2462 = vmatpush2.msra.mxu0 0.0
    %2463 = vmatprep.subr.mxu0 0.0
    %2464 = vmatpush2.msra.mxu0 0.0
    %2465 = vmatprep.subr.mxu0 0.0
    %2466 = vmatpush2.msra.mxu0 0.0
    %2467 = vmatprep.subr.mxu0 0.0
    %2468 = vmatpush2.msra.mxu0 0.0
    %2469 = vmatprep.subr.mxu0 0.0
    %2470 = vmatpush2.msra.mxu0 0.0
    %2471 = vmatprep.subr.mxu0 0.0
    %2472 = vmatpush2.msra.mxu0 0.0
    %2473 = vmatprep.subr.mxu0 0.0
    %2474 = vmatpush2.msra.mxu0 0.0
    %2475 = vmatprep.subr.mxu0 0.0
    %2476 = vmatpush2.msra.mxu0 0.0
    %2477 = vmatprep.subr.mxu0 0.0
    %2478 = vmatpush2.msra.mxu0 0.0
    %2479 = vmatprep.subr.mxu0 0.0
    %2480 = vmatpush2.msra.mxu0 0.0
    %2481 = vmatprep.subr.mxu0 0.0
    %2482 = vmatpush2.msra.mxu0 0.0
    %2483 = vmatprep.subr.mxu0 0.0
    %2484 = vmatpush2.msra.mxu0 0.0
    %2485 = vmatprep.mubr.f32.mxu0 0.0
    %2486 = vmatmul.mubr.f32.gmra.mxu0 %v2410
    %v2487 = vpop.f32.mrf.mxu0
    %v2488 = vadd.f32 0.0, %v2487
    %v2489 = vpop.f32.mrf.mxu0
    %2490 = vmatprep.mubr.f32.mxu0 0.0
    %2491 = vmatmul.mubr.f32.gmra.mxu0 %v2413
    %v2492 = vpop.f32.mrf.mxu0
    %v2493 = vadd.f32 0.0, %v2492
    %v2494 = vpop.f32.mrf.mxu0
    %2495 = vmatprep.mubr.f32.mxu0 0.0
    %2496 = vmatmul.mubr.f32.gmra.mxu0 %v2416
    %v2497 = vpop.f32.mrf.mxu0
    %v2498 = vadd.f32 0.0, %v2497
    %v2499 = vpop.f32.mrf.mxu0
    %2500 = vmatprep.mubr.f32.mxu0 0.0
    %2501 = vmatmul.mubr.f32.gmra.mxu0 %v2419
    %v2502 = vpop.f32.mrf.mxu0
    %v2503 = vadd.f32 0.0, %v2502
    %v2504 = vpop.f32.mrf.mxu0
    %2505 = vdwg.mxu0
    %v2506 = vadd.f32 %v2000, %v2488
    %v2507 = vadd.f32 %v2001, %v2493
    %v2508 = vadd.f32 %v2002, %v2498
    %v2509 = vadd.f32 %v2003, %v2503
    %v2510 = vld [vmem:[%s57] sm:$0x1]
    %v2512 = vlaneseq
    %v2513 = vshrl.u32 %v2512, 7
    %v2514 = vsub.s32 0, %v2513
    %v2515 = vrot.slane %v2510, %v2514
    %v2517 = vadd.f32 %v2506, %v2515
    %v2518 = vadd.f32 %v2507, %v2515
    %v2519 = vadd.f32 %v2508, %v2515
    %v2520 = vadd.f32 %v2509, %v2515
    %v2521 = vadd.f32 %v308, %v2517
    %v2522 = vadd.f32 %v309, %v2518
    %v2523 = vadd.f32 %v310, %v2519
    %v2524 = vadd.f32 %v311, %v2520
    %v2525 = vsel %vm312, %v2521, 0.0
    %2526 = vadd.xlane.f32.xlu0 %v2525
    %v2527 = vpop.xlane.xlu0 %2526
    %v2528 = vsel %vm312, %v2522, 0.0
    %2529 = vadd.xlane.f32.xlu0 %v2528
    %v2530 = vpop.xlane.xlu0 %2529
    %v2531 = vsel %vm312, %v2523, 0.0
    %2532 = vadd.xlane.f32.xlu0 %v2531
    %v2533 = vpop.xlane.xlu0 %2532
    %v2534 = vsel %vm312, %v2524, 0.0
    %2535 = vadd.xlane.f32.xlu0 %v2534
    %v2536 = vpop.xlane.xlu0 %2535
    %v2537 = vmul.f32 %v2527, %v325
    %v2538 = vmul.f32 %v2530, %v325
    %v2539 = vmul.f32 %v2533, %v325
    %v2540 = vmul.f32 %v2536, %v325
    %v2541 = vsub.f32 %v2521, %v2537
    %v2542 = vsub.f32 %v2522, %v2538
    %v2543 = vsub.f32 %v2523, %v2539
    %v2544 = vsub.f32 %v2524, %v2540
    %v2545 = vmul.f32 %v2541, %v2541
    %v2546 = vmul.f32 %v2542, %v2542
    %v2547 = vmul.f32 %v2543, %v2543
    %v2548 = vmul.f32 %v2544, %v2544
    %v2549 = vsel %vm312, %v2545, 0.0
    %2550 = vadd.xlane.f32.xlu0 %v2549
    %v2551 = vpop.xlane.xlu0 %2550
    %v2552 = vsel %vm312, %v2546, 0.0
    %2553 = vadd.xlane.f32.xlu0 %v2552
    %v2554 = vpop.xlane.xlu0 %2553
    %v2555 = vsel %vm312, %v2547, 0.0
    %2556 = vadd.xlane.f32.xlu0 %v2555
    %v2557 = vpop.xlane.xlu0 %2556
    %v2558 = vsel %vm312, %v2548, 0.0
    %2559 = vadd.xlane.f32.xlu0 %v2558
    %v2560 = vpop.xlane.xlu0 %2559
    %v2561 = vmul.f32 %v2551, %v325
    %v2562 = vmul.f32 %v2554, %v325
    %v2563 = vmul.f32 %v2557, %v325
    %v2564 = vmul.f32 %v2560, %v325
    %v2565 = vadd.f32 %v2561, 1e-05
    %v2566 = vadd.f32 %v2562, 1e-05
    %v2567 = vadd.f32 %v2563, 1e-05
    %v2568 = vadd.f32 %v2564, 1e-05
    %v2569 = vrsqrt.pop %v2565
    %v2570 = vrsqrt.pop %v2566
    %v2571 = vrsqrt.pop %v2567
    %v2572 = vrsqrt.pop %v2568
    %v2573 = vmul.f32 %v2541, %v2569
    %v2574 = vmul.f32 %v2542, %v2570
    %v2575 = vmul.f32 %v2543, %v2571
    %v2576 = vmul.f32 %v2544, %v2572
    %v2577 = vld [vmem:[#allocation2] sm:$0x1]
    %v2579 = vlaneseq
    %v2580 = vshrl.u32 %v2579, 7
    %v2581 = vsub.s32 0, %v2580
    %v2582 = vrot.slane %v2577, %v2581
    %v2584 = vmul.f32 %v2573, %v2582
    %v2585 = vmul.f32 %v2574, %v2582
    %v2586 = vmul.f32 %v2575, %v2582
    %v2587 = vmul.f32 %v2576, %v2582
    %v2588 = vld [vmem:[%s75] sm:$0x1]
    %v2590 = vlaneseq
    %v2591 = vshrl.u32 %v2590, 7
    %v2592 = vsub.s32 0, %v2591
    %v2593 = vrot.slane %v2588, %v2592
    %v2595 = vadd.f32 %v2584, %v2593
    %v2596 = vadd.f32 %v2585, %v2593
    %v2597 = vadd.f32 %v2586, %v2593
    %v2598 = vadd.f32 %v2587, %v2593
    %v2599 = vld [vmem:[%s81] sm:$0xff]
    %v2600 = vld [vmem:[%s81 + $0x8] sm:$0xff]
    %v2601 = vld [vmem:[%s81 + $0x10] sm:$0xff]
    %v2602 = vld [vmem:[%s81 + $0x18] sm:$0xff]
    %v2603 = vld [vmem:[%s65] sm:$0x1]
    %v2605 = vlaneseq
    %v2606 = vshrl.u32 %v2605, 7
    %v2607 = vsub.s32 0, %v2606
    %v2608 = vrot.slane %v2603, %v2607
    %v2611 = vsel %vm312, %v2595, 0
    %v2614 = vsel %vm312, %v2596, 0
    %v2617 = vsel %vm312, %v2597, 0
    %v2620 = vsel %vm312, %v2598, 0
    %2622 = vmatprep.subr.mxu0 0.0
    %2623 = vmatpush1.msra.mxu0 0.0
    %2624 = vmatprep.subr.mxu0 0.0
    %2625 = vmatpush1.msra.mxu0 0.0
    %2626 = vmatprep.subr.mxu0 0.0
    %2627 = vmatpush1.msra.mxu0 0.0
    %2628 = vmatprep.subr.mxu0 0.0
    %2629 = vmatpush1.msra.mxu0 0.0
    %2630 = vmatprep.subr.mxu0 0.0
    %2631 = vmatpush1.msra.mxu0 0.0
    %2632 = vmatprep.subr.mxu0 0.0
    %2633 = vmatpush1.msra.mxu0 0.0
    %2634 = vmatprep.subr.mxu0 0.0
    %2635 = vmatpush1.msra.mxu0 0.0
    %2636 = vmatprep.subr.mxu0 0.0
    %2637 = vmatpush1.msra.mxu0 0.0
    %2638 = vmatprep.subr.mxu0 0.0
    %2639 = vmatpush1.msra.mxu0 0.0
    %2640 = vmatprep.subr.mxu0 0.0
    %2641 = vmatpush1.msra.mxu0 0.0
    %2642 = vmatprep.subr.mxu0 0.0
    %2643 = vmatpush1.msra.mxu0 0.0
    %2644 = vmatprep.subr.mxu0 0.0
    %2645 = vmatpush1.msra.mxu0 0.0
    %2646 = vmatprep.subr.mxu0 0.0
    %2647 = vmatpush1.msra.mxu0 %v2602
    %2648 = vmatprep.subr.mxu0 0.0
    %2649 = vmatpush1.msra.mxu0 %v2601
    %2650 = vmatprep.subr.mxu0 0.0
    %2651 = vmatpush1.msra.mxu0 %v2600
    %2652 = vmatprep.subr.mxu0 0.0
    %2653 = vmatpush1.msra.mxu0 %v2599
    %2654 = vmatprep.subr.mxu0 0.0
    %2655 = vmatpush2.msra.mxu0 0.0
    %2656 = vmatprep.subr.mxu0 0.0
    %2657 = vmatpush2.msra.mxu0 0.0
    %2658 = vmatprep.subr.mxu0 0.0
    %2659 = vmatpush2.msra.mxu0 0.0
    %2660 = vmatprep.subr.mxu0 0.0
    %2661 = vmatpush2.msra.mxu0 0.0
    %2662 = vmatprep.subr.mxu0 0.0
    %2663 = vmatpush2.msra.mxu0 0.0
    %2664 = vmatprep.subr.mxu0 0.0
    %2665 = vmatpush2.msra.mxu0 0.0
    %2666 = vmatprep.subr.mxu0 0.0
    %2667 = vmatpush2.msra.mxu0 0.0
    %2668 = vmatprep.subr.mxu0 0.0
    %2669 = vmatpush2.msra.mxu0 0.0
    %2670 = vmatprep.subr.mxu0 0.0
    %2671 = vmatpush2.msra.mxu0 0.0
    %2672 = vmatprep.subr.mxu0 0.0
    %2673 = vmatpush2.msra.mxu0 0.0
    %2674 = vmatprep.subr.mxu0 0.0
    %2675 = vmatpush2.msra.mxu0 0.0
    %2676 = vmatprep.subr.mxu0 0.0
    %2677 = vmatpush2.msra.mxu0 0.0
    %2678 = vmatprep.subr.mxu0 0.0
    %2679 = vmatpush2.msra.mxu0 0.0
    %2680 = vmatprep.subr.mxu0 0.0
    %2681 = vmatpush2.msra.mxu0 0.0
    %2682 = vmatprep.subr.mxu0 0.0
    %2683 = vmatpush2.msra.mxu0 0.0
    %2684 = vmatprep.subr.mxu0 0.0
    %2685 = vmatpush2.msra.mxu0 0.0
    %2686 = vmatprep.mubr.f32.mxu0 0.0
    %2687 = vmatmul.mubr.f32.gmra.mxu0 %v2611
    %v2688 = vpop.f32.mrf.mxu0
    %v2689 = vadd.f32 %v2608, %v2688
    %v2690 = vpop.f32.mrf.mxu0
    %2691 = vmatprep.mubr.f32.mxu0 0.0
    %2692 = vmatmul.mubr.f32.gmra.mxu0 %v2614
    %v2693 = vpop.f32.mrf.mxu0
    %v2694 = vadd.f32 %v2608, %v2693
    %v2695 = vpop.f32.mrf.mxu0
    %2696 = vmatprep.mubr.f32.mxu0 0.0
    %2697 = vmatmul.mubr.f32.gmra.mxu0 %v2617
    %v2698 = vpop.f32.mrf.mxu0
    %v2699 = vadd.f32 %v2608, %v2698
    %v2700 = vpop.f32.mrf.mxu0
    %2701 = vmatprep.mubr.f32.mxu0 0.0
    %2702 = vmatmul.mubr.f32.gmra.mxu0 %v2620
    %v2703 = vpop.f32.mrf.mxu0
    %v2704 = vadd.f32 %v2608, %v2703
    %v2705 = vpop.f32.mrf.mxu0
    %2706 = vdwg.mxu0
    %v2707 = vmul.f32 %v2689, %v2689
    %v2708 = vmul.f32 %v2694, %v2694
    %v2709 = vmul.f32 %v2699, %v2699
    %v2710 = vmul.f32 %v2704, %v2704
    %v2711 = vmul.f32 %v2689, %v2707
    %v2712 = vmul.f32 %v2694, %v2708
    %v2713 = vmul.f32 %v2699, %v2709
    %v2714 = vmul.f32 %v2704, %v2710
    %v2715 = vmul.f32 %v2711, 0.044715
    %v2716 = vmul.f32 %v2712, 0.044715
    %v2717 = vmul.f32 %v2713, 0.044715
    %v2718 = vmul.f32 %v2714, 0.044715
    %v2719 = vadd.f32 %v2689, %v2715
    %v2720 = vadd.f32 %v2694, %v2716
    %v2721 = vadd.f32 %v2699, %v2717
    %v2722 = vadd.f32 %v2704, %v2718
    %v2723 = vmul.f32 %v2719, 0.7978846
    %v2724 = vmul.f32 %v2720, 0.7978846
    %v2725 = vmul.f32 %v2721, 0.7978846
    %v2726 = vmul.f32 %v2722, 0.7978846
    %v2727 = vtanh.pop %v2723
    %v2728 = vtanh.pop %v2724
    %v2729 = vtanh.pop %v2725
    %v2730 = vtanh.pop %v2726
    %v2731 = vadd.f32 %v2727, 1.0
    %v2732 = vadd.f32 %v2728, 1.0
    %v2733 = vadd.f32 %v2729, 1.0
    %v2734 = vadd.f32 %v2730, 1.0
    %v2735 = vmul.f32 %v2731, 0.5
    %v2736 = vmul.f32 %v2732, 0.5
    %v2737 = vmul.f32 %v2733, 0.5
    %v2738 = vmul.f32 %v2734, 0.5
    %v2739 = vmul.f32 %v2689, %v2735
    %v2740 = vmul.f32 %v2694, %v2736
    %v2741 = vmul.f32 %v2699, %v2737
    %v2742 = vmul.f32 %v2704, %v2738
    %v2743 = vld [vmem:[%s83] sm:$0xff]
    %v2744 = vld [vmem:[%s83 + $0x8] sm:$0xff]
    %v2745 = vld [vmem:[%s83 + $0x10] sm:$0xff]
    %v2746 = vld [vmem:[%s83 + $0x18] sm:$0xff]
    %v2747 = vld [vmem:[%s83 + $0x20] sm:$0xff]
    %v2748 = vld [vmem:[%s83 + $0x28] sm:$0xff]
    %v2749 = vld [vmem:[%s83 + $0x30] sm:$0xff]
    %v2750 = vld [vmem:[%s83 + $0x38] sm:$0xff]
    %v2751 = vld [vmem:[%s67] sm:$0x1]
    %v2753 = vlaneseq
    %v2754 = vshrl.u32 %v2753, 7
    %v2755 = vsub.s32 0, %v2754
    %v2756 = vrot.slane %v2751, %v2755
    %vm2758 = vcmask 523264
    %v2760 = vsel %vm2758, %v2739, 0
    %v2763 = vsel %vm2758, %v2740, 0
    %v2766 = vsel %vm2758, %v2741, 0
    %v2769 = vsel %vm2758, %v2742, 0
    %2771 = vmatprep.subr.mxu0 0.0
    %2772 = vmatpush1.msra.mxu0 0.0
    %2773 = vmatprep.subr.mxu0 0.0
    %2774 = vmatpush1.msra.mxu0 0.0
    %2775 = vmatprep.subr.mxu0 0.0
    %2776 = vmatpush1.msra.mxu0 0.0
    %2777 = vmatprep.subr.mxu0 0.0
    %2778 = vmatpush1.msra.mxu0 0.0
    %2779 = vmatprep.subr.mxu0 0.0
    %2780 = vmatpush1.msra.mxu0 0.0
    %2781 = vmatprep.subr.mxu0 0.0
    %2782 = vmatpush1.msra.mxu0 0.0
    %2783 = vmatprep.subr.mxu0 0.0
    %2784 = vmatpush1.msra.mxu0 0.0
    %2785 = vmatprep.subr.mxu0 0.0
    %2786 = vmatpush1.msra.mxu0 0.0
    %2787 = vmatprep.subr.mxu0 0.0
    %2788 = vmatpush1.msra.mxu0 %v2750
    %2789 = vmatprep.subr.mxu0 0.0
    %2790 = vmatpush1.msra.mxu0 %v2749
    %2791 = vmatprep.subr.mxu0 0.0
    %2792 = vmatpush1.msra.mxu0 %v2748
    %2793 = vmatprep.subr.mxu0 0.0
    %2794 = vmatpush1.msra.mxu0 %v2747
    %2795 = vmatprep.subr.mxu0 0.0
    %2796 = vmatpush1.msra.mxu0 %v2746
    %2797 = vmatprep.subr.mxu0 0.0
    %2798 = vmatpush1.msra.mxu0 %v2745
    %2799 = vmatprep.subr.mxu0 0.0
    %2800 = vmatpush1.msra.mxu0 %v2744
    %2801 = vmatprep.subr.mxu0 0.0
    %2802 = vmatpush1.msra.mxu0 %v2743
    %2803 = vmatprep.subr.mxu0 0.0
    %2804 = vmatpush2.msra.mxu0 0.0
    %2805 = vmatprep.subr.mxu0 0.0
    %2806 = vmatpush2.msra.mxu0 0.0
    %2807 = vmatprep.subr.mxu0 0.0
    %2808 = vmatpush2.msra.mxu0 0.0
    %2809 = vmatprep.subr.mxu0 0.0
    %2810 = vmatpush2.msra.mxu0 0.0
    %2811 = vmatprep.subr.mxu0 0.0
    %2812 = vmatpush2.msra.mxu0 0.0
    %2813 = vmatprep.subr.mxu0 0.0
    %2814 = vmatpush2.msra.mxu0 0.0
    %2815 = vmatprep.subr.mxu0 0.0
    %2816 = vmatpush2.msra.mxu0 0.0
    %2817 = vmatprep.subr.mxu0 0.0
    %2818 = vmatpush2.msra.mxu0 0.0
    %2819 = vmatprep.subr.mxu0 0.0
    %2820 = vmatpush2.msra.mxu0 0.0
    %2821 = vmatprep.subr.mxu0 0.0
    %2822 = vmatpush2.msra.mxu0 0.0
    %2823 = vmatprep.subr.mxu0 0.0
    %2824 = vmatpush2.msra.mxu0 0.0
    %2825 = vmatprep.subr.mxu0 0.0
    %2826 = vmatpush2.msra.mxu0 0.0
    %2827 = vmatprep.subr.mxu0 0.0
    %2828 = vmatpush2.msra.mxu0 0.0
    %2829 = vmatprep.subr.mxu0 0.0
    %2830 = vmatpush2.msra.mxu0 0.0
    %2831 = vmatprep.subr.mxu0 0.0
    %2832 = vmatpush2.msra.mxu0 0.0
    %2833 = vmatprep.subr.mxu0 0.0
    %2834 = vmatpush2.msra.mxu0 0.0
    %2835 = vmatprep.mubr.f32.mxu0 0.0
    %2836 = vmatmul.mubr.f32.gmra.mxu0 %v2760
    %v2837 = vpop.f32.mrf.mxu0
    %v2838 = vadd.f32 %v2756, %v2837
    %v2839 = vpop.f32.mrf.mxu0
    %2840 = vmatprep.mubr.f32.mxu0 0.0
    %2841 = vmatmul.mubr.f32.gmra.mxu0 %v2763
    %v2842 = vpop.f32.mrf.mxu0
    %v2843 = vadd.f32 %v2756, %v2842
    %v2844 = vpop.f32.mrf.mxu0
    %2845 = vmatprep.mubr.f32.mxu0 0.0
    %2846 = vmatmul.mubr.f32.gmra.mxu0 %v2766
    %v2847 = vpop.f32.mrf.mxu0
    %v2848 = vadd.f32 %v2756, %v2847
    %v2849 = vpop.f32.mrf.mxu0
    %2850 = vmatprep.mubr.f32.mxu0 0.0
    %2851 = vmatmul.mubr.f32.gmra.mxu0 %v2769
    %v2852 = vpop.f32.mrf.mxu0
    %v2853 = vadd.f32 %v2756, %v2852
    %v2854 = vpop.f32.mrf.mxu0
    %2855 = vdwg.mxu0
    %v2856 = vadd.f32 %v2521, %v2838
    %v2857 = vadd.f32 %v2522, %v2843
    %v2858 = vadd.f32 %v2523, %v2848
    %v2859 = vadd.f32 %v2524, %v2853
    %v2860 = vld [vmem:[%s3] sm:$0x3]
    %v2861 = vld [vmem:[%s5] sm:$0xff]
    %v2862 = vld [vmem:[%s5 + $0x8] sm:$0xff]
    %v2863 = vlaneseq
    %v2864 = vand.u32 %v2863, 127
    %2865 = vset.pattern.permute.xlu0 0
    %2866 = vperm.xlu0 %2865, %v2861
    %v2867 = vpop.permute.xlu0 %2866
    %2868 = vset.pattern.permute.xlu0 0
    %2869 = vperm.xlu0 %2868, %v2862
    %v2870 = vpop.permute.xlu0 %2869
    %vm2871 = vcmp.eq.s32.totalorder %v2867, %v2864
    %vm2872 = vcmp.eq.s32.totalorder %v2870, %v2864
    %v2873 = vsel %vm2871, 1, 0
    %v2874 = vsel %vm2872, 1, 0
    %v2875 = vcvt.s32.f32 %v2873
    %v2876 = vcvt.s32.f32 %v2874
    %v2877 = vld [vmem:[%s53] sm:$0xff]
    %v2878 = vld [vmem:[%s53 + $0x8] sm:$0xff]
    %v2879 = vld [vmem:[%s11] sm:$0x1]
    %v2881 = vlaneseq
    %v2882 = vshrl.u32 %v2881, 7
    %v2883 = vsub.s32 0, %v2882
    %v2884 = vrot.slane %v2879, %v2883
    %v2887 = vsel %vm679, %v2875, 0
    %v2890 = vsel %vm679, %v2876, 0
    %2892 = vmatprep.subr.mxu0 0.0
    %2893 = vmatpush1.msra.mxu0 0.0
    %2894 = vmatprep.subr.mxu0 0.0
    %2895 = vmatpush1.msra.mxu0 0.0
    %2896 = vmatprep.subr.mxu0 0.0
    %2897 = vmatpush1.msra.mxu0 0.0
    %2898 = vmatprep.subr.mxu0 0.0
    %2899 = vmatpush1.msra.mxu0 0.0
    %2900 = vmatprep.subr.mxu0 0.0
    %2901 = vmatpush1.msra.mxu0 0.0
    %2902 = vmatprep.subr.mxu0 0.0
    %2903 = vmatpush1.msra.mxu0 0.0
    %2904 = vmatprep.subr.mxu0 0.0
    %2905 = vmatpush1.msra.mxu0 0.0
    %2906 = vmatprep.subr.mxu0 0.0
    %2907 = vmatpush1.msra.mxu0 0.0
    %2908 = vmatprep.subr.mxu0 0.0
    %2909 = vmatpush1.msra.mxu0 0.0
    %2910 = vmatprep.subr.mxu0 0.0
    %2911 = vmatpush1.msra.mxu0 0.0
    %2912 = vmatprep.subr.mxu0 0.0
    %2913 = vmatpush1.msra.mxu0 0.0
    %2914 = vmatprep.subr.mxu0 0.0
    %2915 = vmatpush1.msra.mxu0 0.0
    %2916 = vmatprep.subr.mxu0 0.0
    %2917 = vmatpush1.msra.mxu0 0.0
    %2918 = vmatprep.subr.mxu0 0.0
    %2919 = vmatpush1.msra.mxu0 0.0
    %2920 = vmatprep.subr.mxu0 0.0
    %2921 = vmatpush1.msra.mxu0 %v2878
    %2922 = vmatprep.subr.mxu0 0.0
    %2923 = vmatpush1.msra.mxu0 %v2877
    %2924 = vmatprep.subr.mxu0 0.0
    %2925 = vmatpush2.msra.mxu0 0.0
    %2926 = vmatprep.subr.mxu0 0.0
    %2927 = vmatpush2.msra.mxu0 0.0
    %2928 = vmatprep.subr.mxu0 0.0
    %2929 = vmatpush2.msra.mxu0 0.0
    %2930 = vmatprep.subr.mxu0 0.0
    %2931 = vmatpush2.msra.mxu0 0.0
    %2932 = vmatprep.subr.mxu0 0.0
    %2933 = vmatpush2.msra.mxu0 0.0
    %2934 = vmatprep.subr.mxu0 0.0
    %2935 = vmatpush2.msra.mxu0 0.0
    %2936 = vmatprep.subr.mxu0 0.0
    %2937 = vmatpush2.msra.mxu0 0.0
    %2938 = vmatprep.subr.mxu0 0.0
    %2939 = vmatpush2.msra.mxu0 0.0
    %2940 = vmatprep.subr.mxu0 0.0
    %2941 = vmatpush2.msra.mxu0 0.0
    %2942 = vmatprep.subr.mxu0 0.0
    %2943 = vmatpush2.msra.mxu0 0.0
    %2944 = vmatprep.subr.mxu0 0.0
    %2945 = vmatpush2.msra.mxu0 0.0
    %2946 = vmatprep.subr.mxu0 0.0
    %2947 = vmatpush2.msra.mxu0 0.0
    %2948 = vmatprep.subr.mxu0 0.0
    %2949 = vmatpush2.msra.mxu0 0.0
    %2950 = vmatprep.subr.mxu0 0.0
    %2951 = vmatpush2.msra.mxu0 0.0
    %2952 = vmatprep.subr.mxu0 0.0
    %2953 = vmatpush2.msra.mxu0 0.0
    %2954 = vmatprep.subr.mxu0 0.0
    %2955 = vmatpush2.msra.mxu0 0.0
    %2956 = vmatprep.mubr.f32.mxu0 0.0
    %2957 = vmatmul.mubr.f32.gmra.mxu0 %v2887
    %v2958 = vpop.f32.mrf.mxu0
    %v2959 = vadd.f32 %v2884, %v2958
    %v2960 = vpop.f32.mrf.mxu0
    %2961 = vmatprep.mubr.f32.mxu0 0.0
    %2962 = vmatmul.mubr.f32.gmra.mxu0 %v2890
    %v2963 = vpop.f32.mrf.mxu0
    %v2964 = vadd.f32 %v2884, %v2963
    %v2965 = vpop.f32.mrf.mxu0
    %2966 = vdwg.mxu0
    %v2967 = vld [vmem:[%s39] sm:$0xff]
    %v2968 = vadd.f32 %v2959, %v2967
    %v2969 = vadd.f32 %v2964, %v2967
    %vm2970 = vcmp.eq.s32.totalorder %v2860, 0
    %v2971 = vsel %vm2970, -1e+09, 0.0
    %v2974 = vunpack.c.l.s4 1966171168
    %v2975 = vunpack.c.0.s8 %v2974
    %v2976 = vlaneseq
    %v2977 = vshrl.u32 %v2976, 7
    %v2978 = vsub.s32 %v2975, %v2977
    %v2979 = vrot.slane %v2971, %v2978
    %v2980 = vcombine.high %v2979, %v2979
    %v2982 = vunpack.c.l.s4 1966171168
    %v2983 = vunpack.c.0.s8 %v2982
    %v2984 = vlaneseq
    %v2985 = vshrl.u32 %v2984, 7
    %v2986 = vsub.s32 %v2983, %v2985
    %v2987 = vrot.slane %v2979, %v2986
    %v2989 = vunpack.c.l.s4 1966171168
    %v2990 = vunpack.c.0.s8 %v2989
    %v2991 = vlaneseq
    %v2992 = vshrl.u32 %v2991, 7
    %v2993 = vsub.s32 %v2990, %v2992
    %v2994 = vrot.slane %v2980, %v2993
    %v2995 = vsel %vm312, %v2968, 0.0
    %2996 = vadd.xlane.f32.xlu0 %v2995
    %v2997 = vpop.xlane.xlu0 %2996
    %v2998 = vsel %vm312, %v2969, 0.0
    %2999 = vadd.xlane.f32.xlu0 %v2998
    %v3000 = vpop.xlane.xlu0 %2999
    %v3001 = vmul.f32 %v2997, %v325
    %v3002 = vmul.f32 %v3000, %v325
    %v3003 = vsub.f32 %v2968, %v3001
    %v3004 = vsub.f32 %v2969, %v3002
    %v3005 = vmul.f32 %v3003, %v3003
    %v3006 = vmul.f32 %v3004, %v3004
    %v3007 = vsel %vm312, %v3005, 0.0
    %3008 = vadd.xlane.f32.xlu0 %v3007
    %v3009 = vpop.xlane.xlu0 %3008
    %v3010 = vsel %vm312, %v3006, 0.0
    %3011 = vadd.xlane.f32.xlu0 %v3010
    %v3012 = vpop.xlane.xlu0 %3011
    %v3013 = vmul.f32 %v3009, %v325
    %v3014 = vmul.f32 %v3012, %v325
    %v3015 = vadd.f32 %v3013, 1e-05
    %v3016 = vadd.f32 %v3014, 1e-05
    %v3017 = vrsqrt.pop %v3015
    %v3018 = vrsqrt.pop %v3016
    %v3019 = vmul.f32 %v3003, %v3017
    %v3020 = vmul.f32 %v3004, %v3018
    %v3021 = vld [vmem:[%s25] sm:$0x1]
    %v3023 = vlaneseq
    %v3024 = vshrl.u32 %v3023, 7
    %v3025 = vsub.s32 0, %v3024
    %v3026 = vrot.slane %v3021, %v3025
    %v3028 = vmul.f32 %v3019, %v3026
    %v3029 = vmul.f32 %v3020, %v3026
    %v3030 = vld [vmem:[%s23] sm:$0x1]
    %v3032 = vlaneseq
    %v3033 = vshrl.u32 %v3032, 7
    %v3034 = vsub.s32 0, %v3033
    %v3035 = vrot.slane %v3030, %v3034
    %v3037 = vadd.f32 %v3028, %v3035
    %v3038 = vadd.f32 %v3029, %v3035
    %v3039 = vld [vmem:[%s47] sm:$0xff]
    %v3040 = vld [vmem:[%s47 + $0x8] sm:$0xff]
    %v3041 = vld [vmem:[%s47 + $0x10] sm:$0xff]
    %v3042 = vld [vmem:[%s47 + $0x18] sm:$0xff]
    %v3043 = vld [vmem:[%s43] sm:$0x1]
    %v3045 = vlaneseq
    %v3046 = vshrl.u32 %v3045, 7
    %v3047 = vsub.s32 0, %v3046
    %v3048 = vrot.slane %v3043, %v3047
    %v3051 = vsel %vm312, %v3037, 0
    %v3054 = vsel %vm312, %v3038, 0
    %3056 = vmatprep.subr.mxu0 0.0
    %3057 = vmatpush1.msra.mxu0 0.0
    %3058 = vmatprep.subr.mxu0 0.0
    %3059 = vmatpush1.msra.mxu0 0.0
    %3060 = vmatprep.subr.mxu0 0.0
    %3061 = vmatpush1.msra.mxu0 0.0
    %3062 = vmatprep.subr.mxu0 0.0
    %3063 = vmatpush1.msra.mxu0 0.0
    %3064 = vmatprep.subr.mxu0 0.0
    %3065 = vmatpush1.msra.mxu0 0.0
    %3066 = vmatprep.subr.mxu0 0.0
    %3067 = vmatpush1.msra.mxu0 0.0
    %3068 = vmatprep.subr.mxu0 0.0
    %3069 = vmatpush1.msra.mxu0 0.0
    %3070 = vmatprep.subr.mxu0 0.0
    %3071 = vmatpush1.msra.mxu0 0.0
    %3072 = vmatprep.subr.mxu0 0.0
    %3073 = vmatpush1.msra.mxu0 0.0
    %3074 = vmatprep.subr.mxu0 0.0
    %3075 = vmatpush1.msra.mxu0 0.0
    %3076 = vmatprep.subr.mxu0 0.0
    %3077 = vmatpush1.msra.mxu0 0.0
    %3078 = vmatprep.subr.mxu0 0.0
    %3079 = vmatpush1.msra.mxu0 0.0
    %3080 = vmatprep.subr.mxu0 0.0
    %3081 = vmatpush1.msra.mxu0 %v3042
    %3082 = vmatprep.subr.mxu0 0.0
    %3083 = vmatpush1.msra.mxu0 %v3041
    %3084 = vmatprep.subr.mxu0 0.0
    %3085 = vmatpush1.msra.mxu0 %v3040
    %3086 = vmatprep.subr.mxu0 0.0
    %3087 = vmatpush1.msra.mxu0 %v3039
    %3088 = vmatprep.subr.mxu0 0.0
    %3089 = vmatpush2.msra.mxu0 0.0
    %3090 = vmatprep.subr.mxu0 0.0
    %3091 = vmatpush2.msra.mxu0 0.0
    %3092 = vmatprep.subr.mxu0 0.0
    %3093 = vmatpush2.msra.mxu0 0.0
    %3094 = vmatprep.subr.mxu0 0.0
    %3095 = vmatpush2.msra.mxu0 0.0
    %3096 = vmatprep.subr.mxu0 0.0
    %3097 = vmatpush2.msra.mxu0 0.0
    %3098 = vmatprep.subr.mxu0 0.0
    %3099 = vmatpush2.msra.mxu0 0.0
    %3100 = vmatprep.subr.mxu0 0.0
    %3101 = vmatpush2.msra.mxu0 0.0
    %3102 = vmatprep.subr.mxu0 0.0
    %3103 = vmatpush2.msra.mxu0 0.0
    %3104 = vmatprep.subr.mxu0 0.0
    %3105 = vmatpush2.msra.mxu0 0.0
    %3106 = vmatprep.subr.mxu0 0.0
    %3107 = vmatpush2.msra.mxu0 0.0
    %3108 = vmatprep.subr.mxu0 0.0
    %3109 = vmatpush2.msra.mxu0 0.0
    %3110 = vmatprep.subr.mxu0 0.0
    %3111 = vmatpush2.msra.mxu0 0.0
    %3112 = vmatprep.subr.mxu0 0.0
    %3113 = vmatpush2.msra.mxu0 0.0
    %3114 = vmatprep.subr.mxu0 0.0
    %3115 = vmatpush2.msra.mxu0 0.0
    %3116 = vmatprep.subr.mxu0 0.0
    %3117 = vmatpush2.msra.mxu0 0.0
    %3118 = vmatprep.subr.mxu0 0.0
    %3119 = vmatpush2.msra.mxu0 0.0
    %3120 = vmatprep.mubr.f32.mxu0 0.0
    %3121 = vmatmul.mubr.f32.gmra.mxu0 %v3051
    %v3122 = vpop.f32.mrf.mxu0
    %v3123 = vadd.f32 %v3048, %v3122
    %v3124 = vpop.f32.mrf.mxu0
    %3125 = vmatprep.mubr.f32.mxu0 0.0
    %3126 = vmatmul.mubr.f32.gmra.mxu0 %v3054
    %v3127 = vpop.f32.mrf.mxu0
    %v3128 = vadd.f32 %v3048, %v3127
    %v3129 = vpop.f32.mrf.mxu0
    %3130 = vdwg.mxu0
    %3132 = vrot.lane.b32.xlu0 %v3123, 96
    %v3133 = vpop.permute.xlu0 %3132
    %v3134 = vsel %vm502, %v3123, 0
    %v3136 = vsel %vm502, %v3133, 0
    %3138 = vmatprep.subr.mxu0 0.0
    %3139 = vmatpush1.xpose.msra.mxu0 0.0
    %3140 = vmatprep.subr.mxu0 0.0
    %3141 = vmatpush1.xpose.msra.mxu0 0.0
    %3142 = vmatprep.subr.mxu0 0.0
    %3143 = vmatpush1.xpose.msra.mxu0 0.0
    %3144 = vmatprep.subr.mxu0 0.0
    %3145 = vmatpush1.xpose.msra.mxu0 0.0
    %3146 = vmatprep.subr.mxu0 0.0
    %3147 = vmatpush1.xpose.msra.mxu0 0.0
    %3148 = vmatprep.subr.mxu0 0.0
    %3149 = vmatpush1.xpose.msra.mxu0 0.0
    %3150 = vmatprep.subr.mxu0 0.0
    %3151 = vmatpush1.xpose.msra.mxu0 0.0
    %3152 = vmatprep.subr.mxu0 0.0
    %3153 = vmatpush1.xpose.msra.mxu0 0.0
    %3154 = vmatprep.subr.mxu0 0.0
    %3155 = vmatpush1.xpose.msra.mxu0 0.0
    %3156 = vmatprep.subr.mxu0 0.0
    %3157 = vmatpush1.xpose.msra.mxu0 0.0
    %3158 = vmatprep.subr.mxu0 0.0
    %3159 = vmatpush1.xpose.msra.mxu0 0.0
    %3160 = vmatprep.subr.mxu0 0.0
    %3161 = vmatpush1.xpose.msra.mxu0 0.0
    %3162 = vmatprep.subr.mxu0 0.0
    %3163 = vmatpush1.xpose.msra.mxu0 0.0
    %3164 = vmatprep.subr.mxu0 0.0
    %3165 = vmatpush1.xpose.msra.mxu0 0.0
    %3166 = vmatprep.subr.mxu0 0.0
    %3167 = vmatpush1.xpose.msra.mxu0 0.0
    %3168 = vmatprep.subr.mxu0 0.0
    %3169 = vmatpush1.xpose.msra.mxu0 %v3136
    %3170 = vmatprep.subr.mxu0 0.0
    %3171 = vmatpush2.xpose.msra.mxu0 0.0
    %3172 = vmatprep.subr.mxu0 0.0
    %3173 = vmatpush2.xpose.msra.mxu0 0.0
    %3174 = vmatprep.subr.mxu0 0.0
    %3175 = vmatpush2.xpose.msra.mxu0 0.0
    %3176 = vmatprep.subr.mxu0 0.0
    %3177 = vmatpush2.xpose.msra.mxu0 0.0
    %3178 = vmatprep.subr.mxu0 0.0
    %3179 = vmatpush2.xpose.msra.mxu0 0.0
    %3180 = vmatprep.subr.mxu0 0.0
    %3181 = vmatpush2.xpose.msra.mxu0 0.0
    %3182 = vmatprep.subr.mxu0 0.0
    %3183 = vmatpush2.xpose.msra.mxu0 0.0
    %3184 = vmatprep.subr.mxu0 0.0
    %3185 = vmatpush2.xpose.msra.mxu0 0.0
    %3186 = vmatprep.subr.mxu0 0.0
    %3187 = vmatpush2.xpose.msra.mxu0 0.0
    %3188 = vmatprep.subr.mxu0 0.0
    %3189 = vmatpush2.xpose.msra.mxu0 0.0
    %3190 = vmatprep.subr.mxu0 0.0
    %3191 = vmatpush2.xpose.msra.mxu0 0.0
    %3192 = vmatprep.subr.mxu0 0.0
    %3193 = vmatpush2.xpose.msra.mxu0 0.0
    %3194 = vmatprep.subr.mxu0 0.0
    %3195 = vmatpush2.xpose.msra.mxu0 0.0
    %3196 = vmatprep.subr.mxu0 0.0
    %3197 = vmatpush2.xpose.msra.mxu0 0.0
    %3198 = vmatprep.subr.mxu0 0.0
    %3199 = vmatpush2.xpose.msra.mxu0 0.0
    %3200 = vmatprep.subr.mxu0 0.0
    %3201 = vmatpush2.xpose.msra.mxu0 0.0
    %3202 = vmatprep.mubr.f32.mxu0 0.0
    %3203 = vmatmul.mubr.f32.gmra.mxu0 %v3134
    %v3204 = vpop.f32.mrf.mxu0
    %v3205 = vadd.f32 0.0, %v3204
    %v3206 = vpop.f32.mrf.mxu0
    %3207 = vdwg.mxu0
    %3209 = vrot.lane.b32.xlu0 %v3128, 96
    %v3210 = vpop.permute.xlu0 %3209
    %v3211 = vsel %vm502, %v3128, 0
    %v3213 = vsel %vm502, %v3210, 0
    %3215 = vmatprep.subr.mxu0 0.0
    %3216 = vmatpush1.xpose.msra.mxu0 0.0
    %3217 = vmatprep.subr.mxu0 0.0
    %3218 = vmatpush1.xpose.msra.mxu0 0.0
    %3219 = vmatprep.subr.mxu0 0.0
    %3220 = vmatpush1.xpose.msra.mxu0 0.0
    %3221 = vmatprep.subr.mxu0 0.0
    %3222 = vmatpush1.xpose.msra.mxu0 0.0
    %3223 = vmatprep.subr.mxu0 0.0
    %3224 = vmatpush1.xpose.msra.mxu0 0.0
    %3225 = vmatprep.subr.mxu0 0.0
    %3226 = vmatpush1.xpose.msra.mxu0 0.0
    %3227 = vmatprep.subr.mxu0 0.0
    %3228 = vmatpush1.xpose.msra.mxu0 0.0
    %3229 = vmatprep.subr.mxu0 0.0
    %3230 = vmatpush1.xpose.msra.mxu0 0.0
    %3231 = vmatprep.subr.mxu0 0.0
    %3232 = vmatpush1.xpose.msra.mxu0 0.0
    %3233 = vmatprep.subr.mxu0 0.0
    %3234 = vmatpush1.xpose.msra.mxu0 0.0
    %3235 = vmatprep.subr.mxu0 0.0
    %3236 = vmatpush1.xpose.msra.mxu0 0.0
    %3237 = vmatprep.subr.mxu0 0.0
    %3238 = vmatpush1.xpose.msra.mxu0 0.0
    %3239 = vmatprep.subr.mxu0 0.0
    %3240 = vmatpush1.xpose.msra.mxu0 0.0
    %3241 = vmatprep.subr.mxu0 0.0
    %3242 = vmatpush1.xpose.msra.mxu0 0.0
    %3243 = vmatprep.subr.mxu0 0.0
    %3244 = vmatpush1.xpose.msra.mxu0 0.0
    %3245 = vmatprep.subr.mxu0 0.0
    %3246 = vmatpush1.xpose.msra.mxu0 %v3213
    %3247 = vmatprep.subr.mxu0 0.0
    %3248 = vmatpush2.xpose.msra.mxu0 0.0
    %3249 = vmatprep.subr.mxu0 0.0
    %3250 = vmatpush2.xpose.msra.mxu0 0.0
    %3251 = vmatprep.subr.mxu0 0.0
    %3252 = vmatpush2.xpose.msra.mxu0 0.0
    %3253 = vmatprep.subr.mxu0 0.0
    %3254 = vmatpush2.xpose.msra.mxu0 0.0
    %3255 = vmatprep.subr.mxu0 0.0
    %3256 = vmatpush2.xpose.msra.mxu0 0.0
    %3257 = vmatprep.subr.mxu0 0.0
    %3258 = vmatpush2.xpose.msra.mxu0 0.0
    %3259 = vmatprep.subr.mxu0 0.0
    %3260 = vmatpush2.xpose.msra.mxu0 0.0
    %3261 = vmatprep.subr.mxu0 0.0
    %3262 = vmatpush2.xpose.msra.mxu0 0.0
    %3263 = vmatprep.subr.mxu0 0.0
    %3264 = vmatpush2.xpose.msra.mxu0 0.0
    %3265 = vmatprep.subr.mxu0 0.0
    %3266 = vmatpush2.xpose.msra.mxu0 0.0
    %3267 = vmatprep.subr.mxu0 0.0
    %3268 = vmatpush2.xpose.msra.mxu0 0.0
    %3269 = vmatprep.subr.mxu0 0.0
    %3270 = vmatpush2.xpose.msra.mxu0 0.0
    %3271 = vmatprep.subr.mxu0 0.0
    %3272 = vmatpush2.xpose.msra.mxu0 0.0
    %3273 = vmatprep.subr.mxu0 0.0
    %3274 = vmatpush2.xpose.msra.mxu0 0.0
    %3275 = vmatprep.subr.mxu0 0.0
    %3276 = vmatpush2.xpose.msra.mxu0 0.0
    %3277 = vmatprep.subr.mxu0 0.0
    %3278 = vmatpush2.xpose.msra.mxu0 0.0
    %3279 = vmatprep.mubr.f32.mxu0 0.0
    %3280 = vmatmul.mubr.f32.gmra.mxu0 %v3211
    %v3281 = vpop.f32.mrf.mxu0
    %v3282 = vadd.f32 0.0, %v3281
    %v3283 = vpop.f32.mrf.mxu0
    %3284 = vdwg.mxu0
    %v3285 = vmul.f32 %v3205, 0.35355338
    %v3286 = vmul.f32 %v3282, 0.35355338
    %v3287 = vlaneseq
    %v3288 = vshrl.u32 %v3287, 7
    %v3289 = vsub.s32 0, %v3288
    %v3290 = vrot.slane %v2987, %v3289
    %v3291 = vlaneseq
    %v3292 = vshrl.u32 %v3291, 7
    %v3293 = vsub.s32 0, %v3292
    %v3294 = vrot.slane %v2994, %v3293
    %v3297 = vadd.f32 %v3285, %v3290
    %v3298 = vadd.f32 %v3286, %v3294
    %v3299 = vsel %vm502, %v3297, -inf
    %3300 = vmax.xlane.f32.xlu0 %v3299
    %v3301 = vpop.xlane.xlu0 %3300
    %v3302 = vsel %vm502, %v3298, -inf
    %3303 = vmax.xlane.f32.xlu0 %v3302
    %v3304 = vpop.xlane.xlu0 %3303
    %v3305 = vsub.f32 %v3297, %v3301
    %v3306 = vsub.f32 %v3298, %v3304
    %v3307 = vmul.f32 %v3305, 1.442695
    %v3308 = vpow.pop %v3307
    %v3309 = vmul.f32 %v3306, 1.442695
    %v3310 = vpow.pop %v3309
    %v3311 = vsel %vm502, %v3308, 0.0
    %3312 = vadd.xlane.f32.xlu0 %v3311
    %v3313 = vpop.xlane.xlu0 %3312
    %v3314 = vsel %vm502, %v3310, 0.0
    %3315 = vadd.xlane.f32.xlu0 %v3314
    %v3316 = vpop.xlane.xlu0 %3315
    %3317 = vrot.lane.b32.xlu0 %v3123, 64
    %v3318 = vpop.permute.xlu0 %3317
    %v3321 = vsel %vm502, %v3308, 0
    %3323 = vmatprep.subr.mxu0 0.0
    %3324 = vmatpush1.msra.mxu0 0.0
    %3325 = vmatprep.subr.mxu0 0.0
    %3326 = vmatpush1.msra.mxu0 0.0
    %3327 = vmatprep.subr.mxu0 0.0
    %3328 = vmatpush1.msra.mxu0 0.0
    %3329 = vmatprep.subr.mxu0 0.0
    %3330 = vmatpush1.msra.mxu0 0.0
    %3331 = vmatprep.subr.mxu0 0.0
    %3332 = vmatpush1.msra.mxu0 0.0
    %3333 = vmatprep.subr.mxu0 0.0
    %3334 = vmatpush1.msra.mxu0 0.0
    %3335 = vmatprep.subr.mxu0 0.0
    %3336 = vmatpush1.msra.mxu0 0.0
    %3337 = vmatprep.subr.mxu0 0.0
    %3338 = vmatpush1.msra.mxu0 0.0
    %3339 = vmatprep.subr.mxu0 0.0
    %3340 = vmatpush1.msra.mxu0 0.0
    %3341 = vmatprep.subr.mxu0 0.0
    %3342 = vmatpush1.msra.mxu0 0.0
    %3343 = vmatprep.subr.mxu0 0.0
    %3344 = vmatpush1.msra.mxu0 0.0
    %3345 = vmatprep.subr.mxu0 0.0
    %3346 = vmatpush1.msra.mxu0 0.0
    %3347 = vmatprep.subr.mxu0 0.0
    %3348 = vmatpush1.msra.mxu0 0.0
    %3349 = vmatprep.subr.mxu0 0.0
    %3350 = vmatpush1.msra.mxu0 0.0
    %3351 = vmatprep.subr.mxu0 0.0
    %3352 = vmatpush1.msra.mxu0 0.0
    %3353 = vmatprep.subr.mxu0 0.0
    %3354 = vmatpush1.msra.mxu0 %v3318
    %3355 = vmatprep.subr.mxu0 0.0
    %3356 = vmatpush2.msra.mxu0 0.0
    %3357 = vmatprep.subr.mxu0 0.0
    %3358 = vmatpush2.msra.mxu0 0.0
    %3359 = vmatprep.subr.mxu0 0.0
    %3360 = vmatpush2.msra.mxu0 0.0
    %3361 = vmatprep.subr.mxu0 0.0
    %3362 = vmatpush2.msra.mxu0 0.0
    %3363 = vmatprep.subr.mxu0 0.0
    %3364 = vmatpush2.msra.mxu0 0.0
    %3365 = vmatprep.subr.mxu0 0.0
    %3366 = vmatpush2.msra.mxu0 0.0
    %3367 = vmatprep.subr.mxu0 0.0
    %3368 = vmatpush2.msra.mxu0 0.0
    %3369 = vmatprep.subr.mxu0 0.0
    %3370 = vmatpush2.msra.mxu0 0.0
    %3371 = vmatprep.subr.mxu0 0.0
    %3372 = vmatpush2.msra.mxu0 0.0
    %3373 = vmatprep.subr.mxu0 0.0
    %3374 = vmatpush2.msra.mxu0 0.0
    %3375 = vmatprep.subr.mxu0 0.0
    %3376 = vmatpush2.msra.mxu0 0.0
    %3377 = vmatprep.subr.mxu0 0.0
    %3378 = vmatpush2.msra.mxu0 0.0
    %3379 = vmatprep.subr.mxu0 0.0
    %3380 = vmatpush2.msra.mxu0 0.0
    %3381 = vmatprep.subr.mxu0 0.0
    %3382 = vmatpush2.msra.mxu0 0.0
    %3383 = vmatprep.subr.mxu0 0.0
    %3384 = vmatpush2.msra.mxu0 0.0
    %3385 = vmatprep.subr.mxu0 0.0
    %3386 = vmatpush2.msra.mxu0 0.0
    %3387 = vmatprep.mubr.f32.mxu0 0.0
    %3388 = vmatmul.mubr.f32.gmra.mxu0 %v3321
    %v3389 = vpop.f32.mrf.mxu0
    %v3390 = vadd.f32 0.0, %v3389
    %v3391 = vpop.f32.mrf.mxu0
    %3392 = vdwg.mxu0
    %3393 = vrot.lane.b32.xlu0 %v3128, 64
    %v3394 = vpop.permute.xlu0 %3393
    %v3397 = vsel %vm502, %v3310, 0
    %3399 = vmatprep.subr.mxu0 0.0
    %3400 = vmatpush1.msra.mxu0 0.0
    %3401 = vmatprep.subr.mxu0 0.0
    %3402 = vmatpush1.msra.mxu0 0.0
    %3403 = vmatprep.subr.mxu0 0.0
    %3404 = vmatpush1.msra.mxu0 0.0
    %3405 = vmatprep.subr.mxu0 0.0
    %3406 = vmatpush1.msra.mxu0 0.0
    %3407 = vmatprep.subr.mxu0 0.0
    %3408 = vmatpush1.msra.mxu0 0.0
    %3409 = vmatprep.subr.mxu0 0.0
    %3410 = vmatpush1.msra.mxu0 0.0
    %3411 = vmatprep.subr.mxu0 0.0
    %3412 = vmatpush1.msra.mxu0 0.0
    %3413 = vmatprep.subr.mxu0 0.0
    %3414 = vmatpush1.msra.mxu0 0.0
    %3415 = vmatprep.subr.mxu0 0.0
    %3416 = vmatpush1.msra.mxu0 0.0
    %3417 = vmatprep.subr.mxu0 0.0
    %3418 = vmatpush1.msra.mxu0 0.0
    %3419 = vmatprep.subr.mxu0 0.0
    %3420 = vmatpush1.msra.mxu0 0.0
    %3421 = vmatprep.subr.mxu0 0.0
    %3422 = vmatpush1.msra.mxu0 0.0
    %3423 = vmatprep.subr.mxu0 0.0
    %3424 = vmatpush1.msra.mxu0 0.0
    %3425 = vmatprep.subr.mxu0 0.0
    %3426 = vmatpush1.msra.mxu0 0.0
    %3427 = vmatprep.subr.mxu0 0.0
    %3428 = vmatpush1.msra.mxu0 0.0
    %3429 = vmatprep.subr.mxu0 0.0
    %3430 = vmatpush1.msra.mxu0 %v3394
    %3431 = vmatprep.subr.mxu0 0.0
    %3432 = vmatpush2.msra.mxu0 0.0
    %3433 = vmatprep.subr.mxu0 0.0
    %3434 = vmatpush2.msra.mxu0 0.0
    %3435 = vmatprep.subr.mxu0 0.0
    %3436 = vmatpush2.msra.mxu0 0.0
    %3437 = vmatprep.subr.mxu0 0.0
    %3438 = vmatpush2.msra.mxu0 0.0
    %3439 = vmatprep.subr.mxu0 0.0
    %3440 = vmatpush2.msra.mxu0 0.0
    %3441 = vmatprep.subr.mxu0 0.0
    %3442 = vmatpush2.msra.mxu0 0.0
    %3443 = vmatprep.subr.mxu0 0.0
    %3444 = vmatpush2.msra.mxu0 0.0
    %3445 = vmatprep.subr.mxu0 0.0
    %3446 = vmatpush2.msra.mxu0 0.0
    %3447 = vmatprep.subr.mxu0 0.0
    %3448 = vmatpush2.msra.mxu0 0.0
    %3449 = vmatprep.subr.mxu0 0.0
    %3450 = vmatpush2.msra.mxu0 0.0
    %3451 = vmatprep.subr.mxu0 0.0
    %3452 = vmatpush2.msra.mxu0 0.0
    %3453 = vmatprep.subr.mxu0 0.0
    %3454 = vmatpush2.msra.mxu0 0.0
    %3455 = vmatprep.subr.mxu0 0.0
    %3456 = vmatpush2.msra.mxu0 0.0
    %3457 = vmatprep.subr.mxu0 0.0
    %3458 = vmatpush2.msra.mxu0 0.0
    %3459 = vmatprep.subr.mxu0 0.0
    %3460 = vmatpush2.msra.mxu0 0.0
    %3461 = vmatprep.subr.mxu0 0.0
    %3462 = vmatpush2.msra.mxu0 0.0
    %3463 = vmatprep.mubr.f32.mxu0 0.0
    %3464 = vmatmul.mubr.f32.gmra.mxu0 %v3397
    %v3465 = vpop.f32.mrf.mxu0
    %v3466 = vadd.f32 0.0, %v3465
    %v3467 = vpop.f32.mrf.mxu0
    %3468 = vdwg.mxu0
    %v3469 = vrcp.pop %v3313
    %v3470 = vrcp.pop %v3316
    %v3471 = vmul.f32 %v3390, %v3469
    %v3472 = vmul.f32 %v3466, %v3470
    %v3473 = vld [vmem:[%s45] sm:$0xff]
    %3474 = vrot.lane.b32.xlu0 %v3123, 120
    %v3475 = vpop.permute.xlu0 %3474
    %3476 = vrot.lane.b32.xlu0 %v3123, 88
    %v3477 = vpop.permute.xlu0 %3476
    %v3478 = vsel %vm502, %v3475, 0
    %v3480 = vsel %vm502, %v3477, 0
    %3482 = vmatprep.subr.mxu0 0.0
    %3483 = vmatpush1.xpose.msra.mxu0 0.0
    %3484 = vmatprep.subr.mxu0 0.0
    %3485 = vmatpush1.xpose.msra.mxu0 0.0
    %3486 = vmatprep.subr.mxu0 0.0
    %3487 = vmatpush1.xpose.msra.mxu0 0.0
    %3488 = vmatprep.subr.mxu0 0.0
    %3489 = vmatpush1.xpose.msra.mxu0 0.0
    %3490 = vmatprep.subr.mxu0 0.0
    %3491 = vmatpush1.xpose.msra.mxu0 0.0
    %3492 = vmatprep.subr.mxu0 0.0
    %3493 = vmatpush1.xpose.msra.mxu0 0.0
    %3494 = vmatprep.subr.mxu0 0.0
    %3495 = vmatpush1.xpose.msra.mxu0 0.0
    %3496 = vmatprep.subr.mxu0 0.0
    %3497 = vmatpush1.xpose.msra.mxu0 0.0
    %3498 = vmatprep.subr.mxu0 0.0
    %3499 = vmatpush1.xpose.msra.mxu0 0.0
    %3500 = vmatprep.subr.mxu0 0.0
    %3501 = vmatpush1.xpose.msra.mxu0 0.0
    %3502 = vmatprep.subr.mxu0 0.0
    %3503 = vmatpush1.xpose.msra.mxu0 0.0
    %3504 = vmatprep.subr.mxu0 0.0
    %3505 = vmatpush1.xpose.msra.mxu0 0.0
    %3506 = vmatprep.subr.mxu0 0.0
    %3507 = vmatpush1.xpose.msra.mxu0 0.0
    %3508 = vmatprep.subr.mxu0 0.0
    %3509 = vmatpush1.xpose.msra.mxu0 0.0
    %3510 = vmatprep.subr.mxu0 0.0
    %3511 = vmatpush1.xpose.msra.mxu0 0.0
    %3512 = vmatprep.subr.mxu0 0.0
    %3513 = vmatpush1.xpose.msra.mxu0 %v3480
    %3514 = vmatprep.subr.mxu0 0.0
    %3515 = vmatpush2.xpose.msra.mxu0 0.0
    %3516 = vmatprep.subr.mxu0 0.0
    %3517 = vmatpush2.xpose.msra.mxu0 0.0
    %3518 = vmatprep.subr.mxu0 0.0
    %3519 = vmatpush2.xpose.msra.mxu0 0.0
    %3520 = vmatprep.subr.mxu0 0.0
    %3521 = vmatpush2.xpose.msra.mxu0 0.0
    %3522 = vmatprep.subr.mxu0 0.0
    %3523 = vmatpush2.xpose.msra.mxu0 0.0
    %3524 = vmatprep.subr.mxu0 0.0
    %3525 = vmatpush2.xpose.msra.mxu0 0.0
    %3526 = vmatprep.subr.mxu0 0.0
    %3527 = vmatpush2.xpose.msra.mxu0 0.0
    %3528 = vmatprep.subr.mxu0 0.0
    %3529 = vmatpush2.xpose.msra.mxu0 0.0
    %3530 = vmatprep.subr.mxu0 0.0
    %3531 = vmatpush2.xpose.msra.mxu0 0.0
    %3532 = vmatprep.subr.mxu0 0.0
    %3533 = vmatpush2.xpose.msra.mxu0 0.0
    %3534 = vmatprep.subr.mxu0 0.0
    %3535 = vmatpush2.xpose.msra.mxu0 0.0
    %3536 = vmatprep.subr.mxu0 0.0
    %3537 = vmatpush2.xpose.msra.mxu0 0.0
    %3538 = vmatprep.subr.mxu0 0.0
    %3539 = vmatpush2.xpose.msra.mxu0 0.0
    %3540 = vmatprep.subr.mxu0 0.0
    %3541 = vmatpush2.xpose.msra.mxu0 0.0
    %3542 = vmatprep.subr.mxu0 0.0
    %3543 = vmatpush2.xpose.msra.mxu0 0.0
    %3544 = vmatprep.subr.mxu0 0.0
    %3545 = vmatpush2.xpose.msra.mxu0 0.0
    %3546 = vmatprep.mubr.f32.mxu0 0.0
    %3547 = vmatmul.mubr.f32.gmra.mxu0 %v3478
    %v3548 = vpop.f32.mrf.mxu0
    %v3549 = vadd.f32 0.0, %v3548
    %v3550 = vpop.f32.mrf.mxu0
    %3551 = vdwg.mxu0
    %3552 = vrot.lane.b32.xlu0 %v3128, 120
    %v3553 = vpop.permute.xlu0 %3552
    %3554 = vrot.lane.b32.xlu0 %v3128, 88
    %v3555 = vpop.permute.xlu0 %3554
    %v3556 = vsel %vm502, %v3553, 0
    %v3558 = vsel %vm502, %v3555, 0
    %3560 = vmatprep.subr.mxu0 0.0
    %3561 = vmatpush1.xpose.msra.mxu0 0.0
    %3562 = vmatprep.subr.mxu0 0.0
    %3563 = vmatpush1.xpose.msra.mxu0 0.0
    %3564 = vmatprep.subr.mxu0 0.0
    %3565 = vmatpush1.xpose.msra.mxu0 0.0
    %3566 = vmatprep.subr.mxu0 0.0
    %3567 = vmatpush1.xpose.msra.mxu0 0.0
    %3568 = vmatprep.subr.mxu0 0.0
    %3569 = vmatpush1.xpose.msra.mxu0 0.0
    %3570 = vmatprep.subr.mxu0 0.0
    %3571 = vmatpush1.xpose.msra.mxu0 0.0
    %3572 = vmatprep.subr.mxu0 0.0
    %3573 = vmatpush1.xpose.msra.mxu0 0.0
    %3574 = vmatprep.subr.mxu0 0.0
    %3575 = vmatpush1.xpose.msra.mxu0 0.0
    %3576 = vmatprep.subr.mxu0 0.0
    %3577 = vmatpush1.xpose.msra.mxu0 0.0
    %3578 = vmatprep.subr.mxu0 0.0
    %3579 = vmatpush1.xpose.msra.mxu0 0.0
    %3580 = vmatprep.subr.mxu0 0.0
    %3581 = vmatpush1.xpose.msra.mxu0 0.0
    %3582 = vmatprep.subr.mxu0 0.0
    %3583 = vmatpush1.xpose.msra.mxu0 0.0
    %3584 = vmatprep.subr.mxu0 0.0
    %3585 = vmatpush1.xpose.msra.mxu0 0.0
    %3586 = vmatprep.subr.mxu0 0.0
    %3587 = vmatpush1.xpose.msra.mxu0 0.0
    %3588 = vmatprep.subr.mxu0 0.0
    %3589 = vmatpush1.xpose.msra.mxu0 0.0
    %3590 = vmatprep.subr.mxu0 0.0
    %3591 = vmatpush1.xpose.msra.mxu0 %v3558
    %3592 = vmatprep.subr.mxu0 0.0
    %3593 = vmatpush2.xpose.msra.mxu0 0.0
    %3594 = vmatprep.subr.mxu0 0.0
    %3595 = vmatpush2.xpose.msra.mxu0 0.0
    %3596 = vmatprep.subr.mxu0 0.0
    %3597 = vmatpush2.xpose.msra.mxu0 0.0
    %3598 = vmatprep.subr.mxu0 0.0
    %3599 = vmatpush2.xpose.msra.mxu0 0.0
    %3600 = vmatprep.subr.mxu0 0.0
    %3601 = vmatpush2.xpose.msra.mxu0 0.0
    %3602 = vmatprep.subr.mxu0 0.0
    %3603 = vmatpush2.xpose.msra.mxu0 0.0
    %3604 = vmatprep.subr.mxu0 0.0
    %3605 = vmatpush2.xpose.msra.mxu0 0.0
    %3606 = vmatprep.subr.mxu0 0.0
    %3607 = vmatpush2.xpose.msra.mxu0 0.0
    %3608 = vmatprep.subr.mxu0 0.0
    %3609 = vmatpush2.xpose.msra.mxu0 0.0
    %3610 = vmatprep.subr.mxu0 0.0
    %3611 = vmatpush2.xpose.msra.mxu0 0.0
    %3612 = vmatprep.subr.mxu0 0.0
    %3613 = vmatpush2.xpose.msra.mxu0 0.0
    %3614 = vmatprep.subr.mxu0 0.0
    %3615 = vmatpush2.xpose.msra.mxu0 0.0
    %3616 = vmatprep.subr.mxu0 0.0
    %3617 = vmatpush2.xpose.msra.mxu0 0.0
    %3618 = vmatprep.subr.mxu0 0.0
    %3619 = vmatpush2.xpose.msra.mxu0 0.0
    %3620 = vmatprep.subr.mxu0 0.0
    %3621 = vmatpush2.xpose.msra.mxu0 0.0
    %3622 = vmatprep.subr.mxu0 0.0
    %3623 = vmatpush2.xpose.msra.mxu0 0.0
    %3624 = vmatprep.mubr.f32.mxu0 0.0
    %3625 = vmatmul.mubr.f32.gmra.mxu0 %v3556
    %v3626 = vpop.f32.mrf.mxu0
    %v3627 = vadd.f32 0.0, %v3626
    %v3628 = vpop.f32.mrf.mxu0
    %3629 = vdwg.mxu0
    %v3630 = vmul.f32 %v3549, 0.35355338
    %v3631 = vmul.f32 %v3627, 0.35355338
    %v3632 = vadd.f32 %v3630, %v3290
    %v3633 = vadd.f32 %v3631, %v3294
    %v3634 = vsel %vm502, %v3632, -inf
    %3635 = vmax.xlane.f32.xlu0 %v3634
    %v3636 = vpop.xlane.xlu0 %3635
    %v3637 = vsel %vm502, %v3633, -inf
    %3638 = vmax.xlane.f32.xlu0 %v3637
    %v3639 = vpop.xlane.xlu0 %3638
    %v3640 = vsub.f32 %v3632, %v3636
    %v3641 = vsub.f32 %v3633, %v3639
    %v3642 = vmul.f32 %v3640, 1.442695
    %v3643 = vpow.pop %v3642
    %v3644 = vmul.f32 %v3641, 1.442695
    %v3645 = vpow.pop %v3644
    %v3646 = vsel %vm502, %v3643, 0.0
    %3647 = vadd.xlane.f32.xlu0 %v3646
    %v3648 = vpop.xlane.xlu0 %3647
    %v3649 = vsel %vm502, %v3645, 0.0
    %3650 = vadd.xlane.f32.xlu0 %v3649
    %v3651 = vpop.xlane.xlu0 %3650
    %3652 = vrot.lane.b32.xlu0 %v3123, 56
    %v3653 = vpop.permute.xlu0 %3652
    %v3656 = vsel %vm502, %v3643, 0
    %3658 = vmatprep.subr.mxu0 0.0
    %3659 = vmatpush1.msra.mxu0 0.0
    %3660 = vmatprep.subr.mxu0 0.0
    %3661 = vmatpush1.msra.mxu0 0.0
    %3662 = vmatprep.subr.mxu0 0.0
    %3663 = vmatpush1.msra.mxu0 0.0
    %3664 = vmatprep.subr.mxu0 0.0
    %3665 = vmatpush1.msra.mxu0 0.0
    %3666 = vmatprep.subr.mxu0 0.0
    %3667 = vmatpush1.msra.mxu0 0.0
    %3668 = vmatprep.subr.mxu0 0.0
    %3669 = vmatpush1.msra.mxu0 0.0
    %3670 = vmatprep.subr.mxu0 0.0
    %3671 = vmatpush1.msra.mxu0 0.0
    %3672 = vmatprep.subr.mxu0 0.0
    %3673 = vmatpush1.msra.mxu0 0.0
    %3674 = vmatprep.subr.mxu0 0.0
    %3675 = vmatpush1.msra.mxu0 0.0
    %3676 = vmatprep.subr.mxu0 0.0
    %3677 = vmatpush1.msra.mxu0 0.0
    %3678 = vmatprep.subr.mxu0 0.0
    %3679 = vmatpush1.msra.mxu0 0.0
    %3680 = vmatprep.subr.mxu0 0.0
    %3681 = vmatpush1.msra.mxu0 0.0
    %3682 = vmatprep.subr.mxu0 0.0
    %3683 = vmatpush1.msra.mxu0 0.0
    %3684 = vmatprep.subr.mxu0 0.0
    %3685 = vmatpush1.msra.mxu0 0.0
    %3686 = vmatprep.subr.mxu0 0.0
    %3687 = vmatpush1.msra.mxu0 0.0
    %3688 = vmatprep.subr.mxu0 0.0
    %3689 = vmatpush1.msra.mxu0 %v3653
    %3690 = vmatprep.subr.mxu0 0.0
    %3691 = vmatpush2.msra.mxu0 0.0
    %3692 = vmatprep.subr.mxu0 0.0
    %3693 = vmatpush2.msra.mxu0 0.0
    %3694 = vmatprep.subr.mxu0 0.0
    %3695 = vmatpush2.msra.mxu0 0.0
    %3696 = vmatprep.subr.mxu0 0.0
    %3697 = vmatpush2.msra.mxu0 0.0
    %3698 = vmatprep.subr.mxu0 0.0
    %3699 = vmatpush2.msra.mxu0 0.0
    %3700 = vmatprep.subr.mxu0 0.0
    %3701 = vmatpush2.msra.mxu0 0.0
    %3702 = vmatprep.subr.mxu0 0.0
    %3703 = vmatpush2.msra.mxu0 0.0
    %3704 = vmatprep.subr.mxu0 0.0
    %3705 = vmatpush2.msra.mxu0 0.0
    %3706 = vmatprep.subr.mxu0 0.0
    %3707 = vmatpush2.msra.mxu0 0.0
    %3708 = vmatprep.subr.mxu0 0.0
    %3709 = vmatpush2.msra.mxu0 0.0
    %3710 = vmatprep.subr.mxu0 0.0
    %3711 = vmatpush2.msra.mxu0 0.0
    %3712 = vmatprep.subr.mxu0 0.0
    %3713 = vmatpush2.msra.mxu0 0.0
    %3714 = vmatprep.subr.mxu0 0.0
    %3715 = vmatpush2.msra.mxu0 0.0
    %3716 = vmatprep.subr.mxu0 0.0
    %3717 = vmatpush2.msra.mxu0 0.0
    %3718 = vmatprep.subr.mxu0 0.0
    %3719 = vmatpush2.msra.mxu0 0.0
    %3720 = vmatprep.subr.mxu0 0.0
    %3721 = vmatpush2.msra.mxu0 0.0
    %3722 = vmatprep.mubr.f32.mxu0 0.0
    %3723 = vmatmul.mubr.f32.gmra.mxu0 %v3656
    %v3724 = vpop.f32.mrf.mxu0
    %v3725 = vadd.f32 0.0, %v3724
    %v3726 = vpop.f32.mrf.mxu0
    %3727 = vdwg.mxu0
    %3728 = vrot.lane.b32.xlu0 %v3128, 56
    %v3729 = vpop.permute.xlu0 %3728
    %v3732 = vsel %vm502, %v3645, 0
    %3734 = vmatprep.subr.mxu0 0.0
    %3735 = vmatpush1.msra.mxu0 0.0
    %3736 = vmatprep.subr.mxu0 0.0
    %3737 = vmatpush1.msra.mxu0 0.0
    %3738 = vmatprep.subr.mxu0 0.0
    %3739 = vmatpush1.msra.mxu0 0.0
    %3740 = vmatprep.subr.mxu0 0.0
    %3741 = vmatpush1.msra.mxu0 0.0
    %3742 = vmatprep.subr.mxu0 0.0
    %3743 = vmatpush1.msra.mxu0 0.0
    %3744 = vmatprep.subr.mxu0 0.0
    %3745 = vmatpush1.msra.mxu0 0.0
    %3746 = vmatprep.subr.mxu0 0.0
    %3747 = vmatpush1.msra.mxu0 0.0
    %3748 = vmatprep.subr.mxu0 0.0
    %3749 = vmatpush1.msra.mxu0 0.0
    %3750 = vmatprep.subr.mxu0 0.0
    %3751 = vmatpush1.msra.mxu0 0.0
    %3752 = vmatprep.subr.mxu0 0.0
    %3753 = vmatpush1.msra.mxu0 0.0
    %3754 = vmatprep.subr.mxu0 0.0
    %3755 = vmatpush1.msra.mxu0 0.0
    %3756 = vmatprep.subr.mxu0 0.0
    %3757 = vmatpush1.msra.mxu0 0.0
    %3758 = vmatprep.subr.mxu0 0.0
    %3759 = vmatpush1.msra.mxu0 0.0
    %3760 = vmatprep.subr.mxu0 0.0
    %3761 = vmatpush1.msra.mxu0 0.0
    %3762 = vmatprep.subr.mxu0 0.0
    %3763 = vmatpush1.msra.mxu0 0.0
    %3764 = vmatprep.subr.mxu0 0.0
    %3765 = vmatpush1.msra.mxu0 %v3729
    %3766 = vmatprep.subr.mxu0 0.0
    %3767 = vmatpush2.msra.mxu0 0.0
    %3768 = vmatprep.subr.mxu0 0.0
    %3769 = vmatpush2.msra.mxu0 0.0
    %3770 = vmatprep.subr.mxu0 0.0
    %3771 = vmatpush2.msra.mxu0 0.0
    %3772 = vmatprep.subr.mxu0 0.0
    %3773 = vmatpush2.msra.mxu0 0.0
    %3774 = vmatprep.subr.mxu0 0.0
    %3775 = vmatpush2.msra.mxu0 0.0
    %3776 = vmatprep.subr.mxu0 0.0
    %3777 = vmatpush2.msra.mxu0 0.0
    %3778 = vmatprep.subr.mxu0 0.0
    %3779 = vmatpush2.msra.mxu0 0.0
    %3780 = vmatprep.subr.mxu0 0.0
    %3781 = vmatpush2.msra.mxu0 0.0
    %3782 = vmatprep.subr.mxu0 0.0
    %3783 = vmatpush2.msra.mxu0 0.0
    %3784 = vmatprep.subr.mxu0 0.0
    %3785 = vmatpush2.msra.mxu0 0.0
    %3786 = vmatprep.subr.mxu0 0.0
    %3787 = vmatpush2.msra.mxu0 0.0
    %3788 = vmatprep.subr.mxu0 0.0
    %3789 = vmatpush2.msra.mxu0 0.0
    %3790 = vmatprep.subr.mxu0 0.0
    %3791 = vmatpush2.msra.mxu0 0.0
    %3792 = vmatprep.subr.mxu0 0.0
    %3793 = vmatpush2.msra.mxu0 0.0
    %3794 = vmatprep.subr.mxu0 0.0
    %3795 = vmatpush2.msra.mxu0 0.0
    %3796 = vmatprep.subr.mxu0 0.0
    %3797 = vmatpush2.msra.mxu0 0.0
    %3798 = vmatprep.mubr.f32.mxu0 0.0
    %3799 = vmatmul.mubr.f32.gmra.mxu0 %v3732
    %v3800 = vpop.f32.mrf.mxu0
    %v3801 = vadd.f32 0.0, %v3800
    %v3802 = vpop.f32.mrf.mxu0
    %3803 = vdwg.mxu0
    %v3804 = vrcp.pop %v3648
    %v3805 = vrcp.pop %v3651
    %v3806 = vmul.f32 %v3725, %v3804
    %v3807 = vmul.f32 %v3801, %v3805
    %v3808 = vld [vmem:[%s45 + $0x8] sm:$0xff]
    %v3810 = vsel %vm502, %v3806, 0
    %v3813 = vsel %vm502, %v3807, 0
    %3815 = vmatprep.subr.mxu0 0.0
    %3816 = vmatpush1.msra.mxu0 0.0
    %3817 = vmatprep.subr.mxu0 0.0
    %3818 = vmatpush1.msra.mxu0 0.0
    %3819 = vmatprep.subr.mxu0 0.0
    %3820 = vmatpush1.msra.mxu0 0.0
    %3821 = vmatprep.subr.mxu0 0.0
    %3822 = vmatpush1.msra.mxu0 0.0
    %3823 = vmatprep.subr.mxu0 0.0
    %3824 = vmatpush1.msra.mxu0 0.0
    %3825 = vmatprep.subr.mxu0 0.0
    %3826 = vmatpush1.msra.mxu0 0.0
    %3827 = vmatprep.subr.mxu0 0.0
    %3828 = vmatpush1.msra.mxu0 0.0
    %3829 = vmatprep.subr.mxu0 0.0
    %3830 = vmatpush1.msra.mxu0 0.0
    %3831 = vmatprep.subr.mxu0 0.0
    %3832 = vmatpush1.msra.mxu0 0.0
    %3833 = vmatprep.subr.mxu0 0.0
    %3834 = vmatpush1.msra.mxu0 0.0
    %3835 = vmatprep.subr.mxu0 0.0
    %3836 = vmatpush1.msra.mxu0 0.0
    %3837 = vmatprep.subr.mxu0 0.0
    %3838 = vmatpush1.msra.mxu0 0.0
    %3839 = vmatprep.subr.mxu0 0.0
    %3840 = vmatpush1.msra.mxu0 0.0
    %3841 = vmatprep.subr.mxu0 0.0
    %3842 = vmatpush1.msra.mxu0 0.0
    %3843 = vmatprep.subr.mxu0 0.0
    %3844 = vmatpush1.msra.mxu0 0.0
    %3845 = vmatprep.subr.mxu0 0.0
    %3846 = vmatpush1.msra.mxu0 %v3808
    %3847 = vmatprep.subr.mxu0 0.0
    %3848 = vmatpush2.msra.mxu0 0.0
    %3849 = vmatprep.subr.mxu0 0.0
    %3850 = vmatpush2.msra.mxu0 0.0
    %3851 = vmatprep.subr.mxu0 0.0
    %3852 = vmatpush2.msra.mxu0 0.0
    %3853 = vmatprep.subr.mxu0 0.0
    %3854 = vmatpush2.msra.mxu0 0.0
    %3855 = vmatprep.subr.mxu0 0.0
    %3856 = vmatpush2.msra.mxu0 0.0
    %3857 = vmatprep.subr.mxu0 0.0
    %3858 = vmatpush2.msra.mxu0 0.0
    %3859 = vmatprep.subr.mxu0 0.0
    %3860 = vmatpush2.msra.mxu0 0.0
    %3861 = vmatprep.subr.mxu0 0.0
    %3862 = vmatpush2.msra.mxu0 0.0
    %3863 = vmatprep.subr.mxu0 0.0
    %3864 = vmatpush2.msra.mxu0 0.0
    %3865 = vmatprep.subr.mxu0 0.0
    %3866 = vmatpush2.msra.mxu0 0.0
    %3867 = vmatprep.subr.mxu0 0.0
    %3868 = vmatpush2.msra.mxu0 0.0
    %3869 = vmatprep.subr.mxu0 0.0
    %3870 = vmatpush2.msra.mxu0 0.0
    %3871 = vmatprep.subr.mxu0 0.0
    %3872 = vmatpush2.msra.mxu0 0.0
    %3873 = vmatprep.subr.mxu0 0.0
    %3874 = vmatpush2.msra.mxu0 0.0
    %3875 = vmatprep.subr.mxu0 0.0
    %3876 = vmatpush2.msra.mxu0 0.0
    %3877 = vmatprep.subr.mxu0 0.0
    %3878 = vmatpush2.msra.mxu0 0.0
    %3879 = vmatprep.mubr.f32.mxu0 0.0
    %3880 = vmatmul.mubr.f32.gmra.mxu0 %v3810
    %v3881 = vpop.f32.mrf.mxu0
    %v3882 = vadd.f32 0.0, %v3881
    %v3883 = vpop.f32.mrf.mxu0
    %3884 = vmatprep.mubr.f32.mxu0 0.0
    %3885 = vmatmul.mubr.f32.gmra.mxu0 %v3813
    %v3886 = vpop.f32.mrf.mxu0
    %v3887 = vadd.f32 0.0, %v3886
    %v3888 = vpop.f32.mrf.mxu0
    %3889 = vdwg.mxu0
    %v3891 = vsel %vm502, %v3471, 0
    %v3894 = vsel %vm502, %v3472, 0
    %3896 = vmatprep.subr.mxu0 0.0
    %3897 = vmatpush1.msra.mxu0 0.0
    %3898 = vmatprep.subr.mxu0 0.0
    %3899 = vmatpush1.msra.mxu0 0.0
    %3900 = vmatprep.subr.mxu0 0.0
    %3901 = vmatpush1.msra.mxu0 0.0
    %3902 = vmatprep.subr.mxu0 0.0
    %3903 = vmatpush1.msra.mxu0 0.0
    %3904 = vmatprep.subr.mxu0 0.0
    %3905 = vmatpush1.msra.mxu0 0.0
    %3906 = vmatprep.subr.mxu0 0.0
    %3907 = vmatpush1.msra.mxu0 0.0
    %3908 = vmatprep.subr.mxu0 0.0
    %3909 = vmatpush1.msra.mxu0 0.0
    %3910 = vmatprep.subr.mxu0 0.0
    %3911 = vmatpush1.msra.mxu0 0.0
    %3912 = vmatprep.subr.mxu0 0.0
    %3913 = vmatpush1.msra.mxu0 0.0
    %3914 = vmatprep.subr.mxu0 0.0
    %3915 = vmatpush1.msra.mxu0 0.0
    %3916 = vmatprep.subr.mxu0 0.0
    %3917 = vmatpush1.msra.mxu0 0.0
    %3918 = vmatprep.subr.mxu0 0.0
    %3919 = vmatpush1.msra.mxu0 0.0
    %3920 = vmatprep.subr.mxu0 0.0
    %3921 = vmatpush1.msra.mxu0 0.0
    %3922 = vmatprep.subr.mxu0 0.0
    %3923 = vmatpush1.msra.mxu0 0.0
    %3924 = vmatprep.subr.mxu0 0.0
    %3925 = vmatpush1.msra.mxu0 0.0
    %3926 = vmatprep.subr.mxu0 0.0
    %3927 = vmatpush1.msra.mxu0 %v3473
    %3928 = vmatprep.subr.mxu0 0.0
    %3929 = vmatpush2.msra.mxu0 0.0
    %3930 = vmatprep.subr.mxu0 0.0
    %3931 = vmatpush2.msra.mxu0 0.0
    %3932 = vmatprep.subr.mxu0 0.0
    %3933 = vmatpush2.msra.mxu0 0.0
    %3934 = vmatprep.subr.mxu0 0.0
    %3935 = vmatpush2.msra.mxu0 0.0
    %3936 = vmatprep.subr.mxu0 0.0
    %3937 = vmatpush2.msra.mxu0 0.0
    %3938 = vmatprep.subr.mxu0 0.0
    %3939 = vmatpush2.msra.mxu0 0.0
    %3940 = vmatprep.subr.mxu0 0.0
    %3941 = vmatpush2.msra.mxu0 0.0
    %3942 = vmatprep.subr.mxu0 0.0
    %3943 = vmatpush2.msra.mxu0 0.0
    %3944 = vmatprep.subr.mxu0 0.0
    %3945 = vmatpush2.msra.mxu0 0.0
    %3946 = vmatprep.subr.mxu0 0.0
    %3947 = vmatpush2.msra.mxu0 0.0
    %3948 = vmatprep.subr.mxu0 0.0
    %3949 = vmatpush2.msra.mxu0 0.0
    %3950 = vmatprep.subr.mxu0 0.0
    %3951 = vmatpush2.msra.mxu0 0.0
    %3952 = vmatprep.subr.mxu0 0.0
    %3953 = vmatpush2.msra.mxu0 0.0
    %3954 = vmatprep.subr.mxu0 0.0
    %3955 = vmatpush2.msra.mxu0 0.0
    %3956 = vmatprep.subr.mxu0 0.0
    %3957 = vmatpush2.msra.mxu0 0.0
    %3958 = vmatprep.subr.mxu0 0.0
    %3959 = vmatpush2.msra.mxu0 0.0
    %3960 = vmatprep.mubr.f32.mxu0 0.0
    %3961 = vmatmul.mubr.f32.gmra.mxu0 %v3891
    %v3962 = vpop.f32.mrf.mxu0
    %v3963 = vadd.f32 %v3882, %v3962
    %v3964 = vpop.f32.mrf.mxu0
    %3965 = vmatprep.mubr.f32.mxu0 0.0
    %3966 = vmatmul.mubr.f32.gmra.mxu0 %v3894
    %v3967 = vpop.f32.mrf.mxu0
    %v3968 = vadd.f32 %v3887, %v3967
    %v3969 = vpop.f32.mrf.mxu0
    %3970 = vdwg.mxu0
    %3971 = vrot.lane.b32.xlu0 %v3123, 112
    %v3972 = vpop.permute.xlu0 %3971
    %3973 = vrot.lane.b32.xlu0 %v3123, 80
    %v3974 = vpop.permute.xlu0 %3973
    %v3975 = vsel %vm502, %v3972, 0
    %v3977 = vsel %vm502, %v3974, 0
    %3979 = vmatprep.subr.mxu0 0.0
    %3980 = vmatpush1.xpose.msra.mxu0 0.0
    %3981 = vmatprep.subr.mxu0 0.0
    %3982 = vmatpush1.xpose.msra.mxu0 0.0
    %3983 = vmatprep.subr.mxu0 0.0
    %3984 = vmatpush1.xpose.msra.mxu0 0.0
    %3985 = vmatprep.subr.mxu0 0.0
    %3986 = vmatpush1.xpose.msra.mxu0 0.0
    %3987 = vmatprep.subr.mxu0 0.0
    %3988 = vmatpush1.xpose.msra.mxu0 0.0
    %3989 = vmatprep.subr.mxu0 0.0
    %3990 = vmatpush1.xpose.msra.mxu0 0.0
    %3991 = vmatprep.subr.mxu0 0.0
    %3992 = vmatpush1.xpose.msra.mxu0 0.0
    %3993 = vmatprep.subr.mxu0 0.0
    %3994 = vmatpush1.xpose.msra.mxu0 0.0
    %3995 = vmatprep.subr.mxu0 0.0
    %3996 = vmatpush1.xpose.msra.mxu0 0.0
    %3997 = vmatprep.subr.mxu0 0.0
    %3998 = vmatpush1.xpose.msra.mxu0 0.0
    %3999 = vmatprep.subr.mxu0 0.0
    %4000 = vmatpush1.xpose.msra.mxu0 0.0
    %4001 = vmatprep.subr.mxu0 0.0
    %4002 = vmatpush1.xpose.msra.mxu0 0.0
    %4003 = vmatprep.subr.mxu0 0.0
    %4004 = vmatpush1.xpose.msra.mxu0 0.0
    %4005 = vmatprep.subr.mxu0 0.0
    %4006 = vmatpush1.xpose.msra.mxu0 0.0
    %4007 = vmatprep.subr.mxu0 0.0
    %4008 = vmatpush1.xpose.msra.mxu0 0.0
    %4009 = vmatprep.subr.mxu0 0.0
    %4010 = vmatpush1.xpose.msra.mxu0 %v3977
    %4011 = vmatprep.subr.mxu0 0.0
    %4012 = vmatpush2.xpose.msra.mxu0 0.0
    %4013 = vmatprep.subr.mxu0 0.0
    %4014 = vmatpush2.xpose.msra.mxu0 0.0
    %4015 = vmatprep.subr.mxu0 0.0
    %4016 = vmatpush2.xpose.msra.mxu0 0.0
    %4017 = vmatprep.subr.mxu0 0.0
    %4018 = vmatpush2.xpose.msra.mxu0 0.0
    %4019 = vmatprep.subr.mxu0 0.0
    %4020 = vmatpush2.xpose.msra.mxu0 0.0
    %4021 = vmatprep.subr.mxu0 0.0
    %4022 = vmatpush2.xpose.msra.mxu0 0.0
    %4023 = vmatprep.subr.mxu0 0.0
    %4024 = vmatpush2.xpose.msra.mxu0 0.0
    %4025 = vmatprep.subr.mxu0 0.0
    %4026 = vmatpush2.xpose.msra.mxu0 0.0
    %4027 = vmatprep.subr.mxu0 0.0
    %4028 = vmatpush2.xpose.msra.mxu0 0.0
    %4029 = vmatprep.subr.mxu0 0.0
    %4030 = vmatpush2.xpose.msra.mxu0 0.0
    %4031 = vmatprep.subr.mxu0 0.0
    %4032 = vmatpush2.xpose.msra.mxu0 0.0
    %4033 = vmatprep.subr.mxu0 0.0
    %4034 = vmatpush2.xpose.msra.mxu0 0.0
    %4035 = vmatprep.subr.mxu0 0.0
    %4036 = vmatpush2.xpose.msra.mxu0 0.0
    %4037 = vmatprep.subr.mxu0 0.0
    %4038 = vmatpush2.xpose.msra.mxu0 0.0
    %4039 = vmatprep.subr.mxu0 0.0
    %4040 = vmatpush2.xpose.msra.mxu0 0.0
    %4041 = vmatprep.subr.mxu0 0.0
    %4042 = vmatpush2.xpose.msra.mxu0 0.0
    %4043 = vmatprep.mubr.f32.mxu0 0.0
    %4044 = vmatmul.mubr.f32.gmra.mxu0 %v3975
    %v4045 = vpop.f32.mrf.mxu0
    %v4046 = vadd.f32 0.0, %v4045
    %v4047 = vpop.f32.mrf.mxu0
    %4048 = vdwg.mxu0
    %4049 = vrot.lane.b32.xlu0 %v3128, 112
    %v4050 = vpop.permute.xlu0 %4049
    %4051 = vrot.lane.b32.xlu0 %v3128, 80
    %v4052 = vpop.permute.xlu0 %4051
    %v4053 = vsel %vm502, %v4050, 0
    %v4055 = vsel %vm502, %v4052, 0
    %4057 = vmatprep.subr.mxu0 0.0
    %4058 = vmatpush1.xpose.msra.mxu0 0.0
    %4059 = vmatprep.subr.mxu0 0.0
    %4060 = vmatpush1.xpose.msra.mxu0 0.0
    %4061 = vmatprep.subr.mxu0 0.0
    %4062 = vmatpush1.xpose.msra.mxu0 0.0
    %4063 = vmatprep.subr.mxu0 0.0
    %4064 = vmatpush1.xpose.msra.mxu0 0.0
    %4065 = vmatprep.subr.mxu0 0.0
    %4066 = vmatpush1.xpose.msra.mxu0 0.0
    %4067 = vmatprep.subr.mxu0 0.0
    %4068 = vmatpush1.xpose.msra.mxu0 0.0
    %4069 = vmatprep.subr.mxu0 0.0
    %4070 = vmatpush1.xpose.msra.mxu0 0.0
    %4071 = vmatprep.subr.mxu0 0.0
    %4072 = vmatpush1.xpose.msra.mxu0 0.0
    %4073 = vmatprep.subr.mxu0 0.0
    %4074 = vmatpush1.xpose.msra.mxu0 0.0
    %4075 = vmatprep.subr.mxu0 0.0
    %4076 = vmatpush1.xpose.msra.mxu0 0.0
    %4077 = vmatprep.subr.mxu0 0.0
    %4078 = vmatpush1.xpose.msra.mxu0 0.0
    %4079 = vmatprep.subr.mxu0 0.0
    %4080 = vmatpush1.xpose.msra.mxu0 0.0
    %4081 = vmatprep.subr.mxu0 0.0
    %4082 = vmatpush1.xpose.msra.mxu0 0.0
    %4083 = vmatprep.subr.mxu0 0.0
    %4084 = vmatpush1.xpose.msra.mxu0 0.0
    %4085 = vmatprep.subr.mxu0 0.0
    %4086 = vmatpush1.xpose.msra.mxu0 0.0
    %4087 = vmatprep.subr.mxu0 0.0
    %4088 = vmatpush1.xpose.msra.mxu0 %v4055
    %4089 = vmatprep.subr.mxu0 0.0
    %4090 = vmatpush2.xpose.msra.mxu0 0.0
    %4091 = vmatprep.subr.mxu0 0.0
    %4092 = vmatpush2.xpose.msra.mxu0 0.0
    %4093 = vmatprep.subr.mxu0 0.0
    %4094 = vmatpush2.xpose.msra.mxu0 0.0
    %4095 = vmatprep.subr.mxu0 0.0
    %4096 = vmatpush2.xpose.msra.mxu0 0.0
    %4097 = vmatprep.subr.mxu0 0.0
    %4098 = vmatpush2.xpose.msra.mxu0 0.0
    %4099 = vmatprep.subr.mxu0 0.0
    %4100 = vmatpush2.xpose.msra.mxu0 0.0
    %4101 = vmatprep.subr.mxu0 0.0
    %4102 = vmatpush2.xpose.msra.mxu0 0.0
    %4103 = vmatprep.subr.mxu0 0.0
    %4104 = vmatpush2.xpose.msra.mxu0 0.0
    %4105 = vmatprep.subr.mxu0 0.0
    %4106 = vmatpush2.xpose.msra.mxu0 0.0
    %4107 = vmatprep.subr.mxu0 0.0
    %4108 = vmatpush2.xpose.msra.mxu0 0.0
    %4109 = vmatprep.subr.mxu0 0.0
    %4110 = vmatpush2.xpose.msra.mxu0 0.0
    %4111 = vmatprep.subr.mxu0 0.0
    %4112 = vmatpush2.xpose.msra.mxu0 0.0
    %4113 = vmatprep.subr.mxu0 0.0
    %4114 = vmatpush2.xpose.msra.mxu0 0.0
    %4115 = vmatprep.subr.mxu0 0.0
    %4116 = vmatpush2.xpose.msra.mxu0 0.0
    %4117 = vmatprep.subr.mxu0 0.0
    %4118 = vmatpush2.xpose.msra.mxu0 0.0
    %4119 = vmatprep.subr.mxu0 0.0
    %4120 = vmatpush2.xpose.msra.mxu0 0.0
    %4121 = vmatprep.mubr.f32.mxu0 0.0
    %4122 = vmatmul.mubr.f32.gmra.mxu0 %v4053
    %v4123 = vpop.f32.mrf.mxu0
    %v4124 = vadd.f32 0.0, %v4123
    %v4125 = vpop.f32.mrf.mxu0
    %4126 = vdwg.mxu0
    %v4127 = vmul.f32 %v4046, 0.35355338
    %v4128 = vmul.f32 %v4124, 0.35355338
    %v4129 = vadd.f32 %v4127, %v3290
    %v4130 = vadd.f32 %v4128, %v3294
    %v4131 = vsel %vm502, %v4129, -inf
    %4132 = vmax.xlane.f32.xlu0 %v4131
    %v4133 = vpop.xlane.xlu0 %4132
    %v4134 = vsel %vm502, %v4130, -inf
    %4135 = vmax.xlane.f32.xlu0 %v4134
    %v4136 = vpop.xlane.xlu0 %4135
    %v4137 = vsub.f32 %v4129, %v4133
    %v4138 = vsub.f32 %v4130, %v4136
    %v4139 = vmul.f32 %v4137, 1.442695
    %v4140 = vpow.pop %v4139
    %v4141 = vmul.f32 %v4138, 1.442695
    %v4142 = vpow.pop %v4141
    %v4143 = vsel %vm502, %v4140, 0.0
    %4144 = vadd.xlane.f32.xlu0 %v4143
    %v4145 = vpop.xlane.xlu0 %4144
    %v4146 = vsel %vm502, %v4142, 0.0
    %4147 = vadd.xlane.f32.xlu0 %v4146
    %v4148 = vpop.xlane.xlu0 %4147
    %4149 = vrot.lane.b32.xlu0 %v3123, 48
    %v4150 = vpop.permute.xlu0 %4149
    %v4153 = vsel %vm502, %v4140, 0
    %4155 = vmatprep.subr.mxu0 0.0
    %4156 = vmatpush1.msra.mxu0 0.0
    %4157 = vmatprep.subr.mxu0 0.0
    %4158 = vmatpush1.msra.mxu0 0.0
    %4159 = vmatprep.subr.mxu0 0.0
    %4160 = vmatpush1.msra.mxu0 0.0
    %4161 = vmatprep.subr.mxu0 0.0
    %4162 = vmatpush1.msra.mxu0 0.0
    %4163 = vmatprep.subr.mxu0 0.0
    %4164 = vmatpush1.msra.mxu0 0.0
    %4165 = vmatprep.subr.mxu0 0.0
    %4166 = vmatpush1.msra.mxu0 0.0
    %4167 = vmatprep.subr.mxu0 0.0
    %4168 = vmatpush1.msra.mxu0 0.0
    %4169 = vmatprep.subr.mxu0 0.0
    %4170 = vmatpush1.msra.mxu0 0.0
    %4171 = vmatprep.subr.mxu0 0.0
    %4172 = vmatpush1.msra.mxu0 0.0
    %4173 = vmatprep.subr.mxu0 0.0
    %4174 = vmatpush1.msra.mxu0 0.0
    %4175 = vmatprep.subr.mxu0 0.0
    %4176 = vmatpush1.msra.mxu0 0.0
    %4177 = vmatprep.subr.mxu0 0.0
    %4178 = vmatpush1.msra.mxu0 0.0
    %4179 = vmatprep.subr.mxu0 0.0
    %4180 = vmatpush1.msra.mxu0 0.0
    %4181 = vmatprep.subr.mxu0 0.0
    %4182 = vmatpush1.msra.mxu0 0.0
    %4183 = vmatprep.subr.mxu0 0.0
    %4184 = vmatpush1.msra.mxu0 0.0
    %4185 = vmatprep.subr.mxu0 0.0
    %4186 = vmatpush1.msra.mxu0 %v4150
    %4187 = vmatprep.subr.mxu0 0.0
    %4188 = vmatpush2.msra.mxu0 0.0
    %4189 = vmatprep.subr.mxu0 0.0
    %4190 = vmatpush2.msra.mxu0 0.0
    %4191 = vmatprep.subr.mxu0 0.0
    %4192 = vmatpush2.msra.mxu0 0.0
    %4193 = vmatprep.subr.mxu0 0.0
    %4194 = vmatpush2.msra.mxu0 0.0
    %4195 = vmatprep.subr.mxu0 0.0
    %4196 = vmatpush2.msra.mxu0 0.0
    %4197 = vmatprep.subr.mxu0 0.0
    %4198 = vmatpush2.msra.mxu0 0.0
    %4199 = vmatprep.subr.mxu0 0.0
    %4200 = vmatpush2.msra.mxu0 0.0
    %4201 = vmatprep.subr.mxu0 0.0
    %4202 = vmatpush2.msra.mxu0 0.0
    %4203 = vmatprep.subr.mxu0 0.0
    %4204 = vmatpush2.msra.mxu0 0.0
    %4205 = vmatprep.subr.mxu0 0.0
    %4206 = vmatpush2.msra.mxu0 0.0
    %4207 = vmatprep.subr.mxu0 0.0
    %4208 = vmatpush2.msra.mxu0 0.0
    %4209 = vmatprep.subr.mxu0 0.0
    %4210 = vmatpush2.msra.mxu0 0.0
    %4211 = vmatprep.subr.mxu0 0.0
    %4212 = vmatpush2.msra.mxu0 0.0
    %4213 = vmatprep.subr.mxu0 0.0
    %4214 = vmatpush2.msra.mxu0 0.0
    %4215 = vmatprep.subr.mxu0 0.0
    %4216 = vmatpush2.msra.mxu0 0.0
    %4217 = vmatprep.subr.mxu0 0.0
    %4218 = vmatpush2.msra.mxu0 0.0
    %4219 = vmatprep.mubr.f32.mxu0 0.0
    %4220 = vmatmul.mubr.f32.gmra.mxu0 %v4153
    %v4221 = vpop.f32.mrf.mxu0
    %v4222 = vadd.f32 0.0, %v4221
    %v4223 = vpop.f32.mrf.mxu0
    %4224 = vdwg.mxu0
    %4225 = vrot.lane.b32.xlu0 %v3128, 48
    %v4226 = vpop.permute.xlu0 %4225
    %v4229 = vsel %vm502, %v4142, 0
    %4231 = vmatprep.subr.mxu0 0.0
    %4232 = vmatpush1.msra.mxu0 0.0
    %4233 = vmatprep.subr.mxu0 0.0
    %4234 = vmatpush1.msra.mxu0 0.0
    %4235 = vmatprep.subr.mxu0 0.0
    %4236 = vmatpush1.msra.mxu0 0.0
    %4237 = vmatprep.subr.mxu0 0.0
    %4238 = vmatpush1.msra.mxu0 0.0
    %4239 = vmatprep.subr.mxu0 0.0
    %4240 = vmatpush1.msra.mxu0 0.0
    %4241 = vmatprep.subr.mxu0 0.0
    %4242 = vmatpush1.msra.mxu0 0.0
    %4243 = vmatprep.subr.mxu0 0.0
    %4244 = vmatpush1.msra.mxu0 0.0
    %4245 = vmatprep.subr.mxu0 0.0
    %4246 = vmatpush1.msra.mxu0 0.0
    %4247 = vmatprep.subr.mxu0 0.0
    %4248 = vmatpush1.msra.mxu0 0.0
    %4249 = vmatprep.subr.mxu0 0.0
    %4250 = vmatpush1.msra.mxu0 0.0
    %4251 = vmatprep.subr.mxu0 0.0
    %4252 = vmatpush1.msra.mxu0 0.0
    %4253 = vmatprep.subr.mxu0 0.0
    %4254 = vmatpush1.msra.mxu0 0.0
    %4255 = vmatprep.subr.mxu0 0.0
    %4256 = vmatpush1.msra.mxu0 0.0
    %4257 = vmatprep.subr.mxu0 0.0
    %4258 = vmatpush1.msra.mxu0 0.0
    %4259 = vmatprep.subr.mxu0 0.0
    %4260 = vmatpush1.msra.mxu0 0.0
    %4261 = vmatprep.subr.mxu0 0.0
    %4262 = vmatpush1.msra.mxu0 %v4226
    %4263 = vmatprep.subr.mxu0 0.0
    %4264 = vmatpush2.msra.mxu0 0.0
    %4265 = vmatprep.subr.mxu0 0.0
    %4266 = vmatpush2.msra.mxu0 0.0
    %4267 = vmatprep.subr.mxu0 0.0
    %4268 = vmatpush2.msra.mxu0 0.0
    %4269 = vmatprep.subr.mxu0 0.0
    %4270 = vmatpush2.msra.mxu0 0.0
    %4271 = vmatprep.subr.mxu0 0.0
    %4272 = vmatpush2.msra.mxu0 0.0
    %4273 = vmatprep.subr.mxu0 0.0
    %4274 = vmatpush2.msra.mxu0 0.0
    %4275 = vmatprep.subr.mxu0 0.0
    %4276 = vmatpush2.msra.mxu0 0.0
    %4277 = vmatprep.subr.mxu0 0.0
    %4278 = vmatpush2.msra.mxu0 0.0
    %4279 = vmatprep.subr.mxu0 0.0
    %4280 = vmatpush2.msra.mxu0 0.0
    %4281 = vmatprep.subr.mxu0 0.0
    %4282 = vmatpush2.msra.mxu0 0.0
    %4283 = vmatprep.subr.mxu0 0.0
    %4284 = vmatpush2.msra.mxu0 0.0
    %4285 = vmatprep.subr.mxu0 0.0
    %4286 = vmatpush2.msra.mxu0 0.0
    %4287 = vmatprep.subr.mxu0 0.0
    %4288 = vmatpush2.msra.mxu0 0.0
    %4289 = vmatprep.subr.mxu0 0.0
    %4290 = vmatpush2.msra.mxu0 0.0
    %4291 = vmatprep.subr.mxu0 0.0
    %4292 = vmatpush2.msra.mxu0 0.0
    %4293 = vmatprep.subr.mxu0 0.0
    %4294 = vmatpush2.msra.mxu0 0.0
    %4295 = vmatprep.mubr.f32.mxu0 0.0
    %4296 = vmatmul.mubr.f32.gmra.mxu0 %v4229
    %v4297 = vpop.f32.mrf.mxu0
    %v4298 = vadd.f32 0.0, %v4297
    %v4299 = vpop.f32.mrf.mxu0
    %4300 = vdwg.mxu0
    %v4301 = vrcp.pop %v4145
    %v4302 = vrcp.pop %v4148
    %v4303 = vmul.f32 %v4222, %v4301
    %v4304 = vmul.f32 %v4298, %v4302
    %v4305 = vld [vmem:[%s45 + $0x10] sm:$0xff]
    %v4307 = vsel %vm502, %v4303, 0
    %v4310 = vsel %vm502, %v4304, 0
    %4312 = vmatprep.subr.mxu0 0.0
    %4313 = vmatpush1.msra.mxu0 0.0
    %4314 = vmatprep.subr.mxu0 0.0
    %4315 = vmatpush1.msra.mxu0 0.0
    %4316 = vmatprep.subr.mxu0 0.0
    %4317 = vmatpush1.msra.mxu0 0.0
    %4318 = vmatprep.subr.mxu0 0.0
    %4319 = vmatpush1.msra.mxu0 0.0
    %4320 = vmatprep.subr.mxu0 0.0
    %4321 = vmatpush1.msra.mxu0 0.0
    %4322 = vmatprep.subr.mxu0 0.0
    %4323 = vmatpush1.msra.mxu0 0.0
    %4324 = vmatprep.subr.mxu0 0.0
    %4325 = vmatpush1.msra.mxu0 0.0
    %4326 = vmatprep.subr.mxu0 0.0
    %4327 = vmatpush1.msra.mxu0 0.0
    %4328 = vmatprep.subr.mxu0 0.0
    %4329 = vmatpush1.msra.mxu0 0.0
    %4330 = vmatprep.subr.mxu0 0.0
    %4331 = vmatpush1.msra.mxu0 0.0
    %4332 = vmatprep.subr.mxu0 0.0
    %4333 = vmatpush1.msra.mxu0 0.0
    %4334 = vmatprep.subr.mxu0 0.0
    %4335 = vmatpush1.msra.mxu0 0.0
    %4336 = vmatprep.subr.mxu0 0.0
    %4337 = vmatpush1.msra.mxu0 0.0
    %4338 = vmatprep.subr.mxu0 0.0
    %4339 = vmatpush1.msra.mxu0 0.0
    %4340 = vmatprep.subr.mxu0 0.0
    %4341 = vmatpush1.msra.mxu0 0.0
    %4342 = vmatprep.subr.mxu0 0.0
    %4343 = vmatpush1.msra.mxu0 %v4305
    %4344 = vmatprep.subr.mxu0 0.0
    %4345 = vmatpush2.msra.mxu0 0.0
    %4346 = vmatprep.subr.mxu0 0.0
    %4347 = vmatpush2.msra.mxu0 0.0
    %4348 = vmatprep.subr.mxu0 0.0
    %4349 = vmatpush2.msra.mxu0 0.0
    %4350 = vmatprep.subr.mxu0 0.0
    %4351 = vmatpush2.msra.mxu0 0.0
    %4352 = vmatprep.subr.mxu0 0.0
    %4353 = vmatpush2.msra.mxu0 0.0
    %4354 = vmatprep.subr.mxu0 0.0
    %4355 = vmatpush2.msra.mxu0 0.0
    %4356 = vmatprep.subr.mxu0 0.0
    %4357 = vmatpush2.msra.mxu0 0.0
    %4358 = vmatprep.subr.mxu0 0.0
    %4359 = vmatpush2.msra.mxu0 0.0
    %4360 = vmatprep.subr.mxu0 0.0
    %4361 = vmatpush2.msra.mxu0 0.0
    %4362 = vmatprep.subr.mxu0 0.0
    %4363 = vmatpush2.msra.mxu0 0.0
    %4364 = vmatprep.subr.mxu0 0.0
    %4365 = vmatpush2.msra.mxu0 0.0
    %4366 = vmatprep.subr.mxu0 0.0
    %4367 = vmatpush2.msra.mxu0 0.0
    %4368 = vmatprep.subr.mxu0 0.0
    %4369 = vmatpush2.msra.mxu0 0.0
    %4370 = vmatprep.subr.mxu0 0.0
    %4371 = vmatpush2.msra.mxu0 0.0
    %4372 = vmatprep.subr.mxu0 0.0
    %4373 = vmatpush2.msra.mxu0 0.0
    %4374 = vmatprep.subr.mxu0 0.0
    %4375 = vmatpush2.msra.mxu0 0.0
    %4376 = vmatprep.mubr.f32.mxu0 0.0
    %4377 = vmatmul.mubr.f32.gmra.mxu0 %v4307
    %v4378 = vpop.f32.mrf.mxu0
    %v4379 = vadd.f32 0.0, %v4378
    %v4380 = vpop.f32.mrf.mxu0
    %4381 = vmatprep.mubr.f32.mxu0 0.0
    %4382 = vmatmul.mubr.f32.gmra.mxu0 %v4310
    %v4383 = vpop.f32.mrf.mxu0
    %v4384 = vadd.f32 0.0, %v4383
    %v4385 = vpop.f32.mrf.mxu0
    %4386 = vdwg.mxu0
    %v4387 = vadd.f32 %v3963, %v4379
    %v4388 = vadd.f32 %v3968, %v4384
    %4389 = vrot.lane.b32.xlu0 %v3123, 104
    %v4390 = vpop.permute.xlu0 %4389
    %4391 = vrot.lane.b32.xlu0 %v3123, 72
    %v4392 = vpop.permute.xlu0 %4391
    %v4393 = vsel %vm502, %v4390, 0
    %v4395 = vsel %vm502, %v4392, 0
    %4397 = vmatprep.subr.mxu0 0.0
    %4398 = vmatpush1.xpose.msra.mxu0 0.0
    %4399 = vmatprep.subr.mxu0 0.0
    %4400 = vmatpush1.xpose.msra.mxu0 0.0
    %4401 = vmatprep.subr.mxu0 0.0
    %4402 = vmatpush1.xpose.msra.mxu0 0.0
    %4403 = vmatprep.subr.mxu0 0.0
    %4404 = vmatpush1.xpose.msra.mxu0 0.0
    %4405 = vmatprep.subr.mxu0 0.0
    %4406 = vmatpush1.xpose.msra.mxu0 0.0
    %4407 = vmatprep.subr.mxu0 0.0
    %4408 = vmatpush1.xpose.msra.mxu0 0.0
    %4409 = vmatprep.subr.mxu0 0.0
    %4410 = vmatpush1.xpose.msra.mxu0 0.0
    %4411 = vmatprep.subr.mxu0 0.0
    %4412 = vmatpush1.xpose.msra.mxu0 0.0
    %4413 = vmatprep.subr.mxu0 0.0
    %4414 = vmatpush1.xpose.msra.mxu0 0.0
    %4415 = vmatprep.subr.mxu0 0.0
    %4416 = vmatpush1.xpose.msra.mxu0 0.0
    %4417 = vmatprep.subr.mxu0 0.0
    %4418 = vmatpush1.xpose.msra.mxu0 0.0
    %4419 = vmatprep.subr.mxu0 0.0
    %4420 = vmatpush1.xpose.msra.mxu0 0.0
    %4421 = vmatprep.subr.mxu0 0.0
    %4422 = vmatpush1.xpose.msra.mxu0 0.0
    %4423 = vmatprep.subr.mxu0 0.0
    %4424 = vmatpush1.xpose.msra.mxu0 0.0
    %4425 = vmatprep.subr.mxu0 0.0
    %4426 = vmatpush1.xpose.msra.mxu0 0.0
    %4427 = vmatprep.subr.mxu0 0.0
    %4428 = vmatpush1.xpose.msra.mxu0 %v4395
    %4429 = vmatprep.subr.mxu0 0.0
    %4430 = vmatpush2.xpose.msra.mxu0 0.0
    %4431 = vmatprep.subr.mxu0 0.0
    %4432 = vmatpush2.xpose.msra.mxu0 0.0
    %4433 = vmatprep.subr.mxu0 0.0
    %4434 = vmatpush2.xpose.msra.mxu0 0.0
    %4435 = vmatprep.subr.mxu0 0.0
    %4436 = vmatpush2.xpose.msra.mxu0 0.0
    %4437 = vmatprep.subr.mxu0 0.0
    %4438 = vmatpush2.xpose.msra.mxu0 0.0
    %4439 = vmatprep.subr.mxu0 0.0
    %4440 = vmatpush2.xpose.msra.mxu0 0.0
    %4441 = vmatprep.subr.mxu0 0.0
    %4442 = vmatpush2.xpose.msra.mxu0 0.0
    %4443 = vmatprep.subr.mxu0 0.0
    %4444 = vmatpush2.xpose.msra.mxu0 0.0
    %4445 = vmatprep.subr.mxu0 0.0
    %4446 = vmatpush2.xpose.msra.mxu0 0.0
    %4447 = vmatprep.subr.mxu0 0.0
    %4448 = vmatpush2.xpose.msra.mxu0 0.0
    %4449 = vmatprep.subr.mxu0 0.0
    %4450 = vmatpush2.xpose.msra.mxu0 0.0
    %4451 = vmatprep.subr.mxu0 0.0
    %4452 = vmatpush2.xpose.msra.mxu0 0.0
    %4453 = vmatprep.subr.mxu0 0.0
    %4454 = vmatpush2.xpose.msra.mxu0 0.0
    %4455 = vmatprep.subr.mxu0 0.0
    %4456 = vmatpush2.xpose.msra.mxu0 0.0
    %4457 = vmatprep.subr.mxu0 0.0
    %4458 = vmatpush2.xpose.msra.mxu0 0.0
    %4459 = vmatprep.subr.mxu0 0.0
    %4460 = vmatpush2.xpose.msra.mxu0 0.0
    %4461 = vmatprep.mubr.f32.mxu0 0.0
    %4462 = vmatmul.mubr.f32.gmra.mxu0 %v4393
    %v4463 = vpop.f32.mrf.mxu0
    %v4464 = vadd.f32 0.0, %v4463
    %v4465 = vpop.f32.mrf.mxu0
    %4466 = vdwg.mxu0
    %4467 = vrot.lane.b32.xlu0 %v3128, 104
    %v4468 = vpop.permute.xlu0 %4467
    %4469 = vrot.lane.b32.xlu0 %v3128, 72
    %v4470 = vpop.permute.xlu0 %4469
    %v4471 = vsel %vm502, %v4468, 0
    %v4473 = vsel %vm502, %v4470, 0
    %4475 = vmatprep.subr.mxu0 0.0
    %4476 = vmatpush1.xpose.msra.mxu0 0.0
    %4477 = vmatprep.subr.mxu0 0.0
    %4478 = vmatpush1.xpose.msra.mxu0 0.0
    %4479 = vmatprep.subr.mxu0 0.0
    %4480 = vmatpush1.xpose.msra.mxu0 0.0
    %4481 = vmatprep.subr.mxu0 0.0
    %4482 = vmatpush1.xpose.msra.mxu0 0.0
    %4483 = vmatprep.subr.mxu0 0.0
    %4484 = vmatpush1.xpose.msra.mxu0 0.0
    %4485 = vmatprep.subr.mxu0 0.0
    %4486 = vmatpush1.xpose.msra.mxu0 0.0
    %4487 = vmatprep.subr.mxu0 0.0
    %4488 = vmatpush1.xpose.msra.mxu0 0.0
    %4489 = vmatprep.subr.mxu0 0.0
    %4490 = vmatpush1.xpose.msra.mxu0 0.0
    %4491 = vmatprep.subr.mxu0 0.0
    %4492 = vmatpush1.xpose.msra.mxu0 0.0
    %4493 = vmatprep.subr.mxu0 0.0
    %4494 = vmatpush1.xpose.msra.mxu0 0.0
    %4495 = vmatprep.subr.mxu0 0.0
    %4496 = vmatpush1.xpose.msra.mxu0 0.0
    %4497 = vmatprep.subr.mxu0 0.0
    %4498 = vmatpush1.xpose.msra.mxu0 0.0
    %4499 = vmatprep.subr.mxu0 0.0
    %4500 = vmatpush1.xpose.msra.mxu0 0.0
    %4501 = vmatprep.subr.mxu0 0.0
    %4502 = vmatpush1.xpose.msra.mxu0 0.0
    %4503 = vmatprep.subr.mxu0 0.0
    %4504 = vmatpush1.xpose.msra.mxu0 0.0
    %4505 = vmatprep.subr.mxu0 0.0
    %4506 = vmatpush1.xpose.msra.mxu0 %v4473
    %4507 = vmatprep.subr.mxu0 0.0
    %4508 = vmatpush2.xpose.msra.mxu0 0.0
    %4509 = vmatprep.subr.mxu0 0.0
    %4510 = vmatpush2.xpose.msra.mxu0 0.0
    %4511 = vmatprep.subr.mxu0 0.0
    %4512 = vmatpush2.xpose.msra.mxu0 0.0
    %4513 = vmatprep.subr.mxu0 0.0
    %4514 = vmatpush2.xpose.msra.mxu0 0.0
    %4515 = vmatprep.subr.mxu0 0.0
    %4516 = vmatpush2.xpose.msra.mxu0 0.0
    %4517 = vmatprep.subr.mxu0 0.0
    %4518 = vmatpush2.xpose.msra.mxu0 0.0
    %4519 = vmatprep.subr.mxu0 0.0
    %4520 = vmatpush2.xpose.msra.mxu0 0.0
    %4521 = vmatprep.subr.mxu0 0.0
    %4522 = vmatpush2.xpose.msra.mxu0 0.0
    %4523 = vmatprep.subr.mxu0 0.0
    %4524 = vmatpush2.xpose.msra.mxu0 0.0
    %4525 = vmatprep.subr.mxu0 0.0
    %4526 = vmatpush2.xpose.msra.mxu0 0.0
    %4527 = vmatprep.subr.mxu0 0.0
    %4528 = vmatpush2.xpose.msra.mxu0 0.0
    %4529 = vmatprep.subr.mxu0 0.0
    %4530 = vmatpush2.xpose.msra.mxu0 0.0
    %4531 = vmatprep.subr.mxu0 0.0
    %4532 = vmatpush2.xpose.msra.mxu0 0.0
    %4533 = vmatprep.subr.mxu0 0.0
    %4534 = vmatpush2.xpose.msra.mxu0 0.0
    %4535 = vmatprep.subr.mxu0 0.0
    %4536 = vmatpush2.xpose.msra.mxu0 0.0
    %4537 = vmatprep.subr.mxu0 0.0
    %4538 = vmatpush2.xpose.msra.mxu0 0.0
    %4539 = vmatprep.mubr.f32.mxu0 0.0
    %4540 = vmatmul.mubr.f32.gmra.mxu0 %v4471
    %v4541 = vpop.f32.mrf.mxu0
    %v4542 = vadd.f32 0.0, %v4541
    %v4543 = vpop.f32.mrf.mxu0
    %4544 = vdwg.mxu0
    %v4545 = vmul.f32 %v4464, 0.35355338
    %v4546 = vmul.f32 %v4542, 0.35355338
    %v4547 = vadd.f32 %v4545, %v3290
    %v4548 = vadd.f32 %v4546, %v3294
    %v4549 = vsel %vm502, %v4547, -inf
    %4550 = vmax.xlane.f32.xlu0 %v4549
    %v4551 = vpop.xlane.xlu0 %4550
    %v4552 = vsel %vm502, %v4548, -inf
    %4553 = vmax.xlane.f32.xlu0 %v4552
    %v4554 = vpop.xlane.xlu0 %4553
    %v4555 = vsub.f32 %v4547, %v4551
    %v4556 = vsub.f32 %v4548, %v4554
    %v4557 = vmul.f32 %v4555, 1.442695
    %v4558 = vpow.pop %v4557
    %v4559 = vmul.f32 %v4556, 1.442695
    %v4560 = vpow.pop %v4559
    %v4561 = vsel %vm502, %v4558, 0.0
    %4562 = vadd.xlane.f32.xlu0 %v4561
    %v4563 = vpop.xlane.xlu0 %4562
    %v4564 = vsel %vm502, %v4560, 0.0
    %4565 = vadd.xlane.f32.xlu0 %v4564
    %v4566 = vpop.xlane.xlu0 %4565
    %4567 = vrot.lane.b32.xlu0 %v3123, 40
    %v4568 = vpop.permute.xlu0 %4567
    %v4571 = vsel %vm502, %v4558, 0
    %4573 = vmatprep.subr.mxu0 0.0
    %4574 = vmatpush1.msra.mxu0 0.0
    %4575 = vmatprep.subr.mxu0 0.0
    %4576 = vmatpush1.msra.mxu0 0.0
    %4577 = vmatprep.subr.mxu0 0.0
    %4578 = vmatpush1.msra.mxu0 0.0
    %4579 = vmatprep.subr.mxu0 0.0
    %4580 = vmatpush1.msra.mxu0 0.0
    %4581 = vmatprep.subr.mxu0 0.0
    %4582 = vmatpush1.msra.mxu0 0.0
    %4583 = vmatprep.subr.mxu0 0.0
    %4584 = vmatpush1.msra.mxu0 0.0
    %4585 = vmatprep.subr.mxu0 0.0
    %4586 = vmatpush1.msra.mxu0 0.0
    %4587 = vmatprep.subr.mxu0 0.0
    %4588 = vmatpush1.msra.mxu0 0.0
    %4589 = vmatprep.subr.mxu0 0.0
    %4590 = vmatpush1.msra.mxu0 0.0
    %4591 = vmatprep.subr.mxu0 0.0
    %4592 = vmatpush1.msra.mxu0 0.0
    %4593 = vmatprep.subr.mxu0 0.0
    %4594 = vmatpush1.msra.mxu0 0.0
    %4595 = vmatprep.subr.mxu0 0.0
    %4596 = vmatpush1.msra.mxu0 0.0
    %4597 = vmatprep.subr.mxu0 0.0
    %4598 = vmatpush1.msra.mxu0 0.0
    %4599 = vmatprep.subr.mxu0 0.0
    %4600 = vmatpush1.msra.mxu0 0.0
    %4601 = vmatprep.subr.mxu0 0.0
    %4602 = vmatpush1.msra.mxu0 0.0
    %4603 = vmatprep.subr.mxu0 0.0
    %4604 = vmatpush1.msra.mxu0 %v4568
    %4605 = vmatprep.subr.mxu0 0.0
    %4606 = vmatpush2.msra.mxu0 0.0
    %4607 = vmatprep.subr.mxu0 0.0
    %4608 = vmatpush2.msra.mxu0 0.0
    %4609 = vmatprep.subr.mxu0 0.0
    %4610 = vmatpush2.msra.mxu0 0.0
    %4611 = vmatprep.subr.mxu0 0.0
    %4612 = vmatpush2.msra.mxu0 0.0
    %4613 = vmatprep.subr.mxu0 0.0
    %4614 = vmatpush2.msra.mxu0 0.0
    %4615 = vmatprep.subr.mxu0 0.0
    %4616 = vmatpush2.msra.mxu0 0.0
    %4617 = vmatprep.subr.mxu0 0.0
    %4618 = vmatpush2.msra.mxu0 0.0
    %4619 = vmatprep.subr.mxu0 0.0
    %4620 = vmatpush2.msra.mxu0 0.0
    %4621 = vmatprep.subr.mxu0 0.0
    %4622 = vmatpush2.msra.mxu0 0.0
    %4623 = vmatprep.subr.mxu0 0.0
    %4624 = vmatpush2.msra.mxu0 0.0
    %4625 = vmatprep.subr.mxu0 0.0
    %4626 = vmatpush2.msra.mxu0 0.0
    %4627 = vmatprep.subr.mxu0 0.0
    %4628 = vmatpush2.msra.mxu0 0.0
    %4629 = vmatprep.subr.mxu0 0.0
    %4630 = vmatpush2.msra.mxu0 0.0
    %4631 = vmatprep.subr.mxu0 0.0
    %4632 = vmatpush2.msra.mxu0 0.0
    %4633 = vmatprep.subr.mxu0 0.0
    %4634 = vmatpush2.msra.mxu0 0.0
    %4635 = vmatprep.subr.mxu0 0.0
    %4636 = vmatpush2.msra.mxu0 0.0
    %4637 = vmatprep.mubr.f32.mxu0 0.0
    %4638 = vmatmul.mubr.f32.gmra.mxu0 %v4571
    %v4639 = vpop.f32.mrf.mxu0
    %v4640 = vadd.f32 0.0, %v4639
    %v4641 = vpop.f32.mrf.mxu0
    %4642 = vdwg.mxu0
    %4643 = vrot.lane.b32.xlu0 %v3128, 40
    %v4644 = vpop.permute.xlu0 %4643
    %v4647 = vsel %vm502, %v4560, 0
    %4649 = vmatprep.subr.mxu0 0.0
    %4650 = vmatpush1.msra.mxu0 0.0
    %4651 = vmatprep.subr.mxu0 0.0
    %4652 = vmatpush1.msra.mxu0 0.0
    %4653 = vmatprep.subr.mxu0 0.0
    %4654 = vmatpush1.msra.mxu0 0.0
    %4655 = vmatprep.subr.mxu0 0.0
    %4656 = vmatpush1.msra.mxu0 0.0
    %4657 = vmatprep.subr.mxu0 0.0
    %4658 = vmatpush1.msra.mxu0 0.0
    %4659 = vmatprep.subr.mxu0 0.0
    %4660 = vmatpush1.msra.mxu0 0.0
    %4661 = vmatprep.subr.mxu0 0.0
    %4662 = vmatpush1.msra.mxu0 0.0
    %4663 = vmatprep.subr.mxu0 0.0
    %4664 = vmatpush1.msra.mxu0 0.0
    %4665 = vmatprep.subr.mxu0 0.0
    %4666 = vmatpush1.msra.mxu0 0.0
    %4667 = vmatprep.subr.mxu0 0.0
    %4668 = vmatpush1.msra.mxu0 0.0
    %4669 = vmatprep.subr.mxu0 0.0
    %4670 = vmatpush1.msra.mxu0 0.0
    %4671 = vmatprep.subr.mxu0 0.0
    %4672 = vmatpush1.msra.mxu0 0.0
    %4673 = vmatprep.subr.mxu0 0.0
    %4674 = vmatpush1.msra.mxu0 0.0
    %4675 = vmatprep.subr.mxu0 0.0
    %4676 = vmatpush1.msra.mxu0 0.0
    %4677 = vmatprep.subr.mxu0 0.0
    %4678 = vmatpush1.msra.mxu0 0.0
    %4679 = vmatprep.subr.mxu0 0.0
    %4680 = vmatpush1.msra.mxu0 %v4644
    %4681 = vmatprep.subr.mxu0 0.0
    %4682 = vmatpush2.msra.mxu0 0.0
    %4683 = vmatprep.subr.mxu0 0.0
    %4684 = vmatpush2.msra.mxu0 0.0
    %4685 = vmatprep.subr.mxu0 0.0
    %4686 = vmatpush2.msra.mxu0 0.0
    %4687 = vmatprep.subr.mxu0 0.0
    %4688 = vmatpush2.msra.mxu0 0.0
    %4689 = vmatprep.subr.mxu0 0.0
    %4690 = vmatpush2.msra.mxu0 0.0
    %4691 = vmatprep.subr.mxu0 0.0
    %4692 = vmatpush2.msra.mxu0 0.0
    %4693 = vmatprep.subr.mxu0 0.0
    %4694 = vmatpush2.msra.mxu0 0.0
    %4695 = vmatprep.subr.mxu0 0.0
    %4696 = vmatpush2.msra.mxu0 0.0
    %4697 = vmatprep.subr.mxu0 0.0
    %4698 = vmatpush2.msra.mxu0 0.0
    %4699 = vmatprep.subr.mxu0 0.0
    %4700 = vmatpush2.msra.mxu0 0.0
    %4701 = vmatprep.subr.mxu0 0.0
    %4702 = vmatpush2.msra.mxu0 0.0
    %4703 = vmatprep.subr.mxu0 0.0
    %4704 = vmatpush2.msra.mxu0 0.0
    %4705 = vmatprep.subr.mxu0 0.0
    %4706 = vmatpush2.msra.mxu0 0.0
    %4707 = vmatprep.subr.mxu0 0.0
    %4708 = vmatpush2.msra.mxu0 0.0
    %4709 = vmatprep.subr.mxu0 0.0
    %4710 = vmatpush2.msra.mxu0 0.0
    %4711 = vmatprep.subr.mxu0 0.0
    %4712 = vmatpush2.msra.mxu0 0.0
    %4713 = vmatprep.mubr.f32.mxu0 0.0
    %4714 = vmatmul.mubr.f32.gmra.mxu0 %v4647
    %v4715 = vpop.f32.mrf.mxu0
    %v4716 = vadd.f32 0.0, %v4715
    %v4717 = vpop.f32.mrf.mxu0
    %4718 = vdwg.mxu0
    %v4719 = vrcp.pop %v4563
    %v4720 = vrcp.pop %v4566
    %v4721 = vmul.f32 %v4640, %v4719
    %v4722 = vmul.f32 %v4716, %v4720
    %v4723 = vld [vmem:[%s45 + $0x18] sm:$0xff]
    %v4725 = vsel %vm502, %v4721, 0
    %v4728 = vsel %vm502, %v4722, 0
    %4730 = vmatprep.subr.mxu0 0.0
    %4731 = vmatpush1.msra.mxu0 0.0
    %4732 = vmatprep.subr.mxu0 0.0
    %4733 = vmatpush1.msra.mxu0 0.0
    %4734 = vmatprep.subr.mxu0 0.0
    %4735 = vmatpush1.msra.mxu0 0.0
    %4736 = vmatprep.subr.mxu0 0.0
    %4737 = vmatpush1.msra.mxu0 0.0
    %4738 = vmatprep.subr.mxu0 0.0
    %4739 = vmatpush1.msra.mxu0 0.0
    %4740 = vmatprep.subr.mxu0 0.0
    %4741 = vmatpush1.msra.mxu0 0.0
    %4742 = vmatprep.subr.mxu0 0.0
    %4743 = vmatpush1.msra.mxu0 0.0
    %4744 = vmatprep.subr.mxu0 0.0
    %4745 = vmatpush1.msra.mxu0 0.0
    %4746 = vmatprep.subr.mxu0 0.0
    %4747 = vmatpush1.msra.mxu0 0.0
    %4748 = vmatprep.subr.mxu0 0.0
    %4749 = vmatpush1.msra.mxu0 0.0
    %4750 = vmatprep.subr.mxu0 0.0
    %4751 = vmatpush1.msra.mxu0 0.0
    %4752 = vmatprep.subr.mxu0 0.0
    %4753 = vmatpush1.msra.mxu0 0.0
    %4754 = vmatprep.subr.mxu0 0.0
    %4755 = vmatpush1.msra.mxu0 0.0
    %4756 = vmatprep.subr.mxu0 0.0
    %4757 = vmatpush1.msra.mxu0 0.0
    %4758 = vmatprep.subr.mxu0 0.0
    %4759 = vmatpush1.msra.mxu0 0.0
    %4760 = vmatprep.subr.mxu0 0.0
    %4761 = vmatpush1.msra.mxu0 %v4723
    %4762 = vmatprep.subr.mxu0 0.0
    %4763 = vmatpush2.msra.mxu0 0.0
    %4764 = vmatprep.subr.mxu0 0.0
    %4765 = vmatpush2.msra.mxu0 0.0
    %4766 = vmatprep.subr.mxu0 0.0
    %4767 = vmatpush2.msra.mxu0 0.0
    %4768 = vmatprep.subr.mxu0 0.0
    %4769 = vmatpush2.msra.mxu0 0.0
    %4770 = vmatprep.subr.mxu0 0.0
    %4771 = vmatpush2.msra.mxu0 0.0
    %4772 = vmatprep.subr.mxu0 0.0
    %4773 = vmatpush2.msra.mxu0 0.0
    %4774 = vmatprep.subr.mxu0 0.0
    %4775 = vmatpush2.msra.mxu0 0.0
    %4776 = vmatprep.subr.mxu0 0.0
    %4777 = vmatpush2.msra.mxu0 0.0
    %4778 = vmatprep.subr.mxu0 0.0
    %4779 = vmatpush2.msra.mxu0 0.0
    %4780 = vmatprep.subr.mxu0 0.0
    %4781 = vmatpush2.msra.mxu0 0.0
    %4782 = vmatprep.subr.mxu0 0.0
    %4783 = vmatpush2.msra.mxu0 0.0
    %4784 = vmatprep.subr.mxu0 0.0
    %4785 = vmatpush2.msra.mxu0 0.0
    %4786 = vmatprep.subr.mxu0 0.0
    %4787 = vmatpush2.msra.mxu0 0.0
    %4788 = vmatprep.subr.mxu0 0.0
    %4789 = vmatpush2.msra.mxu0 0.0
    %4790 = vmatprep.subr.mxu0 0.0
    %4791 = vmatpush2.msra.mxu0 0.0
    %4792 = vmatprep.subr.mxu0 0.0
    %4793 = vmatpush2.msra.mxu0 0.0
    %4794 = vmatprep.mubr.f32.mxu0 0.0
    %4795 = vmatmul.mubr.f32.gmra.mxu0 %v4725
    %v4796 = vpop.f32.mrf.mxu0
    %v4797 = vadd.f32 0.0, %v4796
    %v4798 = vpop.f32.mrf.mxu0
    %4799 = vmatprep.mubr.f32.mxu0 0.0
    %4800 = vmatmul.mubr.f32.gmra.mxu0 %v4728
    %v4801 = vpop.f32.mrf.mxu0
    %v4802 = vadd.f32 0.0, %v4801
    %v4803 = vpop.f32.mrf.mxu0
    %4804 = vdwg.mxu0
    %v4805 = vadd.f32 %v4387, %v4797
    %v4806 = vadd.f32 %v4388, %v4802
    %v4807 = vld [vmem:[%s41] sm:$0x1]
    %v4809 = vlaneseq
    %v4810 = vshrl.u32 %v4809, 7
    %v4811 = vsub.s32 0, %v4810
    %v4812 = vrot.slane %v4807, %v4811
    %v4814 = vadd.f32 %v4805, %v4812
    %v4815 = vadd.f32 %v4806, %v4812
    %v4816 = vadd.f32 %v2968, %v4814
    %v4817 = vadd.f32 %v2969, %v4815
    %v4818 = vsel %vm312, %v4816, 0.0
    %4819 = vadd.xlane.f32.xlu0 %v4818
    %v4820 = vpop.xlane.xlu0 %4819
    %v4821 = vsel %vm312, %v4817, 0.0
    %4822 = vadd.xlane.f32.xlu0 %v4821
    %v4823 = vpop.xlane.xlu0 %4822
    %v4824 = vmul.f32 %v4820, %v325
    %v4825 = vmul.f32 %v4823, %v325
    %v4826 = vsub.f32 %v4816, %v4824
    %v4827 = vsub.f32 %v4817, %v4825
    %v4828 = vmul.f32 %v4826, %v4826
    %v4829 = vmul.f32 %v4827, %v4827
    %v4830 = vsel %vm312, %v4828, 0.0
    %4831 = vadd.xlane.f32.xlu0 %v4830
    %v4832 = vpop.xlane.xlu0 %4831
    %v4833 = vsel %vm312, %v4829, 0.0
    %4834 = vadd.xlane.f32.xlu0 %v4833
    %v4835 = vpop.xlane.xlu0 %4834
    %v4836 = vmul.f32 %v4832, %v325
    %v4837 = vmul.f32 %v4835, %v325
    %v4838 = vadd.f32 %v4836, 1e-05
    %v4839 = vadd.f32 %v4837, 1e-05
    %v4840 = vrsqrt.pop %v4838
    %v4841 = vrsqrt.pop %v4839
    %v4842 = vmul.f32 %v4826, %v4840
    %v4843 = vmul.f32 %v4827, %v4841
    %v4844 = vld [vmem:[%s29] sm:$0x1]
    %v4846 = vlaneseq
    %v4847 = vshrl.u32 %v4846, 7
    %v4848 = vsub.s32 0, %v4847
    %v4849 = vrot.slane %v4844, %v4848
    %v4851 = vmul.f32 %v4842, %v4849
    %v4852 = vmul.f32 %v4843, %v4849
    %v4853 = vld [vmem:[%s27] sm:$0x1]
    %v4855 = vlaneseq
    %v4856 = vshrl.u32 %v4855, 7
    %v4857 = vsub.s32 0, %v4856
    %v4858 = vrot.slane %v4853, %v4857
    %v4860 = vadd.f32 %v4851, %v4858
    %v4861 = vadd.f32 %v4852, %v4858
    %v4862 = vld [vmem:[%s21] sm:$0xff]
    %v4863 = vld [vmem:[%s21 + $0x8] sm:$0xff]
    %v4864 = vld [vmem:[%s21 + $0x10] sm:$0xff]
    %v4865 = vld [vmem:[%s21 + $0x18] sm:$0xff]
    %v4866 = vld [vmem:[%s17] sm:$0x1]
    %v4868 = vlaneseq
    %v4869 = vshrl.u32 %v4868, 7
    %v4870 = vsub.s32 0, %v4869
    %v4871 = vrot.slane %v4866, %v4870
    %v4874 = vsel %vm312, %v4860, 0
    %v4877 = vsel %vm312, %v4861, 0
    %4879 = vmatprep.subr.mxu0 0.0
    %4880 = vmatpush1.msra.mxu0 0.0
    %4881 = vmatprep.subr.mxu0 0.0
    %4882 = vmatpush1.msra.mxu0 0.0
    %4883 = vmatprep.subr.mxu0 0.0
    %4884 = vmatpush1.msra.mxu0 0.0
    %4885 = vmatprep.subr.mxu0 0.0
    %4886 = vmatpush1.msra.mxu0 0.0
    %4887 = vmatprep.subr.mxu0 0.0
    %4888 = vmatpush1.msra.mxu0 0.0
    %4889 = vmatprep.subr.mxu0 0.0
    %4890 = vmatpush1.msra.mxu0 0.0
    %4891 = vmatprep.subr.mxu0 0.0
    %4892 = vmatpush1.msra.mxu0 0.0
    %4893 = vmatprep.subr.mxu0 0.0
    %4894 = vmatpush1.msra.mxu0 0.0
    %4895 = vmatprep.subr.mxu0 0.0
    %4896 = vmatpush1.msra.mxu0 0.0
    %4897 = vmatprep.subr.mxu0 0.0
    %4898 = vmatpush1.msra.mxu0 0.0
    %4899 = vmatprep.subr.mxu0 0.0
    %4900 = vmatpush1.msra.mxu0 0.0
    %4901 = vmatprep.subr.mxu0 0.0
    %4902 = vmatpush1.msra.mxu0 0.0
    %4903 = vmatprep.subr.mxu0 0.0
    %4904 = vmatpush1.msra.mxu0 %v4865
    %4905 = vmatprep.subr.mxu0 0.0
    %4906 = vmatpush1.msra.mxu0 %v4864
    %4907 = vmatprep.subr.mxu0 0.0
    %4908 = vmatpush1.msra.mxu0 %v4863
    %4909 = vmatprep.subr.mxu0 0.0
    %4910 = vmatpush1.msra.mxu0 %v4862
    %4911 = vmatprep.subr.mxu0 0.0
    %4912 = vmatpush2.msra.mxu0 0.0
    %4913 = vmatprep.subr.mxu0 0.0
    %4914 = vmatpush2.msra.mxu0 0.0
    %4915 = vmatprep.subr.mxu0 0.0
    %4916 = vmatpush2.msra.mxu0 0.0
    %4917 = vmatprep.subr.mxu0 0.0
    %4918 = vmatpush2.msra.mxu0 0.0
    %4919 = vmatprep.subr.mxu0 0.0
    %4920 = vmatpush2.msra.mxu0 0.0
    %4921 = vmatprep.subr.mxu0 0.0
    %4922 = vmatpush2.msra.mxu0 0.0
    %4923 = vmatprep.subr.mxu0 0.0
    %4924 = vmatpush2.msra.mxu0 0.0
    %4925 = vmatprep.subr.mxu0 0.0
    %4926 = vmatpush2.msra.mxu0 0.0
    %4927 = vmatprep.subr.mxu0 0.0
    %4928 = vmatpush2.msra.mxu0 0.0
    %4929 = vmatprep.subr.mxu0 0.0
    %4930 = vmatpush2.msra.mxu0 0.0
    %4931 = vmatprep.subr.mxu0 0.0
    %4932 = vmatpush2.msra.mxu0 0.0
    %4933 = vmatprep.subr.mxu0 0.0
    %4934 = vmatpush2.msra.mxu0 0.0
    %4935 = vmatprep.subr.mxu0 0.0
    %4936 = vmatpush2.msra.mxu0 0.0
    %4937 = vmatprep.subr.mxu0 0.0
    %4938 = vmatpush2.msra.mxu0 0.0
    %4939 = vmatprep.subr.mxu0 0.0
    %4940 = vmatpush2.msra.mxu0 0.0
    %4941 = vmatprep.subr.mxu0 0.0
    %4942 = vmatpush2.msra.mxu0 0.0
    %4943 = vmatprep.mubr.f32.mxu0 0.0
    %4944 = vmatmul.mubr.f32.gmra.mxu0 %v4874
    %v4945 = vpop.f32.mrf.mxu0
    %v4946 = vadd.f32 %v4871, %v4945
    %v4947 = vpop.f32.mrf.mxu0
    %4948 = vmatprep.mubr.f32.mxu0 0.0
    %4949 = vmatmul.mubr.f32.gmra.mxu0 %v4877
    %v4950 = vpop.f32.mrf.mxu0
    %v4951 = vadd.f32 %v4871, %v4950
    %v4952 = vpop.f32.mrf.mxu0
    %4953 = vdwg.mxu0
    %4958 = vrot.lane.b32.xlu0 %v4862, 96
    %v4959 = vpop.permute.xlu0 %4958
    %4960 = vrot.lane.b32.xlu0 %v4863, 96
    %v4961 = vpop.permute.xlu0 %4960
    %4962 = vrot.lane.b32.xlu0 %v4864, 96
    %v4963 = vpop.permute.xlu0 %4962
    %4964 = vrot.lane.b32.xlu0 %v4865, 96
    %v4965 = vpop.permute.xlu0 %4964
    %4970 = vrot.lane.b32.xlu0 %v4871, 96
    %v4971 = vpop.permute.xlu0 %4970
    %v4974 = vsel %vm312, %v2856, 0
    %v4977 = vsel %vm312, %v2857, 0
    %v4980 = vsel %vm312, %v2858, 0
    %v4983 = vsel %vm312, %v2859, 0
    %4985 = vmatprep.subr.mxu0 0.0
    %4986 = vmatpush1.msra.mxu0 0.0
    %4987 = vmatprep.subr.mxu0 0.0
    %4988 = vmatpush1.msra.mxu0 0.0
    %4989 = vmatprep.subr.mxu0 0.0
    %4990 = vmatpush1.msra.mxu0 0.0
    %4991 = vmatprep.subr.mxu0 0.0
    %4992 = vmatpush1.msra.mxu0 0.0
    %4993 = vmatprep.subr.mxu0 0.0
    %4994 = vmatpush1.msra.mxu0 0.0
    %4995 = vmatprep.subr.mxu0 0.0
    %4996 = vmatpush1.msra.mxu0 0.0
    %4997 = vmatprep.subr.mxu0 0.0
    %4998 = vmatpush1.msra.mxu0 0.0
    %4999 = vmatprep.subr.mxu0 0.0
    %5000 = vmatpush1.msra.mxu0 0.0
    %5001 = vmatprep.subr.mxu0 0.0
    %5002 = vmatpush1.msra.mxu0 0.0
    %5003 = vmatprep.subr.mxu0 0.0
    %5004 = vmatpush1.msra.mxu0 0.0
    %5005 = vmatprep.subr.mxu0 0.0
    %5006 = vmatpush1.msra.mxu0 0.0
    %5007 = vmatprep.subr.mxu0 0.0
    %5008 = vmatpush1.msra.mxu0 0.0
    %5009 = vmatprep.subr.mxu0 0.0
    %5010 = vmatpush1.msra.mxu0 %v4965
    %5011 = vmatprep.subr.mxu0 0.0
    %5012 = vmatpush1.msra.mxu0 %v4963
    %5013 = vmatprep.subr.mxu0 0.0
    %5014 = vmatpush1.msra.mxu0 %v4961
    %5015 = vmatprep.subr.mxu0 0.0
    %5016 = vmatpush1.msra.mxu0 %v4959
    %5017 = vmatprep.subr.mxu0 0.0
    %5018 = vmatpush2.msra.mxu0 0.0
    %5019 = vmatprep.subr.mxu0 0.0
    %5020 = vmatpush2.msra.mxu0 0.0
    %5021 = vmatprep.subr.mxu0 0.0
    %5022 = vmatpush2.msra.mxu0 0.0
    %5023 = vmatprep.subr.mxu0 0.0
    %5024 = vmatpush2.msra.mxu0 0.0
    %5025 = vmatprep.subr.mxu0 0.0
    %5026 = vmatpush2.msra.mxu0 0.0
    %5027 = vmatprep.subr.mxu0 0.0
    %5028 = vmatpush2.msra.mxu0 0.0
    %5029 = vmatprep.subr.mxu0 0.0
    %5030 = vmatpush2.msra.mxu0 0.0
    %5031 = vmatprep.subr.mxu0 0.0
    %5032 = vmatpush2.msra.mxu0 0.0
    %5033 = vmatprep.subr.mxu0 0.0
    %5034 = vmatpush2.msra.mxu0 0.0
    %5035 = vmatprep.subr.mxu0 0.0
    %5036 = vmatpush2.msra.mxu0 0.0
    %5037 = vmatprep.subr.mxu0 0.0
    %5038 = vmatpush2.msra.mxu0 0.0
    %5039 = vmatprep.subr.mxu0 0.0
    %5040 = vmatpush2.msra.mxu0 0.0
    %5041 = vmatprep.subr.mxu0 0.0
    %5042 = vmatpush2.msra.mxu0 0.0
    %5043 = vmatprep.subr.mxu0 0.0
    %5044 = vmatpush2.msra.mxu0 0.0
    %5045 = vmatprep.subr.mxu0 0.0
    %5046 = vmatpush2.msra.mxu0 0.0
    %5047 = vmatprep.subr.mxu0 0.0
    %5048 = vmatpush2.msra.mxu0 0.0
    %5049 = vmatprep.mubr.f32.mxu0 0.0
    %5050 = vmatmul.mubr.f32.gmra.mxu0 %v4974
    %v5051 = vpop.f32.mrf.mxu0
    %v5052 = vadd.f32 %v4971, %v5051
    %v5053 = vpop.f32.mrf.mxu0
    %5054 = vmatprep.mubr.f32.mxu0 0.0
    %5055 = vmatmul.mubr.f32.gmra.mxu0 %v4977
    %v5056 = vpop.f32.mrf.mxu0
    %v5057 = vadd.f32 %v4971, %v5056
    %v5058 = vpop.f32.mrf.mxu0
    %5059 = vmatprep.mubr.f32.mxu0 0.0
    %5060 = vmatmul.mubr.f32.gmra.mxu0 %v4980
    %v5061 = vpop.f32.mrf.mxu0
    %v5062 = vadd.f32 %v4971, %v5061
    %v5063 = vpop.f32.mrf.mxu0
    %5064 = vmatprep.mubr.f32.mxu0 0.0
    %5065 = vmatmul.mubr.f32.gmra.mxu0 %v4983
    %v5066 = vpop.f32.mrf.mxu0
    %v5067 = vadd.f32 %v4971, %v5066
    %v5068 = vpop.f32.mrf.mxu0
    %5069 = vdwg.mxu0
    %v5071 = vsel %vm502, %v4946, 0
    %v5074 = vsel %vm502, %v5052, 0
    %v5077 = vsel %vm502, %v5057, 0
    %5079 = vmatprep.subr.mxu0 0.0
    %5080 = vmatpush1.xpose.msra.mxu0 0.0
    %5081 = vmatprep.subr.mxu0 0.0
    %5082 = vmatpush1.xpose.msra.mxu0 0.0
    %5083 = vmatprep.subr.mxu0 0.0
    %5084 = vmatpush1.xpose.msra.mxu0 0.0
    %5085 = vmatprep.subr.mxu0 0.0
    %5086 = vmatpush1.xpose.msra.mxu0 0.0
    %5087 = vmatprep.subr.mxu0 0.0
    %5088 = vmatpush1.xpose.msra.mxu0 0.0
    %5089 = vmatprep.subr.mxu0 0.0
    %5090 = vmatpush1.xpose.msra.mxu0 0.0
    %5091 = vmatprep.subr.mxu0 0.0
    %5092 = vmatpush1.xpose.msra.mxu0 0.0
    %5093 = vmatprep.subr.mxu0 0.0
    %5094 = vmatpush1.xpose.msra.mxu0 0.0
    %5095 = vmatprep.subr.mxu0 0.0
    %5096 = vmatpush1.xpose.msra.mxu0 0.0
    %5097 = vmatprep.subr.mxu0 0.0
    %5098 = vmatpush1.xpose.msra.mxu0 0.0
    %5099 = vmatprep.subr.mxu0 0.0
    %5100 = vmatpush1.xpose.msra.mxu0 0.0
    %5101 = vmatprep.subr.mxu0 0.0
    %5102 = vmatpush1.xpose.msra.mxu0 0.0
    %5103 = vmatprep.subr.mxu0 0.0
    %5104 = vmatpush1.xpose.msra.mxu0 0.0
    %5105 = vmatprep.subr.mxu0 0.0
    %5106 = vmatpush1.xpose.msra.mxu0 0.0
    %5107 = vmatprep.subr.mxu0 0.0
    %5108 = vmatpush1.xpose.msra.mxu0 %v5077
    %5109 = vmatprep.subr.mxu0 0.0
    %5110 = vmatpush1.xpose.msra.mxu0 %v5074
    %5111 = vmatprep.subr.mxu0 0.0
    %5112 = vmatpush2.xpose.msra.mxu0 0.0
    %5113 = vmatprep.subr.mxu0 0.0
    %5114 = vmatpush2.xpose.msra.mxu0 0.0
    %5115 = vmatprep.subr.mxu0 0.0
    %5116 = vmatpush2.xpose.msra.mxu0 0.0
    %5117 = vmatprep.subr.mxu0 0.0
    %5118 = vmatpush2.xpose.msra.mxu0 0.0
    %5119 = vmatprep.subr.mxu0 0.0
    %5120 = vmatpush2.xpose.msra.mxu0 0.0
    %5121 = vmatprep.subr.mxu0 0.0
    %5122 = vmatpush2.xpose.msra.mxu0 0.0
    %5123 = vmatprep.subr.mxu0 0.0
    %5124 = vmatpush2.xpose.msra.mxu0 0.0
    %5125 = vmatprep.subr.mxu0 0.0
    %5126 = vmatpush2.xpose.msra.mxu0 0.0
    %5127 = vmatprep.subr.mxu0 0.0
    %5128 = vmatpush2.xpose.msra.mxu0 0.0
    %5129 = vmatprep.subr.mxu0 0.0
    %5130 = vmatpush2.xpose.msra.mxu0 0.0
    %5131 = vmatprep.subr.mxu0 0.0
    %5132 = vmatpush2.xpose.msra.mxu0 0.0
    %5133 = vmatprep.subr.mxu0 0.0
    %5134 = vmatpush2.xpose.msra.mxu0 0.0
    %5135 = vmatprep.subr.mxu0 0.0
    %5136 = vmatpush2.xpose.msra.mxu0 0.0
    %5137 = vmatprep.subr.mxu0 0.0
    %5138 = vmatpush2.xpose.msra.mxu0 0.0
    %5139 = vmatprep.subr.mxu0 0.0
    %5140 = vmatpush2.xpose.msra.mxu0 0.0
    %5141 = vmatprep.subr.mxu0 0.0
    %5142 = vmatpush2.xpose.msra.mxu0 0.0
    %5143 = vmatprep.mubr.f32.mxu0 0.0
    %5144 = vmatmul.mubr.f32.gmra.mxu0 %v5071
    %v5145 = vpop.f32.mrf.mxu0
    %v5146 = vadd.f32 0.0, %v5145
    %v5147 = vpop.f32.mrf.mxu0
    %5148 = vdwg.mxu0
    %v5150 = vsel %vm502, %v4951, 0
    %v5153 = vsel %vm502, %v5062, 0
    %v5156 = vsel %vm502, %v5067, 0
    %5158 = vmatprep.subr.mxu0 0.0
    %5159 = vmatpush1.xpose.msra.mxu0 0.0
    %5160 = vmatprep.subr.mxu0 0.0
    %5161 = vmatpush1.xpose.msra.mxu0 0.0
    %5162 = vmatprep.subr.mxu0 0.0
    %5163 = vmatpush1.xpose.msra.mxu0 0.0
    %5164 = vmatprep.subr.mxu0 0.0
    %5165 = vmatpush1.xpose.msra.mxu0 0.0
    %5166 = vmatprep.subr.mxu0 0.0
    %5167 = vmatpush1.xpose.msra.mxu0 0.0
    %5168 = vmatprep.subr.mxu0 0.0
    %5169 = vmatpush1.xpose.msra.mxu0 0.0
    %5170 = vmatprep.subr.mxu0 0.0
    %5171 = vmatpush1.xpose.msra.mxu0 0.0
    %5172 = vmatprep.subr.mxu0 0.0
    %5173 = vmatpush1.xpose.msra.mxu0 0.0
    %5174 = vmatprep.subr.mxu0 0.0
    %5175 = vmatpush1.xpose.msra.mxu0 0.0
    %5176 = vmatprep.subr.mxu0 0.0
    %5177 = vmatpush1.xpose.msra.mxu0 0.0
    %5178 = vmatprep.subr.mxu0 0.0
    %5179 = vmatpush1.xpose.msra.mxu0 0.0
    %5180 = vmatprep.subr.mxu0 0.0
    %5181 = vmatpush1.xpose.msra.mxu0 0.0
    %5182 = vmatprep.subr.mxu0 0.0
    %5183 = vmatpush1.xpose.msra.mxu0 0.0
    %5184 = vmatprep.subr.mxu0 0.0
    %5185 = vmatpush1.xpose.msra.mxu0 0.0
    %5186 = vmatprep.subr.mxu0 0.0
    %5187 = vmatpush1.xpose.msra.mxu0 %v5156
    %5188 = vmatprep.subr.mxu0 0.0
    %5189 = vmatpush1.xpose.msra.mxu0 %v5153
    %5190 = vmatprep.subr.mxu0 0.0
    %5191 = vmatpush2.xpose.msra.mxu0 0.0
    %5192 = vmatprep.subr.mxu0 0.0
    %5193 = vmatpush2.xpose.msra.mxu0 0.0
    %5194 = vmatprep.subr.mxu0 0.0
    %5195 = vmatpush2.xpose.msra.mxu0 0.0
    %5196 = vmatprep.subr.mxu0 0.0
    %5197 = vmatpush2.xpose.msra.mxu0 0.0
    %5198 = vmatprep.subr.mxu0 0.0
    %5199 = vmatpush2.xpose.msra.mxu0 0.0
    %5200 = vmatprep.subr.mxu0 0.0
    %5201 = vmatpush2.xpose.msra.mxu0 0.0
    %5202 = vmatprep.subr.mxu0 0.0
    %5203 = vmatpush2.xpose.msra.mxu0 0.0
    %5204 = vmatprep.subr.mxu0 0.0
    %5205 = vmatpush2.xpose.msra.mxu0 0.0
    %5206 = vmatprep.subr.mxu0 0.0
    %5207 = vmatpush2.xpose.msra.mxu0 0.0
    %5208 = vmatprep.subr.mxu0 0.0
    %5209 = vmatpush2.xpose.msra.mxu0 0.0
    %5210 = vmatprep.subr.mxu0 0.0
    %5211 = vmatpush2.xpose.msra.mxu0 0.0
    %5212 = vmatprep.subr.mxu0 0.0
    %5213 = vmatpush2.xpose.msra.mxu0 0.0
    %5214 = vmatprep.subr.mxu0 0.0
    %5215 = vmatpush2.xpose.msra.mxu0 0.0
    %5216 = vmatprep.subr.mxu0 0.0
    %5217 = vmatpush2.xpose.msra.mxu0 0.0
    %5218 = vmatprep.subr.mxu0 0.0
    %5219 = vmatpush2.xpose.msra.mxu0 0.0
    %5220 = vmatprep.subr.mxu0 0.0
    %5221 = vmatpush2.xpose.msra.mxu0 0.0
    %5222 = vmatprep.mubr.f32.mxu0 0.0
    %5223 = vmatmul.mubr.f32.gmra.mxu0 %v5150
    %v5224 = vpop.f32.mrf.mxu0
    %v5225 = vadd.f32 0.0, %v5224
    %v5226 = vpop.f32.mrf.mxu0
    %5227 = vdwg.mxu0
    %v5228 = vmul.f32 %v5146, 0.35355338
    %v5229 = vmul.f32 %v5225, 0.35355338
    %v5230 = vsel %vm679, %v5228, -inf
    %5231 = vmax.xlane.f32.xlu0 %v5230
    %v5232 = vpop.xlane.xlu0 %5231
    %v5233 = vsel %vm679, %v5229, -inf
    %5234 = vmax.xlane.f32.xlu0 %v5233
    %v5235 = vpop.xlane.xlu0 %5234
    %v5236 = vsub.f32 %v5228, %v5232
    %v5237 = vsub.f32 %v5229, %v5235
    %v5238 = vmul.f32 %v5236, 1.442695
    %v5239 = vpow.pop %v5238
    %v5240 = vmul.f32 %v5237, 1.442695
    %v5241 = vpow.pop %v5240
    %v5242 = vsel %vm679, %v5239, 0.0
    %5243 = vadd.xlane.f32.xlu0 %v5242
    %v5244 = vpop.xlane.xlu0 %5243
    %v5245 = vsel %vm679, %v5241, 0.0
    %5246 = vadd.xlane.f32.xlu0 %v5245
    %v5247 = vpop.xlane.xlu0 %5246
    %5248 = vrot.lane.b32.xlu0 %v5052, 96
    %v5249 = vpop.permute.xlu0 %5248
    %5250 = vrot.lane.b32.xlu0 %v5057, 96
    %v5251 = vpop.permute.xlu0 %5250
    %v5255 = vsel %vm679, %v5239, 0
    %5257 = vmatprep.subr.mxu0 0.0
    %5258 = vmatpush1.msra.mxu0 0.0
    %5259 = vmatprep.subr.mxu0 0.0
    %5260 = vmatpush1.msra.mxu0 0.0
    %5261 = vmatprep.subr.mxu0 0.0
    %5262 = vmatpush1.msra.mxu0 0.0
    %5263 = vmatprep.subr.mxu0 0.0
    %5264 = vmatpush1.msra.mxu0 0.0
    %5265 = vmatprep.subr.mxu0 0.0
    %5266 = vmatpush1.msra.mxu0 0.0
    %5267 = vmatprep.subr.mxu0 0.0
    %5268 = vmatpush1.msra.mxu0 0.0
    %5269 = vmatprep.subr.mxu0 0.0
    %5270 = vmatpush1.msra.mxu0 0.0
    %5271 = vmatprep.subr.mxu0 0.0
    %5272 = vmatpush1.msra.mxu0 0.0
    %5273 = vmatprep.subr.mxu0 0.0
    %5274 = vmatpush1.msra.mxu0 0.0
    %5275 = vmatprep.subr.mxu0 0.0
    %5276 = vmatpush1.msra.mxu0 0.0
    %5277 = vmatprep.subr.mxu0 0.0
    %5278 = vmatpush1.msra.mxu0 0.0
    %5279 = vmatprep.subr.mxu0 0.0
    %5280 = vmatpush1.msra.mxu0 0.0
    %5281 = vmatprep.subr.mxu0 0.0
    %5282 = vmatpush1.msra.mxu0 0.0
    %5283 = vmatprep.subr.mxu0 0.0
    %5284 = vmatpush1.msra.mxu0 0.0
    %5285 = vmatprep.subr.mxu0 0.0
    %5286 = vmatpush1.msra.mxu0 %v5251
    %5287 = vmatprep.subr.mxu0 0.0
    %5288 = vmatpush1.msra.mxu0 %v5249
    %5289 = vmatprep.subr.mxu0 0.0
    %5290 = vmatpush2.msra.mxu0 0.0
    %5291 = vmatprep.subr.mxu0 0.0
    %5292 = vmatpush2.msra.mxu0 0.0
    %5293 = vmatprep.subr.mxu0 0.0
    %5294 = vmatpush2.msra.mxu0 0.0
    %5295 = vmatprep.subr.mxu0 0.0
    %5296 = vmatpush2.msra.mxu0 0.0
    %5297 = vmatprep.subr.mxu0 0.0
    %5298 = vmatpush2.msra.mxu0 0.0
    %5299 = vmatprep.subr.mxu0 0.0
    %5300 = vmatpush2.msra.mxu0 0.0
    %5301 = vmatprep.subr.mxu0 0.0
    %5302 = vmatpush2.msra.mxu0 0.0
    %5303 = vmatprep.subr.mxu0 0.0
    %5304 = vmatpush2.msra.mxu0 0.0
    %5305 = vmatprep.subr.mxu0 0.0
    %5306 = vmatpush2.msra.mxu0 0.0
    %5307 = vmatprep.subr.mxu0 0.0
    %5308 = vmatpush2.msra.mxu0 0.0
    %5309 = vmatprep.subr.mxu0 0.0
    %5310 = vmatpush2.msra.mxu0 0.0
    %5311 = vmatprep.subr.mxu0 0.0
    %5312 = vmatpush2.msra.mxu0 0.0
    %5313 = vmatprep.subr.mxu0 0.0
    %5314 = vmatpush2.msra.mxu0 0.0
    %5315 = vmatprep.subr.mxu0 0.0
    %5316 = vmatpush2.msra.mxu0 0.0
    %5317 = vmatprep.subr.mxu0 0.0
    %5318 = vmatpush2.msra.mxu0 0.0
    %5319 = vmatprep.subr.mxu0 0.0
    %5320 = vmatpush2.msra.mxu0 0.0
    %5321 = vmatprep.mubr.f32.mxu0 0.0
    %5322 = vmatmul.mubr.f32.gmra.mxu0 %v5255
    %v5323 = vpop.f32.mrf.mxu0
    %v5324 = vadd.f32 0.0, %v5323
    %v5325 = vpop.f32.mrf.mxu0
    %5326 = vdwg.mxu0
    %5327 = vrot.lane.b32.xlu0 %v5062, 96
    %v5328 = vpop.permute.xlu0 %5327
    %5329 = vrot.lane.b32.xlu0 %v5067, 96
    %v5330 = vpop.permute.xlu0 %5329
    %v5334 = vsel %vm679, %v5241, 0
    %5336 = vmatprep.subr.mxu0 0.0
    %5337 = vmatpush1.msra.mxu0 0.0
    %5338 = vmatprep.subr.mxu0 0.0
    %5339 = vmatpush1.msra.mxu0 0.0
    %5340 = vmatprep.subr.mxu0 0.0
    %5341 = vmatpush1.msra.mxu0 0.0
    %5342 = vmatprep.subr.mxu0 0.0
    %5343 = vmatpush1.msra.mxu0 0.0
    %5344 = vmatprep.subr.mxu0 0.0
    %5345 = vmatpush1.msra.mxu0 0.0
    %5346 = vmatprep.subr.mxu0 0.0
    %5347 = vmatpush1.msra.mxu0 0.0
    %5348 = vmatprep.subr.mxu0 0.0
    %5349 = vmatpush1.msra.mxu0 0.0
    %5350 = vmatprep.subr.mxu0 0.0
    %5351 = vmatpush1.msra.mxu0 0.0
    %5352 = vmatprep.subr.mxu0 0.0
    %5353 = vmatpush1.msra.mxu0 0.0
    %5354 = vmatprep.subr.mxu0 0.0
    %5355 = vmatpush1.msra.mxu0 0.0
    %5356 = vmatprep.subr.mxu0 0.0
    %5357 = vmatpush1.msra.mxu0 0.0
    %5358 = vmatprep.subr.mxu0 0.0
    %5359 = vmatpush1.msra.mxu0 0.0
    %5360 = vmatprep.subr.mxu0 0.0
    %5361 = vmatpush1.msra.mxu0 0.0
    %5362 = vmatprep.subr.mxu0 0.0
    %5363 = vmatpush1.msra.mxu0 0.0
    %5364 = vmatprep.subr.mxu0 0.0
    %5365 = vmatpush1.msra.mxu0 %v5330
    %5366 = vmatprep.subr.mxu0 0.0
    %5367 = vmatpush1.msra.mxu0 %v5328
    %5368 = vmatprep.subr.mxu0 0.0
    %5369 = vmatpush2.msra.mxu0 0.0
    %5370 = vmatprep.subr.mxu0 0.0
    %5371 = vmatpush2.msra.mxu0 0.0
    %5372 = vmatprep.subr.mxu0 0.0
    %5373 = vmatpush2.msra.mxu0 0.0
    %5374 = vmatprep.subr.mxu0 0.0
    %5375 = vmatpush2.msra.mxu0 0.0
    %5376 = vmatprep.subr.mxu0 0.0
    %5377 = vmatpush2.msra.mxu0 0.0
    %5378 = vmatprep.subr.mxu0 0.0
    %5379 = vmatpush2.msra.mxu0 0.0
    %5380 = vmatprep.subr.mxu0 0.0
    %5381 = vmatpush2.msra.mxu0 0.0
    %5382 = vmatprep.subr.mxu0 0.0
    %5383 = vmatpush2.msra.mxu0 0.0
    %5384 = vmatprep.subr.mxu0 0.0
    %5385 = vmatpush2.msra.mxu0 0.0
    %5386 = vmatprep.subr.mxu0 0.0
    %5387 = vmatpush2.msra.mxu0 0.0
    %5388 = vmatprep.subr.mxu0 0.0
    %5389 = vmatpush2.msra.mxu0 0.0
    %5390 = vmatprep.subr.mxu0 0.0
    %5391 = vmatpush2.msra.mxu0 0.0
    %5392 = vmatprep.subr.mxu0 0.0
    %5393 = vmatpush2.msra.mxu0 0.0
    %5394 = vmatprep.subr.mxu0 0.0
    %5395 = vmatpush2.msra.mxu0 0.0
    %5396 = vmatprep.subr.mxu0 0.0
    %5397 = vmatpush2.msra.mxu0 0.0
    %5398 = vmatprep.subr.mxu0 0.0
    %5399 = vmatpush2.msra.mxu0 0.0
    %5400 = vmatprep.mubr.f32.mxu0 0.0
    %5401 = vmatmul.mubr.f32.gmra.mxu0 %v5334
    %v5402 = vpop.f32.mrf.mxu0
    %v5403 = vadd.f32 0.0, %v5402
    %v5404 = vpop.f32.mrf.mxu0
    %5405 = vdwg.mxu0
    %v5406 = vrcp.pop %v5244
    %v5407 = vrcp.pop %v5247
    %v5408 = vmul.f32 %v5324, %v5406
    %v5409 = vmul.f32 %v5403, %v5407
    %v5410 = vld [vmem:[%s19] sm:$0xff]
    %5411 = vrot.lane.b32.xlu0 %v4946, 120
    %v5412 = vpop.permute.xlu0 %5411
    %5413 = vrot.lane.b32.xlu0 %v5052, 120
    %v5414 = vpop.permute.xlu0 %5413
    %5415 = vrot.lane.b32.xlu0 %v5057, 120
    %v5416 = vpop.permute.xlu0 %5415
    %v5417 = vsel %vm502, %v5412, 0
    %v5419 = vsel %vm502, %v5414, 0
    %v5421 = vsel %vm502, %v5416, 0
    %5423 = vmatprep.subr.mxu0 0.0
    %5424 = vmatpush1.xpose.msra.mxu0 0.0
    %5425 = vmatprep.subr.mxu0 0.0
    %5426 = vmatpush1.xpose.msra.mxu0 0.0
    %5427 = vmatprep.subr.mxu0 0.0
    %5428 = vmatpush1.xpose.msra.mxu0 0.0
    %5429 = vmatprep.subr.mxu0 0.0
    %5430 = vmatpush1.xpose.msra.mxu0 0.0
    %5431 = vmatprep.subr.mxu0 0.0
    %5432 = vmatpush1.xpose.msra.mxu0 0.0
    %5433 = vmatprep.subr.mxu0 0.0
    %5434 = vmatpush1.xpose.msra.mxu0 0.0
    %5435 = vmatprep.subr.mxu0 0.0
    %5436 = vmatpush1.xpose.msra.mxu0 0.0
    %5437 = vmatprep.subr.mxu0 0.0
    %5438 = vmatpush1.xpose.msra.mxu0 0.0
    %5439 = vmatprep.subr.mxu0 0.0
    %5440 = vmatpush1.xpose.msra.mxu0 0.0
    %5441 = vmatprep.subr.mxu0 0.0
    %5442 = vmatpush1.xpose.msra.mxu0 0.0
    %5443 = vmatprep.subr.mxu0 0.0
    %5444 = vmatpush1.xpose.msra.mxu0 0.0
    %5445 = vmatprep.subr.mxu0 0.0
    %5446 = vmatpush1.xpose.msra.mxu0 0.0
    %5447 = vmatprep.subr.mxu0 0.0
    %5448 = vmatpush1.xpose.msra.mxu0 0.0
    %5449 = vmatprep.subr.mxu0 0.0
    %5450 = vmatpush1.xpose.msra.mxu0 0.0
    %5451 = vmatprep.subr.mxu0 0.0
    %5452 = vmatpush1.xpose.msra.mxu0 %v5421
    %5453 = vmatprep.subr.mxu0 0.0
    %5454 = vmatpush1.xpose.msra.mxu0 %v5419
    %5455 = vmatprep.subr.mxu0 0.0
    %5456 = vmatpush2.xpose.msra.mxu0 0.0
    %5457 = vmatprep.subr.mxu0 0.0
    %5458 = vmatpush2.xpose.msra.mxu0 0.0
    %5459 = vmatprep.subr.mxu0 0.0
    %5460 = vmatpush2.xpose.msra.mxu0 0.0
    %5461 = vmatprep.subr.mxu0 0.0
    %5462 = vmatpush2.xpose.msra.mxu0 0.0
    %5463 = vmatprep.subr.mxu0 0.0
    %5464 = vmatpush2.xpose.msra.mxu0 0.0
    %5465 = vmatprep.subr.mxu0 0.0
    %5466 = vmatpush2.xpose.msra.mxu0 0.0
    %5467 = vmatprep.subr.mxu0 0.0
    %5468 = vmatpush2.xpose.msra.mxu0 0.0
    %5469 = vmatprep.subr.mxu0 0.0
    %5470 = vmatpush2.xpose.msra.mxu0 0.0
    %5471 = vmatprep.subr.mxu0 0.0
    %5472 = vmatpush2.xpose.msra.mxu0 0.0
    %5473 = vmatprep.subr.mxu0 0.0
    %5474 = vmatpush2.xpose.msra.mxu0 0.0
    %5475 = vmatprep.subr.mxu0 0.0
    %5476 = vmatpush2.xpose.msra.mxu0 0.0
    %5477 = vmatprep.subr.mxu0 0.0
    %5478 = vmatpush2.xpose.msra.mxu0 0.0
    %5479 = vmatprep.subr.mxu0 0.0
    %5480 = vmatpush2.xpose.msra.mxu0 0.0
    %5481 = vmatprep.subr.mxu0 0.0
    %5482 = vmatpush2.xpose.msra.mxu0 0.0
    %5483 = vmatprep.subr.mxu0 0.0
    %5484 = vmatpush2.xpose.msra.mxu0 0.0
    %5485 = vmatprep.subr.mxu0 0.0
    %5486 = vmatpush2.xpose.msra.mxu0 0.0
    %5487 = vmatprep.mubr.f32.mxu0 0.0
    %5488 = vmatmul.mubr.f32.gmra.mxu0 %v5417
    %v5489 = vpop.f32.mrf.mxu0
    %v5490 = vadd.f32 0.0, %v5489
    %v5491 = vpop.f32.mrf.mxu0
    %5492 = vdwg.mxu0
    %5493 = vrot.lane.b32.xlu0 %v4951, 120
    %v5494 = vpop.permute.xlu0 %5493
    %5495 = vrot.lane.b32.xlu0 %v5062, 120
    %v5496 = vpop.permute.xlu0 %5495
    %5497 = vrot.lane.b32.xlu0 %v5067, 120
    %v5498 = vpop.permute.xlu0 %5497
    %v5499 = vsel %vm502, %v5494, 0
    %v5501 = vsel %vm502, %v5496, 0
    %v5503 = vsel %vm502, %v5498, 0
    %5505 = vmatprep.subr.mxu0 0.0
    %5506 = vmatpush1.xpose.msra.mxu0 0.0
    %5507 = vmatprep.subr.mxu0 0.0
    %5508 = vmatpush1.xpose.msra.mxu0 0.0
    %5509 = vmatprep.subr.mxu0 0.0
    %5510 = vmatpush1.xpose.msra.mxu0 0.0
    %5511 = vmatprep.subr.mxu0 0.0
    %5512 = vmatpush1.xpose.msra.mxu0 0.0
    %5513 = vmatprep.subr.mxu0 0.0
    %5514 = vmatpush1.xpose.msra.mxu0 0.0
    %5515 = vmatprep.subr.mxu0 0.0
    %5516 = vmatpush1.xpose.msra.mxu0 0.0
    %5517 = vmatprep.subr.mxu0 0.0
    %5518 = vmatpush1.xpose.msra.mxu0 0.0
    %5519 = vmatprep.subr.mxu0 0.0
    %5520 = vmatpush1.xpose.msra.mxu0 0.0
    %5521 = vmatprep.subr.mxu0 0.0
    %5522 = vmatpush1.xpose.msra.mxu0 0.0
    %5523 = vmatprep.subr.mxu0 0.0
    %5524 = vmatpush1.xpose.msra.mxu0 0.0
    %5525 = vmatprep.subr.mxu0 0.0
    %5526 = vmatpush1.xpose.msra.mxu0 0.0
    %5527 = vmatprep.subr.mxu0 0.0
    %5528 = vmatpush1.xpose.msra.mxu0 0.0
    %5529 = vmatprep.subr.mxu0 0.0
    %5530 = vmatpush1.xpose.msra.mxu0 0.0
    %5531 = vmatprep.subr.mxu0 0.0
    %5532 = vmatpush1.xpose.msra.mxu0 0.0
    %5533 = vmatprep.subr.mxu0 0.0
    %5534 = vmatpush1.xpose.msra.mxu0 %v5503
    %5535 = vmatprep.subr.mxu0 0.0
    %5536 = vmatpush1.xpose.msra.mxu0 %v5501
    %5537 = vmatprep.subr.mxu0 0.0
    %5538 = vmatpush2.xpose.msra.mxu0 0.0
    %5539 = vmatprep.subr.mxu0 0.0
    %5540 = vmatpush2.xpose.msra.mxu0 0.0
    %5541 = vmatprep.subr.mxu0 0.0
    %5542 = vmatpush2.xpose.msra.mxu0 0.0
    %5543 = vmatprep.subr.mxu0 0.0
    %5544 = vmatpush2.xpose.msra.mxu0 0.0
    %5545 = vmatprep.subr.mxu0 0.0
    %5546 = vmatpush2.xpose.msra.mxu0 0.0
    %5547 = vmatprep.subr.mxu0 0.0
    %5548 = vmatpush2.xpose.msra.mxu0 0.0
    %5549 = vmatprep.subr.mxu0 0.0
    %5550 = vmatpush2.xpose.msra.mxu0 0.0
    %5551 = vmatprep.subr.mxu0 0.0
    %5552 = vmatpush2.xpose.msra.mxu0 0.0
    %5553 = vmatprep.subr.mxu0 0.0
    %5554 = vmatpush2.xpose.msra.mxu0 0.0
    %5555 = vmatprep.subr.mxu0 0.0
    %5556 = vmatpush2.xpose.msra.mxu0 0.0
    %5557 = vmatprep.subr.mxu0 0.0
    %5558 = vmatpush2.xpose.msra.mxu0 0.0
    %5559 = vmatprep.subr.mxu0 0.0
    %5560 = vmatpush2.xpose.msra.mxu0 0.0
    %5561 = vmatprep.subr.mxu0 0.0
    %5562 = vmatpush2.xpose.msra.mxu0 0.0
    %5563 = vmatprep.subr.mxu0 0.0
    %5564 = vmatpush2.xpose.msra.mxu0 0.0
    %5565 = vmatprep.subr.mxu0 0.0
    %5566 = vmatpush2.xpose.msra.mxu0 0.0
    %5567 = vmatprep.subr.mxu0 0.0
    %5568 = vmatpush2.xpose.msra.mxu0 0.0
    %5569 = vmatprep.mubr.f32.mxu0 0.0
    %5570 = vmatmul.mubr.f32.gmra.mxu0 %v5499
    %v5571 = vpop.f32.mrf.mxu0
    %v5572 = vadd.f32 0.0, %v5571
    %v5573 = vpop.f32.mrf.mxu0
    %5574 = vdwg.mxu0
    %v5575 = vmul.f32 %v5490, 0.35355338
    %v5576 = vmul.f32 %v5572, 0.35355338
    %v5577 = vsel %vm679, %v5575, -inf
    %5578 = vmax.xlane.f32.xlu0 %v5577
    %v5579 = vpop.xlane.xlu0 %5578
    %v5580 = vsel %vm679, %v5576, -inf
    %5581 = vmax.xlane.f32.xlu0 %v5580
    %v5582 = vpop.xlane.xlu0 %5581
    %v5583 = vsub.f32 %v5575, %v5579
    %v5584 = vsub.f32 %v5576, %v5582
    %v5585 = vmul.f32 %v5583, 1.442695
    %v5586 = vpow.pop %v5585
    %v5587 = vmul.f32 %v5584, 1.442695
    %v5588 = vpow.pop %v5587
    %v5589 = vsel %vm679, %v5586, 0.0
    %5590 = vadd.xlane.f32.xlu0 %v5589
    %v5591 = vpop.xlane.xlu0 %5590
    %v5592 = vsel %vm679, %v5588, 0.0
    %5593 = vadd.xlane.f32.xlu0 %v5592
    %v5594 = vpop.xlane.xlu0 %5593
    %5595 = vrot.lane.b32.xlu0 %v5052, 88
    %v5596 = vpop.permute.xlu0 %5595
    %5597 = vrot.lane.b32.xlu0 %v5057, 88
    %v5598 = vpop.permute.xlu0 %5597
    %v5602 = vsel %vm679, %v5586, 0
    %5604 = vmatprep.subr.mxu0 0.0
    %5605 = vmatpush1.msra.mxu0 0.0
    %5606 = vmatprep.subr.mxu0 0.0
    %5607 = vmatpush1.msra.mxu0 0.0
    %5608 = vmatprep.subr.mxu0 0.0
    %5609 = vmatpush1.msra.mxu0 0.0
    %5610 = vmatprep.subr.mxu0 0.0
    %5611 = vmatpush1.msra.mxu0 0.0
    %5612 = vmatprep.subr.mxu0 0.0
    %5613 = vmatpush1.msra.mxu0 0.0
    %5614 = vmatprep.subr.mxu0 0.0
    %5615 = vmatpush1.msra.mxu0 0.0
    %5616 = vmatprep.subr.mxu0 0.0
    %5617 = vmatpush1.msra.mxu0 0.0
    %5618 = vmatprep.subr.mxu0 0.0
    %5619 = vmatpush1.msra.mxu0 0.0
    %5620 = vmatprep.subr.mxu0 0.0
    %5621 = vmatpush1.msra.mxu0 0.0
    %5622 = vmatprep.subr.mxu0 0.0
    %5623 = vmatpush1.msra.mxu0 0.0
    %5624 = vmatprep.subr.mxu0 0.0
    %5625 = vmatpush1.msra.mxu0 0.0
    %5626 = vmatprep.subr.mxu0 0.0
    %5627 = vmatpush1.msra.mxu0 0.0
    %5628 = vmatprep.subr.mxu0 0.0
    %5629 = vmatpush1.msra.mxu0 0.0
    %5630 = vmatprep.subr.mxu0 0.0
    %5631 = vmatpush1.msra.mxu0 0.0
    %5632 = vmatprep.subr.mxu0 0.0
    %5633 = vmatpush1.msra.mxu0 %v5598
    %5634 = vmatprep.subr.mxu0 0.0
    %5635 = vmatpush1.msra.mxu0 %v5596
    %5636 = vmatprep.subr.mxu0 0.0
    %5637 = vmatpush2.msra.mxu0 0.0
    %5638 = vmatprep.subr.mxu0 0.0
    %5639 = vmatpush2.msra.mxu0 0.0
    %5640 = vmatprep.subr.mxu0 0.0
    %5641 = vmatpush2.msra.mxu0 0.0
    %5642 = vmatprep.subr.mxu0 0.0
    %5643 = vmatpush2.msra.mxu0 0.0
    %5644 = vmatprep.subr.mxu0 0.0
    %5645 = vmatpush2.msra.mxu0 0.0
    %5646 = vmatprep.subr.mxu0 0.0
    %5647 = vmatpush2.msra.mxu0 0.0
    %5648 = vmatprep.subr.mxu0 0.0
    %5649 = vmatpush2.msra.mxu0 0.0
    %5650 = vmatprep.subr.mxu0 0.0
    %5651 = vmatpush2.msra.mxu0 0.0
    %5652 = vmatprep.subr.mxu0 0.0
    %5653 = vmatpush2.msra.mxu0 0.0
    %5654 = vmatprep.subr.mxu0 0.0
    %5655 = vmatpush2.msra.mxu0 0.0
    %5656 = vmatprep.subr.mxu0 0.0
    %5657 = vmatpush2.msra.mxu0 0.0
    %5658 = vmatprep.subr.mxu0 0.0
    %5659 = vmatpush2.msra.mxu0 0.0
    %5660 = vmatprep.subr.mxu0 0.0
    %5661 = vmatpush2.msra.mxu0 0.0
    %5662 = vmatprep.subr.mxu0 0.0
    %5663 = vmatpush2.msra.mxu0 0.0
    %5664 = vmatprep.subr.mxu0 0.0
    %5665 = vmatpush2.msra.mxu0 0.0
    %5666 = vmatprep.subr.mxu0 0.0
    %5667 = vmatpush2.msra.mxu0 0.0
    %5668 = vmatprep.mubr.f32.mxu0 0.0
    %5669 = vmatmul.mubr.f32.gmra.mxu0 %v5602
    %v5670 = vpop.f32.mrf.mxu0
    %v5671 = vadd.f32 0.0, %v5670
    %v5672 = vpop.f32.mrf.mxu0
    %5673 = vdwg.mxu0
    %5674 = vrot.lane.b32.xlu0 %v5062, 88
    %v5675 = vpop.permute.xlu0 %5674
    %5676 = vrot.lane.b32.xlu0 %v5067, 88
    %v5677 = vpop.permute.xlu0 %5676
    %v5681 = vsel %vm679, %v5588, 0
    %5683 = vmatprep.subr.mxu0 0.0
    %5684 = vmatpush1.msra.mxu0 0.0
    %5685 = vmatprep.subr.mxu0 0.0
    %5686 = vmatpush1.msra.mxu0 0.0
    %5687 = vmatprep.subr.mxu0 0.0
    %5688 = vmatpush1.msra.mxu0 0.0
    %5689 = vmatprep.subr.mxu0 0.0
    %5690 = vmatpush1.msra.mxu0 0.0
    %5691 = vmatprep.subr.mxu0 0.0
    %5692 = vmatpush1.msra.mxu0 0.0
    %5693 = vmatprep.subr.mxu0 0.0
    %5694 = vmatpush1.msra.mxu0 0.0
    %5695 = vmatprep.subr.mxu0 0.0
    %5696 = vmatpush1.msra.mxu0 0.0
    %5697 = vmatprep.subr.mxu0 0.0
    %5698 = vmatpush1.msra.mxu0 0.0
    %5699 = vmatprep.subr.mxu0 0.0
    %5700 = vmatpush1.msra.mxu0 0.0
    %5701 = vmatprep.subr.mxu0 0.0
    %5702 = vmatpush1.msra.mxu0 0.0
    %5703 = vmatprep.subr.mxu0 0.0
    %5704 = vmatpush1.msra.mxu0 0.0
    %5705 = vmatprep.subr.mxu0 0.0
    %5706 = vmatpush1.msra.mxu0 0.0
    %5707 = vmatprep.subr.mxu0 0.0
    %5708 = vmatpush1.msra.mxu0 0.0
    %5709 = vmatprep.subr.mxu0 0.0
    %5710 = vmatpush1.msra.mxu0 0.0
    %5711 = vmatprep.subr.mxu0 0.0
    %5712 = vmatpush1.msra.mxu0 %v5677
    %5713 = vmatprep.subr.mxu0 0.0
    %5714 = vmatpush1.msra.mxu0 %v5675
    %5715 = vmatprep.subr.mxu0 0.0
    %5716 = vmatpush2.msra.mxu0 0.0
    %5717 = vmatprep.subr.mxu0 0.0
    %5718 = vmatpush2.msra.mxu0 0.0
    %5719 = vmatprep.subr.mxu0 0.0
    %5720 = vmatpush2.msra.mxu0 0.0
    %5721 = vmatprep.subr.mxu0 0.0
    %5722 = vmatpush2.msra.mxu0 0.0
    %5723 = vmatprep.subr.mxu0 0.0
    %5724 = vmatpush2.msra.mxu0 0.0
    %5725 = vmatprep.subr.mxu0 0.0
    %5726 = vmatpush2.msra.mxu0 0.0
    %5727 = vmatprep.subr.mxu0 0.0
    %5728 = vmatpush2.msra.mxu0 0.0
    %5729 = vmatprep.subr.mxu0 0.0
    %5730 = vmatpush2.msra.mxu0 0.0
    %5731 = vmatprep.subr.mxu0 0.0
    %5732 = vmatpush2.msra.mxu0 0.0
    %5733 = vmatprep.subr.mxu0 0.0
    %5734 = vmatpush2.msra.mxu0 0.0
    %5735 = vmatprep.subr.mxu0 0.0
    %5736 = vmatpush2.msra.mxu0 0.0
    %5737 = vmatprep.subr.mxu0 0.0
    %5738 = vmatpush2.msra.mxu0 0.0
    %5739 = vmatprep.subr.mxu0 0.0
    %5740 = vmatpush2.msra.mxu0 0.0
    %5741 = vmatprep.subr.mxu0 0.0
    %5742 = vmatpush2.msra.mxu0 0.0
    %5743 = vmatprep.subr.mxu0 0.0
    %5744 = vmatpush2.msra.mxu0 0.0
    %5745 = vmatprep.subr.mxu0 0.0
    %5746 = vmatpush2.msra.mxu0 0.0
    %5747 = vmatprep.mubr.f32.mxu0 0.0
    %5748 = vmatmul.mubr.f32.gmra.mxu0 %v5681
    %v5749 = vpop.f32.mrf.mxu0
    %v5750 = vadd.f32 0.0, %v5749
    %v5751 = vpop.f32.mrf.mxu0
    %5752 = vdwg.mxu0
    %v5753 = vrcp.pop %v5591
    %v5754 = vrcp.pop %v5594
    %v5755 = vmul.f32 %v5671, %v5753
    %v5756 = vmul.f32 %v5750, %v5754
    %v5757 = vld [vmem:[%s19 + $0x8] sm:$0xff]
    %v5759 = vsel %vm502, %v5755, 0
    %v5762 = vsel %vm502, %v5756, 0
    %5764 = vmatprep.subr.mxu0 0.0
    %5765 = vmatpush1.msra.mxu0 0.0
    %5766 = vmatprep.subr.mxu0 0.0
    %5767 = vmatpush1.msra.mxu0 0.0
    %5768 = vmatprep.subr.mxu0 0.0
    %5769 = vmatpush1.msra.mxu0 0.0
    %5770 = vmatprep.subr.mxu0 0.0
    %5771 = vmatpush1.msra.mxu0 0.0
    %5772 = vmatprep.subr.mxu0 0.0
    %5773 = vmatpush1.msra.mxu0 0.0
    %5774 = vmatprep.subr.mxu0 0.0
    %5775 = vmatpush1.msra.mxu0 0.0
    %5776 = vmatprep.subr.mxu0 0.0
    %5777 = vmatpush1.msra.mxu0 0.0
    %5778 = vmatprep.subr.mxu0 0.0
    %5779 = vmatpush1.msra.mxu0 0.0
    %5780 = vmatprep.subr.mxu0 0.0
    %5781 = vmatpush1.msra.mxu0 0.0
    %5782 = vmatprep.subr.mxu0 0.0
    %5783 = vmatpush1.msra.mxu0 0.0
    %5784 = vmatprep.subr.mxu0 0.0
    %5785 = vmatpush1.msra.mxu0 0.0
    %5786 = vmatprep.subr.mxu0 0.0
    %5787 = vmatpush1.msra.mxu0 0.0
    %5788 = vmatprep.subr.mxu0 0.0
    %5789 = vmatpush1.msra.mxu0 0.0
    %5790 = vmatprep.subr.mxu0 0.0
    %5791 = vmatpush1.msra.mxu0 0.0
    %5792 = vmatprep.subr.mxu0 0.0
    %5793 = vmatpush1.msra.mxu0 0.0
    %5794 = vmatprep.subr.mxu0 0.0
    %5795 = vmatpush1.msra.mxu0 %v5757
    %5796 = vmatprep.subr.mxu0 0.0
    %5797 = vmatpush2.msra.mxu0 0.0
    %5798 = vmatprep.subr.mxu0 0.0
    %5799 = vmatpush2.msra.mxu0 0.0
    %5800 = vmatprep.subr.mxu0 0.0
    %5801 = vmatpush2.msra.mxu0 0.0
    %5802 = vmatprep.subr.mxu0 0.0
    %5803 = vmatpush2.msra.mxu0 0.0
    %5804 = vmatprep.subr.mxu0 0.0
    %5805 = vmatpush2.msra.mxu0 0.0
    %5806 = vmatprep.subr.mxu0 0.0
    %5807 = vmatpush2.msra.mxu0 0.0
    %5808 = vmatprep.subr.mxu0 0.0
    %5809 = vmatpush2.msra.mxu0 0.0
    %5810 = vmatprep.subr.mxu0 0.0
    %5811 = vmatpush2.msra.mxu0 0.0
    %5812 = vmatprep.subr.mxu0 0.0
    %5813 = vmatpush2.msra.mxu0 0.0
    %5814 = vmatprep.subr.mxu0 0.0
    %5815 = vmatpush2.msra.mxu0 0.0
    %5816 = vmatprep.subr.mxu0 0.0
    %5817 = vmatpush2.msra.mxu0 0.0
    %5818 = vmatprep.subr.mxu0 0.0
    %5819 = vmatpush2.msra.mxu0 0.0
    %5820 = vmatprep.subr.mxu0 0.0
    %5821 = vmatpush2.msra.mxu0 0.0
    %5822 = vmatprep.subr.mxu0 0.0
    %5823 = vmatpush2.msra.mxu0 0.0
    %5824 = vmatprep.subr.mxu0 0.0
    %5825 = vmatpush2.msra.mxu0 0.0
    %5826 = vmatprep.subr.mxu0 0.0
    %5827 = vmatpush2.msra.mxu0 0.0
    %5828 = vmatprep.mubr.f32.mxu0 0.0
    %5829 = vmatmul.mubr.f32.gmra.mxu0 %v5759
    %v5830 = vpop.f32.mrf.mxu0
    %v5831 = vadd.f32 0.0, %v5830
    %v5832 = vpop.f32.mrf.mxu0
    %5833 = vmatprep.mubr.f32.mxu0 0.0
    %5834 = vmatmul.mubr.f32.gmra.mxu0 %v5762
    %v5835 = vpop.f32.mrf.mxu0
    %v5836 = vadd.f32 0.0, %v5835
    %v5837 = vpop.f32.mrf.mxu0
    %5838 = vdwg.mxu0
    %v5840 = vsel %vm502, %v5408, 0
    %v5843 = vsel %vm502, %v5409, 0
    %5845 = vmatprep.subr.mxu0 0.0
    %5846 = vmatpush1.msra.mxu0 0.0
    %5847 = vmatprep.subr.mxu0 0.0
    %5848 = vmatpush1.msra.mxu0 0.0
    %5849 = vmatprep.subr.mxu0 0.0
    %5850 = vmatpush1.msra.mxu0 0.0
    %5851 = vmatprep.subr.mxu0 0.0
    %5852 = vmatpush1.msra.mxu0 0.0
    %5853 = vmatprep.subr.mxu0 0.0
    %5854 = vmatpush1.msra.mxu0 0.0
    %5855 = vmatprep.subr.mxu0 0.0
    %5856 = vmatpush1.msra.mxu0 0.0
    %5857 = vmatprep.subr.mxu0 0.0
    %5858 = vmatpush1.msra.mxu0 0.0
    %5859 = vmatprep.subr.mxu0 0.0
    %5860 = vmatpush1.msra.mxu0 0.0
    %5861 = vmatprep.subr.mxu0 0.0
    %5862 = vmatpush1.msra.mxu0 0.0
    %5863 = vmatprep.subr.mxu0 0.0
    %5864 = vmatpush1.msra.mxu0 0.0
    %5865 = vmatprep.subr.mxu0 0.0
    %5866 = vmatpush1.msra.mxu0 0.0
    %5867 = vmatprep.subr.mxu0 0.0
    %5868 = vmatpush1.msra.mxu0 0.0
    %5869 = vmatprep.subr.mxu0 0.0
    %5870 = vmatpush1.msra.mxu0 0.0
    %5871 = vmatprep.subr.mxu0 0.0
    %5872 = vmatpush1.msra.mxu0 0.0
    %5873 = vmatprep.subr.mxu0 0.0
    %5874 = vmatpush1.msra.mxu0 0.0
    %5875 = vmatprep.subr.mxu0 0.0
    %5876 = vmatpush1.msra.mxu0 %v5410
    %5877 = vmatprep.subr.mxu0 0.0
    %5878 = vmatpush2.msra.mxu0 0.0
    %5879 = vmatprep.subr.mxu0 0.0
    %5880 = vmatpush2.msra.mxu0 0.0
    %5881 = vmatprep.subr.mxu0 0.0
    %5882 = vmatpush2.msra.mxu0 0.0
    %5883 = vmatprep.subr.mxu0 0.0
    %5884 = vmatpush2.msra.mxu0 0.0
    %5885 = vmatprep.subr.mxu0 0.0
    %5886 = vmatpush2.msra.mxu0 0.0
    %5887 = vmatprep.subr.mxu0 0.0
    %5888 = vmatpush2.msra.mxu0 0.0
    %5889 = vmatprep.subr.mxu0 0.0
    %5890 = vmatpush2.msra.mxu0 0.0
    %5891 = vmatprep.subr.mxu0 0.0
    %5892 = vmatpush2.msra.mxu0 0.0
    %5893 = vmatprep.subr.mxu0 0.0
    %5894 = vmatpush2.msra.mxu0 0.0
    %5895 = vmatprep.subr.mxu0 0.0
    %5896 = vmatpush2.msra.mxu0 0.0
    %5897 = vmatprep.subr.mxu0 0.0
    %5898 = vmatpush2.msra.mxu0 0.0
    %5899 = vmatprep.subr.mxu0 0.0
    %5900 = vmatpush2.msra.mxu0 0.0
    %5901 = vmatprep.subr.mxu0 0.0
    %5902 = vmatpush2.msra.mxu0 0.0
    %5903 = vmatprep.subr.mxu0 0.0
    %5904 = vmatpush2.msra.mxu0 0.0
    %5905 = vmatprep.subr.mxu0 0.0
    %5906 = vmatpush2.msra.mxu0 0.0
    %5907 = vmatprep.subr.mxu0 0.0
    %5908 = vmatpush2.msra.mxu0 0.0
    %5909 = vmatprep.mubr.f32.mxu0 0.0
    %5910 = vmatmul.mubr.f32.gmra.mxu0 %v5840
    %v5911 = vpop.f32.mrf.mxu0
    %v5912 = vadd.f32 %v5831, %v5911
    %v5913 = vpop.f32.mrf.mxu0
    %5914 = vmatprep.mubr.f32.mxu0 0.0
    %5915 = vmatmul.mubr.f32.gmra.mxu0 %v5843
    %v5916 = vpop.f32.mrf.mxu0
    %v5917 = vadd.f32 %v5836, %v5916
    %v5918 = vpop.f32.mrf.mxu0
    %5919 = vdwg.mxu0
    %5920 = vrot.lane.b32.xlu0 %v4946, 112
    %v5921 = vpop.permute.xlu0 %5920
    %5922 = vrot.lane.b32.xlu0 %v5052, 112
    %v5923 = vpop.permute.xlu0 %5922
    %5924 = vrot.lane.b32.xlu0 %v5057, 112
    %v5925 = vpop.permute.xlu0 %5924
    %v5926 = vsel %vm502, %v5921, 0
    %v5928 = vsel %vm502, %v5923, 0
    %v5930 = vsel %vm502, %v5925, 0
    %5932 = vmatprep.subr.mxu0 0.0
    %5933 = vmatpush1.xpose.msra.mxu0 0.0
    %5934 = vmatprep.subr.mxu0 0.0
    %5935 = vmatpush1.xpose.msra.mxu0 0.0
    %5936 = vmatprep.subr.mxu0 0.0
    %5937 = vmatpush1.xpose.msra.mxu0 0.0
    %5938 = vmatprep.subr.mxu0 0.0
    %5939 = vmatpush1.xpose.msra.mxu0 0.0
    %5940 = vmatprep.subr.mxu0 0.0
    %5941 = vmatpush1.xpose.msra.mxu0 0.0
    %5942 = vmatprep.subr.mxu0 0.0
    %5943 = vmatpush1.xpose.msra.mxu0 0.0
    %5944 = vmatprep.subr.mxu0 0.0
    %5945 = vmatpush1.xpose.msra.mxu0 0.0
    %5946 = vmatprep.subr.mxu0 0.0
    %5947 = vmatpush1.xpose.msra.mxu0 0.0
    %5948 = vmatprep.subr.mxu0 0.0
    %5949 = vmatpush1.xpose.msra.mxu0 0.0
    %5950 = vmatprep.subr.mxu0 0.0
    %5951 = vmatpush1.xpose.msra.mxu0 0.0
    %5952 = vmatprep.subr.mxu0 0.0
    %5953 = vmatpush1.xpose.msra.mxu0 0.0
    %5954 = vmatprep.subr.mxu0 0.0
    %5955 = vmatpush1.xpose.msra.mxu0 0.0
    %5956 = vmatprep.subr.mxu0 0.0
    %5957 = vmatpush1.xpose.msra.mxu0 0.0
    %5958 = vmatprep.subr.mxu0 0.0
    %5959 = vmatpush1.xpose.msra.mxu0 0.0
    %5960 = vmatprep.subr.mxu0 0.0
    %5961 = vmatpush1.xpose.msra.mxu0 %v5930
    %5962 = vmatprep.subr.mxu0 0.0
    %5963 = vmatpush1.xpose.msra.mxu0 %v5928
    %5964 = vmatprep.subr.mxu0 0.0
    %5965 = vmatpush2.xpose.msra.mxu0 0.0
    %5966 = vmatprep.subr.mxu0 0.0
    %5967 = vmatpush2.xpose.msra.mxu0 0.0
    %5968 = vmatprep.subr.mxu0 0.0
    %5969 = vmatpush2.xpose.msra.mxu0 0.0
    %5970 = vmatprep.subr.mxu0 0.0
    %5971 = vmatpush2.xpose.msra.mxu0 0.0
    %5972 = vmatprep.subr.mxu0 0.0
    %5973 = vmatpush2.xpose.msra.mxu0 0.0
    %5974 = vmatprep.subr.mxu0 0.0
    %5975 = vmatpush2.xpose.msra.mxu0 0.0
    %5976 = vmatprep.subr.mxu0 0.0
    %5977 = vmatpush2.xpose.msra.mxu0 0.0
    %5978 = vmatprep.subr.mxu0 0.0
    %5979 = vmatpush2.xpose.msra.mxu0 0.0
    %5980 = vmatprep.subr.mxu0 0.0
    %5981 = vmatpush2.xpose.msra.mxu0 0.0
    %5982 = vmatprep.subr.mxu0 0.0
    %5983 = vmatpush2.xpose.msra.mxu0 0.0
    %5984 = vmatprep.subr.mxu0 0.0
    %5985 = vmatpush2.xpose.msra.mxu0 0.0
    %5986 = vmatprep.subr.mxu0 0.0
    %5987 = vmatpush2.xpose.msra.mxu0 0.0
    %5988 = vmatprep.subr.mxu0 0.0
    %5989 = vmatpush2.xpose.msra.mxu0 0.0
    %5990 = vmatprep.subr.mxu0 0.0
    %5991 = vmatpush2.xpose.msra.mxu0 0.0
    %5992 = vmatprep.subr.mxu0 0.0
    %5993 = vmatpush2.xpose.msra.mxu0 0.0
    %5994 = vmatprep.subr.mxu0 0.0
    %5995 = vmatpush2.xpose.msra.mxu0 0.0
    %5996 = vmatprep.mubr.f32.mxu0 0.0
    %5997 = vmatmul.mubr.f32.gmra.mxu0 %v5926
    %v5998 = vpop.f32.mrf.mxu0
    %v5999 = vadd.f32 0.0, %v5998
    %v6000 = vpop.f32.mrf.mxu0
    %6001 = vdwg.mxu0
    %6002 = vrot.lane.b32.xlu0 %v4951, 112
    %v6003 = vpop.permute.xlu0 %6002
    %6004 = vrot.lane.b32.xlu0 %v5062, 112
    %v6005 = vpop.permute.xlu0 %6004
    %6006 = vrot.lane.b32.xlu0 %v5067, 112
    %v6007 = vpop.permute.xlu0 %6006
    %v6008 = vsel %vm502, %v6003, 0
    %v6010 = vsel %vm502, %v6005, 0
    %v6012 = vsel %vm502, %v6007, 0
    %6014 = vmatprep.subr.mxu0 0.0
    %6015 = vmatpush1.xpose.msra.mxu0 0.0
    %6016 = vmatprep.subr.mxu0 0.0
    %6017 = vmatpush1.xpose.msra.mxu0 0.0
    %6018 = vmatprep.subr.mxu0 0.0
    %6019 = vmatpush1.xpose.msra.mxu0 0.0
    %6020 = vmatprep.subr.mxu0 0.0
    %6021 = vmatpush1.xpose.msra.mxu0 0.0
    %6022 = vmatprep.subr.mxu0 0.0
    %6023 = vmatpush1.xpose.msra.mxu0 0.0
    %6024 = vmatprep.subr.mxu0 0.0
    %6025 = vmatpush1.xpose.msra.mxu0 0.0
    %6026 = vmatprep.subr.mxu0 0.0
    %6027 = vmatpush1.xpose.msra.mxu0 0.0
    %6028 = vmatprep.subr.mxu0 0.0
    %6029 = vmatpush1.xpose.msra.mxu0 0.0
    %6030 = vmatprep.subr.mxu0 0.0
    %6031 = vmatpush1.xpose.msra.mxu0 0.0
    %6032 = vmatprep.subr.mxu0 0.0
    %6033 = vmatpush1.xpose.msra.mxu0 0.0
    %6034 = vmatprep.subr.mxu0 0.0
    %6035 = vmatpush1.xpose.msra.mxu0 0.0
    %6036 = vmatprep.subr.mxu0 0.0
    %6037 = vmatpush1.xpose.msra.mxu0 0.0
    %6038 = vmatprep.subr.mxu0 0.0
    %6039 = vmatpush1.xpose.msra.mxu0 0.0
    %6040 = vmatprep.subr.mxu0 0.0
    %6041 = vmatpush1.xpose.msra.mxu0 0.0
    %6042 = vmatprep.subr.mxu0 0.0
    %6043 = vmatpush1.xpose.msra.mxu0 %v6012
    %6044 = vmatprep.subr.mxu0 0.0
    %6045 = vmatpush1.xpose.msra.mxu0 %v6010
    %6046 = vmatprep.subr.mxu0 0.0
    %6047 = vmatpush2.xpose.msra.mxu0 0.0
    %6048 = vmatprep.subr.mxu0 0.0
    %6049 = vmatpush2.xpose.msra.mxu0 0.0
    %6050 = vmatprep.subr.mxu0 0.0
    %6051 = vmatpush2.xpose.msra.mxu0 0.0
    %6052 = vmatprep.subr.mxu0 0.0
    %6053 = vmatpush2.xpose.msra.mxu0 0.0
    %6054 = vmatprep.subr.mxu0 0.0
    %6055 = vmatpush2.xpose.msra.mxu0 0.0
    %6056 = vmatprep.subr.mxu0 0.0
    %6057 = vmatpush2.xpose.msra.mxu0 0.0
    %6058 = vmatprep.subr.mxu0 0.0
    %6059 = vmatpush2.xpose.msra.mxu0 0.0
    %6060 = vmatprep.subr.mxu0 0.0
    %6061 = vmatpush2.xpose.msra.mxu0 0.0
    %6062 = vmatprep.subr.mxu0 0.0
    %6063 = vmatpush2.xpose.msra.mxu0 0.0
    %6064 = vmatprep.subr.mxu0 0.0
    %6065 = vmatpush2.xpose.msra.mxu0 0.0
    %6066 = vmatprep.subr.mxu0 0.0
    %6067 = vmatpush2.xpose.msra.mxu0 0.0
    %6068 = vmatprep.subr.mxu0 0.0
    %6069 = vmatpush2.xpose.msra.mxu0 0.0
    %6070 = vmatprep.subr.mxu0 0.0
    %6071 = vmatpush2.xpose.msra.mxu0 0.0
    %6072 = vmatprep.subr.mxu0 0.0
    %6073 = vmatpush2.xpose.msra.mxu0 0.0
    %6074 = vmatprep.subr.mxu0 0.0
    %6075 = vmatpush2.xpose.msra.mxu0 0.0
    %6076 = vmatprep.subr.mxu0 0.0
    %6077 = vmatpush2.xpose.msra.mxu0 0.0
    %6078 = vmatprep.mubr.f32.mxu0 0.0
    %6079 = vmatmul.mubr.f32.gmra.mxu0 %v6008
    %v6080 = vpop.f32.mrf.mxu0
    %v6081 = vadd.f32 0.0, %v6080
    %v6082 = vpop.f32.mrf.mxu0
    %6083 = vdwg.mxu0
    %v6084 = vmul.f32 %v5999, 0.35355338
    %v6085 = vmul.f32 %v6081, 0.35355338
    %v6086 = vsel %vm679, %v6084, -inf
    %6087 = vmax.xlane.f32.xlu0 %v6086
    %v6088 = vpop.xlane.xlu0 %6087
    %v6089 = vsel %vm679, %v6085, -inf
    %6090 = vmax.xlane.f32.xlu0 %v6089
    %v6091 = vpop.xlane.xlu0 %6090
    %v6092 = vsub.f32 %v6084, %v6088
    %v6093 = vsub.f32 %v6085, %v6091
    %v6094 = vmul.f32 %v6092, 1.442695
    %v6095 = vpow.pop %v6094
    %v6096 = vmul.f32 %v6093, 1.442695
    %v6097 = vpow.pop %v6096
    %v6098 = vsel %vm679, %v6095, 0.0
    %6099 = vadd.xlane.f32.xlu0 %v6098
    %v6100 = vpop.xlane.xlu0 %6099
    %v6101 = vsel %vm679, %v6097, 0.0
    %6102 = vadd.xlane.f32.xlu0 %v6101
    %v6103 = vpop.xlane.xlu0 %6102
    %6104 = vrot.lane.b32.xlu0 %v5052, 80
    %v6105 = vpop.permute.xlu0 %6104
    %6106 = vrot.lane.b32.xlu0 %v5057, 80
    %v6107 = vpop.permute.xlu0 %6106
    %v6111 = vsel %vm679, %v6095, 0
    %6113 = vmatprep.subr.mxu0 0.0
    %6114 = vmatpush1.msra.mxu0 0.0
    %6115 = vmatprep.subr.mxu0 0.0
    %6116 = vmatpush1.msra.mxu0 0.0
    %6117 = vmatprep.subr.mxu0 0.0
    %6118 = vmatpush1.msra.mxu0 0.0
    %6119 = vmatprep.subr.mxu0 0.0
    %6120 = vmatpush1.msra.mxu0 0.0
    %6121 = vmatprep.subr.mxu0 0.0
    %6122 = vmatpush1.msra.mxu0 0.0
    %6123 = vmatprep.subr.mxu0 0.0
    %6124 = vmatpush1.msra.mxu0 0.0
    %6125 = vmatprep.subr.mxu0 0.0
    %6126 = vmatpush1.msra.mxu0 0.0
    %6127 = vmatprep.subr.mxu0 0.0
    %6128 = vmatpush1.msra.mxu0 0.0
    %6129 = vmatprep.subr.mxu0 0.0
    %6130 = vmatpush1.msra.mxu0 0.0
    %6131 = vmatprep.subr.mxu0 0.0
    %6132 = vmatpush1.msra.mxu0 0.0
    %6133 = vmatprep.subr.mxu0 0.0
    %6134 = vmatpush1.msra.mxu0 0.0
    %6135 = vmatprep.subr.mxu0 0.0
    %6136 = vmatpush1.msra.mxu0 0.0
    %6137 = vmatprep.subr.mxu0 0.0
    %6138 = vmatpush1.msra.mxu0 0.0
    %6139 = vmatprep.subr.mxu0 0.0
    %6140 = vmatpush1.msra.mxu0 0.0
    %6141 = vmatprep.subr.mxu0 0.0
    %6142 = vmatpush1.msra.mxu0 %v6107
    %6143 = vmatprep.subr.mxu0 0.0
    %6144 = vmatpush1.msra.mxu0 %v6105
    %6145 = vmatprep.subr.mxu0 0.0
    %6146 = vmatpush2.msra.mxu0 0.0
    %6147 = vmatprep.subr.mxu0 0.0
    %6148 = vmatpush2.msra.mxu0 0.0
    %6149 = vmatprep.subr.mxu0 0.0
    %6150 = vmatpush2.msra.mxu0 0.0
    %6151 = vmatprep.subr.mxu0 0.0
    %6152 = vmatpush2.msra.mxu0 0.0
    %6153 = vmatprep.subr.mxu0 0.0
    %6154 = vmatpush2.msra.mxu0 0.0
    %6155 = vmatprep.subr.mxu0 0.0
    %6156 = vmatpush2.msra.mxu0 0.0
    %6157 = vmatprep.subr.mxu0 0.0
    %6158 = vmatpush2.msra.mxu0 0.0
    %6159 = vmatprep.subr.mxu0 0.0
    %6160 = vmatpush2.msra.mxu0 0.0
    %6161 = vmatprep.subr.mxu0 0.0
    %6162 = vmatpush2.msra.mxu0 0.0
    %6163 = vmatprep.subr.mxu0 0.0
    %6164 = vmatpush2.msra.mxu0 0.0
    %6165 = vmatprep.subr.mxu0 0.0
    %6166 = vmatpush2.msra.mxu0 0.0
    %6167 = vmatprep.subr.mxu0 0.0
    %6168 = vmatpush2.msra.mxu0 0.0
    %6169 = vmatprep.subr.mxu0 0.0
    %6170 = vmatpush2.msra.mxu0 0.0
    %6171 = vmatprep.subr.mxu0 0.0
    %6172 = vmatpush2.msra.mxu0 0.0
    %6173 = vmatprep.subr.mxu0 0.0
    %6174 = vmatpush2.msra.mxu0 0.0
    %6175 = vmatprep.subr.mxu0 0.0
    %6176 = vmatpush2.msra.mxu0 0.0
    %6177 = vmatprep.mubr.f32.mxu0 0.0
    %6178 = vmatmul.mubr.f32.gmra.mxu0 %v6111
    %v6179 = vpop.f32.mrf.mxu0
    %v6180 = vadd.f32 0.0, %v6179
    %v6181 = vpop.f32.mrf.mxu0
    %6182 = vdwg.mxu0
    %6183 = vrot.lane.b32.xlu0 %v5062, 80
    %v6184 = vpop.permute.xlu0 %6183
    %6185 = vrot.lane.b32.xlu0 %v5067, 80
    %v6186 = vpop.permute.xlu0 %6185
    %v6190 = vsel %vm679, %v6097, 0
    %6192 = vmatprep.subr.mxu0 0.0
    %6193 = vmatpush1.msra.mxu0 0.0
    %6194 = vmatprep.subr.mxu0 0.0
    %6195 = vmatpush1.msra.mxu0 0.0
    %6196 = vmatprep.subr.mxu0 0.0
    %6197 = vmatpush1.msra.mxu0 0.0
    %6198 = vmatprep.subr.mxu0 0.0
    %6199 = vmatpush1.msra.mxu0 0.0
    %6200 = vmatprep.subr.mxu0 0.0
    %6201 = vmatpush1.msra.mxu0 0.0
    %6202 = vmatprep.subr.mxu0 0.0
    %6203 = vmatpush1.msra.mxu0 0.0
    %6204 = vmatprep.subr.mxu0 0.0
    %6205 = vmatpush1.msra.mxu0 0.0
    %6206 = vmatprep.subr.mxu0 0.0
    %6207 = vmatpush1.msra.mxu0 0.0
    %6208 = vmatprep.subr.mxu0 0.0
    %6209 = vmatpush1.msra.mxu0 0.0
    %6210 = vmatprep.subr.mxu0 0.0
    %6211 = vmatpush1.msra.mxu0 0.0
    %6212 = vmatprep.subr.mxu0 0.0
    %6213 = vmatpush1.msra.mxu0 0.0
    %6214 = vmatprep.subr.mxu0 0.0
    %6215 = vmatpush1.msra.mxu0 0.0
    %6216 = vmatprep.subr.mxu0 0.0
    %6217 = vmatpush1.msra.mxu0 0.0
    %6218 = vmatprep.subr.mxu0 0.0
    %6219 = vmatpush1.msra.mxu0 0.0
    %6220 = vmatprep.subr.mxu0 0.0
    %6221 = vmatpush1.msra.mxu0 %v6186
    %6222 = vmatprep.subr.mxu0 0.0
    %6223 = vmatpush1.msra.mxu0 %v6184
    %6224 = vmatprep.subr.mxu0 0.0
    %6225 = vmatpush2.msra.mxu0 0.0
    %6226 = vmatprep.subr.mxu0 0.0
    %6227 = vmatpush2.msra.mxu0 0.0
    %6228 = vmatprep.subr.mxu0 0.0
    %6229 = vmatpush2.msra.mxu0 0.0
    %6230 = vmatprep.subr.mxu0 0.0
    %6231 = vmatpush2.msra.mxu0 0.0
    %6232 = vmatprep.subr.mxu0 0.0
    %6233 = vmatpush2.msra.mxu0 0.0
    %6234 = vmatprep.subr.mxu0 0.0
    %6235 = vmatpush2.msra.mxu0 0.0
    %6236 = vmatprep.subr.mxu0 0.0
    %6237 = vmatpush2.msra.mxu0 0.0
    %6238 = vmatprep.subr.mxu0 0.0
    %6239 = vmatpush2.msra.mxu0 0.0
    %6240 = vmatprep.subr.mxu0 0.0
    %6241 = vmatpush2.msra.mxu0 0.0
    %6242 = vmatprep.subr.mxu0 0.0
    %6243 = vmatpush2.msra.mxu0 0.0
    %6244 = vmatprep.subr.mxu0 0.0
    %6245 = vmatpush2.msra.mxu0 0.0
    %6246 = vmatprep.subr.mxu0 0.0
    %6247 = vmatpush2.msra.mxu0 0.0
    %6248 = vmatprep.subr.mxu0 0.0
    %6249 = vmatpush2.msra.mxu0 0.0
    %6250 = vmatprep.subr.mxu0 0.0
    %6251 = vmatpush2.msra.mxu0 0.0
    %6252 = vmatprep.subr.mxu0 0.0
    %6253 = vmatpush2.msra.mxu0 0.0
    %6254 = vmatprep.subr.mxu0 0.0
    %6255 = vmatpush2.msra.mxu0 0.0
    %6256 = vmatprep.mubr.f32.mxu0 0.0
    %6257 = vmatmul.mubr.f32.gmra.mxu0 %v6190
    %v6258 = vpop.f32.mrf.mxu0
    %v6259 = vadd.f32 0.0, %v6258
    %v6260 = vpop.f32.mrf.mxu0
    %6261 = vdwg.mxu0
    %v6262 = vrcp.pop %v6100
    %v6263 = vrcp.pop %v6103
    %v6264 = vmul.f32 %v6180, %v6262
    %v6265 = vmul.f32 %v6259, %v6263
    %v6266 = vld [vmem:[%s19 + $0x10] sm:$0xff]
    %v6268 = vsel %vm502, %v6264, 0
    %v6271 = vsel %vm502, %v6265, 0
    %6273 = vmatprep.subr.mxu0 0.0
    %6274 = vmatpush1.msra.mxu0 0.0
    %6275 = vmatprep.subr.mxu0 0.0
    %6276 = vmatpush1.msra.mxu0 0.0
    %6277 = vmatprep.subr.mxu0 0.0
    %6278 = vmatpush1.msra.mxu0 0.0
    %6279 = vmatprep.subr.mxu0 0.0
    %6280 = vmatpush1.msra.mxu0 0.0
    %6281 = vmatprep.subr.mxu0 0.0
    %6282 = vmatpush1.msra.mxu0 0.0
    %6283 = vmatprep.subr.mxu0 0.0
    %6284 = vmatpush1.msra.mxu0 0.0
    %6285 = vmatprep.subr.mxu0 0.0
    %6286 = vmatpush1.msra.mxu0 0.0
    %6287 = vmatprep.subr.mxu0 0.0
    %6288 = vmatpush1.msra.mxu0 0.0
    %6289 = vmatprep.subr.mxu0 0.0
    %6290 = vmatpush1.msra.mxu0 0.0
    %6291 = vmatprep.subr.mxu0 0.0
    %6292 = vmatpush1.msra.mxu0 0.0
    %6293 = vmatprep.subr.mxu0 0.0
    %6294 = vmatpush1.msra.mxu0 0.0
    %6295 = vmatprep.subr.mxu0 0.0
    %6296 = vmatpush1.msra.mxu0 0.0
    %6297 = vmatprep.subr.mxu0 0.0
    %6298 = vmatpush1.msra.mxu0 0.0
    %6299 = vmatprep.subr.mxu0 0.0
    %6300 = vmatpush1.msra.mxu0 0.0
    %6301 = vmatprep.subr.mxu0 0.0
    %6302 = vmatpush1.msra.mxu0 0.0
    %6303 = vmatprep.subr.mxu0 0.0
    %6304 = vmatpush1.msra.mxu0 %v6266
    %6305 = vmatprep.subr.mxu0 0.0
    %6306 = vmatpush2.msra.mxu0 0.0
    %6307 = vmatprep.subr.mxu0 0.0
    %6308 = vmatpush2.msra.mxu0 0.0
    %6309 = vmatprep.subr.mxu0 0.0
    %6310 = vmatpush2.msra.mxu0 0.0
    %6311 = vmatprep.subr.mxu0 0.0
    %6312 = vmatpush2.msra.mxu0 0.0
    %6313 = vmatprep.subr.mxu0 0.0
    %6314 = vmatpush2.msra.mxu0 0.0
    %6315 = vmatprep.subr.mxu0 0.0
    %6316 = vmatpush2.msra.mxu0 0.0
    %6317 = vmatprep.subr.mxu0 0.0
    %6318 = vmatpush2.msra.mxu0 0.0
    %6319 = vmatprep.subr.mxu0 0.0
    %6320 = vmatpush2.msra.mxu0 0.0
    %6321 = vmatprep.subr.mxu0 0.0
    %6322 = vmatpush2.msra.mxu0 0.0
    %6323 = vmatprep.subr.mxu0 0.0
    %6324 = vmatpush2.msra.mxu0 0.0
    %6325 = vmatprep.subr.mxu0 0.0
    %6326 = vmatpush2.msra.mxu0 0.0
    %6327 = vmatprep.subr.mxu0 0.0
    %6328 = vmatpush2.msra.mxu0 0.0
    %6329 = vmatprep.subr.mxu0 0.0
    %6330 = vmatpush2.msra.mxu0 0.0
    %6331 = vmatprep.subr.mxu0 0.0
    %6332 = vmatpush2.msra.mxu0 0.0
    %6333 = vmatprep.subr.mxu0 0.0
    %6334 = vmatpush2.msra.mxu0 0.0
    %6335 = vmatprep.subr.mxu0 0.0
    %6336 = vmatpush2.msra.mxu0 0.0
    %6337 = vmatprep.mubr.f32.mxu0 0.0
    %6338 = vmatmul.mubr.f32.gmra.mxu0 %v6268
    %v6339 = vpop.f32.mrf.mxu0
    %v6340 = vadd.f32 0.0, %v6339
    %v6341 = vpop.f32.mrf.mxu0
    %6342 = vmatprep.mubr.f32.mxu0 0.0
    %6343 = vmatmul.mubr.f32.gmra.mxu0 %v6271
    %v6344 = vpop.f32.mrf.mxu0
    %v6345 = vadd.f32 0.0, %v6344
    %v6346 = vpop.f32.mrf.mxu0
    %6347 = vdwg.mxu0
    %v6348 = vadd.f32 %v5912, %v6340
    %v6349 = vadd.f32 %v5917, %v6345
    %6350 = vrot.lane.b32.xlu0 %v4946, 104
    %v6351 = vpop.permute.xlu0 %6350
    %6352 = vrot.lane.b32.xlu0 %v5052, 104
    %v6353 = vpop.permute.xlu0 %6352
    %6354 = vrot.lane.b32.xlu0 %v5057, 104
    %v6355 = vpop.permute.xlu0 %6354
    %v6356 = vsel %vm502, %v6351, 0
    %v6358 = vsel %vm502, %v6353, 0
    %v6360 = vsel %vm502, %v6355, 0
    %6362 = vmatprep.subr.mxu0 0.0
    %6363 = vmatpush1.xpose.msra.mxu0 0.0
    %6364 = vmatprep.subr.mxu0 0.0
    %6365 = vmatpush1.xpose.msra.mxu0 0.0
    %6366 = vmatprep.subr.mxu0 0.0
    %6367 = vmatpush1.xpose.msra.mxu0 0.0
    %6368 = vmatprep.subr.mxu0 0.0
    %6369 = vmatpush1.xpose.msra.mxu0 0.0
    %6370 = vmatprep.subr.mxu0 0.0
    %6371 = vmatpush1.xpose.msra.mxu0 0.0
    %6372 = vmatprep.subr.mxu0 0.0
    %6373 = vmatpush1.xpose.msra.mxu0 0.0
    %6374 = vmatprep.subr.mxu0 0.0
    %6375 = vmatpush1.xpose.msra.mxu0 0.0
    %6376 = vmatprep.subr.mxu0 0.0
    %6377 = vmatpush1.xpose.msra.mxu0 0.0
    %6378 = vmatprep.subr.mxu0 0.0
    %6379 = vmatpush1.xpose.msra.mxu0 0.0
    %6380 = vmatprep.subr.mxu0 0.0
    %6381 = vmatpush1.xpose.msra.mxu0 0.0
    %6382 = vmatprep.subr.mxu0 0.0
    %6383 = vmatpush1.xpose.msra.mxu0 0.0
    %6384 = vmatprep.subr.mxu0 0.0
    %6385 = vmatpush1.xpose.msra.mxu0 0.0
    %6386 = vmatprep.subr.mxu0 0.0
    %6387 = vmatpush1.xpose.msra.mxu0 0.0
    %6388 = vmatprep.subr.mxu0 0.0
    %6389 = vmatpush1.xpose.msra.mxu0 0.0
    %6390 = vmatprep.subr.mxu0 0.0
    %6391 = vmatpush1.xpose.msra.mxu0 %v6360
    %6392 = vmatprep.subr.mxu0 0.0
    %6393 = vmatpush1.xpose.msra.mxu0 %v6358
    %6394 = vmatprep.subr.mxu0 0.0
    %6395 = vmatpush2.xpose.msra.mxu0 0.0
    %6396 = vmatprep.subr.mxu0 0.0
    %6397 = vmatpush2.xpose.msra.mxu0 0.0
    %6398 = vmatprep.subr.mxu0 0.0
    %6399 = vmatpush2.xpose.msra.mxu0 0.0
    %6400 = vmatprep.subr.mxu0 0.0
    %6401 = vmatpush2.xpose.msra.mxu0 0.0
    %6402 = vmatprep.subr.mxu0 0.0
    %6403 = vmatpush2.xpose.msra.mxu0 0.0
    %6404 = vmatprep.subr.mxu0 0.0
    %6405 = vmatpush2.xpose.msra.mxu0 0.0
    %6406 = vmatprep.subr.mxu0 0.0
    %6407 = vmatpush2.xpose.msra.mxu0 0.0
    %6408 = vmatprep.subr.mxu0 0.0
    %6409 = vmatpush2.xpose.msra.mxu0 0.0
    %6410 = vmatprep.subr.mxu0 0.0
    %6411 = vmatpush2.xpose.msra.mxu0 0.0
    %6412 = vmatprep.subr.mxu0 0.0
    %6413 = vmatpush2.xpose.msra.mxu0 0.0
    %6414 = vmatprep.subr.mxu0 0.0
    %6415 = vmatpush2.xpose.msra.mxu0 0.0
    %6416 = vmatprep.subr.mxu0 0.0
    %6417 = vmatpush2.xpose.msra.mxu0 0.0
    %6418 = vmatprep.subr.mxu0 0.0
    %6419 = vmatpush2.xpose.msra.mxu0 0.0
    %6420 = vmatprep.subr.mxu0 0.0
    %6421 = vmatpush2.xpose.msra.mxu0 0.0
    %6422 = vmatprep.subr.mxu0 0.0
    %6423 = vmatpush2.xpose.msra.mxu0 0.0
    %6424 = vmatprep.subr.mxu0 0.0
    %6425 = vmatpush2.xpose.msra.mxu0 0.0
    %6426 = vmatprep.mubr.f32.mxu0 0.0
    %6427 = vmatmul.mubr.f32.gmra.mxu0 %v6356
    %v6428 = vpop.f32.mrf.mxu0
    %v6429 = vadd.f32 0.0, %v6428
    %v6430 = vpop.f32.mrf.mxu0
    %6431 = vdwg.mxu0
    %6432 = vrot.lane.b32.xlu0 %v4951, 104
    %v6433 = vpop.permute.xlu0 %6432
    %6434 = vrot.lane.b32.xlu0 %v5062, 104
    %v6435 = vpop.permute.xlu0 %6434
    %6436 = vrot.lane.b32.xlu0 %v5067, 104
    %v6437 = vpop.permute.xlu0 %6436
    %v6438 = vsel %vm502, %v6433, 0
    %v6440 = vsel %vm502, %v6435, 0
    %v6442 = vsel %vm502, %v6437, 0
    %6444 = vmatprep.subr.mxu0 0.0
    %6445 = vmatpush1.xpose.msra.mxu0 0.0
    %6446 = vmatprep.subr.mxu0 0.0
    %6447 = vmatpush1.xpose.msra.mxu0 0.0
    %6448 = vmatprep.subr.mxu0 0.0
    %6449 = vmatpush1.xpose.msra.mxu0 0.0
    %6450 = vmatprep.subr.mxu0 0.0
    %6451 = vmatpush1.xpose.msra.mxu0 0.0
    %6452 = vmatprep.subr.mxu0 0.0
    %6453 = vmatpush1.xpose.msra.mxu0 0.0
    %6454 = vmatprep.subr.mxu0 0.0
    %6455 = vmatpush1.xpose.msra.mxu0 0.0
    %6456 = vmatprep.subr.mxu0 0.0
    %6457 = vmatpush1.xpose.msra.mxu0 0.0
    %6458 = vmatprep.subr.mxu0 0.0
    %6459 = vmatpush1.xpose.msra.mxu0 0.0
    %6460 = vmatprep.subr.mxu0 0.0
    %6461 = vmatpush1.xpose.msra.mxu0 0.0
    %6462 = vmatprep.subr.mxu0 0.0
    %6463 = vmatpush1.xpose.msra.mxu0 0.0
    %6464 = vmatprep.subr.mxu0 0.0
    %6465 = vmatpush1.xpose.msra.mxu0 0.0
    %6466 = vmatprep.subr.mxu0 0.0
    %6467 = vmatpush1.xpose.msra.mxu0 0.0
    %6468 = vmatprep.subr.mxu0 0.0
    %6469 = vmatpush1.xpose.msra.mxu0 0.0
    %6470 = vmatprep.subr.mxu0 0.0
    %6471 = vmatpush1.xpose.msra.mxu0 0.0
    %6472 = vmatprep.subr.mxu0 0.0
    %6473 = vmatpush1.xpose.msra.mxu0 %v6442
    %6474 = vmatprep.subr.mxu0 0.0
    %6475 = vmatpush1.xpose.msra.mxu0 %v6440
    %6476 = vmatprep.subr.mxu0 0.0
    %6477 = vmatpush2.xpose.msra.mxu0 0.0
    %6478 = vmatprep.subr.mxu0 0.0
    %6479 = vmatpush2.xpose.msra.mxu0 0.0
    %6480 = vmatprep.subr.mxu0 0.0
    %6481 = vmatpush2.xpose.msra.mxu0 0.0
    %6482 = vmatprep.subr.mxu0 0.0
    %6483 = vmatpush2.xpose.msra.mxu0 0.0
    %6484 = vmatprep.subr.mxu0 0.0
    %6485 = vmatpush2.xpose.msra.mxu0 0.0
    %6486 = vmatprep.subr.mxu0 0.0
    %6487 = vmatpush2.xpose.msra.mxu0 0.0
    %6488 = vmatprep.subr.mxu0 0.0
    %6489 = vmatpush2.xpose.msra.mxu0 0.0
    %6490 = vmatprep.subr.mxu0 0.0
    %6491 = vmatpush2.xpose.msra.mxu0 0.0
    %6492 = vmatprep.subr.mxu0 0.0
    %6493 = vmatpush2.xpose.msra.mxu0 0.0
    %6494 = vmatprep.subr.mxu0 0.0
    %6495 = vmatpush2.xpose.msra.mxu0 0.0
    %6496 = vmatprep.subr.mxu0 0.0
    %6497 = vmatpush2.xpose.msra.mxu0 0.0
    %6498 = vmatprep.subr.mxu0 0.0
    %6499 = vmatpush2.xpose.msra.mxu0 0.0
    %6500 = vmatprep.subr.mxu0 0.0
    %6501 = vmatpush2.xpose.msra.mxu0 0.0
    %6502 = vmatprep.subr.mxu0 0.0
    %6503 = vmatpush2.xpose.msra.mxu0 0.0
    %6504 = vmatprep.subr.mxu0 0.0
    %6505 = vmatpush2.xpose.msra.mxu0 0.0
    %6506 = vmatprep.subr.mxu0 0.0
    %6507 = vmatpush2.xpose.msra.mxu0 0.0
    %6508 = vmatprep.mubr.f32.mxu0 0.0
    %6509 = vmatmul.mubr.f32.gmra.mxu0 %v6438
    %v6510 = vpop.f32.mrf.mxu0
    %v6511 = vadd.f32 0.0, %v6510
    %v6512 = vpop.f32.mrf.mxu0
    %6513 = vdwg.mxu0
    %v6514 = vmul.f32 %v6429, 0.35355338
    %v6515 = vmul.f32 %v6511, 0.35355338
    %v6516 = vsel %vm679, %v6514, -inf
    %6517 = vmax.xlane.f32.xlu0 %v6516
    %v6518 = vpop.xlane.xlu0 %6517
    %v6519 = vsel %vm679, %v6515, -inf
    %6520 = vmax.xlane.f32.xlu0 %v6519
    %v6521 = vpop.xlane.xlu0 %6520
    %v6522 = vsub.f32 %v6514, %v6518
    %v6523 = vsub.f32 %v6515, %v6521
    %v6524 = vmul.f32 %v6522, 1.442695
    %v6525 = vpow.pop %v6524
    %v6526 = vmul.f32 %v6523, 1.442695
    %v6527 = vpow.pop %v6526
    %v6528 = vsel %vm679, %v6525, 0.0
    %6529 = vadd.xlane.f32.xlu0 %v6528
    %v6530 = vpop.xlane.xlu0 %6529
    %v6531 = vsel %vm679, %v6527, 0.0
    %6532 = vadd.xlane.f32.xlu0 %v6531
    %v6533 = vpop.xlane.xlu0 %6532
    %6534 = vrot.lane.b32.xlu0 %v5052, 72
    %v6535 = vpop.permute.xlu0 %6534
    %6536 = vrot.lane.b32.xlu0 %v5057, 72
    %v6537 = vpop.permute.xlu0 %6536
    %v6541 = vsel %vm679, %v6525, 0
    %6543 = vmatprep.subr.mxu0 0.0
    %6544 = vmatpush1.msra.mxu0 0.0
    %6545 = vmatprep.subr.mxu0 0.0
    %6546 = vmatpush1.msra.mxu0 0.0
    %6547 = vmatprep.subr.mxu0 0.0
    %6548 = vmatpush1.msra.mxu0 0.0
    %6549 = vmatprep.subr.mxu0 0.0
    %6550 = vmatpush1.msra.mxu0 0.0
    %6551 = vmatprep.subr.mxu0 0.0
    %6552 = vmatpush1.msra.mxu0 0.0
    %6553 = vmatprep.subr.mxu0 0.0
    %6554 = vmatpush1.msra.mxu0 0.0
    %6555 = vmatprep.subr.mxu0 0.0
    %6556 = vmatpush1.msra.mxu0 0.0
    %6557 = vmatprep.subr.mxu0 0.0
    %6558 = vmatpush1.msra.mxu0 0.0
    %6559 = vmatprep.subr.mxu0 0.0
    %6560 = vmatpush1.msra.mxu0 0.0
    %6561 = vmatprep.subr.mxu0 0.0
    %6562 = vmatpush1.msra.mxu0 0.0
    %6563 = vmatprep.subr.mxu0 0.0
    %6564 = vmatpush1.msra.mxu0 0.0
    %6565 = vmatprep.subr.mxu0 0.0
    %6566 = vmatpush1.msra.mxu0 0.0
    %6567 = vmatprep.subr.mxu0 0.0
    %6568 = vmatpush1.msra.mxu0 0.0
    %6569 = vmatprep.subr.mxu0 0.0
    %6570 = vmatpush1.msra.mxu0 0.0
    %6571 = vmatprep.subr.mxu0 0.0
    %6572 = vmatpush1.msra.mxu0 %v6537
    %6573 = vmatprep.subr.mxu0 0.0
    %6574 = vmatpush1.msra.mxu0 %v6535
    %6575 = vmatprep.subr.mxu0 0.0
    %6576 = vmatpush2.msra.mxu0 0.0
    %6577 = vmatprep.subr.mxu0 0.0
    %6578 = vmatpush2.msra.mxu0 0.0
    %6579 = vmatprep.subr.mxu0 0.0
    %6580 = vmatpush2.msra.mxu0 0.0
    %6581 = vmatprep.subr.mxu0 0.0
    %6582 = vmatpush2.msra.mxu0 0.0
    %6583 = vmatprep.subr.mxu0 0.0
    %6584 = vmatpush2.msra.mxu0 0.0
    %6585 = vmatprep.subr.mxu0 0.0
    %6586 = vmatpush2.msra.mxu0 0.0
    %6587 = vmatprep.subr.mxu0 0.0
    %6588 = vmatpush2.msra.mxu0 0.0
    %6589 = vmatprep.subr.mxu0 0.0
    %6590 = vmatpush2.msra.mxu0 0.0
    %6591 = vmatprep.subr.mxu0 0.0
    %6592 = vmatpush2.msra.mxu0 0.0
    %6593 = vmatprep.subr.mxu0 0.0
    %6594 = vmatpush2.msra.mxu0 0.0
    %6595 = vmatprep.subr.mxu0 0.0
    %6596 = vmatpush2.msra.mxu0 0.0
    %6597 = vmatprep.subr.mxu0 0.0
    %6598 = vmatpush2.msra.mxu0 0.0
    %6599 = vmatprep.subr.mxu0 0.0
    %6600 = vmatpush2.msra.mxu0 0.0
    %6601 = vmatprep.subr.mxu0 0.0
    %6602 = vmatpush2.msra.mxu0 0.0
    %6603 = vmatprep.subr.mxu0 0.0
    %6604 = vmatpush2.msra.mxu0 0.0
    %6605 = vmatprep.subr.mxu0 0.0
    %6606 = vmatpush2.msra.mxu0 0.0
    %6607 = vmatprep.mubr.f32.mxu0 0.0
    %6608 = vmatmul.mubr.f32.gmra.mxu0 %v6541
    %v6609 = vpop.f32.mrf.mxu0
    %v6610 = vadd.f32 0.0, %v6609
    %v6611 = vpop.f32.mrf.mxu0
    %6612 = vdwg.mxu0
    %6613 = vrot.lane.b32.xlu0 %v5062, 72
    %v6614 = vpop.permute.xlu0 %6613
    %6615 = vrot.lane.b32.xlu0 %v5067, 72
    %v6616 = vpop.permute.xlu0 %6615
    %v6620 = vsel %vm679, %v6527, 0
    %6622 = vmatprep.subr.mxu0 0.0
    %6623 = vmatpush1.msra.mxu0 0.0
    %6624 = vmatprep.subr.mxu0 0.0
    %6625 = vmatpush1.msra.mxu0 0.0
    %6626 = vmatprep.subr.mxu0 0.0
    %6627 = vmatpush1.msra.mxu0 0.0
    %6628 = vmatprep.subr.mxu0 0.0
    %6629 = vmatpush1.msra.mxu0 0.0
    %6630 = vmatprep.subr.mxu0 0.0
    %6631 = vmatpush1.msra.mxu0 0.0
    %6632 = vmatprep.subr.mxu0 0.0
    %6633 = vmatpush1.msra.mxu0 0.0
    %6634 = vmatprep.subr.mxu0 0.0
    %6635 = vmatpush1.msra.mxu0 0.0
    %6636 = vmatprep.subr.mxu0 0.0
    %6637 = vmatpush1.msra.mxu0 0.0
    %6638 = vmatprep.subr.mxu0 0.0
    %6639 = vmatpush1.msra.mxu0 0.0
    %6640 = vmatprep.subr.mxu0 0.0
    %6641 = vmatpush1.msra.mxu0 0.0
    %6642 = vmatprep.subr.mxu0 0.0
    %6643 = vmatpush1.msra.mxu0 0.0
    %6644 = vmatprep.subr.mxu0 0.0
    %6645 = vmatpush1.msra.mxu0 0.0
    %6646 = vmatprep.subr.mxu0 0.0
    %6647 = vmatpush1.msra.mxu0 0.0
    %6648 = vmatprep.subr.mxu0 0.0
    %6649 = vmatpush1.msra.mxu0 0.0
    %6650 = vmatprep.subr.mxu0 0.0
    %6651 = vmatpush1.msra.mxu0 %v6616
    %6652 = vmatprep.subr.mxu0 0.0
    %6653 = vmatpush1.msra.mxu0 %v6614
    %6654 = vmatprep.subr.mxu0 0.0
    %6655 = vmatpush2.msra.mxu0 0.0
    %6656 = vmatprep.subr.mxu0 0.0
    %6657 = vmatpush2.msra.mxu0 0.0
    %6658 = vmatprep.subr.mxu0 0.0
    %6659 = vmatpush2.msra.mxu0 0.0
    %6660 = vmatprep.subr.mxu0 0.0
    %6661 = vmatpush2.msra.mxu0 0.0
    %6662 = vmatprep.subr.mxu0 0.0
    %6663 = vmatpush2.msra.mxu0 0.0
    %6664 = vmatprep.subr.mxu0 0.0
    %6665 = vmatpush2.msra.mxu0 0.0
    %6666 = vmatprep.subr.mxu0 0.0
    %6667 = vmatpush2.msra.mxu0 0.0
    %6668 = vmatprep.subr.mxu0 0.0
    %6669 = vmatpush2.msra.mxu0 0.0
    %6670 = vmatprep.subr.mxu0 0.0
    %6671 = vmatpush2.msra.mxu0 0.0
    %6672 = vmatprep.subr.mxu0 0.0
    %6673 = vmatpush2.msra.mxu0 0.0
    %6674 = vmatprep.subr.mxu0 0.0
    %6675 = vmatpush2.msra.mxu0 0.0
    %6676 = vmatprep.subr.mxu0 0.0
    %6677 = vmatpush2.msra.mxu0 0.0
    %6678 = vmatprep.subr.mxu0 0.0
    %6679 = vmatpush2.msra.mxu0 0.0
    %6680 = vmatprep.subr.mxu0 0.0
    %6681 = vmatpush2.msra.mxu0 0.0
    %6682 = vmatprep.subr.mxu0 0.0
    %6683 = vmatpush2.msra.mxu0 0.0
    %6684 = vmatprep.subr.mxu0 0.0
    %6685 = vmatpush2.msra.mxu0 0.0
    %6686 = vmatprep.mubr.f32.mxu0 0.0
    %6687 = vmatmul.mubr.f32.gmra.mxu0 %v6620
    %v6688 = vpop.f32.mrf.mxu0
    %v6689 = vadd.f32 0.0, %v6688
    %v6690 = vpop.f32.mrf.mxu0
    %6691 = vdwg.mxu0
    %v6692 = vrcp.pop %v6530
    %v6693 = vrcp.pop %v6533
    %v6694 = vmul.f32 %v6610, %v6692
    %v6695 = vmul.f32 %v6689, %v6693
    %v6696 = vld [vmem:[%s19 + $0x18] sm:$0xff]
    %v6698 = vsel %vm502, %v6694, 0
    %v6701 = vsel %vm502, %v6695, 0
    %6703 = vmatprep.subr.mxu0 0.0
    %6704 = vmatpush1.msra.mxu0 0.0
    %6705 = vmatprep.subr.mxu0 0.0
    %6706 = vmatpush1.msra.mxu0 0.0
    %6707 = vmatprep.subr.mxu0 0.0
    %6708 = vmatpush1.msra.mxu0 0.0
    %6709 = vmatprep.subr.mxu0 0.0
    %6710 = vmatpush1.msra.mxu0 0.0
    %6711 = vmatprep.subr.mxu0 0.0
    %6712 = vmatpush1.msra.mxu0 0.0
    %6713 = vmatprep.subr.mxu0 0.0
    %6714 = vmatpush1.msra.mxu0 0.0
    %6715 = vmatprep.subr.mxu0 0.0
    %6716 = vmatpush1.msra.mxu0 0.0
    %6717 = vmatprep.subr.mxu0 0.0
    %6718 = vmatpush1.msra.mxu0 0.0
    %6719 = vmatprep.subr.mxu0 0.0
    %6720 = vmatpush1.msra.mxu0 0.0
    %6721 = vmatprep.subr.mxu0 0.0
    %6722 = vmatpush1.msra.mxu0 0.0
    %6723 = vmatprep.subr.mxu0 0.0
    %6724 = vmatpush1.msra.mxu0 0.0
    %6725 = vmatprep.subr.mxu0 0.0
    %6726 = vmatpush1.msra.mxu0 0.0
    %6727 = vmatprep.subr.mxu0 0.0
    %6728 = vmatpush1.msra.mxu0 0.0
    %6729 = vmatprep.subr.mxu0 0.0
    %6730 = vmatpush1.msra.mxu0 0.0
    %6731 = vmatprep.subr.mxu0 0.0
    %6732 = vmatpush1.msra.mxu0 0.0
    %6733 = vmatprep.subr.mxu0 0.0
    %6734 = vmatpush1.msra.mxu0 %v6696
    %6735 = vmatprep.subr.mxu0 0.0
    %6736 = vmatpush2.msra.mxu0 0.0
    %6737 = vmatprep.subr.mxu0 0.0
    %6738 = vmatpush2.msra.mxu0 0.0
    %6739 = vmatprep.subr.mxu0 0.0
    %6740 = vmatpush2.msra.mxu0 0.0
    %6741 = vmatprep.subr.mxu0 0.0
    %6742 = vmatpush2.msra.mxu0 0.0
    %6743 = vmatprep.subr.mxu0 0.0
    %6744 = vmatpush2.msra.mxu0 0.0
    %6745 = vmatprep.subr.mxu0 0.0
    %6746 = vmatpush2.msra.mxu0 0.0
    %6747 = vmatprep.subr.mxu0 0.0
    %6748 = vmatpush2.msra.mxu0 0.0
    %6749 = vmatprep.subr.mxu0 0.0
    %6750 = vmatpush2.msra.mxu0 0.0
    %6751 = vmatprep.subr.mxu0 0.0
    %6752 = vmatpush2.msra.mxu0 0.0
    %6753 = vmatprep.subr.mxu0 0.0
    %6754 = vmatpush2.msra.mxu0 0.0
    %6755 = vmatprep.subr.mxu0 0.0
    %6756 = vmatpush2.msra.mxu0 0.0
    %6757 = vmatprep.subr.mxu0 0.0
    %6758 = vmatpush2.msra.mxu0 0.0
    %6759 = vmatprep.subr.mxu0 0.0
    %6760 = vmatpush2.msra.mxu0 0.0
    %6761 = vmatprep.subr.mxu0 0.0
    %6762 = vmatpush2.msra.mxu0 0.0
    %6763 = vmatprep.subr.mxu0 0.0
    %6764 = vmatpush2.msra.mxu0 0.0
    %6765 = vmatprep.subr.mxu0 0.0
    %6766 = vmatpush2.msra.mxu0 0.0
    %6767 = vmatprep.mubr.f32.mxu0 0.0
    %6768 = vmatmul.mubr.f32.gmra.mxu0 %v6698
    %v6769 = vpop.f32.mrf.mxu0
    %v6770 = vadd.f32 0.0, %v6769
    %v6771 = vpop.f32.mrf.mxu0
    %6772 = vmatprep.mubr.f32.mxu0 0.0
    %6773 = vmatmul.mubr.f32.gmra.mxu0 %v6701
    %v6774 = vpop.f32.mrf.mxu0
    %v6775 = vadd.f32 0.0, %v6774
    %v6776 = vpop.f32.mrf.mxu0
    %6777 = vdwg.mxu0
    %v6778 = vadd.f32 %v6348, %v6770
    %v6779 = vadd.f32 %v6349, %v6775
    %v6780 = vld [vmem:[%s15] sm:$0x1]
    %v6782 = vlaneseq
    %v6783 = vshrl.u32 %v6782, 7
    %v6784 = vsub.s32 0, %v6783
    %v6785 = vrot.slane %v6780, %v6784
    %v6787 = vadd.f32 %v6778, %v6785
    %v6788 = vadd.f32 %v6779, %v6785
    %v6789 = vadd.f32 %v4816, %v6787
    %v6790 = vadd.f32 %v4817, %v6788
    %v6791 = vsel %vm312, %v6789, 0.0
    %6792 = vadd.xlane.f32.xlu0 %v6791
    %v6793 = vpop.xlane.xlu0 %6792
    %v6794 = vsel %vm312, %v6790, 0.0
    %6795 = vadd.xlane.f32.xlu0 %v6794
    %v6796 = vpop.xlane.xlu0 %6795
    %v6797 = vmul.f32 %v6793, %v325
    %v6798 = vmul.f32 %v6796, %v325
    %v6799 = vsub.f32 %v6789, %v6797
    %v6800 = vsub.f32 %v6790, %v6798
    %v6801 = vmul.f32 %v6799, %v6799
    %v6802 = vmul.f32 %v6800, %v6800
    %v6803 = vsel %vm312, %v6801, 0.0
    %6804 = vadd.xlane.f32.xlu0 %v6803
    %v6805 = vpop.xlane.xlu0 %6804
    %v6806 = vsel %vm312, %v6802, 0.0
    %6807 = vadd.xlane.f32.xlu0 %v6806
    %v6808 = vpop.xlane.xlu0 %6807
    %v6809 = vmul.f32 %v6805, %v325
    %v6810 = vmul.f32 %v6808, %v325
    %v6811 = vadd.f32 %v6809, 1e-05
    %v6812 = vadd.f32 %v6810, 1e-05
    %v6813 = vrsqrt.pop %v6811
    %v6814 = vrsqrt.pop %v6812
    %v6815 = vmul.f32 %v6799, %v6813
    %v6816 = vmul.f32 %v6800, %v6814
    %v6817 = vld [vmem:[%s33] sm:$0x1]
    %v6819 = vlaneseq
    %v6820 = vshrl.u32 %v6819, 7
    %v6821 = vsub.s32 0, %v6820
    %v6822 = vrot.slane %v6817, %v6821
    %v6824 = vmul.f32 %v6815, %v6822
    %v6825 = vmul.f32 %v6816, %v6822
    %v6826 = vld [vmem:[%s31] sm:$0x1]
    %v6828 = vlaneseq
    %v6829 = vshrl.u32 %v6828, 7
    %v6830 = vsub.s32 0, %v6829
    %v6831 = vrot.slane %v6826, %v6830
    %v6833 = vadd.f32 %v6824, %v6831
    %v6834 = vadd.f32 %v6825, %v6831
    %v6835 = vld [vmem:[%s49] sm:$0xff]
    %v6836 = vld [vmem:[%s49 + $0x8] sm:$0xff]
    %v6837 = vld [vmem:[%s49 + $0x10] sm:$0xff]
    %v6838 = vld [vmem:[%s49 + $0x18] sm:$0xff]
    %v6839 = vld [vmem:[%s7] sm:$0x1]
    %v6841 = vlaneseq
    %v6842 = vshrl.u32 %v6841, 7
    %v6843 = vsub.s32 0, %v6842
    %v6844 = vrot.slane %v6839, %v6843
    %v6847 = vsel %vm312, %v6833, 0
    %v6850 = vsel %vm312, %v6834, 0
    %6852 = vmatprep.subr.mxu0 0.0
    %6853 = vmatpush1.msra.mxu0 0.0
    %6854 = vmatprep.subr.mxu0 0.0
    %6855 = vmatpush1.msra.mxu0 0.0
    %6856 = vmatprep.subr.mxu0 0.0
    %6857 = vmatpush1.msra.mxu0 0.0
    %6858 = vmatprep.subr.mxu0 0.0
    %6859 = vmatpush1.msra.mxu0 0.0
    %6860 = vmatprep.subr.mxu0 0.0
    %6861 = vmatpush1.msra.mxu0 0.0
    %6862 = vmatprep.subr.mxu0 0.0
    %6863 = vmatpush1.msra.mxu0 0.0
    %6864 = vmatprep.subr.mxu0 0.0
    %6865 = vmatpush1.msra.mxu0 0.0
    %6866 = vmatprep.subr.mxu0 0.0
    %6867 = vmatpush1.msra.mxu0 0.0
    %6868 = vmatprep.subr.mxu0 0.0
    %6869 = vmatpush1.msra.mxu0 0.0
    %6870 = vmatprep.subr.mxu0 0.0
    %6871 = vmatpush1.msra.mxu0 0.0
    %6872 = vmatprep.subr.mxu0 0.0
    %6873 = vmatpush1.msra.mxu0 0.0
    %6874 = vmatprep.subr.mxu0 0.0
    %6875 = vmatpush1.msra.mxu0 0.0
    %6876 = vmatprep.subr.mxu0 0.0
    %6877 = vmatpush1.msra.mxu0 %v6838
    %6878 = vmatprep.subr.mxu0 0.0
    %6879 = vmatpush1.msra.mxu0 %v6837
    %6880 = vmatprep.subr.mxu0 0.0
    %6881 = vmatpush1.msra.mxu0 %v6836
    %6882 = vmatprep.subr.mxu0 0.0
    %6883 = vmatpush1.msra.mxu0 %v6835
    %6884 = vmatprep.subr.mxu0 0.0
    %6885 = vmatpush2.msra.mxu0 0.0
    %6886 = vmatprep.subr.mxu0 0.0
    %6887 = vmatpush2.msra.mxu0 0.0
    %6888 = vmatprep.subr.mxu0 0.0
    %6889 = vmatpush2.msra.mxu0 0.0
    %6890 = vmatprep.subr.mxu0 0.0
    %6891 = vmatpush2.msra.mxu0 0.0
    %6892 = vmatprep.subr.mxu0 0.0
    %6893 = vmatpush2.msra.mxu0 0.0
    %6894 = vmatprep.subr.mxu0 0.0
    %6895 = vmatpush2.msra.mxu0 0.0
    %6896 = vmatprep.subr.mxu0 0.0
    %6897 = vmatpush2.msra.mxu0 0.0
    %6898 = vmatprep.subr.mxu0 0.0
    %6899 = vmatpush2.msra.mxu0 0.0
    %6900 = vmatprep.subr.mxu0 0.0
    %6901 = vmatpush2.msra.mxu0 0.0
    %6902 = vmatprep.subr.mxu0 0.0
    %6903 = vmatpush2.msra.mxu0 0.0
    %6904 = vmatprep.subr.mxu0 0.0
    %6905 = vmatpush2.msra.mxu0 0.0
    %6906 = vmatprep.subr.mxu0 0.0
    %6907 = vmatpush2.msra.mxu0 0.0
    %6908 = vmatprep.subr.mxu0 0.0
    %6909 = vmatpush2.msra.mxu0 0.0
    %6910 = vmatprep.subr.mxu0 0.0
    %6911 = vmatpush2.msra.mxu0 0.0
    %6912 = vmatprep.subr.mxu0 0.0
    %6913 = vmatpush2.msra.mxu0 0.0
    %6914 = vmatprep.subr.mxu0 0.0
    %6915 = vmatpush2.msra.mxu0 0.0
    %6916 = vmatprep.mubr.f32.mxu0 0.0
    %6917 = vmatmul.mubr.f32.gmra.mxu0 %v6847
    %v6918 = vpop.f32.mrf.mxu0
    %v6919 = vadd.f32 %v6844, %v6918
    %v6920 = vpop.f32.mrf.mxu0
    %6921 = vmatprep.mubr.f32.mxu0 0.0
    %6922 = vmatmul.mubr.f32.gmra.mxu0 %v6850
    %v6923 = vpop.f32.mrf.mxu0
    %v6924 = vadd.f32 %v6844, %v6923
    %v6925 = vpop.f32.mrf.mxu0
    %6926 = vdwg.mxu0
    %v6927 = vmul.f32 %v6919, %v6919
    %v6928 = vmul.f32 %v6924, %v6924
    %v6929 = vmul.f32 %v6919, %v6927
    %v6930 = vmul.f32 %v6924, %v6928
    %v6931 = vmul.f32 %v6929, 0.044715
    %v6932 = vmul.f32 %v6930, 0.044715
    %v6933 = vadd.f32 %v6919, %v6931
    %v6934 = vadd.f32 %v6924, %v6932
    %v6935 = vmul.f32 %v6933, 0.7978846
    %v6936 = vmul.f32 %v6934, 0.7978846
    %v6937 = vtanh.pop %v6935
    %v6938 = vtanh.pop %v6936
    %v6939 = vadd.f32 %v6937, 1.0
    %v6940 = vadd.f32 %v6938, 1.0
    %v6941 = vmul.f32 %v6939, 0.5
    %v6942 = vmul.f32 %v6940, 0.5
    %v6943 = vmul.f32 %v6919, %v6941
    %v6944 = vmul.f32 %v6924, %v6942
    %v6945 = vld [vmem:[%s51] sm:$0xff]
    %v6946 = vld [vmem:[%s51 + $0x8] sm:$0xff]
    %v6947 = vld [vmem:[%s51 + $0x10] sm:$0xff]
    %v6948 = vld [vmem:[%s51 + $0x18] sm:$0xff]
    %v6949 = vld [vmem:[%s51 + $0x20] sm:$0xff]
    %v6950 = vld [vmem:[%s51 + $0x28] sm:$0xff]
    %v6951 = vld [vmem:[%s51 + $0x30] sm:$0xff]
    %v6952 = vld [vmem:[%s51 + $0x38] sm:$0xff]
    %v6953 = vld [vmem:[%s9] sm:$0x1]
    %v6955 = vlaneseq
    %v6956 = vshrl.u32 %v6955, 7
    %v6957 = vsub.s32 0, %v6956
    %v6958 = vrot.slane %v6953, %v6957
    %v6961 = vsel %vm2758, %v6943, 0
    %v6964 = vsel %vm2758, %v6944, 0
    %6966 = vmatprep.subr.mxu0 0.0
    %6967 = vmatpush1.msra.mxu0 0.0
    %6968 = vmatprep.subr.mxu0 0.0
    %6969 = vmatpush1.msra.mxu0 0.0
    %6970 = vmatprep.subr.mxu0 0.0
    %6971 = vmatpush1.msra.mxu0 0.0
    %6972 = vmatprep.subr.mxu0 0.0
    %6973 = vmatpush1.msra.mxu0 0.0
    %6974 = vmatprep.subr.mxu0 0.0
    %6975 = vmatpush1.msra.mxu0 0.0
    %6976 = vmatprep.subr.mxu0 0.0
    %6977 = vmatpush1.msra.mxu0 0.0
    %6978 = vmatprep.subr.mxu0 0.0
    %6979 = vmatpush1.msra.mxu0 0.0
    %6980 = vmatprep.subr.mxu0 0.0
    %6981 = vmatpush1.msra.mxu0 0.0
    %6982 = vmatprep.subr.mxu0 0.0
    %6983 = vmatpush1.msra.mxu0 %v6952
    %6984 = vmatprep.subr.mxu0 0.0
    %6985 = vmatpush1.msra.mxu0 %v6951
    %6986 = vmatprep.subr.mxu0 0.0
    %6987 = vmatpush1.msra.mxu0 %v6950
    %6988 = vmatprep.subr.mxu0 0.0
    %6989 = vmatpush1.msra.mxu0 %v6949
    %6990 = vmatprep.subr.mxu0 0.0
    %6991 = vmatpush1.msra.mxu0 %v6948
    %6992 = vmatprep.subr.mxu0 0.0
    %6993 = vmatpush1.msra.mxu0 %v6947
    %6994 = vmatprep.subr.mxu0 0.0
    %6995 = vmatpush1.msra.mxu0 %v6946
    %6996 = vmatprep.subr.mxu0 0.0
    %6997 = vmatpush1.msra.mxu0 %v6945
    %6998 = vmatprep.subr.mxu0 0.0
    %6999 = vmatpush2.msra.mxu0 0.0
    %7000 = vmatprep.subr.mxu0 0.0
    %7001 = vmatpush2.msra.mxu0 0.0
    %7002 = vmatprep.subr.mxu0 0.0
    %7003 = vmatpush2.msra.mxu0 0.0
    %7004 = vmatprep.subr.mxu0 0.0
    %7005 = vmatpush2.msra.mxu0 0.0
    %7006 = vmatprep.subr.mxu0 0.0
    %7007 = vmatpush2.msra.mxu0 0.0
    %7008 = vmatprep.subr.mxu0 0.0
    %7009 = vmatpush2.msra.mxu0 0.0
    %7010 = vmatprep.subr.mxu0 0.0
    %7011 = vmatpush2.msra.mxu0 0.0
    %7012 = vmatprep.subr.mxu0 0.0
    %7013 = vmatpush2.msra.mxu0 0.0
    %7014 = vmatprep.subr.mxu0 0.0
    %7015 = vmatpush2.msra.mxu0 0.0
    %7016 = vmatprep.subr.mxu0 0.0
    %7017 = vmatpush2.msra.mxu0 0.0
    %7018 = vmatprep.subr.mxu0 0.0
    %7019 = vmatpush2.msra.mxu0 0.0
    %7020 = vmatprep.subr.mxu0 0.0
    %7021 = vmatpush2.msra.mxu0 0.0
    %7022 = vmatprep.subr.mxu0 0.0
    %7023 = vmatpush2.msra.mxu0 0.0
    %7024 = vmatprep.subr.mxu0 0.0
    %7025 = vmatpush2.msra.mxu0 0.0
    %7026 = vmatprep.subr.mxu0 0.0
    %7027 = vmatpush2.msra.mxu0 0.0
    %7028 = vmatprep.subr.mxu0 0.0
    %7029 = vmatpush2.msra.mxu0 0.0
    %7030 = vmatprep.mubr.f32.mxu0 0.0
    %7031 = vmatmul.mubr.f32.gmra.mxu0 %v6961
    %v7032 = vpop.f32.mrf.mxu0
    %v7033 = vadd.f32 %v6958, %v7032
    %v7034 = vpop.f32.mrf.mxu0
    %7035 = vmatprep.mubr.f32.mxu0 0.0
    %7036 = vmatmul.mubr.f32.gmra.mxu0 %v6964
    %v7037 = vpop.f32.mrf.mxu0
    %v7038 = vadd.f32 %v6958, %v7037
    %v7039 = vpop.f32.mrf.mxu0
    %7040 = vdwg.mxu0
    %v7041 = vadd.f32 %v6789, %v7033
    %v7042 = vadd.f32 %v6790, %v7038
    %v7043 = vsel %vm312, %v7041, 0.0
    %7044 = vadd.xlane.f32.xlu0 %v7043
    %v7045 = vpop.xlane.xlu0 %7044
    %v7046 = vsel %vm312, %v7042, 0.0
    %7047 = vadd.xlane.f32.xlu0 %v7046
    %v7048 = vpop.xlane.xlu0 %7047
    %v7049 = vmul.f32 %v7045, %v325
    %v7050 = vmul.f32 %v7048, %v325
    %v7051 = vsub.f32 %v7041, %v7049
    %v7052 = vsub.f32 %v7042, %v7050
    %v7053 = vmul.f32 %v7051, %v7051
    %v7054 = vmul.f32 %v7052, %v7052
    %v7055 = vsel %vm312, %v7053, 0.0
    %7056 = vadd.xlane.f32.xlu0 %v7055
    %v7057 = vpop.xlane.xlu0 %7056
    %v7058 = vsel %vm312, %v7054, 0.0
    %7059 = vadd.xlane.f32.xlu0 %v7058
    %v7060 = vpop.xlane.xlu0 %7059
    %v7061 = vmul.f32 %v7057, %v325
    %v7062 = vmul.f32 %v7060, %v325
    %v7063 = vadd.f32 %v7061, 1e-05
    %v7064 = vadd.f32 %v7062, 1e-05
    %v7065 = vrsqrt.pop %v7063
    %v7066 = vrsqrt.pop %v7064
    %v7067 = vmul.f32 %v7051, %v7065
    %v7068 = vmul.f32 %v7052, %v7066
    %v7069 = vld [vmem:[%s37] sm:$0x1]
    %v7071 = vlaneseq
    %v7072 = vshrl.u32 %v7071, 7
    %v7073 = vsub.s32 0, %v7072
    %v7074 = vrot.slane %v7069, %v7073
    %v7076 = vmul.f32 %v7067, %v7074
    %v7077 = vmul.f32 %v7068, %v7074
    %v7078 = vld [vmem:[%s35] sm:$0x1]
    %v7080 = vlaneseq
    %v7081 = vshrl.u32 %v7080, 7
    %v7082 = vsub.s32 0, %v7081
    %v7083 = vrot.slane %v7078, %v7082
    %v7085 = vadd.f32 %v7076, %v7083
    %v7086 = vadd.f32 %v7077, %v7083
    %vm7087 = vcmp.eq.s32.totalorder %v2861, 1
    %vm7088 = vcmp.eq.s32.totalorder %v2862, 1
    %v7089 = vsel %vm7087, 1, 0
    %v7090 = vsel %vm7088, 1, 0
    %v7091 = vcvt.s32.f32 %v7089
    %v7092 = vcvt.s32.f32 %v7090
    %7094 = vset.pattern.permute.xlu0 0
    %7095 = vperm.xlu0 %7094, %v7091
    %v7096 = vpop.permute.xlu0 %7095
    %7099 = vset.pattern.permute.xlu0 0
    %7100 = vperm.xlu0 %7099, %v7092
    %v7101 = vpop.permute.xlu0 %7100
    %v7103 = vmul.f32 %v7085, %v7096
    %v7104 = vmul.f32 %v7086, %v7101
    %v7105 = vsel %vm312, %v7103, 0.0
    %v7106 = vrot.slane %v7105, 4
    %v7107 = vadd.f32 %v7105, %v7106
    %v7108 = vrot.slane %v7107, 2
    %v7109 = vadd.f32 %v7107, %v7108
    %v7110 = vrot.slane %v7109, 1
    %v7111 = vadd.f32 %v7109, %v7110
    %v7112 = vsel %vm312, %v7104, 0.0
    %v7113 = vrot.slane %v7112, 4
    %v7114 = vadd.f32 %v7112, %v7113
    %v7115 = vrot.slane %v7114, 2
    %v7116 = vadd.f32 %v7114, %v7115
    %v7117 = vrot.slane %v7116, 1
    %v7118 = vadd.f32 %v7116, %v7117
    %vm7119 = vcmask 7168
    %v7120 = vsel %vm7119, %v7091, 0.0
    %v7121 = vrot.slane %v7120, 4
    %v7122 = vadd.f32 %v7120, %v7121
    %v7123 = vrot.slane %v7122, 2
    %v7124 = vadd.f32 %v7122, %v7123
    %v7125 = vrot.slane %v7124, 1
    %v7126 = vadd.f32 %v7124, %v7125
    %v7127 = vsel %vm7119, %v7092, 0.0
    %v7128 = vrot.slane %v7127, 4
    %v7129 = vadd.f32 %v7127, %v7128
    %v7130 = vrot.slane %v7129, 2
    %v7131 = vadd.f32 %v7129, %v7130
    %v7132 = vrot.slane %v7131, 1
    %v7133 = vadd.f32 %v7131, %v7132
    %v7134 = vmax.f32 %v7126, 1.0
    %v7135 = vmax.f32 %v7133, 1.0
    %7137 = vset.pattern.permute.xlu0 0
    %7138 = vperm.xlu0 %7137, %v7134
    %v7139 = vpop.permute.xlu0 %7138
    %7142 = vset.pattern.permute.xlu0 0
    %7143 = vperm.xlu0 %7142, %v7135
    %v7144 = vpop.permute.xlu0 %7143
    %v7146 = vrcp.pop %v7139
    %v7147 = vmul.f32 %v7111, %v7146
    %v7148 = vrcp.pop %v7144
    %v7149 = vmul.f32 %v7118, %v7148
    %v7150 = vld [vmem:[%s55] sm:$0xff]
    %v7151 = vld [vmem:[%s55 + $0x8] sm:$0xff]
    %v7152 = vld [vmem:[%s55 + $0x10] sm:$0xff]
    %v7153 = vld [vmem:[%s55 + $0x18] sm:$0xff]
    %v7154 = vld [vmem:[%s13] sm:$0x1]
    %v7156 = vlaneseq
    %v7157 = vshrl.u32 %v7156, 7
    %v7158 = vsub.s32 0, %v7157
    %v7159 = vrot.slane %v7154, %v7158
    %vm7163 = vcmask 1041409
    %v7164 = vsel %vm7163, %v7149, %v7147
    %v7165 = vsel %vm312, %v7164, 0
    %7167 = vmatprep.subr.mxu0 0.0
    %7168 = vmatpush1.msra.mxu0 0.0
    %7169 = vmatprep.subr.mxu0 0.0
    %7170 = vmatpush1.msra.mxu0 0.0
    %7171 = vmatprep.subr.mxu0 0.0
    %7172 = vmatpush1.msra.mxu0 0.0
    %7173 = vmatprep.subr.mxu0 0.0
    %7174 = vmatpush1.msra.mxu0 0.0
    %7175 = vmatprep.subr.mxu0 0.0
    %7176 = vmatpush1.msra.mxu0 0.0
    %7177 = vmatprep.subr.mxu0 0.0
    %7178 = vmatpush1.msra.mxu0 0.0
    %7179 = vmatprep.subr.mxu0 0.0
    %7180 = vmatpush1.msra.mxu0 0.0
    %7181 = vmatprep.subr.mxu0 0.0
    %7182 = vmatpush1.msra.mxu0 0.0
    %7183 = vmatprep.subr.mxu0 0.0
    %7184 = vmatpush1.msra.mxu0 0.0
    %7185 = vmatprep.subr.mxu0 0.0
    %7186 = vmatpush1.msra.mxu0 0.0
    %7187 = vmatprep.subr.mxu0 0.0
    %7188 = vmatpush1.msra.mxu0 0.0
    %7189 = vmatprep.subr.mxu0 0.0
    %7190 = vmatpush1.msra.mxu0 0.0
    %7191 = vmatprep.subr.mxu0 0.0
    %7192 = vmatpush1.msra.mxu0 %v7153
    %7193 = vmatprep.subr.mxu0 0.0
    %7194 = vmatpush1.msra.mxu0 %v7152
    %7195 = vmatprep.subr.mxu0 0.0
    %7196 = vmatpush1.msra.mxu0 %v7151
    %7197 = vmatprep.subr.mxu0 0.0
    %7198 = vmatpush1.msra.mxu0 %v7150
    %7199 = vmatprep.subr.mxu0 0.0
    %7200 = vmatpush2.msra.mxu0 0.0
    %7201 = vmatprep.subr.mxu0 0.0
    %7202 = vmatpush2.msra.mxu0 0.0
    %7203 = vmatprep.subr.mxu0 0.0
    %7204 = vmatpush2.msra.mxu0 0.0
    %7205 = vmatprep.subr.mxu0 0.0
    %7206 = vmatpush2.msra.mxu0 0.0
    %7207 = vmatprep.subr.mxu0 0.0
    %7208 = vmatpush2.msra.mxu0 0.0
    %7209 = vmatprep.subr.mxu0 0.0
    %7210 = vmatpush2.msra.mxu0 0.0
    %7211 = vmatprep.subr.mxu0 0.0
    %7212 = vmatpush2.msra.mxu0 0.0
    %7213 = vmatprep.subr.mxu0 0.0
    %7214 = vmatpush2.msra.mxu0 0.0
    %7215 = vmatprep.subr.mxu0 0.0
    %7216 = vmatpush2.msra.mxu0 0.0
    %7217 = vmatprep.subr.mxu0 0.0
    %7218 = vmatpush2.msra.mxu0 0.0
    %7219 = vmatprep.subr.mxu0 0.0
    %7220 = vmatpush2.msra.mxu0 0.0
    %7221 = vmatprep.subr.mxu0 0.0
    %7222 = vmatpush2.msra.mxu0 0.0
    %7223 = vmatprep.subr.mxu0 0.0
    %7224 = vmatpush2.msra.mxu0 0.0
    %7225 = vmatprep.subr.mxu0 0.0
    %7226 = vmatpush2.msra.mxu0 0.0
    %7227 = vmatprep.subr.mxu0 0.0
    %7228 = vmatpush2.msra.mxu0 0.0
    %7229 = vmatprep.subr.mxu0 0.0
    %7230 = vmatpush2.msra.mxu0 0.0
    %7231 = vmatprep.mubr.f32.mxu0 0.0
    %7232 = vmatmul.mubr.f32.gmra.mxu0 %v7165
    %v7233 = vpop.f32.mrf.mxu0
    %v7234 = vadd.f32 %v7159, %v7233
    %v7235 = vpop.f32.mrf.mxu0
    %7236 = vdwg.mxu0
    %vm7237 = vcmask 123904
    %7238 = vst.msk [vmem:[#allocation5] sm:$0x3] %vm7237, %v7234
    // Predicated region
    $region178: #{vit_cls_tree_forward.1} parent=1 // pred_check
      _
    $region179: #{vit_cls_tree_forward.1} parent=1 // pred_check_branch
      %7240 = sbr.rel (0) target = $region181
    $region180: #{vit_cls_tree_forward.1} parent=1 // pred_region
      %s7242 = ssub.s32 32, 32
      %7243 = vsyncadd [#allocation4], %s7242
      %s7245 = sshll.u32 [#allocation5], 4
      %s7246 = int_to_ptr.vmem [resolvable:$true] %s7245
      %7248 = dma.vmem_to_hbm [thread:$0]  %s7246, 32, %s87, [#allocation4]
    $region181: #{vit_cls_tree_forward.1} parent=1 // pred_fallthru
      _
    // Predicated region
    $region182: #{vit_cls_tree_forward.1} parent=1 // pred_check
      _
    $region183: #{vit_cls_tree_forward.1} parent=1 // pred_check_branch
      %7250 = sbr.rel (0) target = $region185
    $region184: #{vit_cls_tree_forward.1} parent=1 // pred_region
      %7251 = dma.done [#allocation4], 32
    $region185: #{vit_cls_tree_forward.1} parent=1 // pred_fallthru
      _
    %7252 = vsyncpa [#allocation3], 1
    %7253 = vsyncpa [#allocation4], 1

</llo_original>
